<compile_context>
chip_gen: v7x
topology: tpu7x:2x2x1
jax: 0.10.0
libtpu: 0.0.40
codegen_flags: <defaults>
</compile_context>

<pallas_src>
import functools
import math

import jax
import jax.numpy as jnp
from jax.experimental import pallas as pl
from jax.experimental.pallas import tpu as pltpu

D_MODEL = 512               # in_dim
HEADS = 4
D_K = D_MODEL // HEADS      # 128 -> every head slice is 128-lane aligned
D_FF = 1024                 # mlp_dim
LN_EPS = 1e-5               # nn.LayerNorm default


# ------------------------------ fused kernel --------------------------------

def _layer_norm(v, g, b):
    mu = jnp.mean(v, axis=-1, keepdims=True)
    var = jnp.mean(jnp.square(v - mu), axis=-1, keepdims=True)
    return (v - mu) * jax.lax.rsqrt(var + LN_EPS) * g + b


def encoder_block_kernel(x_ref, g1_ref, be1_ref, wqkv_ref, bqkv_ref,
                         wo_ref, bo_ref, g2_ref, be2_ref,
                         w1_ref, bf1_ref, w2_ref, bf2_ref,
                         o_ref, ctx_ref, *, seqs, seq_len, heads, d_k):
    f32 = jnp.float32
    bf16 = jnp.bfloat16

    # [Bb, T, D] -> [Bb*T, D] (lane dim untouched; T is a multiple of 8)
    x = x_ref[...].reshape(seqs * seq_len, -1)
    d_model = x.shape[-1]

    # ---- sublayer 1: LN1 -> MHSA -> out-proj + residual ---------------------
    xn = _layer_norm(x, g1_ref[...], be1_ref[...])

    # fused QKV projection: [M, D] x [D, 3D]   (bf16 MXU, f32 accumulate)
    # 1/sqrt(d_k) is already folded into the Q third of wqkv / bqkv.
    qkv = jnp.dot(xn.astype(bf16), wqkv_ref[...],
                  preferred_element_type=f32) + bqkv_ref[...]        # [M, 3D]

    # Attention per sequence / per head, context written straight into VMEM
    # scratch (lane-dense 128-wide column slices, 8-aligned row slices).
    # TODO(synk): for very large Bb*heads, switch to lax.fori_loop over a
    # scratch to bound compile time / live ranges instead of a static unroll.
    for b in range(seqs):
        r0 = b * seq_len
        r1 = r0 + seq_len
        for h in range(heads):
            c0 = h * d_k
            q_h = qkv[r0:r1, c0:c0 + d_k].astype(bf16)
            k_h = qkv[r0:r1, d_model + c0:d_model + c0 + d_k].astype(bf16)
            v_h = qkv[r0:r1, 2 * d_model + c0:2 * d_model + c0 + d_k].astype(bf16)
            s = jax.lax.dot_general(q_h, k_h, (((1,), (1,)), ((), ())),
                                    preferred_element_type=f32)       # [T, T]
            m = jnp.max(s, axis=-1, keepdims=True)
            p = jnp.exp(s - m)
            p = p * pl.reciprocal(jnp.sum(p, axis=-1, keepdims=True),
                                  approx=True)
            ctx_ref[r0:r1, c0:c0 + d_k] = jnp.dot(
                p.astype(bf16), v_h, preferred_element_type=f32)

    ctx = ctx_ref[...]                                                # [M, D]
    y = (jnp.dot(ctx.astype(bf16), wo_ref[...],
                 preferred_element_type=f32) + bo_ref[...] + x)       # [M, D]

    # ---- sublayer 2: LN2 -> FC1 -> GELU -> FC2 + residual -------------------
    yn = _layer_norm(y, g2_ref[...], be2_ref[...])
    h1 = jnp.dot(yn.astype(bf16), w1_ref[...],
                 preferred_element_type=f32) + bf1_ref[...]           # [M, F]
    # GELU (tanh form, f32 VPU/EUP).
    # TODO(synk): switch to exact erf GELU if lax.erf lowering is guaranteed.
    h1 = 0.5 * h1 * (1.0 + jnp.tanh(0.7978845608028654
                                    * (h1 + 0.044715 * h1 * h1 * h1)))
    out = (jnp.dot(h1.astype(bf16), w2_ref[...],
                   preferred_element_type=f32) + bf2_ref[...] + y)    # [M, D]

    o_ref[...] = out.reshape(seqs, seq_len, d_model).astype(o_ref.dtype)


# ------------------------------ kernel wrapper -------------------------------

@functools.partial(jax.jit, static_argnames=("block_seqs",))
def encoder_block_pallas(kp, x, block_seqs=None):
    B, T, D = x.shape

    if block_seqs is None:
        # Fatten MXU rows (target ~256) while keeping B % Bb == 0 and, when
        # possible, >= 2 grid steps so "parallel" can shard across v7x's 2 TCs.
        bb = max(1, min(B, max(1, 256 // T)))
        while bb > 1 and (B % bb != 0 or B // bb < 2):
            bb -= 1
        block_seqs = bb

    num_steps = B // block_seqs

    def full(a):
        # whole-array block, constant index -> DMA'd to VMEM once, kept
        # resident across all grid steps.
        # TODO(synk): pipeline_mode=pl.Buffered(1) would halve the weight
        # double-buffer VMEM; left at default buffering for portability.
        return pl.BlockSpec(a.shape, lambda b, _nd=a.ndim: (0,) * _nd)

    # ---- cost estimate (advisory scheduling hint) ----------------------------
    M = B * T
    flops = (2 * M * D * (3 * D)            # QKV
             + 2 * B * HEADS * T * T * D_K * 2   # scores + context
             + 2 * M * D * D                # out proj
             + 2 * M * D * D_FF * 2)        # fc1 + fc2
    transcendentals = B * HEADS * T * T + M * D_FF   # softmax exp + gelu tanh
    weight_bytes = sum(int(v.size) * v.dtype.itemsize for v in kp.values())
    bytes_accessed = 2 * M * D * 4 + weight_bytes

    kern = functools.partial(encoder_block_kernel,
                             seqs=block_seqs, seq_len=T, heads=HEADS, d_k=D_K)
    return pl.pallas_call(
        kern,
        out_shape=jax.ShapeDtypeStruct((B, T, D), jnp.float32),
        grid=(num_steps,),
        in_specs=[
            pl.BlockSpec((block_seqs, T, D), lambda b: (b, 0, 0)),   # x
            full(kp["g1"]), full(kp["be1"]),                  # LN1 affine
            full(kp["wqkv"]), full(kp["bqkv"]),               # fused QKV
            full(kp["wo"]), full(kp["bo"]),                   # attn out proj
            full(kp["g2"]), full(kp["be2"]),                  # LN2 affine
            full(kp["w1"]), full(kp["bf1"]),                  # MLP fc1
            full(kp["w2"]), full(kp["bf2"]),                  # MLP fc2
        ],
        out_specs=pl.BlockSpec((block_seqs, T, D), lambda b: (b, 0, 0)),
        scratch_shapes=[pltpu.VMEM((block_seqs * T, D), jnp.float32)],
        compiler_params=pltpu.CompilerParams(
            dimension_semantics=("parallel",),
            vmem_limit_bytes=48 * 1024 * 1024,   # headroom on v7x's 64 MiB
        ),
        cost_estimate=pl.CostEstimate(flops=int(flops),
                                      transcendentals=int(transcendentals),
                                      bytes_accessed=int(bytes_accessed)),
    )(x, kp["g1"], kp["be1"], kp["wqkv"], kp["bqkv"], kp["wo"], kp["bo"],
      kp["g2"], kp["be2"], kp["w1"], kp["bf1"], kp["w2"], kp["bf2"])


# --------------------------------- parameters --------------------------------

def init_params(key):
    def rnd(k, shape, scale=0.02):
        return jax.random.normal(k, shape, jnp.float32) * scale

    ks = jax.random.split(key, 16)
    return {
        # SelfAttention (LinearGeneral weights flattened to [D_in, D_out])
        "wq": rnd(ks[0], (D_MODEL, D_MODEL)), "bq": rnd(ks[3], (D_MODEL,)),
        "wk": rnd(ks[1], (D_MODEL, D_MODEL)), "bk": rnd(ks[4], (D_MODEL,)),
        "wv": rnd(ks[2], (D_MODEL, D_MODEL)), "bv": rnd(ks[5], (D_MODEL,)),
        "wo": rnd(ks[6], (D_MODEL, D_MODEL)), "bo": rnd(ks[7], (D_MODEL,)),
        # MlpBlock
        "w1": rnd(ks[8], (D_MODEL, D_FF)),  "bf1": rnd(ks[9], (D_FF,)),
        "w2": rnd(ks[10], (D_FF, D_MODEL)), "bf2": rnd(ks[11], (D_MODEL,)),
        # LayerNorms
        "g1": 1.0 + rnd(ks[12], (D_MODEL,)), "be1": rnd(ks[13], (D_MODEL,)),
        "g2": 1.0 + rnd(ks[14], (D_MODEL,)), "be2": rnd(ks[15], (D_MODEL,)),
    }


def pack_kernel_params(p):
    """Pack params for the fused kernel.

    bf16 MXU weights, fused QKV with 1/sqrt(d_k) folded into the Q slice,
    f32 [1, N] biases (added after f32 accumulation).
    """
    bf16 = jnp.bfloat16
    inv_scale = 1.0 / math.sqrt(D_K)
    wq_s = p["wq"] * inv_scale
    bq_s = p["bq"] * inv_scale
    return {
        "wqkv": jnp.concatenate([wq_s, p["wk"], p["wv"]], axis=1).astype(bf16),
        "bqkv": jnp.concatenate([bq_s, p["bk"], p["bv"]])[None, :],
        "wo": p["wo"].astype(bf16), "bo": p["bo"][None, :],
        "w1": p["w1"].astype(bf16), "bf1": p["bf1"][None, :],
        "w2": p["w2"].astype(bf16), "bf2": p["bf2"][None, :],
        "g1": p["g1"][None, :], "be1": p["be1"][None, :],
        "g2": p["g2"][None, :], "be2": p["be2"][None, :],
    }


# ------------------------------ pure-JAX reference ---------------------------

def reference_forward(p, x):
    HI = jax.lax.Precision.HIGHEST
    B, T, D = x.shape

    def ln(v, g, b):
        mu = v.mean(-1, keepdims=True)
        var = ((v - mu) ** 2).mean(-1, keepdims=True)
        return (v - mu) / jnp.sqrt(var + LN_EPS) * g + b

    def proj(v, w, b):
        return jnp.einsum("btd,de->bte", v, w, precision=HI) + b

    xn = ln(x, p["g1"], p["be1"])
    q = proj(xn, p["wq"], p["bq"]).reshape(B, T, HEADS, D_K).transpose(0, 2, 1, 3)
    k = proj(xn, p["wk"], p["bk"]).reshape(B, T, HEADS, D_K).transpose(0, 2, 1, 3)
    v = proj(xn, p["wv"], p["bv"]).reshape(B, T, HEADS, D_K).transpose(0, 2, 1, 3)
    scores = jnp.einsum("bhtd,bhsd->bhts", q, k, precision=HI) / math.sqrt(D_K)
    attn = jax.nn.softmax(scores, axis=-1)
    ctx = jnp.einsum("bhts,bhsd->bhtd", attn, v, precision=HI)
    ctx = ctx.transpose(0, 2, 1, 3).reshape(B, T, D)
    y = x + proj(ctx, p["wo"], p["bo"])                      # residual 1
    yn = ln(y, p["g2"], p["be2"])
    h = jax.nn.gelu(jnp.einsum("btd,df->btf", yn, p["w1"], precision=HI) + p["bf1"],
                    approximate=False)
    return y + jnp.einsum("btf,fd->btd", h, p["w2"], precision=HI) + p["bf2"]


# ------------------------------------ main ------------------------------------

if __name__ == "__main__":
    B, T = 4, 16   # small batch / seq; model dims D=512, heads=4, mlp=1024

    key = jax.random.PRNGKey(0)
    kp_key, kx_key = jax.random.split(key)
    params = init_params(kp_key)
    kparams = pack_kernel_params(params)
    x = jax.random.normal(kx_key, (B, T, D_MODEL), jnp.float32)

    out = encoder_block_pallas(kparams, x)
    out = jax.block_until_ready(out)

    ref = reference_forward(params, x)
    assert out.shape == (B, T, D_MODEL)
    max_err = float(jnp.max(jnp.abs(out - ref)))
    if max_err < 5e-2:
        print("KERNEL_OK")
    else:
        print(f"MISMATCH max_abs_err={max_err}")
</pallas_src>

<mosaic_0001>
module attributes {stable_mosaic.version = 11 : i64} {
  func.func @encoder_block_kernel(%arg0: i32, %arg1: memref<2x16x512xf32, #tpu.memory_space<vmem>>, %arg2: memref<1x512xf32, #tpu.memory_space<vmem>>, %arg3: memref<1x512xf32, #tpu.memory_space<vmem>>, %arg4: memref<512x1536xbf16, #tpu.memory_space<vmem>>, %arg5: memref<1x1536xf32, #tpu.memory_space<vmem>>, %arg6: memref<512x512xbf16, #tpu.memory_space<vmem>>, %arg7: memref<1x512xf32, #tpu.memory_space<vmem>>, %arg8: memref<1x512xf32, #tpu.memory_space<vmem>>, %arg9: memref<1x512xf32, #tpu.memory_space<vmem>>, %arg10: memref<512x1024xbf16, #tpu.memory_space<vmem>>, %arg11: memref<1x1024xf32, #tpu.memory_space<vmem>>, %arg12: memref<1024x512xbf16, #tpu.memory_space<vmem>>, %arg13: memref<1x512xf32, #tpu.memory_space<vmem>>, %arg14: memref<2x16x512xf32, #tpu.memory_space<vmem>>, %arg15: memref<32x512xf32, #tpu.memory_space<vmem>>) attributes {dimension_semantics = [#tpu.dimension_semantics<parallel>], iteration_bounds = array<i64: 2>, scalar_prefetch = 0 : i64, scratch_operands = 1 : i64, tpu.core_type = #tpu.core_type<tc>, window_params = [{transform_indices = @transform_0, window_bounds = array<i64: 2, 16, 512>}, {pipeline_mode = #tpu.pipeline_mode<synchronous>, transform_indices = @transform_1, window_bounds = array<i64: 1, 512>}, {pipeline_mode = #tpu.pipeline_mode<synchronous>, transform_indices = @transform_2, window_bounds = array<i64: 1, 512>}, {pipeline_mode = #tpu.pipeline_mode<synchronous>, transform_indices = @transform_3, window_bounds = array<i64: 512, 1536>}, {pipeline_mode = #tpu.pipeline_mode<synchronous>, transform_indices = @transform_4, window_bounds = array<i64: 1, 1536>}, {pipeline_mode = #tpu.pipeline_mode<synchronous>, transform_indices = @transform_5, window_bounds = array<i64: 512, 512>}, {pipeline_mode = #tpu.pipeline_mode<synchronous>, transform_indices = @transform_6, window_bounds = array<i64: 1, 512>}, {pipeline_mode = #tpu.pipeline_mode<synchronous>, transform_indices = @transform_7, window_bounds = array<i64: 1, 512>}, {pipeline_mode = #tpu.pipeline_mode<synchronous>, transform_indices = @transform_8, window_bounds = array<i64: 1, 512>}, {pipeline_mode = #tpu.pipeline_mode<synchronous>, transform_indices = @transform_9, window_bounds = array<i64: 512, 1024>}, {pipeline_mode = #tpu.pipeline_mode<synchronous>, transform_indices = @transform_10, window_bounds = array<i64: 1, 1024>}, {pipeline_mode = #tpu.pipeline_mode<synchronous>, transform_indices = @transform_11, window_bounds = array<i64: 1024, 512>}, {pipeline_mode = #tpu.pipeline_mode<synchronous>, transform_indices = @transform_12, window_bounds = array<i64: 1, 512>}, {transform_indices = @transform_13, window_bounds = array<i64: 2, 16, 512>}]} {
    %c0 = arith.constant 0 : index
    %c0_0 = arith.constant 0 : index
    %c0_1 = arith.constant 0 : index
    %0 = vector.load %arg1[%c0, %c0_0, %c0_1] : memref<2x16x512xf32, #tpu.memory_space<vmem>>, vector<2x16x512xf32>
    %1 = vector.shape_cast %0 : vector<2x16x512xf32> to vector<32x512xf32>
    %c0_2 = arith.constant 0 : index
    %c0_3 = arith.constant 0 : index
    %2 = vector.load %arg2[%c0_2, %c0_3] : memref<1x512xf32, #tpu.memory_space<vmem>>, vector<1x512xf32>
    %c0_4 = arith.constant 0 : index
    %c0_5 = arith.constant 0 : index
    %3 = vector.load %arg3[%c0_4, %c0_5] : memref<1x512xf32, #tpu.memory_space<vmem>>, vector<1x512xf32>
    %cst = arith.constant dense<0.000000e+00> : vector<32xf32>
    %4 = vector.multi_reduction <add>, %1, %cst [1] : vector<32x512xf32> to vector<32xf32>
    %5 = vector.shape_cast %4 : vector<32xf32> to vector<32x1xf32>
    %cst_6 = arith.constant 5.120000e+02 : f32
    %6 = vector.broadcast %cst_6 : f32 to vector<32x1xf32>
    %7 = arith.divf %5, %6 : vector<32x1xf32>
    %8 = vector.broadcast %7 : vector<32x1xf32> to vector<32x512xf32>
    %9 = arith.subf %1, %8 : vector<32x512xf32>
    %10 = arith.mulf %9, %9 : vector<32x512xf32>
    %cst_7 = arith.constant dense<0.000000e+00> : vector<32xf32>
    %11 = vector.multi_reduction <add>, %10, %cst_7 [1] : vector<32x512xf32> to vector<32xf32>
    %12 = vector.shape_cast %11 : vector<32xf32> to vector<32x1xf32>
    %cst_8 = arith.constant 5.120000e+02 : f32
    %13 = vector.broadcast %cst_8 : f32 to vector<32x1xf32>
    %14 = arith.divf %12, %13 : vector<32x1xf32>
    %15 = vector.broadcast %7 : vector<32x1xf32> to vector<32x512xf32>
    %16 = arith.subf %1, %15 : vector<32x512xf32>
    %cst_9 = arith.constant 9.99999974E-6 : f32
    %17 = vector.broadcast %cst_9 : f32 to vector<32x1xf32>
    %18 = arith.addf %14, %17 : vector<32x1xf32>
    %19 = math.rsqrt %18 : vector<32x1xf32>
    %20 = vector.broadcast %19 : vector<32x1xf32> to vector<32x512xf32>
    %21 = arith.mulf %16, %20 : vector<32x512xf32>
    %22 = vector.broadcast %2 : vector<1x512xf32> to vector<32x512xf32>
    %23 = arith.mulf %21, %22 : vector<32x512xf32>
    %24 = vector.broadcast %3 : vector<1x512xf32> to vector<32x512xf32>
    %25 = arith.addf %23, %24 : vector<32x512xf32>
    %26 = arith.truncf %25 : vector<32x512xf32> to vector<32x512xbf16>
    %c0_10 = arith.constant 0 : index
    %c0_11 = arith.constant 0 : index
    %27 = vector.load %arg4[%c0_10, %c0_11] : memref<512x1536xbf16, #tpu.memory_space<vmem>>, vector<512x1536xbf16>
    %cst_12 = arith.constant dense<0.000000e+00> : vector<32x1536xf32>
    %28 = tpu.matmul %26, %27, %cst_12 {dimension_numbers = #tpu.dot_dimension_numbers<[1], [0], [0], [1], [0, 0, 1, 1], [], []>} : vector<32x512xbf16>, vector<512x1536xbf16>, vector<32x1536xf32> -> vector<32x1536xf32>
    %c0_13 = arith.constant 0 : index
    %c0_14 = arith.constant 0 : index
    %29 = vector.load %arg5[%c0_13, %c0_14] : memref<1x1536xf32, #tpu.memory_space<vmem>>, vector<1x1536xf32>
    %30 = vector.broadcast %29 : vector<1x1536xf32> to vector<32x1536xf32>
    %31 = arith.addf %28, %30 : vector<32x1536xf32>
    %32 = vector.extract_strided_slice %31 {offsets = [0, 0], sizes = [16, 128], strides = [1, 1]} : vector<32x1536xf32> to vector<16x128xf32>
    %33 = arith.truncf %32 : vector<16x128xf32> to vector<16x128xbf16>
    %34 = vector.extract_strided_slice %31 {offsets = [0, 512], sizes = [16, 128], strides = [1, 1]} : vector<32x1536xf32> to vector<16x128xf32>
    %35 = arith.truncf %34 : vector<16x128xf32> to vector<16x128xbf16>
    %36 = vector.extract_strided_slice %31 {offsets = [0, 1024], sizes = [16, 128], strides = [1, 1]} : vector<32x1536xf32> to vector<16x128xf32>
    %37 = arith.truncf %36 : vector<16x128xf32> to vector<16x128xbf16>
    %cst_15 = arith.constant dense<0.000000e+00> : vector<16x16xf32>
    %38 = tpu.matmul %33, %35, %cst_15 {dimension_numbers = #tpu.dot_dimension_numbers<[1], [1], [0], [0], [0, 0, 1, 0], [], []>} : vector<16x128xbf16>, vector<16x128xbf16>, vector<16x16xf32> -> vector<16x16xf32>
    %cst_16 = arith.constant dense<0xFF800000> : vector<16xf32>
    %39 = vector.multi_reduction <maximumf>, %38, %cst_16 [1] : vector<16x16xf32> to vector<16xf32>
    %40 = vector.shape_cast %39 : vector<16xf32> to vector<16x1xf32>
    %41 = vector.broadcast %40 : vector<16x1xf32> to vector<16x16xf32>
    %42 = arith.subf %38, %41 : vector<16x16xf32>
    %43 = math.exp %42 : vector<16x16xf32>
    %cst_17 = arith.constant dense<0.000000e+00> : vector<16xf32>
    %44 = vector.multi_reduction <add>, %43, %cst_17 [1] : vector<16x16xf32> to vector<16xf32>
    %45 = vector.shape_cast %44 : vector<16xf32> to vector<16x1xf32>
    %46 = tpu.reciprocal %45 {approx = true} : vector<16x1xf32> -> vector<16x1xf32>
    %47 = vector.broadcast %46 : vector<16x1xf32> to vector<16x16xf32>
    %48 = arith.mulf %43, %47 : vector<16x16xf32>
    %49 = arith.truncf %48 : vector<16x16xf32> to vector<16x16xbf16>
    %cst_18 = arith.constant dense<0.000000e+00> : vector<16x128xf32>
    %50 = tpu.matmul %49, %37, %cst_18 {dimension_numbers = #tpu.dot_dimension_numbers<[1], [0], [0], [1], [0, 0, 1, 1], [], []>} : vector<16x16xbf16>, vector<16x128xbf16>, vector<16x128xf32> -> vector<16x128xf32>
    %c0_19 = arith.constant 0 : index
    %c0_20 = arith.constant 0 : index
    %51 = vector.load %arg15[%c0_19, %c0_20] : memref<32x512xf32, #tpu.memory_space<vmem>>, vector<16x128xf32>
    tpu.vector_store %arg15[%c0_19, %c0_20], %50 {strides = array<i32>} : memref<32x512xf32, #tpu.memory_space<vmem>>, vector<16x128xf32>,
    %52 = vector.extract_strided_slice %31 {offsets = [0, 128], sizes = [16, 128], strides = [1, 1]} : vector<32x1536xf32> to vector<16x128xf32>
    %53 = arith.truncf %52 : vector<16x128xf32> to vector<16x128xbf16>
    %54 = vector.extract_strided_slice %31 {offsets = [0, 640], sizes = [16, 128], strides = [1, 1]} : vector<32x1536xf32> to vector<16x128xf32>
    %55 = arith.truncf %54 : vector<16x128xf32> to vector<16x128xbf16>
    %56 = vector.extract_strided_slice %31 {offsets = [0, 1152], sizes = [16, 128], strides = [1, 1]} : vector<32x1536xf32> to vector<16x128xf32>
    %57 = arith.truncf %56 : vector<16x128xf32> to vector<16x128xbf16>
    %cst_21 = arith.constant dense<0.000000e+00> : vector<16x16xf32>
    %58 = tpu.matmul %53, %55, %cst_21 {dimension_numbers = #tpu.dot_dimension_numbers<[1], [1], [0], [0], [0, 0, 1, 0], [], []>} : vector<16x128xbf16>, vector<16x128xbf16>, vector<16x16xf32> -> vector<16x16xf32>
    %cst_22 = arith.constant dense<0xFF800000> : vector<16xf32>
    %59 = vector.multi_reduction <maximumf>, %58, %cst_22 [1] : vector<16x16xf32> to vector<16xf32>
    %60 = vector.shape_cast %59 : vector<16xf32> to vector<16x1xf32>
    %61 = vector.broadcast %60 : vector<16x1xf32> to vector<16x16xf32>
    %62 = arith.subf %58, %61 : vector<16x16xf32>
    %63 = math.exp %62 : vector<16x16xf32>
    %cst_23 = arith.constant dense<0.000000e+00> : vector<16xf32>
    %64 = vector.multi_reduction <add>, %63, %cst_23 [1] : vector<16x16xf32> to vector<16xf32>
    %65 = vector.shape_cast %64 : vector<16xf32> to vector<16x1xf32>
    %66 = tpu.reciprocal %65 {approx = true} : vector<16x1xf32> -> vector<16x1xf32>
    %67 = vector.broadcast %66 : vector<16x1xf32> to vector<16x16xf32>
    %68 = arith.mulf %63, %67 : vector<16x16xf32>
    %69 = arith.truncf %68 : vector<16x16xf32> to vector<16x16xbf16>
    %cst_24 = arith.constant dense<0.000000e+00> : vector<16x128xf32>
    %70 = tpu.matmul %69, %57, %cst_24 {dimension_numbers = #tpu.dot_dimension_numbers<[1], [0], [0], [1], [0, 0, 1, 1], [], []>} : vector<16x16xbf16>, vector<16x128xbf16>, vector<16x128xf32> -> vector<16x128xf32>
    %c0_25 = arith.constant 0 : index
    %c128 = arith.constant 128 : index
    %71 = vector.load %arg15[%c0_25, %c128] : memref<32x512xf32, #tpu.memory_space<vmem>>, vector<16x128xf32>
    tpu.vector_store %arg15[%c0_25, %c128], %70 {strides = array<i32>} : memref<32x512xf32, #tpu.memory_space<vmem>>, vector<16x128xf32>,
    %72 = vector.extract_strided_slice %31 {offsets = [0, 256], sizes = [16, 128], strides = [1, 1]} : vector<32x1536xf32> to vector<16x128xf32>
    %73 = arith.truncf %72 : vector<16x128xf32> to vector<16x128xbf16>
    %74 = vector.extract_strided_slice %31 {offsets = [0, 768], sizes = [16, 128], strides = [1, 1]} : vector<32x1536xf32> to vector<16x128xf32>
    %75 = arith.truncf %74 : vector<16x128xf32> to vector<16x128xbf16>
    %76 = vector.extract_strided_slice %31 {offsets = [0, 1280], sizes = [16, 128], strides = [1, 1]} : vector<32x1536xf32> to vector<16x128xf32>
    %77 = arith.truncf %76 : vector<16x128xf32> to vector<16x128xbf16>
    %cst_26 = arith.constant dense<0.000000e+00> : vector<16x16xf32>
    %78 = tpu.matmul %73, %75, %cst_26 {dimension_numbers = #tpu.dot_dimension_numbers<[1], [1], [0], [0], [0, 0, 1, 0], [], []>} : vector<16x128xbf16>, vector<16x128xbf16>, vector<16x16xf32> -> vector<16x16xf32>
    %cst_27 = arith.constant dense<0xFF800000> : vector<16xf32>
    %79 = vector.multi_reduction <maximumf>, %78, %cst_27 [1] : vector<16x16xf32> to vector<16xf32>
    %80 = vector.shape_cast %79 : vector<16xf32> to vector<16x1xf32>
    %81 = vector.broadcast %80 : vector<16x1xf32> to vector<16x16xf32>
    %82 = arith.subf %78, %81 : vector<16x16xf32>
    %83 = math.exp %82 : vector<16x16xf32>
    %cst_28 = arith.constant dense<0.000000e+00> : vector<16xf32>
    %84 = vector.multi_reduction <add>, %83, %cst_28 [1] : vector<16x16xf32> to vector<16xf32>
    %85 = vector.shape_cast %84 : vector<16xf32> to vector<16x1xf32>
    %86 = tpu.reciprocal %85 {approx = true} : vector<16x1xf32> -> vector<16x1xf32>
    %87 = vector.broadcast %86 : vector<16x1xf32> to vector<16x16xf32>
    %88 = arith.mulf %83, %87 : vector<16x16xf32>
    %89 = arith.truncf %88 : vector<16x16xf32> to vector<16x16xbf16>
    %cst_29 = arith.constant dense<0.000000e+00> : vector<16x128xf32>
    %90 = tpu.matmul %89, %77, %cst_29 {dimension_numbers = #tpu.dot_dimension_numbers<[1], [0], [0], [1], [0, 0, 1, 1], [], []>} : vector<16x16xbf16>, vector<16x128xbf16>, vector<16x128xf32> -> vector<16x128xf32>
    %c0_30 = arith.constant 0 : index
    %c256 = arith.constant 256 : index
    %91 = vector.load %arg15[%c0_30, %c256] : memref<32x512xf32, #tpu.memory_space<vmem>>, vector<16x128xf32>
    tpu.vector_store %arg15[%c0_30, %c256], %90 {strides = array<i32>} : memref<32x512xf32, #tpu.memory_space<vmem>>, vector<16x128xf32>,
    %92 = vector.extract_strided_slice %31 {offsets = [0, 384], sizes = [16, 128], strides = [1, 1]} : vector<32x1536xf32> to vector<16x128xf32>
    %93 = arith.truncf %92 : vector<16x128xf32> to vector<16x128xbf16>
    %94 = vector.extract_strided_slice %31 {offsets = [0, 896], sizes = [16, 128], strides = [1, 1]} : vector<32x1536xf32> to vector<16x128xf32>
    %95 = arith.truncf %94 : vector<16x128xf32> to vector<16x128xbf16>
    %96 = vector.extract_strided_slice %31 {offsets = [0, 1408], sizes = [16, 128], strides = [1, 1]} : vector<32x1536xf32> to vector<16x128xf32>
    %97 = arith.truncf %96 : vector<16x128xf32> to vector<16x128xbf16>
    %cst_31 = arith.constant dense<0.000000e+00> : vector<16x16xf32>
    %98 = tpu.matmul %93, %95, %cst_31 {dimension_numbers = #tpu.dot_dimension_numbers<[1], [1], [0], [0], [0, 0, 1, 0], [], []>} : vector<16x128xbf16>, vector<16x128xbf16>, vector<16x16xf32> -> vector<16x16xf32>
    %cst_32 = arith.constant dense<0xFF800000> : vector<16xf32>
    %99 = vector.multi_reduction <maximumf>, %98, %cst_32 [1] : vector<16x16xf32> to vector<16xf32>
    %100 = vector.shape_cast %99 : vector<16xf32> to vector<16x1xf32>
    %101 = vector.broadcast %100 : vector<16x1xf32> to vector<16x16xf32>
    %102 = arith.subf %98, %101 : vector<16x16xf32>
    %103 = math.exp %102 : vector<16x16xf32>
    %cst_33 = arith.constant dense<0.000000e+00> : vector<16xf32>
    %104 = vector.multi_reduction <add>, %103, %cst_33 [1] : vector<16x16xf32> to vector<16xf32>
    %105 = vector.shape_cast %104 : vector<16xf32> to vector<16x1xf32>
    %106 = tpu.reciprocal %105 {approx = true} : vector<16x1xf32> -> vector<16x1xf32>
    %107 = vector.broadcast %106 : vector<16x1xf32> to vector<16x16xf32>
    %108 = arith.mulf %103, %107 : vector<16x16xf32>
    %109 = arith.truncf %108 : vector<16x16xf32> to vector<16x16xbf16>
    %cst_34 = arith.constant dense<0.000000e+00> : vector<16x128xf32>
    %110 = tpu.matmul %109, %97, %cst_34 {dimension_numbers = #tpu.dot_dimension_numbers<[1], [0], [0], [1], [0, 0, 1, 1], [], []>} : vector<16x16xbf16>, vector<16x128xbf16>, vector<16x128xf32> -> vector<16x128xf32>
    %c0_35 = arith.constant 0 : index
    %c384 = arith.constant 384 : index
    %111 = vector.load %arg15[%c0_35, %c384] : memref<32x512xf32, #tpu.memory_space<vmem>>, vector<16x128xf32>
    tpu.vector_store %arg15[%c0_35, %c384], %110 {strides = array<i32>} : memref<32x512xf32, #tpu.memory_space<vmem>>, vector<16x128xf32>,
    %112 = vector.extract_strided_slice %31 {offsets = [16, 0], sizes = [16, 128], strides = [1, 1]} : vector<32x1536xf32> to vector<16x128xf32>
    %113 = arith.truncf %112 : vector<16x128xf32> to vector<16x128xbf16>
    %114 = vector.extract_strided_slice %31 {offsets = [16, 512], sizes = [16, 128], strides = [1, 1]} : vector<32x1536xf32> to vector<16x128xf32>
    %115 = arith.truncf %114 : vector<16x128xf32> to vector<16x128xbf16>
    %116 = vector.extract_strided_slice %31 {offsets = [16, 1024], sizes = [16, 128], strides = [1, 1]} : vector<32x1536xf32> to vector<16x128xf32>
    %117 = arith.truncf %116 : vector<16x128xf32> to vector<16x128xbf16>
    %cst_36 = arith.constant dense<0.000000e+00> : vector<16x16xf32>
    %118 = tpu.matmul %113, %115, %cst_36 {dimension_numbers = #tpu.dot_dimension_numbers<[1], [1], [0], [0], [0, 0, 1, 0], [], []>} : vector<16x128xbf16>, vector<16x128xbf16>, vector<16x16xf32> -> vector<16x16xf32>
    %cst_37 = arith.constant dense<0xFF800000> : vector<16xf32>
    %119 = vector.multi_reduction <maximumf>, %118, %cst_37 [1] : vector<16x16xf32> to vector<16xf32>
    %120 = vector.shape_cast %119 : vector<16xf32> to vector<16x1xf32>
    %121 = vector.broadcast %120 : vector<16x1xf32> to vector<16x16xf32>
    %122 = arith.subf %118, %121 : vector<16x16xf32>
    %123 = math.exp %122 : vector<16x16xf32>
    %cst_38 = arith.constant dense<0.000000e+00> : vector<16xf32>
    %124 = vector.multi_reduction <add>, %123, %cst_38 [1] : vector<16x16xf32> to vector<16xf32>
    %125 = vector.shape_cast %124 : vector<16xf32> to vector<16x1xf32>
    %126 = tpu.reciprocal %125 {approx = true} : vector<16x1xf32> -> vector<16x1xf32>
    %127 = vector.broadcast %126 : vector<16x1xf32> to vector<16x16xf32>
    %128 = arith.mulf %123, %127 : vector<16x16xf32>
    %129 = arith.truncf %128 : vector<16x16xf32> to vector<16x16xbf16>
    %cst_39 = arith.constant dense<0.000000e+00> : vector<16x128xf32>
    %130 = tpu.matmul %129, %117, %cst_39 {dimension_numbers = #tpu.dot_dimension_numbers<[1], [0], [0], [1], [0, 0, 1, 1], [], []>} : vector<16x16xbf16>, vector<16x128xbf16>, vector<16x128xf32> -> vector<16x128xf32>
    %c16 = arith.constant 16 : index
    %c0_40 = arith.constant 0 : index
    %131 = vector.load %arg15[%c16, %c0_40] : memref<32x512xf32, #tpu.memory_space<vmem>>, vector<16x128xf32>
    tpu.vector_store %arg15[%c16, %c0_40], %130 {strides = array<i32>} : memref<32x512xf32, #tpu.memory_space<vmem>>, vector<16x128xf32>,
    %132 = vector.extract_strided_slice %31 {offsets = [16, 128], sizes = [16, 128], strides = [1, 1]} : vector<32x1536xf32> to vector<16x128xf32>
    %133 = arith.truncf %132 : vector<16x128xf32> to vector<16x128xbf16>
    %134 = vector.extract_strided_slice %31 {offsets = [16, 640], sizes = [16, 128], strides = [1, 1]} : vector<32x1536xf32> to vector<16x128xf32>
    %135 = arith.truncf %134 : vector<16x128xf32> to vector<16x128xbf16>
    %136 = vector.extract_strided_slice %31 {offsets = [16, 1152], sizes = [16, 128], strides = [1, 1]} : vector<32x1536xf32> to vector<16x128xf32>
    %137 = arith.truncf %136 : vector<16x128xf32> to vector<16x128xbf16>
    %cst_41 = arith.constant dense<0.000000e+00> : vector<16x16xf32>
    %138 = tpu.matmul %133, %135, %cst_41 {dimension_numbers = #tpu.dot_dimension_numbers<[1], [1], [0], [0], [0, 0, 1, 0], [], []>} : vector<16x128xbf16>, vector<16x128xbf16>, vector<16x16xf32> -> vector<16x16xf32>
    %cst_42 = arith.constant dense<0xFF800000> : vector<16xf32>
    %139 = vector.multi_reduction <maximumf>, %138, %cst_42 [1] : vector<16x16xf32> to vector<16xf32>
    %140 = vector.shape_cast %139 : vector<16xf32> to vector<16x1xf32>
    %141 = vector.broadcast %140 : vector<16x1xf32> to vector<16x16xf32>
    %142 = arith.subf %138, %141 : vector<16x16xf32>
    %143 = math.exp %142 : vector<16x16xf32>
    %cst_43 = arith.constant dense<0.000000e+00> : vector<16xf32>
    %144 = vector.multi_reduction <add>, %143, %cst_43 [1] : vector<16x16xf32> to vector<16xf32>
    %145 = vector.shape_cast %144 : vector<16xf32> to vector<16x1xf32>
    %146 = tpu.reciprocal %145 {approx = true} : vector<16x1xf32> -> vector<16x1xf32>
    %147 = vector.broadcast %146 : vector<16x1xf32> to vector<16x16xf32>
    %148 = arith.mulf %143, %147 : vector<16x16xf32>
    %149 = arith.truncf %148 : vector<16x16xf32> to vector<16x16xbf16>
    %cst_44 = arith.constant dense<0.000000e+00> : vector<16x128xf32>
    %150 = tpu.matmul %149, %137, %cst_44 {dimension_numbers = #tpu.dot_dimension_numbers<[1], [0], [0], [1], [0, 0, 1, 1], [], []>} : vector<16x16xbf16>, vector<16x128xbf16>, vector<16x128xf32> -> vector<16x128xf32>
    %c16_45 = arith.constant 16 : index
    %c128_46 = arith.constant 128 : index
    %151 = vector.load %arg15[%c16_45, %c128_46] : memref<32x512xf32, #tpu.memory_space<vmem>>, vector<16x128xf32>
    tpu.vector_store %arg15[%c16_45, %c128_46], %150 {strides = array<i32>} : memref<32x512xf32, #tpu.memory_space<vmem>>, vector<16x128xf32>,
    %152 = vector.extract_strided_slice %31 {offsets = [16, 256], sizes = [16, 128], strides = [1, 1]} : vector<32x1536xf32> to vector<16x128xf32>
    %153 = arith.truncf %152 : vector<16x128xf32> to vector<16x128xbf16>
    %154 = vector.extract_strided_slice %31 {offsets = [16, 768], sizes = [16, 128], strides = [1, 1]} : vector<32x1536xf32> to vector<16x128xf32>
    %155 = arith.truncf %154 : vector<16x128xf32> to vector<16x128xbf16>
    %156 = vector.extract_strided_slice %31 {offsets = [16, 1280], sizes = [16, 128], strides = [1, 1]} : vector<32x1536xf32> to vector<16x128xf32>
    %157 = arith.truncf %156 : vector<16x128xf32> to vector<16x128xbf16>
    %cst_47 = arith.constant dense<0.000000e+00> : vector<16x16xf32>
    %158 = tpu.matmul %153, %155, %cst_47 {dimension_numbers = #tpu.dot_dimension_numbers<[1], [1], [0], [0], [0, 0, 1, 0], [], []>} : vector<16x128xbf16>, vector<16x128xbf16>, vector<16x16xf32> -> vector<16x16xf32>
    %cst_48 = arith.constant dense<0xFF800000> : vector<16xf32>
    %159 = vector.multi_reduction <maximumf>, %158, %cst_48 [1] : vector<16x16xf32> to vector<16xf32>
    %160 = vector.shape_cast %159 : vector<16xf32> to vector<16x1xf32>
    %161 = vector.broadcast %160 : vector<16x1xf32> to vector<16x16xf32>
    %162 = arith.subf %158, %161 : vector<16x16xf32>
    %163 = math.exp %162 : vector<16x16xf32>
    %cst_49 = arith.constant dense<0.000000e+00> : vector<16xf32>
    %164 = vector.multi_reduction <add>, %163, %cst_49 [1] : vector<16x16xf32> to vector<16xf32>
    %165 = vector.shape_cast %164 : vector<16xf32> to vector<16x1xf32>
    %166 = tpu.reciprocal %165 {approx = true} : vector<16x1xf32> -> vector<16x1xf32>
    %167 = vector.broadcast %166 : vector<16x1xf32> to vector<16x16xf32>
    %168 = arith.mulf %163, %167 : vector<16x16xf32>
    %169 = arith.truncf %168 : vector<16x16xf32> to vector<16x16xbf16>
    %cst_50 = arith.constant dense<0.000000e+00> : vector<16x128xf32>
    %170 = tpu.matmul %169, %157, %cst_50 {dimension_numbers = #tpu.dot_dimension_numbers<[1], [0], [0], [1], [0, 0, 1, 1], [], []>} : vector<16x16xbf16>, vector<16x128xbf16>, vector<16x128xf32> -> vector<16x128xf32>
    %c16_51 = arith.constant 16 : index
    %c256_52 = arith.constant 256 : index
    %171 = vector.load %arg15[%c16_51, %c256_52] : memref<32x512xf32, #tpu.memory_space<vmem>>, vector<16x128xf32>
    tpu.vector_store %arg15[%c16_51, %c256_52], %170 {strides = array<i32>} : memref<32x512xf32, #tpu.memory_space<vmem>>, vector<16x128xf32>,
    %172 = vector.extract_strided_slice %31 {offsets = [16, 384], sizes = [16, 128], strides = [1, 1]} : vector<32x1536xf32> to vector<16x128xf32>
    %173 = arith.truncf %172 : vector<16x128xf32> to vector<16x128xbf16>
    %174 = vector.extract_strided_slice %31 {offsets = [16, 896], sizes = [16, 128], strides = [1, 1]} : vector<32x1536xf32> to vector<16x128xf32>
    %175 = arith.truncf %174 : vector<16x128xf32> to vector<16x128xbf16>
    %176 = vector.extract_strided_slice %31 {offsets = [16, 1408], sizes = [16, 128], strides = [1, 1]} : vector<32x1536xf32> to vector<16x128xf32>
    %177 = arith.truncf %176 : vector<16x128xf32> to vector<16x128xbf16>
    %cst_53 = arith.constant dense<0.000000e+00> : vector<16x16xf32>
    %178 = tpu.matmul %173, %175, %cst_53 {dimension_numbers = #tpu.dot_dimension_numbers<[1], [1], [0], [0], [0, 0, 1, 0], [], []>} : vector<16x128xbf16>, vector<16x128xbf16>, vector<16x16xf32> -> vector<16x16xf32>
    %cst_54 = arith.constant dense<0xFF800000> : vector<16xf32>
    %179 = vector.multi_reduction <maximumf>, %178, %cst_54 [1] : vector<16x16xf32> to vector<16xf32>
    %180 = vector.shape_cast %179 : vector<16xf32> to vector<16x1xf32>
    %181 = vector.broadcast %180 : vector<16x1xf32> to vector<16x16xf32>
    %182 = arith.subf %178, %181 : vector<16x16xf32>
    %183 = math.exp %182 : vector<16x16xf32>
    %cst_55 = arith.constant dense<0.000000e+00> : vector<16xf32>
    %184 = vector.multi_reduction <add>, %183, %cst_55 [1] : vector<16x16xf32> to vector<16xf32>
    %185 = vector.shape_cast %184 : vector<16xf32> to vector<16x1xf32>
    %186 = tpu.reciprocal %185 {approx = true} : vector<16x1xf32> -> vector<16x1xf32>
    %187 = vector.broadcast %186 : vector<16x1xf32> to vector<16x16xf32>
    %188 = arith.mulf %183, %187 : vector<16x16xf32>
    %189 = arith.truncf %188 : vector<16x16xf32> to vector<16x16xbf16>
    %cst_56 = arith.constant dense<0.000000e+00> : vector<16x128xf32>
    %190 = tpu.matmul %189, %177, %cst_56 {dimension_numbers = #tpu.dot_dimension_numbers<[1], [0], [0], [1], [0, 0, 1, 1], [], []>} : vector<16x16xbf16>, vector<16x128xbf16>, vector<16x128xf32> -> vector<16x128xf32>
    %c16_57 = arith.constant 16 : index
    %c384_58 = arith.constant 384 : index
    %191 = vector.load %arg15[%c16_57, %c384_58] : memref<32x512xf32, #tpu.memory_space<vmem>>, vector<16x128xf32>
    tpu.vector_store %arg15[%c16_57, %c384_58], %190 {strides = array<i32>} : memref<32x512xf32, #tpu.memory_space<vmem>>, vector<16x128xf32>,
    %c0_59 = arith.constant 0 : index
    %c0_60 = arith.constant 0 : index
    %192 = vector.load %arg15[%c0_59, %c0_60] : memref<32x512xf32, #tpu.memory_space<vmem>>, vector<32x512xf32>
    %193 = arith.truncf %192 : vector<32x512xf32> to vector<32x512xbf16>
    %c0_61 = arith.constant 0 : index
    %c0_62 = arith.constant 0 : index
    %194 = vector.load %arg6[%c0_61, %c0_62] : memref<512x512xbf16, #tpu.memory_space<vmem>>, vector<512x512xbf16>
    %cst_63 = arith.constant dense<0.000000e+00> : vector<32x512xf32>
    %195 = tpu.matmul %193, %194, %cst_63 {dimension_numbers = #tpu.dot_dimension_numbers<[1], [0], [0], [1], [0, 0, 1, 1], [], []>} : vector<32x512xbf16>, vector<512x512xbf16>, vector<32x512xf32> -> vector<32x512xf32>
    %c0_64 = arith.constant 0 : index
    %c0_65 = arith.constant 0 : index
    %196 = vector.load %arg7[%c0_64, %c0_65] : memref<1x512xf32, #tpu.memory_space<vmem>>, vector<1x512xf32>
    %197 = vector.broadcast %196 : vector<1x512xf32> to vector<32x512xf32>
    %198 = arith.addf %195, %197 : vector<32x512xf32>
    %199 = arith.addf %198, %1 : vector<32x512xf32>
    %c0_66 = arith.constant 0 : index
    %c0_67 = arith.constant 0 : index
    %200 = vector.load %arg8[%c0_66, %c0_67] : memref<1x512xf32, #tpu.memory_space<vmem>>, vector<1x512xf32>
    %c0_68 = arith.constant 0 : index
    %c0_69 = arith.constant 0 : index
    %201 = vector.load %arg9[%c0_68, %c0_69] : memref<1x512xf32, #tpu.memory_space<vmem>>, vector<1x512xf32>
    %cst_70 = arith.constant dense<0.000000e+00> : vector<32xf32>
    %202 = vector.multi_reduction <add>, %199, %cst_70 [1] : vector<32x512xf32> to vector<32xf32>
    %203 = vector.shape_cast %202 : vector<32xf32> to vector<32x1xf32>
    %cst_71 = arith.constant 5.120000e+02 : f32
    %204 = vector.broadcast %cst_71 : f32 to vector<32x1xf32>
    %205 = arith.divf %203, %204 : vector<32x1xf32>
    %206 = vector.broadcast %205 : vector<32x1xf32> to vector<32x512xf32>
    %207 = arith.subf %199, %206 : vector<32x512xf32>
    %208 = arith.mulf %207, %207 : vector<32x512xf32>
    %cst_72 = arith.constant dense<0.000000e+00> : vector<32xf32>
    %209 = vector.multi_reduction <add>, %208, %cst_72 [1] : vector<32x512xf32> to vector<32xf32>
    %210 = vector.shape_cast %209 : vector<32xf32> to vector<32x1xf32>
    %cst_73 = arith.constant 5.120000e+02 : f32
    %211 = vector.broadcast %cst_73 : f32 to vector<32x1xf32>
    %212 = arith.divf %210, %211 : vector<32x1xf32>
    %213 = vector.broadcast %205 : vector<32x1xf32> to vector<32x512xf32>
    %214 = arith.subf %199, %213 : vector<32x512xf32>
    %cst_74 = arith.constant 9.99999974E-6 : f32
    %215 = vector.broadcast %cst_74 : f32 to vector<32x1xf32>
    %216 = arith.addf %212, %215 : vector<32x1xf32>
    %217 = math.rsqrt %216 : vector<32x1xf32>
    %218 = vector.broadcast %217 : vector<32x1xf32> to vector<32x512xf32>
    %219 = arith.mulf %214, %218 : vector<32x512xf32>
    %220 = vector.broadcast %200 : vector<1x512xf32> to vector<32x512xf32>
    %221 = arith.mulf %219, %220 : vector<32x512xf32>
    %222 = vector.broadcast %201 : vector<1x512xf32> to vector<32x512xf32>
    %223 = arith.addf %221, %222 : vector<32x512xf32>
    %224 = arith.truncf %223 : vector<32x512xf32> to vector<32x512xbf16>
    %c0_75 = arith.constant 0 : index
    %c0_76 = arith.constant 0 : index
    %225 = vector.load %arg10[%c0_75, %c0_76] : memref<512x1024xbf16, #tpu.memory_space<vmem>>, vector<512x1024xbf16>
    %cst_77 = arith.constant dense<0.000000e+00> : vector<32x1024xf32>
    %226 = tpu.matmul %224, %225, %cst_77 {dimension_numbers = #tpu.dot_dimension_numbers<[1], [0], [0], [1], [0, 0, 1, 1], [], []>} : vector<32x512xbf16>, vector<512x1024xbf16>, vector<32x1024xf32> -> vector<32x1024xf32>
    %c0_78 = arith.constant 0 : index
    %c0_79 = arith.constant 0 : index
    %227 = vector.load %arg11[%c0_78, %c0_79] : memref<1x1024xf32, #tpu.memory_space<vmem>>, vector<1x1024xf32>
    %228 = vector.broadcast %227 : vector<1x1024xf32> to vector<32x1024xf32>
    %229 = arith.addf %226, %228 : vector<32x1024xf32>
    %cst_80 = arith.constant 5.000000e-01 : f32
    %230 = vector.broadcast %cst_80 : f32 to vector<32x1024xf32>
    %231 = arith.mulf %230, %229 : vector<32x1024xf32>
    %cst_81 = arith.constant 4.471500e-02 : f32
    %232 = vector.broadcast %cst_81 : f32 to vector<32x1024xf32>
    %233 = arith.mulf %232, %229 : vector<32x1024xf32>
    %234 = arith.mulf %233, %229 : vector<32x1024xf32>
    %235 = arith.mulf %234, %229 : vector<32x1024xf32>
    %236 = arith.addf %229, %235 : vector<32x1024xf32>
    %cst_82 = arith.constant 0.797884583 : f32
    %237 = vector.broadcast %cst_82 : f32 to vector<32x1024xf32>
    %238 = arith.mulf %237, %236 : vector<32x1024xf32>
    %239 = math.tanh %238 : vector<32x1024xf32>
    %cst_83 = arith.constant 1.000000e+00 : f32
    %240 = vector.broadcast %cst_83 : f32 to vector<32x1024xf32>
    %241 = arith.addf %240, %239 : vector<32x1024xf32>
    %242 = arith.mulf %231, %241 : vector<32x1024xf32>
    %243 = arith.truncf %242 : vector<32x1024xf32> to vector<32x1024xbf16>
    %c0_84 = arith.constant 0 : index
    %c0_85 = arith.constant 0 : index
    %244 = vector.load %arg12[%c0_84, %c0_85] : memref<1024x512xbf16, #tpu.memory_space<vmem>>, vector<1024x512xbf16>
    %cst_86 = arith.constant dense<0.000000e+00> : vector<32x512xf32>
    %245 = tpu.matmul %243, %244, %cst_86 {dimension_numbers = #tpu.dot_dimension_numbers<[1], [0], [0], [1], [0, 0, 1, 1], [], []>} : vector<32x1024xbf16>, vector<1024x512xbf16>, vector<32x512xf32> -> vector<32x512xf32>
    %c0_87 = arith.constant 0 : index
    %c0_88 = arith.constant 0 : index
    %246 = vector.load %arg13[%c0_87, %c0_88] : memref<1x512xf32, #tpu.memory_space<vmem>>, vector<1x512xf32>
    %247 = vector.broadcast %246 : vector<1x512xf32> to vector<32x512xf32>
    %248 = arith.addf %245, %247 : vector<32x512xf32>
    %249 = arith.addf %248, %199 : vector<32x512xf32>
    %250 = vector.shape_cast %249 : vector<32x512xf32> to vector<2x16x512xf32>
    %c0_89 = arith.constant 0 : index
    %c0_90 = arith.constant 0 : index
    %c0_91 = arith.constant 0 : index
    %251 = vector.load %arg14[%c0_89, %c0_90, %c0_91] : memref<2x16x512xf32, #tpu.memory_space<vmem>>, vector<2x16x512xf32>
    tpu.vector_store %arg14[%c0_89, %c0_90, %c0_91], %250 {strides = array<i32>} : memref<2x16x512xf32, #tpu.memory_space<vmem>>, vector<2x16x512xf32>,
    return
  }
  func.func @transform_0(%arg0: i32) -> (i32, i32, i32) {
    %c0_i32 = arith.constant 0 : i32
    %c0_i32_0 = arith.constant 0 : i32
    %c0_i32_1 = arith.constant 0 : i32
    return %arg0, %c0_i32, %c0_i32_0 : i32, i32, i32
  }
  func.func @transform_1(%arg0: i32) -> (i32, i32) {
    %c0_i32 = arith.constant 0 : i32
    %c0_i32_0 = arith.constant 0 : i32
    %c0_i32_1 = arith.constant 0 : i32
    return %c0_i32, %c0_i32_0 : i32, i32
  }
  func.func @transform_2(%arg0: i32) -> (i32, i32) {
    %c0_i32 = arith.constant 0 : i32
    %c0_i32_0 = arith.constant 0 : i32
    %c0_i32_1 = arith.constant 0 : i32
    return %c0_i32, %c0_i32_0 : i32, i32
  }
  func.func @transform_3(%arg0: i32) -> (i32, i32) {
    %c0_i32 = arith.constant 0 : i32
    %c0_i32_0 = arith.constant 0 : i32
    %c0_i32_1 = arith.constant 0 : i32
    return %c0_i32, %c0_i32_0 : i32, i32
  }
  func.func @transform_4(%arg0: i32) -> (i32, i32) {
    %c0_i32 = arith.constant 0 : i32
    %c0_i32_0 = arith.constant 0 : i32
    %c0_i32_1 = arith.constant 0 : i32
    return %c0_i32, %c0_i32_0 : i32, i32
  }
  func.func @transform_5(%arg0: i32) -> (i32, i32) {
    %c0_i32 = arith.constant 0 : i32
    %c0_i32_0 = arith.constant 0 : i32
    %c0_i32_1 = arith.constant 0 : i32
    return %c0_i32, %c0_i32_0 : i32, i32
  }
  func.func @transform_6(%arg0: i32) -> (i32, i32) {
    %c0_i32 = arith.constant 0 : i32
    %c0_i32_0 = arith.constant 0 : i32
    %c0_i32_1 = arith.constant 0 : i32
    return %c0_i32, %c0_i32_0 : i32, i32
  }
  func.func @transform_7(%arg0: i32) -> (i32, i32) {
    %c0_i32 = arith.constant 0 : i32
    %c0_i32_0 = arith.constant 0 : i32
    %c0_i32_1 = arith.constant 0 : i32
    return %c0_i32, %c0_i32_0 : i32, i32
  }
  func.func @transform_8(%arg0: i32) -> (i32, i32) {
    %c0_i32 = arith.constant 0 : i32
    %c0_i32_0 = arith.constant 0 : i32
    %c0_i32_1 = arith.constant 0 : i32
    return %c0_i32, %c0_i32_0 : i32, i32
  }
  func.func @transform_9(%arg0: i32) -> (i32, i32) {
    %c0_i32 = arith.constant 0 : i32
    %c0_i32_0 = arith.constant 0 : i32
    %c0_i32_1 = arith.constant 0 : i32
    return %c0_i32, %c0_i32_0 : i32, i32
  }
  func.func @transform_10(%arg0: i32) -> (i32, i32) {
    %c0_i32 = arith.constant 0 : i32
    %c0_i32_0 = arith.constant 0 : i32
    %c0_i32_1 = arith.constant 0 : i32
    return %c0_i32, %c0_i32_0 : i32, i32
  }
  func.func @transform_11(%arg0: i32) -> (i32, i32) {
    %c0_i32 = arith.constant 0 : i32
    %c0_i32_0 = arith.constant 0 : i32
    %c0_i32_1 = arith.constant 0 : i32
    return %c0_i32, %c0_i32_0 : i32, i32
  }
  func.func @transform_12(%arg0: i32) -> (i32, i32) {
    %c0_i32 = arith.constant 0 : i32
    %c0_i32_0 = arith.constant 0 : i32
    %c0_i32_1 = arith.constant 0 : i32
    return %c0_i32, %c0_i32_0 : i32, i32
  }
  func.func @transform_13(%arg0: i32) -> (i32, i32, i32) {
    %c0_i32 = arith.constant 0 : i32
    %c0_i32_0 = arith.constant 0 : i32
    %c0_i32_1 = arith.constant 0 : i32
    return %arg0, %c0_i32, %c0_i32_0 : i32, i32, i32
  }
}

</mosaic_0001>

<llo_original>
// kernel: encoder_block_pallas.1
$region0: #{encoder_block_pallas.1}
  #allocation0 [shape = 'u32[]', space=smem, size = 0x4, offset = 0x4, fixed_abs, tag = 'smem constant byte address 0x4 - core index']
  #allocation1 [shape = 'u32[144,128]{1,0:T(1,128)}', space=vmem, size = 0x12000, scoped, tag = 'internal scratch']
  #allocation2 [shape = 'f32[32,512]{1,0:T(8,128)}', space=vmem, size = 0x10000, scoped, tag = 'scratch operand']
  %s0 = inlined_call_operand.hbm [shape: f32[4,16,512], index: 0, kind: input, shape index: {}]
  %s1 = inlined_call_operand.hbm [shape: f32[1,512], index: 1, kind: input, shape index: {}]
  %s2 = inlined_call_operand.hbm [shape: f32[1,512], index: 2, kind: input, shape index: {}]
  %s3 = inlined_call_operand.hbm [shape: bf16[512,1536], index: 3, kind: input, shape index: {}]
  %s4 = inlined_call_operand.hbm [shape: f32[1,1536], index: 4, kind: input, shape index: {}]
  %s5 = inlined_call_operand.hbm [shape: bf16[512,512], index: 5, kind: input, shape index: {}]
  %s6 = inlined_call_operand.hbm [shape: f32[1,512], index: 6, kind: input, shape index: {}]
  %s7 = inlined_call_operand.hbm [shape: f32[1,512], index: 7, kind: input, shape index: {}]
  %s8 = inlined_call_operand.hbm [shape: f32[1,512], index: 8, kind: input, shape index: {}]
  %s9 = inlined_call_operand.hbm [shape: bf16[512,1024], index: 9, kind: input, shape index: {}]
  %s10 = inlined_call_operand.hbm [shape: f32[1,1024], index: 10, kind: input, shape index: {}]
  %s11 = inlined_call_operand.hbm [shape: bf16[1024,512], index: 11, kind: input, shape index: {}]
  %s12 = inlined_call_operand.hbm [shape: f32[1,512], index: 12, kind: input, shape index: {}]
  %s13 = inlined_call_operand.hbm [shape: f32[4,16,512], index: 13, kind: output, shape index: {}]
  %s14 = sld [smem:[#allocation0]]
  $region137: #{encoder_block_pallas.1} parent=0
    _
  %s16 = ssub.s32 1, %s14
  %s17 = scalar_select 0, %s16, %s14
  $region1: #{encoder_block_pallas.1} parent=0
    #allocation3 [shape = 'u8[131072]{0}', space=vmem, size = 0x20000, scoped, tag = 'input window, operand 0']
    #allocation4 [shape = 's32[2]{0}', space=sflag, size = 0x8, scoped, tag = 'scoped memory for encoder_block_pallas.1']
    #allocation5 [shape = 's32[2]{0}', space=sflag, size = 0x8, scoped, tag = 'scoped memory for encoder_block_pallas.1']
    #allocation6 [shape = 'u8[2048]{0}', space=vmem, size = 0x800, scoped, tag = 'input window, operand 1, single buffered']
    #allocation7 [shape = 's32[1]{0}', space=sflag, size = 0x4, scoped, tag = 'scoped memory for encoder_block_pallas.1']
    #allocation8 [shape = 'u8[2048]{0}', space=vmem, size = 0x800, scoped, tag = 'input window, operand 2, single buffered']
    #allocation9 [shape = 'u8[1572864]{0}', space=vmem, size = 0x180000, scoped, tag = 'input window, operand 3, single buffered']
    #allocation10 [shape = 's32[1]{0}', space=sflag, size = 0x4, scoped, tag = 'scoped memory for encoder_block_pallas.1']
    #allocation11 [shape = 'u8[6144]{0}', space=vmem, size = 0x1800, scoped, tag = 'input window, operand 4, single buffered']
    #allocation12 [shape = 'u8[524288]{0}', space=vmem, size = 0x80000, scoped, tag = 'input window, operand 5, single buffered']
    #allocation13 [shape = 's32[1]{0}', space=sflag, size = 0x4, scoped, tag = 'scoped memory for encoder_block_pallas.1']
    #allocation14 [shape = 'u8[2048]{0}', space=vmem, size = 0x800, scoped, tag = 'input window, operand 6, single buffered']
    #allocation15 [shape = 'u8[2048]{0}', space=vmem, size = 0x800, scoped, tag = 'input window, operand 7, single buffered']
    #allocation16 [shape = 's32[1]{0}', space=sflag, size = 0x4, scoped, tag = 'scoped memory for encoder_block_pallas.1']
    #allocation17 [shape = 'u8[2048]{0}', space=vmem, size = 0x800, scoped, tag = 'input window, operand 8, single buffered']
    #allocation18 [shape = 'u8[1048576]{0}', space=vmem, size = 0x100000, scoped, tag = 'input window, operand 9, single buffered']
    #allocation19 [shape = 's32[1]{0}', space=sflag, size = 0x4, scoped, tag = 'scoped memory for encoder_block_pallas.1']
    #allocation20 [shape = 'u8[4096]{0}', space=vmem, size = 0x1000, scoped, tag = 'input window, operand 10, single buffered']
    #allocation21 [shape = 'u8[1048576]{0}', space=vmem, size = 0x100000, scoped, tag = 'input window, operand 11, single buffered']
    #allocation22 [shape = 's32[1]{0}', space=sflag, size = 0x4, scoped, tag = 'scoped memory for encoder_block_pallas.1']
    #allocation23 [shape = 'u8[2048]{0}', space=vmem, size = 0x800, scoped, tag = 'input window, operand 12, single buffered']
    #allocation24 [shape = 'u8[131072]{0}', space=vmem, size = 0x20000, scoped, tag = 'output window, operand 0']
    %18 = vsyncpa [#allocation4], 0
    %s19 = scalar_lea.sflag [#allocation4], 1
    %20 = vsyncpa %s19, 0
    %21 = vsyncpa [#allocation7], 0
    %22 = vsyncpa [#allocation10], 0
    %23 = vsyncpa [#allocation13], 0
    %24 = vsyncpa [#allocation16], 0
    %25 = vsyncpa [#allocation19], 0
    %26 = vsyncpa [#allocation22], 0
    %27 = vsyncpa [#allocation5], 0
    %s28 = scalar_lea.sflag [#allocation5], 1
    %29 = vsyncpa %s28, 0
    loop: start=0, step=1, limit=4
    $region2: #{encoder_block_pallas.1} parent=1 // loop_pre_header
      _
    $region3: #{encoder_block_pallas.1} parent=1 // loop_header
      %s31 = sphi 0, %s35
      %p32 = scmp.ge.s32.totalorder %s31, 4
      %s41 = sphi 0, %s43
      %s44 = sphi 0, %s41
      %s45 = sphi 0, %s44
      %s61 = sphi 0, %s45
      %s65 = sphi 0, %s65
      %s67 = sphi 0, %s65
      %s68 = sphi 0, %s67
      %s82 = sphi 0, %s68
      %s86 = sphi 0, %s86
      %s88 = sphi 0, %s86
      %s89 = sphi 0, %s88
      %s103 = sphi 0, %s89
      %s107 = sphi 0, %s107
      %s109 = sphi 0, %s107
      %s110 = sphi 0, %s109
      %s124 = sphi 0, %s110
      %s128 = sphi 0, %s128
      %s130 = sphi 0, %s128
      %s131 = sphi 0, %s130
      %s145 = sphi 0, %s131
      %s149 = sphi 0, %s149
      %s151 = sphi 0, %s149
      %s152 = sphi 0, %s151
      %s166 = sphi 0, %s152
      %s170 = sphi 0, %s170
      %s172 = sphi 0, %s170
      %s173 = sphi 0, %s172
      %s187 = sphi 0, %s173
      %s191 = sphi 0, %s191
      %s193 = sphi 0, %s191
      %s194 = sphi 0, %s193
      %s208 = sphi 0, %s194
      %s212 = sphi 0, %s212
      %s214 = sphi 0, %s212
      %s215 = sphi 0, %s214
      %s229 = sphi 0, %s215
      %s233 = sphi 0, %s233
      %s235 = sphi 0, %s233
      %s236 = sphi 0, %s235
      %s250 = sphi 0, %s236
      %s254 = sphi 0, %s254
      %s256 = sphi 0, %s254
      %s257 = sphi 0, %s256
      %s271 = sphi 0, %s257
      %s275 = sphi 0, %s275
      %s277 = sphi 0, %s275
      %s278 = sphi 0, %s277
      %s292 = sphi 0, %s278
      %s296 = sphi 0, %s296
      %s298 = sphi 0, %s296
      %s299 = sphi 0, %s298
      %s313 = sphi 0, %s299
      %s319 = sphi 0, %s321
      %s322 = sphi 0, %s319
      %s323 = sphi 0, %s322
      %s339 = sphi 0, %s323
    $region4: #{encoder_block_pallas.1} parent=1 // loop_header_branch
      %34 = sbr.rel (%p32) target = $region8
    $region5: #{encoder_block_pallas.1} parent=1 // loop_body
      %s36 = ssub.s32 %s31, 1
      %s37 = ssub.s32 %s31, 2
      %s38 = sadd.s32 %s31, 1
      %s39 = ssub.s32 %s31, %s38
      %p40 = scmp.eq.s32.totalorder %s39, 0
      %s42 = sadd.s32 %s41, 1
      %s43 = scalar_select %p40, %s41, %s42
      %p46 = pneg %p40
      %p47 = scmp.eq.s32.totalorder %s31, 1
      %p48 = por %p46, %p47
      %p49 = scmp.ne.s32.totalorder %s41, %s44
      %p50 = scmp.eq.s32.totalorder %s31, 0
      %p51 = por %p49, %p50
      %p52 = scmp.ne.s32.totalorder %s41, %s44
      %p53 = scmp.eq.s32.totalorder %s36, 1
      %p54 = por %p52, %p53
      %p55 = scmp.ne.s32.totalorder %s44, %s45
      %p56 = scmp.eq.s32.totalorder %s36, 0
      %p57 = por %p55, %p56
      %p58 = scmp.ne.s32.totalorder %s44, %s45
      %p59 = scmp.eq.s32.totalorder %s37, 1
      %p60 = por %p58, %p59
      %p62 = scmp.ne.s32.totalorder %s45, %s61
      %p63 = scmp.eq.s32.totalorder %s37, 0
      %p64 = por %p62, %p63
      %s66 = sadd.s32 %s65, 1
      %p69 = scmp.eq.s32.totalorder %s31, 1
      %p70 = scmp.ne.s32.totalorder %s65, %s67
      %p71 = scmp.eq.s32.totalorder %s31, 0
      %p72 = por %p70, %p71
      %p73 = scmp.ne.s32.totalorder %s65, %s67
      %p74 = scmp.eq.s32.totalorder %s36, 1
      %p75 = por %p73, %p74
      %p76 = scmp.ne.s32.totalorder %s67, %s68
      %p77 = scmp.eq.s32.totalorder %s36, 0
      %p78 = por %p76, %p77
      %p79 = scmp.ne.s32.totalorder %s67, %s68
      %p80 = scmp.eq.s32.totalorder %s37, 1
      %p81 = por %p79, %p80
      %p83 = scmp.ne.s32.totalorder %s68, %s82
      %p84 = scmp.eq.s32.totalorder %s37, 0
      %p85 = por %p83, %p84
      %s87 = sadd.s32 %s86, 1
      %p90 = scmp.eq.s32.totalorder %s31, 1
      %p91 = scmp.ne.s32.totalorder %s86, %s88
      %p92 = scmp.eq.s32.totalorder %s31, 0
      %p93 = por %p91, %p92
      %p94 = scmp.ne.s32.totalorder %s86, %s88
      %p95 = scmp.eq.s32.totalorder %s36, 1
      %p96 = por %p94, %p95
      %p97 = scmp.ne.s32.totalorder %s88, %s89
      %p98 = scmp.eq.s32.totalorder %s36, 0
      %p99 = por %p97, %p98
      %p100 = scmp.ne.s32.totalorder %s88, %s89
      %p101 = scmp.eq.s32.totalorder %s37, 1
      %p102 = por %p100, %p101
      %p104 = scmp.ne.s32.totalorder %s89, %s103
      %p105 = scmp.eq.s32.totalorder %s37, 0
      %p106 = por %p104, %p105
      %s108 = sadd.s32 %s107, 1
      %p111 = scmp.eq.s32.totalorder %s31, 1
      %p112 = scmp.ne.s32.totalorder %s107, %s109
      %p113 = scmp.eq.s32.totalorder %s31, 0
      %p114 = por %p112, %p113
      %p115 = scmp.ne.s32.totalorder %s107, %s109
      %p116 = scmp.eq.s32.totalorder %s36, 1
      %p117 = por %p115, %p116
      %p118 = scmp.ne.s32.totalorder %s109, %s110
      %p119 = scmp.eq.s32.totalorder %s36, 0
      %p120 = por %p118, %p119
      %p121 = scmp.ne.s32.totalorder %s109, %s110
      %p122 = scmp.eq.s32.totalorder %s37, 1
      %p123 = por %p121, %p122
      %p125 = scmp.ne.s32.totalorder %s110, %s124
      %p126 = scmp.eq.s32.totalorder %s37, 0
      %p127 = por %p125, %p126
      %s129 = sadd.s32 %s128, 1
      %p132 = scmp.eq.s32.totalorder %s31, 1
      %p133 = scmp.ne.s32.totalorder %s128, %s130
      %p134 = scmp.eq.s32.totalorder %s31, 0
      %p135 = por %p133, %p134
      %p136 = scmp.ne.s32.totalorder %s128, %s130
      %p137 = scmp.eq.s32.totalorder %s36, 1
      %p138 = por %p136, %p137
      %p139 = scmp.ne.s32.totalorder %s130, %s131
      %p140 = scmp.eq.s32.totalorder %s36, 0
      %p141 = por %p139, %p140
      %p142 = scmp.ne.s32.totalorder %s130, %s131
      %p143 = scmp.eq.s32.totalorder %s37, 1
      %p144 = por %p142, %p143
      %p146 = scmp.ne.s32.totalorder %s131, %s145
      %p147 = scmp.eq.s32.totalorder %s37, 0
      %p148 = por %p146, %p147
      %s150 = sadd.s32 %s149, 1
      %p153 = scmp.eq.s32.totalorder %s31, 1
      %p154 = scmp.ne.s32.totalorder %s149, %s151
      %p155 = scmp.eq.s32.totalorder %s31, 0
      %p156 = por %p154, %p155
      %p157 = scmp.ne.s32.totalorder %s149, %s151
      %p158 = scmp.eq.s32.totalorder %s36, 1
      %p159 = por %p157, %p158
      %p160 = scmp.ne.s32.totalorder %s151, %s152
      %p161 = scmp.eq.s32.totalorder %s36, 0
      %p162 = por %p160, %p161
      %p163 = scmp.ne.s32.totalorder %s151, %s152
      %p164 = scmp.eq.s32.totalorder %s37, 1
      %p165 = por %p163, %p164
      %p167 = scmp.ne.s32.totalorder %s152, %s166
      %p168 = scmp.eq.s32.totalorder %s37, 0
      %p169 = por %p167, %p168
      %s171 = sadd.s32 %s170, 1
      %p174 = scmp.eq.s32.totalorder %s31, 1
      %p175 = scmp.ne.s32.totalorder %s170, %s172
      %p176 = scmp.eq.s32.totalorder %s31, 0
      %p177 = por %p175, %p176
      %p178 = scmp.ne.s32.totalorder %s170, %s172
      %p179 = scmp.eq.s32.totalorder %s36, 1
      %p180 = por %p178, %p179
      %p181 = scmp.ne.s32.totalorder %s172, %s173
      %p182 = scmp.eq.s32.totalorder %s36, 0
      %p183 = por %p181, %p182
      %p184 = scmp.ne.s32.totalorder %s172, %s173
      %p185 = scmp.eq.s32.totalorder %s37, 1
      %p186 = por %p184, %p185
      %p188 = scmp.ne.s32.totalorder %s173, %s187
      %p189 = scmp.eq.s32.totalorder %s37, 0
      %p190 = por %p188, %p189
      %s192 = sadd.s32 %s191, 1
      %p195 = scmp.eq.s32.totalorder %s31, 1
      %p196 = scmp.ne.s32.totalorder %s191, %s193
      %p197 = scmp.eq.s32.totalorder %s31, 0
      %p198 = por %p196, %p197
      %p199 = scmp.ne.s32.totalorder %s191, %s193
      %p200 = scmp.eq.s32.totalorder %s36, 1
      %p201 = por %p199, %p200
      %p202 = scmp.ne.s32.totalorder %s193, %s194
      %p203 = scmp.eq.s32.totalorder %s36, 0
      %p204 = por %p202, %p203
      %p205 = scmp.ne.s32.totalorder %s193, %s194
      %p206 = scmp.eq.s32.totalorder %s37, 1
      %p207 = por %p205, %p206
      %p209 = scmp.ne.s32.totalorder %s194, %s208
      %p210 = scmp.eq.s32.totalorder %s37, 0
      %p211 = por %p209, %p210
      %s213 = sadd.s32 %s212, 1
      %p216 = scmp.eq.s32.totalorder %s31, 1
      %p217 = scmp.ne.s32.totalorder %s212, %s214
      %p218 = scmp.eq.s32.totalorder %s31, 0
      %p219 = por %p217, %p218
      %p220 = scmp.ne.s32.totalorder %s212, %s214
      %p221 = scmp.eq.s32.totalorder %s36, 1
      %p222 = por %p220, %p221
      %p223 = scmp.ne.s32.totalorder %s214, %s215
      %p224 = scmp.eq.s32.totalorder %s36, 0
      %p225 = por %p223, %p224
      %p226 = scmp.ne.s32.totalorder %s214, %s215
      %p227 = scmp.eq.s32.totalorder %s37, 1
      %p228 = por %p226, %p227
      %p230 = scmp.ne.s32.totalorder %s215, %s229
      %p231 = scmp.eq.s32.totalorder %s37, 0
      %p232 = por %p230, %p231
      %s234 = sadd.s32 %s233, 1
      %p237 = scmp.eq.s32.totalorder %s31, 1
      %p238 = scmp.ne.s32.totalorder %s233, %s235
      %p239 = scmp.eq.s32.totalorder %s31, 0
      %p240 = por %p238, %p239
      %p241 = scmp.ne.s32.totalorder %s233, %s235
      %p242 = scmp.eq.s32.totalorder %s36, 1
      %p243 = por %p241, %p242
      %p244 = scmp.ne.s32.totalorder %s235, %s236
      %p245 = scmp.eq.s32.totalorder %s36, 0
      %p246 = por %p244, %p245
      %p247 = scmp.ne.s32.totalorder %s235, %s236
      %p248 = scmp.eq.s32.totalorder %s37, 1
      %p249 = por %p247, %p248
      %p251 = scmp.ne.s32.totalorder %s236, %s250
      %p252 = scmp.eq.s32.totalorder %s37, 0
      %p253 = por %p251, %p252
      %s255 = sadd.s32 %s254, 1
      %p258 = scmp.eq.s32.totalorder %s31, 1
      %p259 = scmp.ne.s32.totalorder %s254, %s256
      %p260 = scmp.eq.s32.totalorder %s31, 0
      %p261 = por %p259, %p260
      %p262 = scmp.ne.s32.totalorder %s254, %s256
      %p263 = scmp.eq.s32.totalorder %s36, 1
      %p264 = por %p262, %p263
      %p265 = scmp.ne.s32.totalorder %s256, %s257
      %p266 = scmp.eq.s32.totalorder %s36, 0
      %p267 = por %p265, %p266
      %p268 = scmp.ne.s32.totalorder %s256, %s257
      %p269 = scmp.eq.s32.totalorder %s37, 1
      %p270 = por %p268, %p269
      %p272 = scmp.ne.s32.totalorder %s257, %s271
      %p273 = scmp.eq.s32.totalorder %s37, 0
      %p274 = por %p272, %p273
      %s276 = sadd.s32 %s275, 1
      %p279 = scmp.eq.s32.totalorder %s31, 1
      %p280 = scmp.ne.s32.totalorder %s275, %s277
      %p281 = scmp.eq.s32.totalorder %s31, 0
      %p282 = por %p280, %p281
      %p283 = scmp.ne.s32.totalorder %s275, %s277
      %p284 = scmp.eq.s32.totalorder %s36, 1
      %p285 = por %p283, %p284
      %p286 = scmp.ne.s32.totalorder %s277, %s278
      %p287 = scmp.eq.s32.totalorder %s36, 0
      %p288 = por %p286, %p287
      %p289 = scmp.ne.s32.totalorder %s277, %s278
      %p290 = scmp.eq.s32.totalorder %s37, 1
      %p291 = por %p289, %p290
      %p293 = scmp.ne.s32.totalorder %s278, %s292
      %p294 = scmp.eq.s32.totalorder %s37, 0
      %p295 = por %p293, %p294
      %s297 = sadd.s32 %s296, 1
      %p300 = scmp.eq.s32.totalorder %s31, 1
      %p301 = scmp.ne.s32.totalorder %s296, %s298
      %p302 = scmp.eq.s32.totalorder %s31, 0
      %p303 = por %p301, %p302
      %p304 = scmp.ne.s32.totalorder %s296, %s298
      %p305 = scmp.eq.s32.totalorder %s36, 1
      %p306 = por %p304, %p305
      %p307 = scmp.ne.s32.totalorder %s298, %s299
      %p308 = scmp.eq.s32.totalorder %s36, 0
      %p309 = por %p307, %p308
      %p310 = scmp.ne.s32.totalorder %s298, %s299
      %p311 = scmp.eq.s32.totalorder %s37, 1
      %p312 = por %p310, %p311
      %p314 = scmp.ne.s32.totalorder %s299, %s313
      %p315 = scmp.eq.s32.totalorder %s37, 0
      %p316 = por %p314, %p315
      %s317 = ssub.s32 %s31, %s38
      %p318 = scmp.eq.s32.totalorder %s317, 0
      %s320 = sadd.s32 %s319, 1
      %s321 = scalar_select %p318, %s319, %s320
      %p324 = pneg %p318
      %p325 = scmp.eq.s32.totalorder %s31, 1
      %p326 = por %p324, %p325
      %p327 = scmp.ne.s32.totalorder %s319, %s322
      %p328 = scmp.eq.s32.totalorder %s31, 0
      %p329 = por %p327, %p328
      %p330 = scmp.ne.s32.totalorder %s319, %s322
      %p331 = scmp.eq.s32.totalorder %s36, 1
      %p332 = por %p330, %p331
      %p333 = scmp.ne.s32.totalorder %s322, %s323
      %p334 = scmp.eq.s32.totalorder %s36, 0
      %p335 = por %p333, %p334
      %p336 = scmp.ne.s32.totalorder %s322, %s323
      %p337 = scmp.eq.s32.totalorder %s37, 1
      %p338 = por %p336, %p337
      %p340 = scmp.ne.s32.totalorder %s323, %s339
      %p341 = scmp.eq.s32.totalorder %s37, 0
      %p342 = por %p340, %p341
      %p343 = scmp.le.s32.totalorder 1, %s31
      %p344 = scmp.lt.s32.totalorder %s31, 3
      %p345 = pnand %p343, %p344
      %p346 = pneg %p345
      // Predicated region
      $region9: #{encoder_block_pallas.1} parent=5 // pred_check
        _
      $region10: #{encoder_block_pallas.1} parent=5 // pred_check_branch
        %348 = sbr.rel (%p345) target = $region12
      $region11: #{encoder_block_pallas.1} parent=5 // pred_region
        %s349 = ssub.s32 %s31, 1
        // Predicated region
        $region13: #{encoder_block_pallas.1} parent=11 // pred_check
          %p350 = pneg %p78
        $region14: #{encoder_block_pallas.1} parent=11 // pred_check_branch
          %352 = sbr.rel (%p350) target = $region16
        $region15: #{encoder_block_pallas.1} parent=11 // pred_region
          %s354 = ssub.s32 64, 64
          %355 = vsyncadd [#allocation7], %s354
          %s357 = sshll.u32 [#allocation6], 4
          %s358 = int_to_ptr.vmem [resolvable:$true] %s357
          %360 = dma.hbm_to_vmem [thread:$0]  %s1, 64, %s358, [#allocation7]
        $region16: #{encoder_block_pallas.1} parent=11 // pred_fallthru
          _
        // Predicated region
        $region17: #{encoder_block_pallas.1} parent=11 // pred_check
          %p361 = pneg %p99
        $region18: #{encoder_block_pallas.1} parent=11 // pred_check_branch
          %363 = sbr.rel (%p361) target = $region20
        $region19: #{encoder_block_pallas.1} parent=11 // pred_region
          %s365 = ssub.s32 64, 64
          %366 = vsyncadd [#allocation7], %s365
          %s368 = sshll.u32 [#allocation8], 4
          %s369 = int_to_ptr.vmem [resolvable:$true] %s368
          %371 = dma.hbm_to_vmem [thread:$0]  %s2, 64, %s369, [#allocation7]
        $region20: #{encoder_block_pallas.1} parent=11 // pred_fallthru
          _
        // Predicated region
        $region21: #{encoder_block_pallas.1} parent=11 // pred_check
          %p372 = pneg %p120
        $region22: #{encoder_block_pallas.1} parent=11 // pred_check_branch
          %374 = sbr.rel (%p372) target = $region24
        $region23: #{encoder_block_pallas.1} parent=11 // pred_region
          %s376 = ssub.s32 49152, 49152
          %377 = vsyncadd [#allocation10], %s376
          %s378 = sshll.u32 [#allocation9], 4
          %s379 = int_to_ptr.vmem [resolvable:$true] %s378
          %384 = dma.hbm_to_vmem [thread:$0]  %s3, 49152, %s379, [#allocation10], 768, 768, 48
        $region24: #{encoder_block_pallas.1} parent=11 // pred_fallthru
          _
        // Predicated region
        $region25: #{encoder_block_pallas.1} parent=11 // pred_check
          %p385 = pneg %p141
        $region26: #{encoder_block_pallas.1} parent=11 // pred_check_branch
          %387 = sbr.rel (%p385) target = $region28
        $region27: #{encoder_block_pallas.1} parent=11 // pred_region
          %s389 = ssub.s32 192, 192
          %390 = vsyncadd [#allocation10], %s389
          %s392 = sshll.u32 [#allocation11], 4
          %s393 = int_to_ptr.vmem [resolvable:$true] %s392
          %395 = dma.hbm_to_vmem [thread:$0]  %s4, 192, %s393, [#allocation10]
        $region28: #{encoder_block_pallas.1} parent=11 // pred_fallthru
          _
        // Predicated region
        $region29: #{encoder_block_pallas.1} parent=11 // pred_check
          %p396 = pneg %p162
        $region30: #{encoder_block_pallas.1} parent=11 // pred_check_branch
          %398 = sbr.rel (%p396) target = $region32
        $region31: #{encoder_block_pallas.1} parent=11 // pred_region
          %s400 = ssub.s32 16384, 16384
          %401 = vsyncadd [#allocation13], %s400
          %s402 = sshll.u32 [#allocation12], 4
          %s403 = int_to_ptr.vmem [resolvable:$true] %s402
          %408 = dma.hbm_to_vmem [thread:$0]  %s5, 16384, %s403, [#allocation13], 256, 256, 16
        $region32: #{encoder_block_pallas.1} parent=11 // pred_fallthru
          _
        // Predicated region
        $region33: #{encoder_block_pallas.1} parent=11 // pred_check
          %p409 = pneg %p183
        $region34: #{encoder_block_pallas.1} parent=11 // pred_check_branch
          %411 = sbr.rel (%p409) target = $region36
        $region35: #{encoder_block_pallas.1} parent=11 // pred_region
          %s413 = ssub.s32 64, 64
          %414 = vsyncadd [#allocation13], %s413
          %s416 = sshll.u32 [#allocation14], 4
          %s417 = int_to_ptr.vmem [resolvable:$true] %s416
          %419 = dma.hbm_to_vmem [thread:$0]  %s6, 64, %s417, [#allocation13]
        $region36: #{encoder_block_pallas.1} parent=11 // pred_fallthru
          _
        // Predicated region
        $region37: #{encoder_block_pallas.1} parent=11 // pred_check
          %p420 = pneg %p204
        $region38: #{encoder_block_pallas.1} parent=11 // pred_check_branch
          %422 = sbr.rel (%p420) target = $region40
        $region39: #{encoder_block_pallas.1} parent=11 // pred_region
          %s424 = ssub.s32 64, 64
          %425 = vsyncadd [#allocation16], %s424
          %s427 = sshll.u32 [#allocation15], 4
          %s428 = int_to_ptr.vmem [resolvable:$true] %s427
          %430 = dma.hbm_to_vmem [thread:$0]  %s7, 64, %s428, [#allocation16]
        $region40: #{encoder_block_pallas.1} parent=11 // pred_fallthru
          _
        // Predicated region
        $region41: #{encoder_block_pallas.1} parent=11 // pred_check
          %p431 = pneg %p225
        $region42: #{encoder_block_pallas.1} parent=11 // pred_check_branch
          %433 = sbr.rel (%p431) target = $region44
        $region43: #{encoder_block_pallas.1} parent=11 // pred_region
          %s435 = ssub.s32 64, 64
          %436 = vsyncadd [#allocation16], %s435
          %s438 = sshll.u32 [#allocation17], 4
          %s439 = int_to_ptr.vmem [resolvable:$true] %s438
          %441 = dma.hbm_to_vmem [thread:$0]  %s8, 64, %s439, [#allocation16]
        $region44: #{encoder_block_pallas.1} parent=11 // pred_fallthru
          _
        // Predicated region
        $region45: #{encoder_block_pallas.1} parent=11 // pred_check
          %p442 = pneg %p246
        $region46: #{encoder_block_pallas.1} parent=11 // pred_check_branch
          %444 = sbr.rel (%p442) target = $region48
        $region47: #{encoder_block_pallas.1} parent=11 // pred_region
          %s446 = ssub.s32 32768, 32768
          %447 = vsyncadd [#allocation19], %s446
          %s448 = sshll.u32 [#allocation18], 4
          %s449 = int_to_ptr.vmem [resolvable:$true] %s448
          %454 = dma.hbm_to_vmem [thread:$0]  %s9, 32768, %s449, [#allocation19], 512, 512, 32
        $region48: #{encoder_block_pallas.1} parent=11 // pred_fallthru
          _
        // Predicated region
        $region49: #{encoder_block_pallas.1} parent=11 // pred_check
          %p455 = pneg %p267
        $region50: #{encoder_block_pallas.1} parent=11 // pred_check_branch
          %457 = sbr.rel (%p455) target = $region52
        $region51: #{encoder_block_pallas.1} parent=11 // pred_region
          %s459 = ssub.s32 128, 128
          %460 = vsyncadd [#allocation19], %s459
          %s462 = sshll.u32 [#allocation20], 4
          %s463 = int_to_ptr.vmem [resolvable:$true] %s462
          %465 = dma.hbm_to_vmem [thread:$0]  %s10, 128, %s463, [#allocation19]
        $region52: #{encoder_block_pallas.1} parent=11 // pred_fallthru
          _
        // Predicated region
        $region53: #{encoder_block_pallas.1} parent=11 // pred_check
          %p466 = pneg %p288
        $region54: #{encoder_block_pallas.1} parent=11 // pred_check_branch
          %468 = sbr.rel (%p466) target = $region56
        $region55: #{encoder_block_pallas.1} parent=11 // pred_region
          %s470 = ssub.s32 32768, 32768
          %471 = vsyncadd [#allocation22], %s470
          %s472 = sshll.u32 [#allocation21], 4
          %s473 = int_to_ptr.vmem [resolvable:$true] %s472
          %478 = dma.hbm_to_vmem [thread:$0]  %s11, 32768, %s473, [#allocation22], 256, 256, 16
        $region56: #{encoder_block_pallas.1} parent=11 // pred_fallthru
          _
        // Predicated region
        $region57: #{encoder_block_pallas.1} parent=11 // pred_check
          %p479 = pneg %p309
        $region58: #{encoder_block_pallas.1} parent=11 // pred_check_branch
          %481 = sbr.rel (%p479) target = $region60
        $region59: #{encoder_block_pallas.1} parent=11 // pred_region
          %s483 = ssub.s32 64, 64
          %484 = vsyncadd [#allocation22], %s483
          %s486 = sshll.u32 [#allocation23], 4
          %s487 = int_to_ptr.vmem [resolvable:$true] %s486
          %489 = dma.hbm_to_vmem [thread:$0]  %s12, 64, %s487, [#allocation22]
        $region60: #{encoder_block_pallas.1} parent=11 // pred_fallthru
          _
      $region12: #{encoder_block_pallas.1} parent=5 // pred_fallthru
        _
      %p490 = scmp.lt.s32.totalorder %s31, 2
      // Predicated region
      $region61: #{encoder_block_pallas.1} parent=5 // pred_check
        %p491 = pneg %p490
      $region62: #{encoder_block_pallas.1} parent=5 // pred_check_branch
        %493 = sbr.rel (%p491) target = $region64
      $region63: #{encoder_block_pallas.1} parent=5 // pred_region
        // Predicated region
        $region65: #{encoder_block_pallas.1} parent=63 // pred_check
          %p494 = pneg %p51
        $region66: #{encoder_block_pallas.1} parent=63 // pred_check_branch
          %496 = sbr.rel (%p494) target = $region68
        $region67: #{encoder_block_pallas.1} parent=63 // pred_region
          %s497 = sand.u32 %s41, 1
          %s498 = scalar_lea.sflag [#allocation4], %s497
          %s499 = sand.u32 %s41, 1
          %s500 = smul.addr %s499, 128
          %s501 = scalar_lea.vmem [#allocation3], %s500
          %s502 = smul.u32 2, %s31
          %s504 = ssub.s32 2048, 2048
          %505 = vsyncadd %s498, %s504
          %s506 = smul.addr %s502, 8
          %s507 = smul.addr %s506, 128
          %s508 = scalar_lea.hbm %s0, %s507
          %s509 = sshll.u32 %s501, 4
          %s510 = int_to_ptr.vmem [resolvable:$true] %s509
          %515 = dma.hbm_to_vmem [thread:$0]  %s508, 2048, %s510, %s498, 512, 512, 32
        $region68: #{encoder_block_pallas.1} parent=63 // pred_fallthru
          _
      $region64: #{encoder_block_pallas.1} parent=5 // pred_fallthru
        _
      %p516 = scmp.le.s32.totalorder 1, %s31
      %p517 = scmp.lt.s32.totalorder %s31, 3
      %p518 = pnand %p516, %p517
      %p519 = pneg %p518
      // Predicated region
      $region69: #{encoder_block_pallas.1} parent=5 // pred_check
        _
      $region70: #{encoder_block_pallas.1} parent=5 // pred_check_branch
        %521 = sbr.rel (%p518) target = $region72
      $region71: #{encoder_block_pallas.1} parent=5 // pred_region
        %s522 = ssub.s32 %s31, 1
        %s523 = sand.u32 %s44, 1
        %s524 = scalar_lea.sflag [#allocation4], %s523
        %s525 = sand.u32 %s44, 1
        %s526 = smul.addr %s525, 128
        %s527 = scalar_lea.vmem [#allocation3], %s526
        // Predicated region
        $region73: #{encoder_block_pallas.1} parent=71 // pred_check
          %p528 = pneg %p57
        $region74: #{encoder_block_pallas.1} parent=71 // pred_check_branch
          %530 = sbr.rel (%p528) target = $region76
        $region75: #{encoder_block_pallas.1} parent=71 // pred_region
          %531 = dma.done %s524, 2048
        $region76: #{encoder_block_pallas.1} parent=71 // pred_fallthru
          _
        // Predicated region
        $region77: #{encoder_block_pallas.1} parent=71 // pred_check
          %p532 = pneg %p78
        $region78: #{encoder_block_pallas.1} parent=71 // pred_check_branch
          %534 = sbr.rel (%p532) target = $region80
        $region79: #{encoder_block_pallas.1} parent=71 // pred_region
          %535 = dma.done [#allocation7], 64
        $region80: #{encoder_block_pallas.1} parent=71 // pred_fallthru
          _
        // Predicated region
        $region81: #{encoder_block_pallas.1} parent=71 // pred_check
          %p536 = pneg %p99
        $region82: #{encoder_block_pallas.1} parent=71 // pred_check_branch
          %538 = sbr.rel (%p536) target = $region84
        $region83: #{encoder_block_pallas.1} parent=71 // pred_region
          %539 = dma.done [#allocation7], 64
        $region84: #{encoder_block_pallas.1} parent=71 // pred_fallthru
          _
        // Predicated region
        $region85: #{encoder_block_pallas.1} parent=71 // pred_check
          %p540 = pneg %p120
        $region86: #{encoder_block_pallas.1} parent=71 // pred_check_branch
          %542 = sbr.rel (%p540) target = $region88
        $region87: #{encoder_block_pallas.1} parent=71 // pred_region
          %543 = dma.done [#allocation10], 49152
        $region88: #{encoder_block_pallas.1} parent=71 // pred_fallthru
          _
        // Predicated region
        $region89: #{encoder_block_pallas.1} parent=71 // pred_check
          %p544 = pneg %p141
        $region90: #{encoder_block_pallas.1} parent=71 // pred_check_branch
          %546 = sbr.rel (%p544) target = $region92
        $region91: #{encoder_block_pallas.1} parent=71 // pred_region
          %547 = dma.done [#allocation10], 192
        $region92: #{encoder_block_pallas.1} parent=71 // pred_fallthru
          _
        // Predicated region
        $region93: #{encoder_block_pallas.1} parent=71 // pred_check
          %p548 = pneg %p162
        $region94: #{encoder_block_pallas.1} parent=71 // pred_check_branch
          %550 = sbr.rel (%p548) target = $region96
        $region95: #{encoder_block_pallas.1} parent=71 // pred_region
          %551 = dma.done [#allocation13], 16384
        $region96: #{encoder_block_pallas.1} parent=71 // pred_fallthru
          _
        // Predicated region
        $region97: #{encoder_block_pallas.1} parent=71 // pred_check
          %p552 = pneg %p183
        $region98: #{encoder_block_pallas.1} parent=71 // pred_check_branch
          %554 = sbr.rel (%p552) target = $region100
        $region99: #{encoder_block_pallas.1} parent=71 // pred_region
          %555 = dma.done [#allocation13], 64
        $region100: #{encoder_block_pallas.1} parent=71 // pred_fallthru
          _
        // Predicated region
        $region101: #{encoder_block_pallas.1} parent=71 // pred_check
          %p556 = pneg %p204
        $region102: #{encoder_block_pallas.1} parent=71 // pred_check_branch
          %558 = sbr.rel (%p556) target = $region104
        $region103: #{encoder_block_pallas.1} parent=71 // pred_region
          %559 = dma.done [#allocation16], 64
        $region104: #{encoder_block_pallas.1} parent=71 // pred_fallthru
          _
        // Predicated region
        $region105: #{encoder_block_pallas.1} parent=71 // pred_check
          %p560 = pneg %p225
        $region106: #{encoder_block_pallas.1} parent=71 // pred_check_branch
          %562 = sbr.rel (%p560) target = $region108
        $region107: #{encoder_block_pallas.1} parent=71 // pred_region
          %563 = dma.done [#allocation16], 64
        $region108: #{encoder_block_pallas.1} parent=71 // pred_fallthru
          _
        // Predicated region
        $region109: #{encoder_block_pallas.1} parent=71 // pred_check
          %p564 = pneg %p246
        $region110: #{encoder_block_pallas.1} parent=71 // pred_check_branch
          %566 = sbr.rel (%p564) target = $region112
        $region111: #{encoder_block_pallas.1} parent=71 // pred_region
          %567 = dma.done [#allocation19], 32768
        $region112: #{encoder_block_pallas.1} parent=71 // pred_fallthru
          _
        // Predicated region
        $region113: #{encoder_block_pallas.1} parent=71 // pred_check
          %p568 = pneg %p267
        $region114: #{encoder_block_pallas.1} parent=71 // pred_check_branch
          %570 = sbr.rel (%p568) target = $region116
        $region115: #{encoder_block_pallas.1} parent=71 // pred_region
          %571 = dma.done [#allocation19], 128
        $region116: #{encoder_block_pallas.1} parent=71 // pred_fallthru
          _
        // Predicated region
        $region117: #{encoder_block_pallas.1} parent=71 // pred_check
          %p572 = pneg %p288
        $region118: #{encoder_block_pallas.1} parent=71 // pred_check_branch
          %574 = sbr.rel (%p572) target = $region120
        $region119: #{encoder_block_pallas.1} parent=71 // pred_region
          %575 = dma.done [#allocation22], 32768
        $region120: #{encoder_block_pallas.1} parent=71 // pred_fallthru
          _
        // Predicated region
        $region121: #{encoder_block_pallas.1} parent=71 // pred_check
          %p576 = pneg %p309
        $region122: #{encoder_block_pallas.1} parent=71 // pred_check_branch
          %578 = sbr.rel (%p576) target = $region124
        $region123: #{encoder_block_pallas.1} parent=71 // pred_region
          %579 = dma.done [#allocation22], 64
        $region124: #{encoder_block_pallas.1} parent=71 // pred_fallthru
          _
        %s580 = sand.u32 %s44, 1
        %s581 = scalar_lea.sflag [#allocation4], %s580
        %s582 = sand.u32 %s44, 1
        %s583 = smul.addr %s582, 128
        %s584 = scalar_lea.vmem [#allocation3], %s583
        %p585 = pneg %p57
        %p586 = pneg %p54
        %p587 = pneg %p78
        %p588 = pneg %p75
        %p589 = pneg %p99
        %p590 = pneg %p96
        %p591 = pneg %p120
        %p592 = pneg %p117
        %p593 = pneg %p141
        %p594 = pneg %p138
        %p595 = pneg %p162
        %p596 = pneg %p159
        %p597 = pneg %p183
        %p598 = pneg %p180
        %p599 = pneg %p204
        %p600 = pneg %p201
        %p601 = pneg %p225
        %p602 = pneg %p222
        %p603 = pneg %p246
        %p604 = pneg %p243
        %p605 = pneg %p267
        %p606 = pneg %p264
        %p607 = pneg %p288
        %p608 = pneg %p285
        %p609 = pneg %p309
        %p610 = pneg %p306
        %p611 = pneg %p335
        %p612 = pneg %p332
        %s613 = sand.u32 %s322, 1
        %s614 = scalar_lea.sflag [#allocation5], %s613
        %s615 = sand.u32 %s322, 1
        %s616 = smul.addr %s615, 128
        %s617 = scalar_lea.vmem [#allocation24], %s616
        %s618 = smul.u32 2, %s36
        %s619 = smul.u32 2, %s36
        %v621 = vld [vmem:[%s527] sm:$0xff]
        %v622 = vld [vmem:[%s527 + $0x8] sm:$0xff]
        %v623 = vld [vmem:[%s527 + $0x10] sm:$0xff]
        %v624 = vld [vmem:[%s527 + $0x18] sm:$0xff]
        %v625 = vld [vmem:[%s527 + $0x20] sm:$0xff]
        %v626 = vld [vmem:[%s527 + $0x28] sm:$0xff]
        %v627 = vld [vmem:[%s527 + $0x30] sm:$0xff]
        %v628 = vld [vmem:[%s527 + $0x38] sm:$0xff]
        %v629 = vld [vmem:[%s527 + $0x40] sm:$0xff]
        %v630 = vld [vmem:[%s527 + $0x48] sm:$0xff]
        %v631 = vld [vmem:[%s527 + $0x50] sm:$0xff]
        %v632 = vld [vmem:[%s527 + $0x58] sm:$0xff]
        %v633 = vld [vmem:[%s527 + $0x60] sm:$0xff]
        %v634 = vld [vmem:[%s527 + $0x68] sm:$0xff]
        %v635 = vld [vmem:[%s527 + $0x70] sm:$0xff]
        %v636 = vld [vmem:[%s527 + $0x78] sm:$0xff]
        %v637 = vld [vmem:[#allocation6] sm:$0xf]
        %v638 = vld [vmem:[#allocation8] sm:$0xf]
        %v639 = vadd.f32 %v621, %v622
        %v640 = vadd.f32 %v639, %v623
        %v641 = vadd.f32 %v640, %v624
        %642 = vadd.xlane.f32.xlu0 %v641
        %v643 = vpop.xlane.xlu0 %642
        %v644 = vadd.f32 %v625, %v626
        %v645 = vadd.f32 %v644, %v627
        %v646 = vadd.f32 %v645, %v628
        %647 = vadd.xlane.f32.xlu0 %v646
        %v648 = vpop.xlane.xlu0 %647
        %v649 = vadd.f32 %v629, %v630
        %v650 = vadd.f32 %v649, %v631
        %v651 = vadd.f32 %v650, %v632
        %652 = vadd.xlane.f32.xlu0 %v651
        %v653 = vpop.xlane.xlu0 %652
        %v654 = vadd.f32 %v633, %v634
        %v655 = vadd.f32 %v654, %v635
        %v656 = vadd.f32 %v655, %v636
        %657 = vadd.xlane.f32.xlu0 %v656
        %v658 = vpop.xlane.xlu0 %657
        %v659 = vrcp.pop 512.0
        %v660 = vmul.f32 %v643, %v659
        %v661 = vmul.f32 %v648, %v659
        %v662 = vmul.f32 %v653, %v659
        %v663 = vmul.f32 %v658, %v659
        %v664 = vsub.f32 %v621, %v660
        %v665 = vsub.f32 %v622, %v660
        %v666 = vsub.f32 %v623, %v660
        %v667 = vsub.f32 %v624, %v660
        %v668 = vsub.f32 %v625, %v661
        %v669 = vsub.f32 %v626, %v661
        %v670 = vsub.f32 %v627, %v661
        %v671 = vsub.f32 %v628, %v661
        %v672 = vsub.f32 %v629, %v662
        %v673 = vsub.f32 %v630, %v662
        %v674 = vsub.f32 %v631, %v662
        %v675 = vsub.f32 %v632, %v662
        %v676 = vsub.f32 %v633, %v663
        %v677 = vsub.f32 %v634, %v663
        %v678 = vsub.f32 %v635, %v663
        %v679 = vsub.f32 %v636, %v663
        %v680 = vmul.f32 %v664, %v664
        %v681 = vmul.f32 %v665, %v665
        %v682 = vmul.f32 %v666, %v666
        %v683 = vmul.f32 %v667, %v667
        %v684 = vmul.f32 %v668, %v668
        %v685 = vmul.f32 %v669, %v669
        %v686 = vmul.f32 %v670, %v670
        %v687 = vmul.f32 %v671, %v671
        %v688 = vmul.f32 %v672, %v672
        %v689 = vmul.f32 %v673, %v673
        %v690 = vmul.f32 %v674, %v674
        %v691 = vmul.f32 %v675, %v675
        %v692 = vmul.f32 %v676, %v676
        %v693 = vmul.f32 %v677, %v677
        %v694 = vmul.f32 %v678, %v678
        %v695 = vmul.f32 %v679, %v679
        %v696 = vadd.f32 %v680, %v681
        %v697 = vadd.f32 %v696, %v682
        %v698 = vadd.f32 %v697, %v683
        %699 = vadd.xlane.f32.xlu0 %v698
        %v700 = vpop.xlane.xlu0 %699
        %v701 = vadd.f32 %v684, %v685
        %v702 = vadd.f32 %v701, %v686
        %v703 = vadd.f32 %v702, %v687
        %704 = vadd.xlane.f32.xlu0 %v703
        %v705 = vpop.xlane.xlu0 %704
        %v706 = vadd.f32 %v688, %v689
        %v707 = vadd.f32 %v706, %v690
        %v708 = vadd.f32 %v707, %v691
        %709 = vadd.xlane.f32.xlu0 %v708
        %v710 = vpop.xlane.xlu0 %709
        %v711 = vadd.f32 %v692, %v693
        %v712 = vadd.f32 %v711, %v694
        %v713 = vadd.f32 %v712, %v695
        %714 = vadd.xlane.f32.xlu0 %v713
        %v715 = vpop.xlane.xlu0 %714
        %v716 = vmul.f32 %v700, %v659
        %v717 = vmul.f32 %v705, %v659
        %v718 = vmul.f32 %v710, %v659
        %v719 = vmul.f32 %v715, %v659
        %v720 = vadd.f32 %v716, 1e-05
        %v721 = vadd.f32 %v717, 1e-05
        %v722 = vadd.f32 %v718, 1e-05
        %v723 = vadd.f32 %v719, 1e-05
        %v724 = vrsqrt.pop %v720
        %v725 = vrsqrt.pop %v721
        %v726 = vrsqrt.pop %v722
        %v727 = vrsqrt.pop %v723
        %v728 = vmul.f32 %v664, %v724
        %v729 = vmul.f32 %v665, %v724
        %v730 = vmul.f32 %v666, %v724
        %v731 = vmul.f32 %v667, %v724
        %v732 = vmul.f32 %v668, %v725
        %v733 = vmul.f32 %v669, %v725
        %v734 = vmul.f32 %v670, %v725
        %v735 = vmul.f32 %v671, %v725
        %v736 = vmul.f32 %v672, %v726
        %v737 = vmul.f32 %v673, %v726
        %v738 = vmul.f32 %v674, %v726
        %v739 = vmul.f32 %v675, %v726
        %v740 = vmul.f32 %v676, %v727
        %v741 = vmul.f32 %v677, %v727
        %v742 = vmul.f32 %v678, %v727
        %v743 = vmul.f32 %v679, %v727
        %v745 = vlaneseq
        %v746 = vshrl.u32 %v745, 7
        %v747 = vsub.s32 0, %v746
        %v748 = vrot.slane %v637, %v747
        %v749 = vlaneseq
        %v750 = vshrl.u32 %v749, 7
        %v751 = vsub.s32 1, %v750
        %v752 = vrot.slane %v637, %v751
        %v753 = vlaneseq
        %v754 = vshrl.u32 %v753, 7
        %v755 = vsub.s32 2, %v754
        %v756 = vrot.slane %v637, %v755
        %v757 = vlaneseq
        %v758 = vshrl.u32 %v757, 7
        %v759 = vsub.s32 3, %v758
        %v760 = vrot.slane %v637, %v759
        %v765 = vmul.f32 %v728, %v748
        %v766 = vmul.f32 %v729, %v752
        %v767 = vmul.f32 %v730, %v756
        %v768 = vmul.f32 %v731, %v760
        %v769 = vmul.f32 %v732, %v748
        %v770 = vmul.f32 %v733, %v752
        %v771 = vmul.f32 %v734, %v756
        %v772 = vmul.f32 %v735, %v760
        %v773 = vmul.f32 %v736, %v748
        %v774 = vmul.f32 %v737, %v752
        %v775 = vmul.f32 %v738, %v756
        %v776 = vmul.f32 %v739, %v760
        %v777 = vmul.f32 %v740, %v748
        %v778 = vmul.f32 %v741, %v752
        %v779 = vmul.f32 %v742, %v756
        %v780 = vmul.f32 %v743, %v760
        %v782 = vlaneseq
        %v783 = vshrl.u32 %v782, 7
        %v784 = vsub.s32 0, %v783
        %v785 = vrot.slane %v638, %v784
        %v786 = vlaneseq
        %v787 = vshrl.u32 %v786, 7
        %v788 = vsub.s32 1, %v787
        %v789 = vrot.slane %v638, %v788
        %v790 = vlaneseq
        %v791 = vshrl.u32 %v790, 7
        %v792 = vsub.s32 2, %v791
        %v793 = vrot.slane %v638, %v792
        %v794 = vlaneseq
        %v795 = vshrl.u32 %v794, 7
        %v796 = vsub.s32 3, %v795
        %v797 = vrot.slane %v638, %v796
        %v802 = vadd.f32 %v765, %v785
        %v803 = vadd.f32 %v766, %v789
        %v804 = vadd.f32 %v767, %v793
        %v805 = vadd.f32 %v768, %v797
        %v806 = vadd.f32 %v769, %v785
        %v807 = vadd.f32 %v770, %v789
        %v808 = vadd.f32 %v771, %v793
        %v809 = vadd.f32 %v772, %v797
        %v810 = vadd.f32 %v773, %v785
        %v811 = vadd.f32 %v774, %v789
        %v812 = vadd.f32 %v775, %v793
        %v813 = vadd.f32 %v776, %v797
        %v814 = vadd.f32 %v777, %v785
        %v815 = vadd.f32 %v778, %v789
        %v816 = vadd.f32 %v779, %v793
        %v817 = vadd.f32 %v780, %v797
        %v818 = vpack.c.bf16 %v806, %v802
        %v819 = vpack.c.bf16 %v807, %v803
        %v820 = vpack.c.bf16 %v808, %v804
        %v821 = vpack.c.bf16 %v809, %v805
        %v822 = vpack.c.bf16 %v814, %v810
        %v823 = vpack.c.bf16 %v815, %v811
        %v824 = vpack.c.bf16 %v816, %v812
        %v825 = vpack.c.bf16 %v817, %v813
        %v826 = vld [vmem:[#allocation9] sm:$0xff]
        %v827 = vld [vmem:[#allocation9 + $0x8] sm:$0xff]
        %v828 = vld [vmem:[#allocation9 + $0x10] sm:$0xff]
        %v829 = vld [vmem:[#allocation9 + $0x18] sm:$0xff]
        %v830 = vld [vmem:[#allocation9 + $0x20] sm:$0xff]
        %v831 = vld [vmem:[#allocation9 + $0x28] sm:$0xff]
        %v832 = vld [vmem:[#allocation9 + $0x30] sm:$0xff]
        %v833 = vld [vmem:[#allocation9 + $0x38] sm:$0xff]
        %v834 = vld [vmem:[#allocation9 + $0x40] sm:$0xff]
        %v835 = vld [vmem:[#allocation9 + $0x48] sm:$0xff]
        %v836 = vld [vmem:[#allocation9 + $0x50] sm:$0xff]
        %v837 = vld [vmem:[#allocation9 + $0x58] sm:$0xff]
        %v838 = vld [vmem:[#allocation9 + $0x60] sm:$0xff]
        %v839 = vld [vmem:[#allocation9 + $0x68] sm:$0xff]
        %v840 = vld [vmem:[#allocation9 + $0x70] sm:$0xff]
        %v841 = vld [vmem:[#allocation9 + $0x78] sm:$0xff]
        %v842 = vld [vmem:[#allocation9 + $0x80] sm:$0xff]
        %v843 = vld [vmem:[#allocation9 + $0x88] sm:$0xff]
        %v844 = vld [vmem:[#allocation9 + $0x90] sm:$0xff]
        %v845 = vld [vmem:[#allocation9 + $0x98] sm:$0xff]
        %v846 = vld [vmem:[#allocation9 + $0xa0] sm:$0xff]
        %v847 = vld [vmem:[#allocation9 + $0xa8] sm:$0xff]
        %v848 = vld [vmem:[#allocation9 + $0xb0] sm:$0xff]
        %v849 = vld [vmem:[#allocation9 + $0xb8] sm:$0xff]
        %v850 = vld [vmem:[#allocation9 + $0xc0] sm:$0xff]
        %v851 = vld [vmem:[#allocation9 + $0xc8] sm:$0xff]
        %v852 = vld [vmem:[#allocation9 + $0xd0] sm:$0xff]
        %v853 = vld [vmem:[#allocation9 + $0xd8] sm:$0xff]
        %v854 = vld [vmem:[#allocation9 + $0xe0] sm:$0xff]
        %v855 = vld [vmem:[#allocation9 + $0xe8] sm:$0xff]
        %v856 = vld [vmem:[#allocation9 + $0xf0] sm:$0xff]
        %v857 = vld [vmem:[#allocation9 + $0xf8] sm:$0xff]
        %v858 = vld [vmem:[#allocation9 + $0x100] sm:$0xff]
        %v859 = vld [vmem:[#allocation9 + $0x108] sm:$0xff]
        %v860 = vld [vmem:[#allocation9 + $0x110] sm:$0xff]
        %v861 = vld [vmem:[#allocation9 + $0x118] sm:$0xff]
        %v862 = vld [vmem:[#allocation9 + $0x120] sm:$0xff]
        %v863 = vld [vmem:[#allocation9 + $0x128] sm:$0xff]
        %v864 = vld [vmem:[#allocation9 + $0x130] sm:$0xff]
        %v865 = vld [vmem:[#allocation9 + $0x138] sm:$0xff]
        %v866 = vld [vmem:[#allocation9 + $0x140] sm:$0xff]
        %v867 = vld [vmem:[#allocation9 + $0x148] sm:$0xff]
        %v868 = vld [vmem:[#allocation9 + $0x150] sm:$0xff]
        %v869 = vld [vmem:[#allocation9 + $0x158] sm:$0xff]
        %v870 = vld [vmem:[#allocation9 + $0x160] sm:$0xff]
        %v871 = vld [vmem:[#allocation9 + $0x168] sm:$0xff]
        %v872 = vld [vmem:[#allocation9 + $0x170] sm:$0xff]
        %v873 = vld [vmem:[#allocation9 + $0x178] sm:$0xff]
        %v874 = vld [vmem:[#allocation9 + $0x180] sm:$0xff]
        %v875 = vld [vmem:[#allocation9 + $0x188] sm:$0xff]
        %v876 = vld [vmem:[#allocation9 + $0x190] sm:$0xff]
        %v877 = vld [vmem:[#allocation9 + $0x198] sm:$0xff]
        %v878 = vld [vmem:[#allocation9 + $0x1a0] sm:$0xff]
        %v879 = vld [vmem:[#allocation9 + $0x1a8] sm:$0xff]
        %v880 = vld [vmem:[#allocation9 + $0x1b0] sm:$0xff]
        %v881 = vld [vmem:[#allocation9 + $0x1b8] sm:$0xff]
        %v882 = vld [vmem:[#allocation9 + $0x1c0] sm:$0xff]
        %v883 = vld [vmem:[#allocation9 + $0x1c8] sm:$0xff]
        %v884 = vld [vmem:[#allocation9 + $0x1d0] sm:$0xff]
        %v885 = vld [vmem:[#allocation9 + $0x1d8] sm:$0xff]
        %v886 = vld [vmem:[#allocation9 + $0x1e0] sm:$0xff]
        %v887 = vld [vmem:[#allocation9 + $0x1e8] sm:$0xff]
        %v888 = vld [vmem:[#allocation9 + $0x1f0] sm:$0xff]
        %v889 = vld [vmem:[#allocation9 + $0x1f8] sm:$0xff]
        %v890 = vld [vmem:[#allocation9 + $0x200] sm:$0xff]
        %v891 = vld [vmem:[#allocation9 + $0x208] sm:$0xff]
        %v892 = vld [vmem:[#allocation9 + $0x210] sm:$0xff]
        %v893 = vld [vmem:[#allocation9 + $0x218] sm:$0xff]
        %v894 = vld [vmem:[#allocation9 + $0x220] sm:$0xff]
        %v895 = vld [vmem:[#allocation9 + $0x228] sm:$0xff]
        %v896 = vld [vmem:[#allocation9 + $0x230] sm:$0xff]
        %v897 = vld [vmem:[#allocation9 + $0x238] sm:$0xff]
        %v898 = vld [vmem:[#allocation9 + $0x240] sm:$0xff]
        %v899 = vld [vmem:[#allocation9 + $0x248] sm:$0xff]
        %v900 = vld [vmem:[#allocation9 + $0x250] sm:$0xff]
        %v901 = vld [vmem:[#allocation9 + $0x258] sm:$0xff]
        %v902 = vld [vmem:[#allocation9 + $0x260] sm:$0xff]
        %v903 = vld [vmem:[#allocation9 + $0x268] sm:$0xff]
        %v904 = vld [vmem:[#allocation9 + $0x270] sm:$0xff]
        %v905 = vld [vmem:[#allocation9 + $0x278] sm:$0xff]
        %v906 = vld [vmem:[#allocation9 + $0x280] sm:$0xff]
        %v907 = vld [vmem:[#allocation9 + $0x288] sm:$0xff]
        %v908 = vld [vmem:[#allocation9 + $0x290] sm:$0xff]
        %v909 = vld [vmem:[#allocation9 + $0x298] sm:$0xff]
        %v910 = vld [vmem:[#allocation9 + $0x2a0] sm:$0xff]
        %v911 = vld [vmem:[#allocation9 + $0x2a8] sm:$0xff]
        %v912 = vld [vmem:[#allocation9 + $0x2b0] sm:$0xff]
        %v913 = vld [vmem:[#allocation9 + $0x2b8] sm:$0xff]
        %v914 = vld [vmem:[#allocation9 + $0x2c0] sm:$0xff]
        %v915 = vld [vmem:[#allocation9 + $0x2c8] sm:$0xff]
        %v916 = vld [vmem:[#allocation9 + $0x2d0] sm:$0xff]
        %v917 = vld [vmem:[#allocation9 + $0x2d8] sm:$0xff]
        %v918 = vld [vmem:[#allocation9 + $0x2e0] sm:$0xff]
        %v919 = vld [vmem:[#allocation9 + $0x2e8] sm:$0xff]
        %v920 = vld [vmem:[#allocation9 + $0x2f0] sm:$0xff]
        %v921 = vld [vmem:[#allocation9 + $0x2f8] sm:$0xff]
        %v922 = vld [vmem:[#allocation9 + $0x300] sm:$0xff]
        %v923 = vld [vmem:[#allocation9 + $0x308] sm:$0xff]
        %v924 = vld [vmem:[#allocation9 + $0x310] sm:$0xff]
        %v925 = vld [vmem:[#allocation9 + $0x318] sm:$0xff]
        %v926 = vld [vmem:[#allocation9 + $0x320] sm:$0xff]
        %v927 = vld [vmem:[#allocation9 + $0x328] sm:$0xff]
        %v928 = vld [vmem:[#allocation9 + $0x330] sm:$0xff]
        %v929 = vld [vmem:[#allocation9 + $0x338] sm:$0xff]
        %v930 = vld [vmem:[#allocation9 + $0x340] sm:$0xff]
        %v931 = vld [vmem:[#allocation9 + $0x348] sm:$0xff]
        %v932 = vld [vmem:[#allocation9 + $0x350] sm:$0xff]
        %v933 = vld [vmem:[#allocation9 + $0x358] sm:$0xff]
        %v934 = vld [vmem:[#allocation9 + $0x360] sm:$0xff]
        %v935 = vld [vmem:[#allocation9 + $0x368] sm:$0xff]
        %v936 = vld [vmem:[#allocation9 + $0x370] sm:$0xff]
        %v937 = vld [vmem:[#allocation9 + $0x378] sm:$0xff]
        %v938 = vld [vmem:[#allocation9 + $0x380] sm:$0xff]
        %v939 = vld [vmem:[#allocation9 + $0x388] sm:$0xff]
        %v940 = vld [vmem:[#allocation9 + $0x390] sm:$0xff]
        %v941 = vld [vmem:[#allocation9 + $0x398] sm:$0xff]
        %v942 = vld [vmem:[#allocation9 + $0x3a0] sm:$0xff]
        %v943 = vld [vmem:[#allocation9 + $0x3a8] sm:$0xff]
        %v944 = vld [vmem:[#allocation9 + $0x3b0] sm:$0xff]
        %v945 = vld [vmem:[#allocation9 + $0x3b8] sm:$0xff]
        %v946 = vld [vmem:[#allocation9 + $0x3c0] sm:$0xff]
        %v947 = vld [vmem:[#allocation9 + $0x3c8] sm:$0xff]
        %v948 = vld [vmem:[#allocation9 + $0x3d0] sm:$0xff]
        %v949 = vld [vmem:[#allocation9 + $0x3d8] sm:$0xff]
        %v950 = vld [vmem:[#allocation9 + $0x3e0] sm:$0xff]
        %v951 = vld [vmem:[#allocation9 + $0x3e8] sm:$0xff]
        %v952 = vld [vmem:[#allocation9 + $0x3f0] sm:$0xff]
        %v953 = vld [vmem:[#allocation9 + $0x3f8] sm:$0xff]
        %v954 = vld [vmem:[#allocation9 + $0x400] sm:$0xff]
        %v955 = vld [vmem:[#allocation9 + $0x408] sm:$0xff]
        %v956 = vld [vmem:[#allocation9 + $0x410] sm:$0xff]
        %v957 = vld [vmem:[#allocation9 + $0x418] sm:$0xff]
        %v958 = vld [vmem:[#allocation9 + $0x420] sm:$0xff]
        %v959 = vld [vmem:[#allocation9 + $0x428] sm:$0xff]
        %v960 = vld [vmem:[#allocation9 + $0x430] sm:$0xff]
        %v961 = vld [vmem:[#allocation9 + $0x438] sm:$0xff]
        %v962 = vld [vmem:[#allocation9 + $0x440] sm:$0xff]
        %v963 = vld [vmem:[#allocation9 + $0x448] sm:$0xff]
        %v964 = vld [vmem:[#allocation9 + $0x450] sm:$0xff]
        %v965 = vld [vmem:[#allocation9 + $0x458] sm:$0xff]
        %v966 = vld [vmem:[#allocation9 + $0x460] sm:$0xff]
        %v967 = vld [vmem:[#allocation9 + $0x468] sm:$0xff]
        %v968 = vld [vmem:[#allocation9 + $0x470] sm:$0xff]
        %v969 = vld [vmem:[#allocation9 + $0x478] sm:$0xff]
        %v970 = vld [vmem:[#allocation9 + $0x480] sm:$0xff]
        %v971 = vld [vmem:[#allocation9 + $0x488] sm:$0xff]
        %v972 = vld [vmem:[#allocation9 + $0x490] sm:$0xff]
        %v973 = vld [vmem:[#allocation9 + $0x498] sm:$0xff]
        %v974 = vld [vmem:[#allocation9 + $0x4a0] sm:$0xff]
        %v975 = vld [vmem:[#allocation9 + $0x4a8] sm:$0xff]
        %v976 = vld [vmem:[#allocation9 + $0x4b0] sm:$0xff]
        %v977 = vld [vmem:[#allocation9 + $0x4b8] sm:$0xff]
        %v978 = vld [vmem:[#allocation9 + $0x4c0] sm:$0xff]
        %v979 = vld [vmem:[#allocation9 + $0x4c8] sm:$0xff]
        %v980 = vld [vmem:[#allocation9 + $0x4d0] sm:$0xff]
        %v981 = vld [vmem:[#allocation9 + $0x4d8] sm:$0xff]
        %v982 = vld [vmem:[#allocation9 + $0x4e0] sm:$0xff]
        %v983 = vld [vmem:[#allocation9 + $0x4e8] sm:$0xff]
        %v984 = vld [vmem:[#allocation9 + $0x4f0] sm:$0xff]
        %v985 = vld [vmem:[#allocation9 + $0x4f8] sm:$0xff]
        %v986 = vld [vmem:[#allocation9 + $0x500] sm:$0xff]
        %v987 = vld [vmem:[#allocation9 + $0x508] sm:$0xff]
        %v988 = vld [vmem:[#allocation9 + $0x510] sm:$0xff]
        %v989 = vld [vmem:[#allocation9 + $0x518] sm:$0xff]
        %v990 = vld [vmem:[#allocation9 + $0x520] sm:$0xff]
        %v991 = vld [vmem:[#allocation9 + $0x528] sm:$0xff]
        %v992 = vld [vmem:[#allocation9 + $0x530] sm:$0xff]
        %v993 = vld [vmem:[#allocation9 + $0x538] sm:$0xff]
        %v994 = vld [vmem:[#allocation9 + $0x540] sm:$0xff]
        %v995 = vld [vmem:[#allocation9 + $0x548] sm:$0xff]
        %v996 = vld [vmem:[#allocation9 + $0x550] sm:$0xff]
        %v997 = vld [vmem:[#allocation9 + $0x558] sm:$0xff]
        %v998 = vld [vmem:[#allocation9 + $0x560] sm:$0xff]
        %v999 = vld [vmem:[#allocation9 + $0x568] sm:$0xff]
        %v1000 = vld [vmem:[#allocation9 + $0x570] sm:$0xff]
        %v1001 = vld [vmem:[#allocation9 + $0x578] sm:$0xff]
        %v1002 = vld [vmem:[#allocation9 + $0x580] sm:$0xff]
        %v1003 = vld [vmem:[#allocation9 + $0x588] sm:$0xff]
        %v1004 = vld [vmem:[#allocation9 + $0x590] sm:$0xff]
        %v1005 = vld [vmem:[#allocation9 + $0x598] sm:$0xff]
        %v1006 = vld [vmem:[#allocation9 + $0x5a0] sm:$0xff]
        %v1007 = vld [vmem:[#allocation9 + $0x5a8] sm:$0xff]
        %v1008 = vld [vmem:[#allocation9 + $0x5b0] sm:$0xff]
        %v1009 = vld [vmem:[#allocation9 + $0x5b8] sm:$0xff]
        %v1010 = vld [vmem:[#allocation9 + $0x5c0] sm:$0xff]
        %v1011 = vld [vmem:[#allocation9 + $0x5c8] sm:$0xff]
        %v1012 = vld [vmem:[#allocation9 + $0x5d0] sm:$0xff]
        %v1013 = vld [vmem:[#allocation9 + $0x5d8] sm:$0xff]
        %v1014 = vld [vmem:[#allocation9 + $0x5e0] sm:$0xff]
        %v1015 = vld [vmem:[#allocation9 + $0x5e8] sm:$0xff]
        %v1016 = vld [vmem:[#allocation9 + $0x5f0] sm:$0xff]
        %v1017 = vld [vmem:[#allocation9 + $0x5f8] sm:$0xff]
        %v1018 = vld [vmem:[#allocation9 + $0x600] sm:$0xff]
        %v1019 = vld [vmem:[#allocation9 + $0x608] sm:$0xff]
        %v1020 = vld [vmem:[#allocation9 + $0x610] sm:$0xff]
        %v1021 = vld [vmem:[#allocation9 + $0x618] sm:$0xff]
        %v1022 = vld [vmem:[#allocation9 + $0x620] sm:$0xff]
        %v1023 = vld [vmem:[#allocation9 + $0x628] sm:$0xff]
        %v1024 = vld [vmem:[#allocation9 + $0x630] sm:$0xff]
        %v1025 = vld [vmem:[#allocation9 + $0x638] sm:$0xff]
        %v1026 = vld [vmem:[#allocation9 + $0x640] sm:$0xff]
        %v1027 = vld [vmem:[#allocation9 + $0x648] sm:$0xff]
        %v1028 = vld [vmem:[#allocation9 + $0x650] sm:$0xff]
        %v1029 = vld [vmem:[#allocation9 + $0x658] sm:$0xff]
        %v1030 = vld [vmem:[#allocation9 + $0x660] sm:$0xff]
        %v1031 = vld [vmem:[#allocation9 + $0x668] sm:$0xff]
        %v1032 = vld [vmem:[#allocation9 + $0x670] sm:$0xff]
        %v1033 = vld [vmem:[#allocation9 + $0x678] sm:$0xff]
        %v1034 = vld [vmem:[#allocation9 + $0x680] sm:$0xff]
        %v1035 = vld [vmem:[#allocation9 + $0x688] sm:$0xff]
        %v1036 = vld [vmem:[#allocation9 + $0x690] sm:$0xff]
        %v1037 = vld [vmem:[#allocation9 + $0x698] sm:$0xff]
        %v1038 = vld [vmem:[#allocation9 + $0x6a0] sm:$0xff]
        %v1039 = vld [vmem:[#allocation9 + $0x6a8] sm:$0xff]
        %v1040 = vld [vmem:[#allocation9 + $0x6b0] sm:$0xff]
        %v1041 = vld [vmem:[#allocation9 + $0x6b8] sm:$0xff]
        %v1042 = vld [vmem:[#allocation9 + $0x6c0] sm:$0xff]
        %v1043 = vld [vmem:[#allocation9 + $0x6c8] sm:$0xff]
        %v1044 = vld [vmem:[#allocation9 + $0x6d0] sm:$0xff]
        %v1045 = vld [vmem:[#allocation9 + $0x6d8] sm:$0xff]
        %v1046 = vld [vmem:[#allocation9 + $0x6e0] sm:$0xff]
        %v1047 = vld [vmem:[#allocation9 + $0x6e8] sm:$0xff]
        %v1048 = vld [vmem:[#allocation9 + $0x6f0] sm:$0xff]
        %v1049 = vld [vmem:[#allocation9 + $0x6f8] sm:$0xff]
        %v1050 = vld [vmem:[#allocation9 + $0x700] sm:$0xff]
        %v1051 = vld [vmem:[#allocation9 + $0x708] sm:$0xff]
        %v1052 = vld [vmem:[#allocation9 + $0x710] sm:$0xff]
        %v1053 = vld [vmem:[#allocation9 + $0x718] sm:$0xff]
        %v1054 = vld [vmem:[#allocation9 + $0x720] sm:$0xff]
        %v1055 = vld [vmem:[#allocation9 + $0x728] sm:$0xff]
        %v1056 = vld [vmem:[#allocation9 + $0x730] sm:$0xff]
        %v1057 = vld [vmem:[#allocation9 + $0x738] sm:$0xff]
        %v1058 = vld [vmem:[#allocation9 + $0x740] sm:$0xff]
        %v1059 = vld [vmem:[#allocation9 + $0x748] sm:$0xff]
        %v1060 = vld [vmem:[#allocation9 + $0x750] sm:$0xff]
        %v1061 = vld [vmem:[#allocation9 + $0x758] sm:$0xff]
        %v1062 = vld [vmem:[#allocation9 + $0x760] sm:$0xff]
        %v1063 = vld [vmem:[#allocation9 + $0x768] sm:$0xff]
        %v1064 = vld [vmem:[#allocation9 + $0x770] sm:$0xff]
        %v1065 = vld [vmem:[#allocation9 + $0x778] sm:$0xff]
        %v1066 = vld [vmem:[#allocation9 + $0x780] sm:$0xff]
        %v1067 = vld [vmem:[#allocation9 + $0x788] sm:$0xff]
        %v1068 = vld [vmem:[#allocation9 + $0x790] sm:$0xff]
        %v1069 = vld [vmem:[#allocation9 + $0x798] sm:$0xff]
        %v1070 = vld [vmem:[#allocation9 + $0x7a0] sm:$0xff]
        %v1071 = vld [vmem:[#allocation9 + $0x7a8] sm:$0xff]
        %v1072 = vld [vmem:[#allocation9 + $0x7b0] sm:$0xff]
        %v1073 = vld [vmem:[#allocation9 + $0x7b8] sm:$0xff]
        %v1074 = vld [vmem:[#allocation9 + $0x7c0] sm:$0xff]
        %v1075 = vld [vmem:[#allocation9 + $0x7c8] sm:$0xff]
        %v1076 = vld [vmem:[#allocation9 + $0x7d0] sm:$0xff]
        %v1077 = vld [vmem:[#allocation9 + $0x7d8] sm:$0xff]
        %v1078 = vld [vmem:[#allocation9 + $0x7e0] sm:$0xff]
        %v1079 = vld [vmem:[#allocation9 + $0x7e8] sm:$0xff]
        %v1080 = vld [vmem:[#allocation9 + $0x7f0] sm:$0xff]
        %v1081 = vld [vmem:[#allocation9 + $0x7f8] sm:$0xff]
        %v1082 = vld [vmem:[#allocation9 + $0x800] sm:$0xff]
        %v1083 = vld [vmem:[#allocation9 + $0x808] sm:$0xff]
        %v1084 = vld [vmem:[#allocation9 + $0x810] sm:$0xff]
        %v1085 = vld [vmem:[#allocation9 + $0x818] sm:$0xff]
        %v1086 = vld [vmem:[#allocation9 + $0x820] sm:$0xff]
        %v1087 = vld [vmem:[#allocation9 + $0x828] sm:$0xff]
        %v1088 = vld [vmem:[#allocation9 + $0x830] sm:$0xff]
        %v1089 = vld [vmem:[#allocation9 + $0x838] sm:$0xff]
        %v1090 = vld [vmem:[#allocation9 + $0x840] sm:$0xff]
        %v1091 = vld [vmem:[#allocation9 + $0x848] sm:$0xff]
        %v1092 = vld [vmem:[#allocation9 + $0x850] sm:$0xff]
        %v1093 = vld [vmem:[#allocation9 + $0x858] sm:$0xff]
        %v1094 = vld [vmem:[#allocation9 + $0x860] sm:$0xff]
        %v1095 = vld [vmem:[#allocation9 + $0x868] sm:$0xff]
        %v1096 = vld [vmem:[#allocation9 + $0x870] sm:$0xff]
        %v1097 = vld [vmem:[#allocation9 + $0x878] sm:$0xff]
        %v1098 = vld [vmem:[#allocation9 + $0x880] sm:$0xff]
        %v1099 = vld [vmem:[#allocation9 + $0x888] sm:$0xff]
        %v1100 = vld [vmem:[#allocation9 + $0x890] sm:$0xff]
        %v1101 = vld [vmem:[#allocation9 + $0x898] sm:$0xff]
        %v1102 = vld [vmem:[#allocation9 + $0x8a0] sm:$0xff]
        %v1103 = vld [vmem:[#allocation9 + $0x8a8] sm:$0xff]
        %v1104 = vld [vmem:[#allocation9 + $0x8b0] sm:$0xff]
        %v1105 = vld [vmem:[#allocation9 + $0x8b8] sm:$0xff]
        %v1106 = vld [vmem:[#allocation9 + $0x8c0] sm:$0xff]
        %v1107 = vld [vmem:[#allocation9 + $0x8c8] sm:$0xff]
        %v1108 = vld [vmem:[#allocation9 + $0x8d0] sm:$0xff]
        %v1109 = vld [vmem:[#allocation9 + $0x8d8] sm:$0xff]
        %v1110 = vld [vmem:[#allocation9 + $0x8e0] sm:$0xff]
        %v1111 = vld [vmem:[#allocation9 + $0x8e8] sm:$0xff]
        %v1112 = vld [vmem:[#allocation9 + $0x8f0] sm:$0xff]
        %v1113 = vld [vmem:[#allocation9 + $0x8f8] sm:$0xff]
        %v1114 = vld [vmem:[#allocation9 + $0x900] sm:$0xff]
        %v1115 = vld [vmem:[#allocation9 + $0x908] sm:$0xff]
        %v1116 = vld [vmem:[#allocation9 + $0x910] sm:$0xff]
        %v1117 = vld [vmem:[#allocation9 + $0x918] sm:$0xff]
        %v1118 = vld [vmem:[#allocation9 + $0x920] sm:$0xff]
        %v1119 = vld [vmem:[#allocation9 + $0x928] sm:$0xff]
        %v1120 = vld [vmem:[#allocation9 + $0x930] sm:$0xff]
        %v1121 = vld [vmem:[#allocation9 + $0x938] sm:$0xff]
        %v1122 = vld [vmem:[#allocation9 + $0x940] sm:$0xff]
        %v1123 = vld [vmem:[#allocation9 + $0x948] sm:$0xff]
        %v1124 = vld [vmem:[#allocation9 + $0x950] sm:$0xff]
        %v1125 = vld [vmem:[#allocation9 + $0x958] sm:$0xff]
        %v1126 = vld [vmem:[#allocation9 + $0x960] sm:$0xff]
        %v1127 = vld [vmem:[#allocation9 + $0x968] sm:$0xff]
        %v1128 = vld [vmem:[#allocation9 + $0x970] sm:$0xff]
        %v1129 = vld [vmem:[#allocation9 + $0x978] sm:$0xff]
        %v1130 = vld [vmem:[#allocation9 + $0x980] sm:$0xff]
        %v1131 = vld [vmem:[#allocation9 + $0x988] sm:$0xff]
        %v1132 = vld [vmem:[#allocation9 + $0x990] sm:$0xff]
        %v1133 = vld [vmem:[#allocation9 + $0x998] sm:$0xff]
        %v1134 = vld [vmem:[#allocation9 + $0x9a0] sm:$0xff]
        %v1135 = vld [vmem:[#allocation9 + $0x9a8] sm:$0xff]
        %v1136 = vld [vmem:[#allocation9 + $0x9b0] sm:$0xff]
        %v1137 = vld [vmem:[#allocation9 + $0x9b8] sm:$0xff]
        %v1138 = vld [vmem:[#allocation9 + $0x9c0] sm:$0xff]
        %v1139 = vld [vmem:[#allocation9 + $0x9c8] sm:$0xff]
        %v1140 = vld [vmem:[#allocation9 + $0x9d0] sm:$0xff]
        %v1141 = vld [vmem:[#allocation9 + $0x9d8] sm:$0xff]
        %v1142 = vld [vmem:[#allocation9 + $0x9e0] sm:$0xff]
        %v1143 = vld [vmem:[#allocation9 + $0x9e8] sm:$0xff]
        %v1144 = vld [vmem:[#allocation9 + $0x9f0] sm:$0xff]
        %v1145 = vld [vmem:[#allocation9 + $0x9f8] sm:$0xff]
        %v1146 = vld [vmem:[#allocation9 + $0xa00] sm:$0xff]
        %v1147 = vld [vmem:[#allocation9 + $0xa08] sm:$0xff]
        %v1148 = vld [vmem:[#allocation9 + $0xa10] sm:$0xff]
        %v1149 = vld [vmem:[#allocation9 + $0xa18] sm:$0xff]
        %v1150 = vld [vmem:[#allocation9 + $0xa20] sm:$0xff]
        %v1151 = vld [vmem:[#allocation9 + $0xa28] sm:$0xff]
        %v1152 = vld [vmem:[#allocation9 + $0xa30] sm:$0xff]
        %v1153 = vld [vmem:[#allocation9 + $0xa38] sm:$0xff]
        %v1154 = vld [vmem:[#allocation9 + $0xa40] sm:$0xff]
        %v1155 = vld [vmem:[#allocation9 + $0xa48] sm:$0xff]
        %v1156 = vld [vmem:[#allocation9 + $0xa50] sm:$0xff]
        %v1157 = vld [vmem:[#allocation9 + $0xa58] sm:$0xff]
        %v1158 = vld [vmem:[#allocation9 + $0xa60] sm:$0xff]
        %v1159 = vld [vmem:[#allocation9 + $0xa68] sm:$0xff]
        %v1160 = vld [vmem:[#allocation9 + $0xa70] sm:$0xff]
        %v1161 = vld [vmem:[#allocation9 + $0xa78] sm:$0xff]
        %v1162 = vld [vmem:[#allocation9 + $0xa80] sm:$0xff]
        %v1163 = vld [vmem:[#allocation9 + $0xa88] sm:$0xff]
        %v1164 = vld [vmem:[#allocation9 + $0xa90] sm:$0xff]
        %v1165 = vld [vmem:[#allocation9 + $0xa98] sm:$0xff]
        %v1166 = vld [vmem:[#allocation9 + $0xaa0] sm:$0xff]
        %v1167 = vld [vmem:[#allocation9 + $0xaa8] sm:$0xff]
        %v1168 = vld [vmem:[#allocation9 + $0xab0] sm:$0xff]
        %v1169 = vld [vmem:[#allocation9 + $0xab8] sm:$0xff]
        %v1170 = vld [vmem:[#allocation9 + $0xac0] sm:$0xff]
        %v1171 = vld [vmem:[#allocation9 + $0xac8] sm:$0xff]
        %v1172 = vld [vmem:[#allocation9 + $0xad0] sm:$0xff]
        %v1173 = vld [vmem:[#allocation9 + $0xad8] sm:$0xff]
        %v1174 = vld [vmem:[#allocation9 + $0xae0] sm:$0xff]
        %v1175 = vld [vmem:[#allocation9 + $0xae8] sm:$0xff]
        %v1176 = vld [vmem:[#allocation9 + $0xaf0] sm:$0xff]
        %v1177 = vld [vmem:[#allocation9 + $0xaf8] sm:$0xff]
        %v1178 = vld [vmem:[#allocation9 + $0xb00] sm:$0xff]
        %v1179 = vld [vmem:[#allocation9 + $0xb08] sm:$0xff]
        %v1180 = vld [vmem:[#allocation9 + $0xb10] sm:$0xff]
        %v1181 = vld [vmem:[#allocation9 + $0xb18] sm:$0xff]
        %v1182 = vld [vmem:[#allocation9 + $0xb20] sm:$0xff]
        %v1183 = vld [vmem:[#allocation9 + $0xb28] sm:$0xff]
        %v1184 = vld [vmem:[#allocation9 + $0xb30] sm:$0xff]
        %v1185 = vld [vmem:[#allocation9 + $0xb38] sm:$0xff]
        %v1186 = vld [vmem:[#allocation9 + $0xb40] sm:$0xff]
        %v1187 = vld [vmem:[#allocation9 + $0xb48] sm:$0xff]
        %v1188 = vld [vmem:[#allocation9 + $0xb50] sm:$0xff]
        %v1189 = vld [vmem:[#allocation9 + $0xb58] sm:$0xff]
        %v1190 = vld [vmem:[#allocation9 + $0xb60] sm:$0xff]
        %v1191 = vld [vmem:[#allocation9 + $0xb68] sm:$0xff]
        %v1192 = vld [vmem:[#allocation9 + $0xb70] sm:$0xff]
        %v1193 = vld [vmem:[#allocation9 + $0xb78] sm:$0xff]
        %v1194 = vld [vmem:[#allocation9 + $0xb80] sm:$0xff]
        %v1195 = vld [vmem:[#allocation9 + $0xb88] sm:$0xff]
        %v1196 = vld [vmem:[#allocation9 + $0xb90] sm:$0xff]
        %v1197 = vld [vmem:[#allocation9 + $0xb98] sm:$0xff]
        %v1198 = vld [vmem:[#allocation9 + $0xba0] sm:$0xff]
        %v1199 = vld [vmem:[#allocation9 + $0xba8] sm:$0xff]
        %v1200 = vld [vmem:[#allocation9 + $0xbb0] sm:$0xff]
        %v1201 = vld [vmem:[#allocation9 + $0xbb8] sm:$0xff]
        %v1202 = vld [vmem:[#allocation9 + $0xbc0] sm:$0xff]
        %v1203 = vld [vmem:[#allocation9 + $0xbc8] sm:$0xff]
        %v1204 = vld [vmem:[#allocation9 + $0xbd0] sm:$0xff]
        %v1205 = vld [vmem:[#allocation9 + $0xbd8] sm:$0xff]
        %v1206 = vld [vmem:[#allocation9 + $0xbe0] sm:$0xff]
        %v1207 = vld [vmem:[#allocation9 + $0xbe8] sm:$0xff]
        %v1208 = vld [vmem:[#allocation9 + $0xbf0] sm:$0xff]
        %v1209 = vld [vmem:[#allocation9 + $0xbf8] sm:$0xff]
        %v1210 = vld [vmem:[#allocation11] sm:$0xff]
        %v1211 = vld [vmem:[#allocation11 + $0x8] sm:$0xf]
        %v1214 = vlaneseq
        %v1215 = vshrl.u32 %v1214, 7
        %v1216 = vsub.s32 0, %v1215
        %v1217 = vrot.slane %v1210, %v1216
        %v1218 = vlaneseq
        %v1219 = vshrl.u32 %v1218, 7
        %v1220 = vsub.s32 1, %v1219
        %v1221 = vrot.slane %v1210, %v1220
        %v1222 = vlaneseq
        %v1223 = vshrl.u32 %v1222, 7
        %v1224 = vsub.s32 2, %v1223
        %v1225 = vrot.slane %v1210, %v1224
        %v1226 = vlaneseq
        %v1227 = vshrl.u32 %v1226, 7
        %v1228 = vsub.s32 3, %v1227
        %v1229 = vrot.slane %v1210, %v1228
        %v1230 = vlaneseq
        %v1231 = vshrl.u32 %v1230, 7
        %v1232 = vsub.s32 4, %v1231
        %v1233 = vrot.slane %v1210, %v1232
        %v1234 = vlaneseq
        %v1235 = vshrl.u32 %v1234, 7
        %v1236 = vsub.s32 5, %v1235
        %v1237 = vrot.slane %v1210, %v1236
        %v1238 = vlaneseq
        %v1239 = vshrl.u32 %v1238, 7
        %v1240 = vsub.s32 6, %v1239
        %v1241 = vrot.slane %v1210, %v1240
        %v1242 = vlaneseq
        %v1243 = vshrl.u32 %v1242, 7
        %v1244 = vsub.s32 7, %v1243
        %v1245 = vrot.slane %v1210, %v1244
        %v1246 = vlaneseq
        %v1247 = vshrl.u32 %v1246, 7
        %v1248 = vsub.s32 0, %v1247
        %v1249 = vrot.slane %v1211, %v1248
        %v1250 = vlaneseq
        %v1251 = vshrl.u32 %v1250, 7
        %v1252 = vsub.s32 1, %v1251
        %v1253 = vrot.slane %v1211, %v1252
        %v1254 = vlaneseq
        %v1255 = vshrl.u32 %v1254, 7
        %v1256 = vsub.s32 2, %v1255
        %v1257 = vrot.slane %v1211, %v1256
        %v1258 = vlaneseq
        %v1259 = vshrl.u32 %v1258, 7
        %v1260 = vsub.s32 3, %v1259
        %v1261 = vrot.slane %v1211, %v1260
        %v1658 = vunpack.c.l.b16 %v826
        %v1659 = vunpack.c.h.b16 %v826
        %v1660 = vunpack.c.l.b16 %v827
        %v1661 = vunpack.c.h.b16 %v827
        %v1662 = vunpack.c.l.b16 %v828
        %v1663 = vunpack.c.h.b16 %v828
        %v1664 = vunpack.c.l.b16 %v829
        %v1665 = vunpack.c.h.b16 %v829
        %v1666 = vunpack.c.l.b16 %v830
        %v1667 = vunpack.c.h.b16 %v830
        %v1668 = vunpack.c.l.b16 %v831
        %v1669 = vunpack.c.h.b16 %v831
        %v1670 = vunpack.c.l.b16 %v832
        %v1671 = vunpack.c.h.b16 %v832
        %v1672 = vunpack.c.l.b16 %v833
        %v1673 = vunpack.c.h.b16 %v833
        %v1674 = vunpack.c.l.b16 %v834
        %v1675 = vunpack.c.h.b16 %v834
        %v1676 = vunpack.c.l.b16 %v835
        %v1677 = vunpack.c.h.b16 %v835
        %v1678 = vunpack.c.l.b16 %v836
        %v1679 = vunpack.c.h.b16 %v836
        %v1680 = vunpack.c.l.b16 %v837
        %v1681 = vunpack.c.h.b16 %v837
        %v1682 = vunpack.c.l.b16 %v838
        %v1683 = vunpack.c.h.b16 %v838
        %v1684 = vunpack.c.l.b16 %v839
        %v1685 = vunpack.c.h.b16 %v839
        %v1686 = vunpack.c.l.b16 %v840
        %v1687 = vunpack.c.h.b16 %v840
        %v1688 = vunpack.c.l.b16 %v841
        %v1689 = vunpack.c.h.b16 %v841
        %v1690 = vunpack.c.l.b16 %v842
        %v1691 = vunpack.c.h.b16 %v842
        %v1692 = vunpack.c.l.b16 %v843
        %v1693 = vunpack.c.h.b16 %v843
        %v1694 = vunpack.c.l.b16 %v844
        %v1695 = vunpack.c.h.b16 %v844
        %v1696 = vunpack.c.l.b16 %v845
        %v1697 = vunpack.c.h.b16 %v845
        %v1698 = vunpack.c.l.b16 %v846
        %v1699 = vunpack.c.h.b16 %v846
        %v1700 = vunpack.c.l.b16 %v847
        %v1701 = vunpack.c.h.b16 %v847
        %v1702 = vunpack.c.l.b16 %v848
        %v1703 = vunpack.c.h.b16 %v848
        %v1704 = vunpack.c.l.b16 %v849
        %v1705 = vunpack.c.h.b16 %v849
        %v1706 = vunpack.c.l.b16 %v850
        %v1707 = vunpack.c.h.b16 %v850
        %v1708 = vunpack.c.l.b16 %v851
        %v1709 = vunpack.c.h.b16 %v851
        %v1710 = vunpack.c.l.b16 %v852
        %v1711 = vunpack.c.h.b16 %v852
        %v1712 = vunpack.c.l.b16 %v853
        %v1713 = vunpack.c.h.b16 %v853
        %v1714 = vunpack.c.l.b16 %v854
        %v1715 = vunpack.c.h.b16 %v854
        %v1716 = vunpack.c.l.b16 %v855
        %v1717 = vunpack.c.h.b16 %v855
        %v1718 = vunpack.c.l.b16 %v856
        %v1719 = vunpack.c.h.b16 %v856
        %v1720 = vunpack.c.l.b16 %v857
        %v1721 = vunpack.c.h.b16 %v857
        %v1722 = vunpack.c.l.b16 %v858
        %v1723 = vunpack.c.h.b16 %v858
        %v1724 = vunpack.c.l.b16 %v859
        %v1725 = vunpack.c.h.b16 %v859
        %v1726 = vunpack.c.l.b16 %v860
        %v1727 = vunpack.c.h.b16 %v860
        %v1728 = vunpack.c.l.b16 %v861
        %v1729 = vunpack.c.h.b16 %v861
        %v1730 = vunpack.c.l.b16 %v862
        %v1731 = vunpack.c.h.b16 %v862
        %v1732 = vunpack.c.l.b16 %v863
        %v1733 = vunpack.c.h.b16 %v863
        %v1734 = vunpack.c.l.b16 %v864
        %v1735 = vunpack.c.h.b16 %v864
        %v1736 = vunpack.c.l.b16 %v865
        %v1737 = vunpack.c.h.b16 %v865
        %v1738 = vunpack.c.l.b16 %v866
        %v1739 = vunpack.c.h.b16 %v866
        %v1740 = vunpack.c.l.b16 %v867
        %v1741 = vunpack.c.h.b16 %v867
        %v1742 = vunpack.c.l.b16 %v868
        %v1743 = vunpack.c.h.b16 %v868
        %v1744 = vunpack.c.l.b16 %v869
        %v1745 = vunpack.c.h.b16 %v869
        %v1746 = vunpack.c.l.b16 %v870
        %v1747 = vunpack.c.h.b16 %v870
        %v1748 = vunpack.c.l.b16 %v871
        %v1749 = vunpack.c.h.b16 %v871
        %v1750 = vunpack.c.l.b16 %v872
        %v1751 = vunpack.c.h.b16 %v872
        %v1752 = vunpack.c.l.b16 %v873
        %v1753 = vunpack.c.h.b16 %v873
        %v1754 = vunpack.c.l.b16 %v874
        %v1755 = vunpack.c.h.b16 %v874
        %v1756 = vunpack.c.l.b16 %v875
        %v1757 = vunpack.c.h.b16 %v875
        %v1758 = vunpack.c.l.b16 %v876
        %v1759 = vunpack.c.h.b16 %v876
        %v1760 = vunpack.c.l.b16 %v877
        %v1761 = vunpack.c.h.b16 %v877
        %v1762 = vunpack.c.l.b16 %v878
        %v1763 = vunpack.c.h.b16 %v878
        %v1764 = vunpack.c.l.b16 %v879
        %v1765 = vunpack.c.h.b16 %v879
        %v1766 = vunpack.c.l.b16 %v880
        %v1767 = vunpack.c.h.b16 %v880
        %v1768 = vunpack.c.l.b16 %v881
        %v1769 = vunpack.c.h.b16 %v881
        %v1770 = vunpack.c.l.b16 %v882
        %v1771 = vunpack.c.h.b16 %v882
        %v1772 = vunpack.c.l.b16 %v883
        %v1773 = vunpack.c.h.b16 %v883
        %v1774 = vunpack.c.l.b16 %v884
        %v1775 = vunpack.c.h.b16 %v884
        %v1776 = vunpack.c.l.b16 %v885
        %v1777 = vunpack.c.h.b16 %v885
        %v1778 = vunpack.c.l.b16 %v886
        %v1779 = vunpack.c.h.b16 %v886
        %v1780 = vunpack.c.l.b16 %v887
        %v1781 = vunpack.c.h.b16 %v887
        %v1782 = vunpack.c.l.b16 %v888
        %v1783 = vunpack.c.h.b16 %v888
        %v1784 = vunpack.c.l.b16 %v889
        %v1785 = vunpack.c.h.b16 %v889
        %v1786 = vunpack.c.l.b16 %v890
        %v1787 = vunpack.c.h.b16 %v890
        %v1788 = vunpack.c.l.b16 %v891
        %v1789 = vunpack.c.h.b16 %v891
        %v1790 = vunpack.c.l.b16 %v892
        %v1791 = vunpack.c.h.b16 %v892
        %v1792 = vunpack.c.l.b16 %v893
        %v1793 = vunpack.c.h.b16 %v893
        %v1794 = vunpack.c.l.b16 %v894
        %v1795 = vunpack.c.h.b16 %v894
        %v1796 = vunpack.c.l.b16 %v895
        %v1797 = vunpack.c.h.b16 %v895
        %v1798 = vunpack.c.l.b16 %v896
        %v1799 = vunpack.c.h.b16 %v896
        %v1800 = vunpack.c.l.b16 %v897
        %v1801 = vunpack.c.h.b16 %v897
        %v1802 = vunpack.c.l.b16 %v898
        %v1803 = vunpack.c.h.b16 %v898
        %v1804 = vunpack.c.l.b16 %v899
        %v1805 = vunpack.c.h.b16 %v899
        %v1806 = vunpack.c.l.b16 %v900
        %v1807 = vunpack.c.h.b16 %v900
        %v1808 = vunpack.c.l.b16 %v901
        %v1809 = vunpack.c.h.b16 %v901
        %v1810 = vunpack.c.l.b16 %v902
        %v1811 = vunpack.c.h.b16 %v902
        %v1812 = vunpack.c.l.b16 %v903
        %v1813 = vunpack.c.h.b16 %v903
        %v1814 = vunpack.c.l.b16 %v904
        %v1815 = vunpack.c.h.b16 %v904
        %v1816 = vunpack.c.l.b16 %v905
        %v1817 = vunpack.c.h.b16 %v905
        %v1818 = vunpack.c.l.b16 %v906
        %v1819 = vunpack.c.h.b16 %v906
        %v1820 = vunpack.c.l.b16 %v907
        %v1821 = vunpack.c.h.b16 %v907
        %v1822 = vunpack.c.l.b16 %v908
        %v1823 = vunpack.c.h.b16 %v908
        %v1824 = vunpack.c.l.b16 %v909
        %v1825 = vunpack.c.h.b16 %v909
        %v1826 = vunpack.c.l.b16 %v910
        %v1827 = vunpack.c.h.b16 %v910
        %v1828 = vunpack.c.l.b16 %v911
        %v1829 = vunpack.c.h.b16 %v911
        %v1830 = vunpack.c.l.b16 %v912
        %v1831 = vunpack.c.h.b16 %v912
        %v1832 = vunpack.c.l.b16 %v913
        %v1833 = vunpack.c.h.b16 %v913
        %v1834 = vunpack.c.l.b16 %v914
        %v1835 = vunpack.c.h.b16 %v914
        %v1836 = vunpack.c.l.b16 %v915
        %v1837 = vunpack.c.h.b16 %v915
        %v1838 = vunpack.c.l.b16 %v916
        %v1839 = vunpack.c.h.b16 %v916
        %v1840 = vunpack.c.l.b16 %v917
        %v1841 = vunpack.c.h.b16 %v917
        %v1842 = vunpack.c.l.b16 %v918
        %v1843 = vunpack.c.h.b16 %v918
        %v1844 = vunpack.c.l.b16 %v919
        %v1845 = vunpack.c.h.b16 %v919
        %v1846 = vunpack.c.l.b16 %v920
        %v1847 = vunpack.c.h.b16 %v920
        %v1848 = vunpack.c.l.b16 %v921
        %v1849 = vunpack.c.h.b16 %v921
        %v1850 = vunpack.c.l.b16 %v922
        %v1851 = vunpack.c.h.b16 %v922
        %v1852 = vunpack.c.l.b16 %v923
        %v1853 = vunpack.c.h.b16 %v923
        %v1854 = vunpack.c.l.b16 %v924
        %v1855 = vunpack.c.h.b16 %v924
        %v1856 = vunpack.c.l.b16 %v925
        %v1857 = vunpack.c.h.b16 %v925
        %v1858 = vunpack.c.l.b16 %v926
        %v1859 = vunpack.c.h.b16 %v926
        %v1860 = vunpack.c.l.b16 %v927
        %v1861 = vunpack.c.h.b16 %v927
        %v1862 = vunpack.c.l.b16 %v928
        %v1863 = vunpack.c.h.b16 %v928
        %v1864 = vunpack.c.l.b16 %v929
        %v1865 = vunpack.c.h.b16 %v929
        %v1866 = vunpack.c.l.b16 %v930
        %v1867 = vunpack.c.h.b16 %v930
        %v1868 = vunpack.c.l.b16 %v931
        %v1869 = vunpack.c.h.b16 %v931
        %v1870 = vunpack.c.l.b16 %v932
        %v1871 = vunpack.c.h.b16 %v932
        %v1872 = vunpack.c.l.b16 %v933
        %v1873 = vunpack.c.h.b16 %v933
        %v1874 = vunpack.c.l.b16 %v934
        %v1875 = vunpack.c.h.b16 %v934
        %v1876 = vunpack.c.l.b16 %v935
        %v1877 = vunpack.c.h.b16 %v935
        %v1878 = vunpack.c.l.b16 %v936
        %v1879 = vunpack.c.h.b16 %v936
        %v1880 = vunpack.c.l.b16 %v937
        %v1881 = vunpack.c.h.b16 %v937
        %v1882 = vunpack.c.l.b16 %v938
        %v1883 = vunpack.c.h.b16 %v938
        %v1884 = vunpack.c.l.b16 %v939
        %v1885 = vunpack.c.h.b16 %v939
        %v1886 = vunpack.c.l.b16 %v940
        %v1887 = vunpack.c.h.b16 %v940
        %v1888 = vunpack.c.l.b16 %v941
        %v1889 = vunpack.c.h.b16 %v941
        %v1890 = vunpack.c.l.b16 %v942
        %v1891 = vunpack.c.h.b16 %v942
        %v1892 = vunpack.c.l.b16 %v943
        %v1893 = vunpack.c.h.b16 %v943
        %v1894 = vunpack.c.l.b16 %v944
        %v1895 = vunpack.c.h.b16 %v944
        %v1896 = vunpack.c.l.b16 %v945
        %v1897 = vunpack.c.h.b16 %v945
        %v1898 = vunpack.c.l.b16 %v946
        %v1899 = vunpack.c.h.b16 %v946
        %v1900 = vunpack.c.l.b16 %v947
        %v1901 = vunpack.c.h.b16 %v947
        %v1902 = vunpack.c.l.b16 %v948
        %v1903 = vunpack.c.h.b16 %v948
        %v1904 = vunpack.c.l.b16 %v949
        %v1905 = vunpack.c.h.b16 %v949
        %v1906 = vunpack.c.l.b16 %v950
        %v1907 = vunpack.c.h.b16 %v950
        %v1908 = vunpack.c.l.b16 %v951
        %v1909 = vunpack.c.h.b16 %v951
        %v1910 = vunpack.c.l.b16 %v952
        %v1911 = vunpack.c.h.b16 %v952
        %v1912 = vunpack.c.l.b16 %v953
        %v1913 = vunpack.c.h.b16 %v953
        %v1914 = vunpack.c.l.b16 %v954
        %v1915 = vunpack.c.h.b16 %v954
        %v1916 = vunpack.c.l.b16 %v955
        %v1917 = vunpack.c.h.b16 %v955
        %v1918 = vunpack.c.l.b16 %v956
        %v1919 = vunpack.c.h.b16 %v956
        %v1920 = vunpack.c.l.b16 %v957
        %v1921 = vunpack.c.h.b16 %v957
        %v1922 = vunpack.c.l.b16 %v958
        %v1923 = vunpack.c.h.b16 %v958
        %v1924 = vunpack.c.l.b16 %v959
        %v1925 = vunpack.c.h.b16 %v959
        %v1926 = vunpack.c.l.b16 %v960
        %v1927 = vunpack.c.h.b16 %v960
        %v1928 = vunpack.c.l.b16 %v961
        %v1929 = vunpack.c.h.b16 %v961
        %v1930 = vunpack.c.l.b16 %v962
        %v1931 = vunpack.c.h.b16 %v962
        %v1932 = vunpack.c.l.b16 %v963
        %v1933 = vunpack.c.h.b16 %v963
        %v1934 = vunpack.c.l.b16 %v964
        %v1935 = vunpack.c.h.b16 %v964
        %v1936 = vunpack.c.l.b16 %v965
        %v1937 = vunpack.c.h.b16 %v965
        %v1938 = vunpack.c.l.b16 %v966
        %v1939 = vunpack.c.h.b16 %v966
        %v1940 = vunpack.c.l.b16 %v967
        %v1941 = vunpack.c.h.b16 %v967
        %v1942 = vunpack.c.l.b16 %v968
        %v1943 = vunpack.c.h.b16 %v968
        %v1944 = vunpack.c.l.b16 %v969
        %v1945 = vunpack.c.h.b16 %v969
        %v1946 = vunpack.c.l.b16 %v970
        %v1947 = vunpack.c.h.b16 %v970
        %v1948 = vunpack.c.l.b16 %v971
        %v1949 = vunpack.c.h.b16 %v971
        %v1950 = vunpack.c.l.b16 %v972
        %v1951 = vunpack.c.h.b16 %v972
        %v1952 = vunpack.c.l.b16 %v973
        %v1953 = vunpack.c.h.b16 %v973
        %v1954 = vunpack.c.l.b16 %v974
        %v1955 = vunpack.c.h.b16 %v974
        %v1956 = vunpack.c.l.b16 %v975
        %v1957 = vunpack.c.h.b16 %v975
        %v1958 = vunpack.c.l.b16 %v976
        %v1959 = vunpack.c.h.b16 %v976
        %v1960 = vunpack.c.l.b16 %v977
        %v1961 = vunpack.c.h.b16 %v977
        %v1962 = vunpack.c.l.b16 %v978
        %v1963 = vunpack.c.h.b16 %v978
        %v1964 = vunpack.c.l.b16 %v979
        %v1965 = vunpack.c.h.b16 %v979
        %v1966 = vunpack.c.l.b16 %v980
        %v1967 = vunpack.c.h.b16 %v980
        %v1968 = vunpack.c.l.b16 %v981
        %v1969 = vunpack.c.h.b16 %v981
        %v1970 = vunpack.c.l.b16 %v982
        %v1971 = vunpack.c.h.b16 %v982
        %v1972 = vunpack.c.l.b16 %v983
        %v1973 = vunpack.c.h.b16 %v983
        %v1974 = vunpack.c.l.b16 %v984
        %v1975 = vunpack.c.h.b16 %v984
        %v1976 = vunpack.c.l.b16 %v985
        %v1977 = vunpack.c.h.b16 %v985
        %v1978 = vunpack.c.l.b16 %v986
        %v1979 = vunpack.c.h.b16 %v986
        %v1980 = vunpack.c.l.b16 %v987
        %v1981 = vunpack.c.h.b16 %v987
        %v1982 = vunpack.c.l.b16 %v988
        %v1983 = vunpack.c.h.b16 %v988
        %v1984 = vunpack.c.l.b16 %v989
        %v1985 = vunpack.c.h.b16 %v989
        %v1986 = vunpack.c.l.b16 %v990
        %v1987 = vunpack.c.h.b16 %v990
        %v1988 = vunpack.c.l.b16 %v991
        %v1989 = vunpack.c.h.b16 %v991
        %v1990 = vunpack.c.l.b16 %v992
        %v1991 = vunpack.c.h.b16 %v992
        %v1992 = vunpack.c.l.b16 %v993
        %v1993 = vunpack.c.h.b16 %v993
        %v1994 = vunpack.c.l.b16 %v994
        %v1995 = vunpack.c.h.b16 %v994
        %v1996 = vunpack.c.l.b16 %v995
        %v1997 = vunpack.c.h.b16 %v995
        %v1998 = vunpack.c.l.b16 %v996
        %v1999 = vunpack.c.h.b16 %v996
        %v2000 = vunpack.c.l.b16 %v997
        %v2001 = vunpack.c.h.b16 %v997
        %v2002 = vunpack.c.l.b16 %v998
        %v2003 = vunpack.c.h.b16 %v998
        %v2004 = vunpack.c.l.b16 %v999
        %v2005 = vunpack.c.h.b16 %v999
        %v2006 = vunpack.c.l.b16 %v1000
        %v2007 = vunpack.c.h.b16 %v1000
        %v2008 = vunpack.c.l.b16 %v1001
        %v2009 = vunpack.c.h.b16 %v1001
        %v2010 = vunpack.c.l.b16 %v1002
        %v2011 = vunpack.c.h.b16 %v1002
        %v2012 = vunpack.c.l.b16 %v1003
        %v2013 = vunpack.c.h.b16 %v1003
        %v2014 = vunpack.c.l.b16 %v1004
        %v2015 = vunpack.c.h.b16 %v1004
        %v2016 = vunpack.c.l.b16 %v1005
        %v2017 = vunpack.c.h.b16 %v1005
        %v2018 = vunpack.c.l.b16 %v1006
        %v2019 = vunpack.c.h.b16 %v1006
        %v2020 = vunpack.c.l.b16 %v1007
        %v2021 = vunpack.c.h.b16 %v1007
        %v2022 = vunpack.c.l.b16 %v1008
        %v2023 = vunpack.c.h.b16 %v1008
        %v2024 = vunpack.c.l.b16 %v1009
        %v2025 = vunpack.c.h.b16 %v1009
        %v2026 = vunpack.c.l.b16 %v1010
        %v2027 = vunpack.c.h.b16 %v1010
        %v2028 = vunpack.c.l.b16 %v1011
        %v2029 = vunpack.c.h.b16 %v1011
        %v2030 = vunpack.c.l.b16 %v1012
        %v2031 = vunpack.c.h.b16 %v1012
        %v2032 = vunpack.c.l.b16 %v1013
        %v2033 = vunpack.c.h.b16 %v1013
        %v2034 = vunpack.c.l.b16 %v1014
        %v2035 = vunpack.c.h.b16 %v1014
        %v2036 = vunpack.c.l.b16 %v1015
        %v2037 = vunpack.c.h.b16 %v1015
        %v2038 = vunpack.c.l.b16 %v1016
        %v2039 = vunpack.c.h.b16 %v1016
        %v2040 = vunpack.c.l.b16 %v1017
        %v2041 = vunpack.c.h.b16 %v1017
        %v2042 = vunpack.c.l.b16 %v1018
        %v2043 = vunpack.c.h.b16 %v1018
        %v2044 = vunpack.c.l.b16 %v1019
        %v2045 = vunpack.c.h.b16 %v1019
        %v2046 = vunpack.c.l.b16 %v1020
        %v2047 = vunpack.c.h.b16 %v1020
        %v2048 = vunpack.c.l.b16 %v1021
        %v2049 = vunpack.c.h.b16 %v1021
        %v2050 = vunpack.c.l.b16 %v1022
        %v2051 = vunpack.c.h.b16 %v1022
        %v2052 = vunpack.c.l.b16 %v1023
        %v2053 = vunpack.c.h.b16 %v1023
        %v2054 = vunpack.c.l.b16 %v1024
        %v2055 = vunpack.c.h.b16 %v1024
        %v2056 = vunpack.c.l.b16 %v1025
        %v2057 = vunpack.c.h.b16 %v1025
        %v2058 = vunpack.c.l.b16 %v1026
        %v2059 = vunpack.c.h.b16 %v1026
        %v2060 = vunpack.c.l.b16 %v1027
        %v2061 = vunpack.c.h.b16 %v1027
        %v2062 = vunpack.c.l.b16 %v1028
        %v2063 = vunpack.c.h.b16 %v1028
        %v2064 = vunpack.c.l.b16 %v1029
        %v2065 = vunpack.c.h.b16 %v1029
        %v2066 = vunpack.c.l.b16 %v1030
        %v2067 = vunpack.c.h.b16 %v1030
        %v2068 = vunpack.c.l.b16 %v1031
        %v2069 = vunpack.c.h.b16 %v1031
        %v2070 = vunpack.c.l.b16 %v1032
        %v2071 = vunpack.c.h.b16 %v1032
        %v2072 = vunpack.c.l.b16 %v1033
        %v2073 = vunpack.c.h.b16 %v1033
        %v2074 = vunpack.c.l.b16 %v1034
        %v2075 = vunpack.c.h.b16 %v1034
        %v2076 = vunpack.c.l.b16 %v1035
        %v2077 = vunpack.c.h.b16 %v1035
        %v2078 = vunpack.c.l.b16 %v1036
        %v2079 = vunpack.c.h.b16 %v1036
        %v2080 = vunpack.c.l.b16 %v1037
        %v2081 = vunpack.c.h.b16 %v1037
        %v2082 = vunpack.c.l.b16 %v1038
        %v2083 = vunpack.c.h.b16 %v1038
        %v2084 = vunpack.c.l.b16 %v1039
        %v2085 = vunpack.c.h.b16 %v1039
        %v2086 = vunpack.c.l.b16 %v1040
        %v2087 = vunpack.c.h.b16 %v1040
        %v2088 = vunpack.c.l.b16 %v1041
        %v2089 = vunpack.c.h.b16 %v1041
        %v2090 = vunpack.c.l.b16 %v1042
        %v2091 = vunpack.c.h.b16 %v1042
        %v2092 = vunpack.c.l.b16 %v1043
        %v2093 = vunpack.c.h.b16 %v1043
        %v2094 = vunpack.c.l.b16 %v1044
        %v2095 = vunpack.c.h.b16 %v1044
        %v2096 = vunpack.c.l.b16 %v1045
        %v2097 = vunpack.c.h.b16 %v1045
        %v2098 = vunpack.c.l.b16 %v1046
        %v2099 = vunpack.c.h.b16 %v1046
        %v2100 = vunpack.c.l.b16 %v1047
        %v2101 = vunpack.c.h.b16 %v1047
        %v2102 = vunpack.c.l.b16 %v1048
        %v2103 = vunpack.c.h.b16 %v1048
        %v2104 = vunpack.c.l.b16 %v1049
        %v2105 = vunpack.c.h.b16 %v1049
        %v2106 = vunpack.c.l.b16 %v1050
        %v2107 = vunpack.c.h.b16 %v1050
        %v2108 = vunpack.c.l.b16 %v1051
        %v2109 = vunpack.c.h.b16 %v1051
        %v2110 = vunpack.c.l.b16 %v1052
        %v2111 = vunpack.c.h.b16 %v1052
        %v2112 = vunpack.c.l.b16 %v1053
        %v2113 = vunpack.c.h.b16 %v1053
        %v2114 = vunpack.c.l.b16 %v1054
        %v2115 = vunpack.c.h.b16 %v1054
        %v2116 = vunpack.c.l.b16 %v1055
        %v2117 = vunpack.c.h.b16 %v1055
        %v2118 = vunpack.c.l.b16 %v1056
        %v2119 = vunpack.c.h.b16 %v1056
        %v2120 = vunpack.c.l.b16 %v1057
        %v2121 = vunpack.c.h.b16 %v1057
        %v2122 = vunpack.c.l.b16 %v1058
        %v2123 = vunpack.c.h.b16 %v1058
        %v2124 = vunpack.c.l.b16 %v1059
        %v2125 = vunpack.c.h.b16 %v1059
        %v2126 = vunpack.c.l.b16 %v1060
        %v2127 = vunpack.c.h.b16 %v1060
        %v2128 = vunpack.c.l.b16 %v1061
        %v2129 = vunpack.c.h.b16 %v1061
        %v2130 = vunpack.c.l.b16 %v1062
        %v2131 = vunpack.c.h.b16 %v1062
        %v2132 = vunpack.c.l.b16 %v1063
        %v2133 = vunpack.c.h.b16 %v1063
        %v2134 = vunpack.c.l.b16 %v1064
        %v2135 = vunpack.c.h.b16 %v1064
        %v2136 = vunpack.c.l.b16 %v1065
        %v2137 = vunpack.c.h.b16 %v1065
        %v2138 = vunpack.c.l.b16 %v1066
        %v2139 = vunpack.c.h.b16 %v1066
        %v2140 = vunpack.c.l.b16 %v1067
        %v2141 = vunpack.c.h.b16 %v1067
        %v2142 = vunpack.c.l.b16 %v1068
        %v2143 = vunpack.c.h.b16 %v1068
        %v2144 = vunpack.c.l.b16 %v1069
        %v2145 = vunpack.c.h.b16 %v1069
        %v2146 = vunpack.c.l.b16 %v1070
        %v2147 = vunpack.c.h.b16 %v1070
        %v2148 = vunpack.c.l.b16 %v1071
        %v2149 = vunpack.c.h.b16 %v1071
        %v2150 = vunpack.c.l.b16 %v1072
        %v2151 = vunpack.c.h.b16 %v1072
        %v2152 = vunpack.c.l.b16 %v1073
        %v2153 = vunpack.c.h.b16 %v1073
        %v2154 = vunpack.c.l.b16 %v1074
        %v2155 = vunpack.c.h.b16 %v1074
        %v2156 = vunpack.c.l.b16 %v1075
        %v2157 = vunpack.c.h.b16 %v1075
        %v2158 = vunpack.c.l.b16 %v1076
        %v2159 = vunpack.c.h.b16 %v1076
        %v2160 = vunpack.c.l.b16 %v1077
        %v2161 = vunpack.c.h.b16 %v1077
        %v2162 = vunpack.c.l.b16 %v1078
        %v2163 = vunpack.c.h.b16 %v1078
        %v2164 = vunpack.c.l.b16 %v1079
        %v2165 = vunpack.c.h.b16 %v1079
        %v2166 = vunpack.c.l.b16 %v1080
        %v2167 = vunpack.c.h.b16 %v1080
        %v2168 = vunpack.c.l.b16 %v1081
        %v2169 = vunpack.c.h.b16 %v1081
        %v2170 = vunpack.c.l.b16 %v1082
        %v2171 = vunpack.c.h.b16 %v1082
        %v2172 = vunpack.c.l.b16 %v1083
        %v2173 = vunpack.c.h.b16 %v1083
        %v2174 = vunpack.c.l.b16 %v1084
        %v2175 = vunpack.c.h.b16 %v1084
        %v2176 = vunpack.c.l.b16 %v1085
        %v2177 = vunpack.c.h.b16 %v1085
        %v2178 = vunpack.c.l.b16 %v1086
        %v2179 = vunpack.c.h.b16 %v1086
        %v2180 = vunpack.c.l.b16 %v1087
        %v2181 = vunpack.c.h.b16 %v1087
        %v2182 = vunpack.c.l.b16 %v1088
        %v2183 = vunpack.c.h.b16 %v1088
        %v2184 = vunpack.c.l.b16 %v1089
        %v2185 = vunpack.c.h.b16 %v1089
        %v2186 = vunpack.c.l.b16 %v1090
        %v2187 = vunpack.c.h.b16 %v1090
        %v2188 = vunpack.c.l.b16 %v1091
        %v2189 = vunpack.c.h.b16 %v1091
        %v2190 = vunpack.c.l.b16 %v1092
        %v2191 = vunpack.c.h.b16 %v1092
        %v2192 = vunpack.c.l.b16 %v1093
        %v2193 = vunpack.c.h.b16 %v1093
        %v2194 = vunpack.c.l.b16 %v1094
        %v2195 = vunpack.c.h.b16 %v1094
        %v2196 = vunpack.c.l.b16 %v1095
        %v2197 = vunpack.c.h.b16 %v1095
        %v2198 = vunpack.c.l.b16 %v1096
        %v2199 = vunpack.c.h.b16 %v1096
        %v2200 = vunpack.c.l.b16 %v1097
        %v2201 = vunpack.c.h.b16 %v1097
        %v2202 = vunpack.c.l.b16 %v1098
        %v2203 = vunpack.c.h.b16 %v1098
        %v2204 = vunpack.c.l.b16 %v1099
        %v2205 = vunpack.c.h.b16 %v1099
        %v2206 = vunpack.c.l.b16 %v1100
        %v2207 = vunpack.c.h.b16 %v1100
        %v2208 = vunpack.c.l.b16 %v1101
        %v2209 = vunpack.c.h.b16 %v1101
        %v2210 = vunpack.c.l.b16 %v1102
        %v2211 = vunpack.c.h.b16 %v1102
        %v2212 = vunpack.c.l.b16 %v1103
        %v2213 = vunpack.c.h.b16 %v1103
        %v2214 = vunpack.c.l.b16 %v1104
        %v2215 = vunpack.c.h.b16 %v1104
        %v2216 = vunpack.c.l.b16 %v1105
        %v2217 = vunpack.c.h.b16 %v1105
        %v2218 = vunpack.c.l.b16 %v1106
        %v2219 = vunpack.c.h.b16 %v1106
        %v2220 = vunpack.c.l.b16 %v1107
        %v2221 = vunpack.c.h.b16 %v1107
        %v2222 = vunpack.c.l.b16 %v1108
        %v2223 = vunpack.c.h.b16 %v1108
        %v2224 = vunpack.c.l.b16 %v1109
        %v2225 = vunpack.c.h.b16 %v1109
        %v2226 = vunpack.c.l.b16 %v1110
        %v2227 = vunpack.c.h.b16 %v1110
        %v2228 = vunpack.c.l.b16 %v1111
        %v2229 = vunpack.c.h.b16 %v1111
        %v2230 = vunpack.c.l.b16 %v1112
        %v2231 = vunpack.c.h.b16 %v1112
        %v2232 = vunpack.c.l.b16 %v1113
        %v2233 = vunpack.c.h.b16 %v1113
        %v2234 = vunpack.c.l.b16 %v1114
        %v2235 = vunpack.c.h.b16 %v1114
        %v2236 = vunpack.c.l.b16 %v1115
        %v2237 = vunpack.c.h.b16 %v1115
        %v2238 = vunpack.c.l.b16 %v1116
        %v2239 = vunpack.c.h.b16 %v1116
        %v2240 = vunpack.c.l.b16 %v1117
        %v2241 = vunpack.c.h.b16 %v1117
        %v2242 = vunpack.c.l.b16 %v1118
        %v2243 = vunpack.c.h.b16 %v1118
        %v2244 = vunpack.c.l.b16 %v1119
        %v2245 = vunpack.c.h.b16 %v1119
        %v2246 = vunpack.c.l.b16 %v1120
        %v2247 = vunpack.c.h.b16 %v1120
        %v2248 = vunpack.c.l.b16 %v1121
        %v2249 = vunpack.c.h.b16 %v1121
        %v2250 = vunpack.c.l.b16 %v1122
        %v2251 = vunpack.c.h.b16 %v1122
        %v2252 = vunpack.c.l.b16 %v1123
        %v2253 = vunpack.c.h.b16 %v1123
        %v2254 = vunpack.c.l.b16 %v1124
        %v2255 = vunpack.c.h.b16 %v1124
        %v2256 = vunpack.c.l.b16 %v1125
        %v2257 = vunpack.c.h.b16 %v1125
        %v2258 = vunpack.c.l.b16 %v1126
        %v2259 = vunpack.c.h.b16 %v1126
        %v2260 = vunpack.c.l.b16 %v1127
        %v2261 = vunpack.c.h.b16 %v1127
        %v2262 = vunpack.c.l.b16 %v1128
        %v2263 = vunpack.c.h.b16 %v1128
        %v2264 = vunpack.c.l.b16 %v1129
        %v2265 = vunpack.c.h.b16 %v1129
        %v2266 = vunpack.c.l.b16 %v1130
        %v2267 = vunpack.c.h.b16 %v1130
        %v2268 = vunpack.c.l.b16 %v1131
        %v2269 = vunpack.c.h.b16 %v1131
        %v2270 = vunpack.c.l.b16 %v1132
        %v2271 = vunpack.c.h.b16 %v1132
        %v2272 = vunpack.c.l.b16 %v1133
        %v2273 = vunpack.c.h.b16 %v1133
        %v2274 = vunpack.c.l.b16 %v1134
        %v2275 = vunpack.c.h.b16 %v1134
        %v2276 = vunpack.c.l.b16 %v1135
        %v2277 = vunpack.c.h.b16 %v1135
        %v2278 = vunpack.c.l.b16 %v1136
        %v2279 = vunpack.c.h.b16 %v1136
        %v2280 = vunpack.c.l.b16 %v1137
        %v2281 = vunpack.c.h.b16 %v1137
        %v2282 = vunpack.c.l.b16 %v1138
        %v2283 = vunpack.c.h.b16 %v1138
        %v2284 = vunpack.c.l.b16 %v1139
        %v2285 = vunpack.c.h.b16 %v1139
        %v2286 = vunpack.c.l.b16 %v1140
        %v2287 = vunpack.c.h.b16 %v1140
        %v2288 = vunpack.c.l.b16 %v1141
        %v2289 = vunpack.c.h.b16 %v1141
        %v2290 = vunpack.c.l.b16 %v1142
        %v2291 = vunpack.c.h.b16 %v1142
        %v2292 = vunpack.c.l.b16 %v1143
        %v2293 = vunpack.c.h.b16 %v1143
        %v2294 = vunpack.c.l.b16 %v1144
        %v2295 = vunpack.c.h.b16 %v1144
        %v2296 = vunpack.c.l.b16 %v1145
        %v2297 = vunpack.c.h.b16 %v1145
        %v2298 = vunpack.c.l.b16 %v1146
        %v2299 = vunpack.c.h.b16 %v1146
        %v2300 = vunpack.c.l.b16 %v1147
        %v2301 = vunpack.c.h.b16 %v1147
        %v2302 = vunpack.c.l.b16 %v1148
        %v2303 = vunpack.c.h.b16 %v1148
        %v2304 = vunpack.c.l.b16 %v1149
        %v2305 = vunpack.c.h.b16 %v1149
        %v2306 = vunpack.c.l.b16 %v1150
        %v2307 = vunpack.c.h.b16 %v1150
        %v2308 = vunpack.c.l.b16 %v1151
        %v2309 = vunpack.c.h.b16 %v1151
        %v2310 = vunpack.c.l.b16 %v1152
        %v2311 = vunpack.c.h.b16 %v1152
        %v2312 = vunpack.c.l.b16 %v1153
        %v2313 = vunpack.c.h.b16 %v1153
        %v2314 = vunpack.c.l.b16 %v1154
        %v2315 = vunpack.c.h.b16 %v1154
        %v2316 = vunpack.c.l.b16 %v1155
        %v2317 = vunpack.c.h.b16 %v1155
        %v2318 = vunpack.c.l.b16 %v1156
        %v2319 = vunpack.c.h.b16 %v1156
        %v2320 = vunpack.c.l.b16 %v1157
        %v2321 = vunpack.c.h.b16 %v1157
        %v2322 = vunpack.c.l.b16 %v1158
        %v2323 = vunpack.c.h.b16 %v1158
        %v2324 = vunpack.c.l.b16 %v1159
        %v2325 = vunpack.c.h.b16 %v1159
        %v2326 = vunpack.c.l.b16 %v1160
        %v2327 = vunpack.c.h.b16 %v1160
        %v2328 = vunpack.c.l.b16 %v1161
        %v2329 = vunpack.c.h.b16 %v1161
        %v2330 = vunpack.c.l.b16 %v1162
        %v2331 = vunpack.c.h.b16 %v1162
        %v2332 = vunpack.c.l.b16 %v1163
        %v2333 = vunpack.c.h.b16 %v1163
        %v2334 = vunpack.c.l.b16 %v1164
        %v2335 = vunpack.c.h.b16 %v1164
        %v2336 = vunpack.c.l.b16 %v1165
        %v2337 = vunpack.c.h.b16 %v1165
        %v2338 = vunpack.c.l.b16 %v1166
        %v2339 = vunpack.c.h.b16 %v1166
        %v2340 = vunpack.c.l.b16 %v1167
        %v2341 = vunpack.c.h.b16 %v1167
        %v2342 = vunpack.c.l.b16 %v1168
        %v2343 = vunpack.c.h.b16 %v1168
        %v2344 = vunpack.c.l.b16 %v1169
        %v2345 = vunpack.c.h.b16 %v1169
        %v2346 = vunpack.c.l.b16 %v1170
        %v2347 = vunpack.c.h.b16 %v1170
        %v2348 = vunpack.c.l.b16 %v1171
        %v2349 = vunpack.c.h.b16 %v1171
        %v2350 = vunpack.c.l.b16 %v1172
        %v2351 = vunpack.c.h.b16 %v1172
        %v2352 = vunpack.c.l.b16 %v1173
        %v2353 = vunpack.c.h.b16 %v1173
        %v2354 = vunpack.c.l.b16 %v1174
        %v2355 = vunpack.c.h.b16 %v1174
        %v2356 = vunpack.c.l.b16 %v1175
        %v2357 = vunpack.c.h.b16 %v1175
        %v2358 = vunpack.c.l.b16 %v1176
        %v2359 = vunpack.c.h.b16 %v1176
        %v2360 = vunpack.c.l.b16 %v1177
        %v2361 = vunpack.c.h.b16 %v1177
        %v2362 = vunpack.c.l.b16 %v1178
        %v2363 = vunpack.c.h.b16 %v1178
        %v2364 = vunpack.c.l.b16 %v1179
        %v2365 = vunpack.c.h.b16 %v1179
        %v2366 = vunpack.c.l.b16 %v1180
        %v2367 = vunpack.c.h.b16 %v1180
        %v2368 = vunpack.c.l.b16 %v1181
        %v2369 = vunpack.c.h.b16 %v1181
        %v2370 = vunpack.c.l.b16 %v1182
        %v2371 = vunpack.c.h.b16 %v1182
        %v2372 = vunpack.c.l.b16 %v1183
        %v2373 = vunpack.c.h.b16 %v1183
        %v2374 = vunpack.c.l.b16 %v1184
        %v2375 = vunpack.c.h.b16 %v1184
        %v2376 = vunpack.c.l.b16 %v1185
        %v2377 = vunpack.c.h.b16 %v1185
        %v2378 = vunpack.c.l.b16 %v1186
        %v2379 = vunpack.c.h.b16 %v1186
        %v2380 = vunpack.c.l.b16 %v1187
        %v2381 = vunpack.c.h.b16 %v1187
        %v2382 = vunpack.c.l.b16 %v1188
        %v2383 = vunpack.c.h.b16 %v1188
        %v2384 = vunpack.c.l.b16 %v1189
        %v2385 = vunpack.c.h.b16 %v1189
        %v2386 = vunpack.c.l.b16 %v1190
        %v2387 = vunpack.c.h.b16 %v1190
        %v2388 = vunpack.c.l.b16 %v1191
        %v2389 = vunpack.c.h.b16 %v1191
        %v2390 = vunpack.c.l.b16 %v1192
        %v2391 = vunpack.c.h.b16 %v1192
        %v2392 = vunpack.c.l.b16 %v1193
        %v2393 = vunpack.c.h.b16 %v1193
        %v2394 = vunpack.c.l.b16 %v1194
        %v2395 = vunpack.c.h.b16 %v1194
        %v2396 = vunpack.c.l.b16 %v1195
        %v2397 = vunpack.c.h.b16 %v1195
        %v2398 = vunpack.c.l.b16 %v1196
        %v2399 = vunpack.c.h.b16 %v1196
        %v2400 = vunpack.c.l.b16 %v1197
        %v2401 = vunpack.c.h.b16 %v1197
        %v2402 = vunpack.c.l.b16 %v1198
        %v2403 = vunpack.c.h.b16 %v1198
        %v2404 = vunpack.c.l.b16 %v1199
        %v2405 = vunpack.c.h.b16 %v1199
        %v2406 = vunpack.c.l.b16 %v1200
        %v2407 = vunpack.c.h.b16 %v1200
        %v2408 = vunpack.c.l.b16 %v1201
        %v2409 = vunpack.c.h.b16 %v1201
        %v2410 = vunpack.c.l.b16 %v1202
        %v2411 = vunpack.c.h.b16 %v1202
        %v2412 = vunpack.c.l.b16 %v1203
        %v2413 = vunpack.c.h.b16 %v1203
        %v2414 = vunpack.c.l.b16 %v1204
        %v2415 = vunpack.c.h.b16 %v1204
        %v2416 = vunpack.c.l.b16 %v1205
        %v2417 = vunpack.c.h.b16 %v1205
        %v2418 = vunpack.c.l.b16 %v1206
        %v2419 = vunpack.c.h.b16 %v1206
        %v2420 = vunpack.c.l.b16 %v1207
        %v2421 = vunpack.c.h.b16 %v1207
        %v2422 = vunpack.c.l.b16 %v1208
        %v2423 = vunpack.c.h.b16 %v1208
        %v2424 = vunpack.c.l.b16 %v1209
        %v2425 = vunpack.c.h.b16 %v1209
        %v2426 = vpack.c.b16 %v1670, %v1658
        %v2427 = vpack.c.b16 %v1671, %v1659
        %v2428 = vpack.c.b16 %v1672, %v1660
        %v2429 = vpack.c.b16 %v1673, %v1661
        %v2430 = vpack.c.b16 %v1674, %v1662
        %v2431 = vpack.c.b16 %v1675, %v1663
        %v2432 = vpack.c.b16 %v1676, %v1664
        %v2433 = vpack.c.b16 %v1677, %v1665
        %v2434 = vpack.c.b16 %v1678, %v1666
        %v2435 = vpack.c.b16 %v1679, %v1667
        %v2436 = vpack.c.b16 %v1680, %v1668
        %v2437 = vpack.c.b16 %v1681, %v1669
        %v2438 = vpack.c.b16 %v1694, %v1682
        %v2439 = vpack.c.b16 %v1695, %v1683
        %v2440 = vpack.c.b16 %v1696, %v1684
        %v2441 = vpack.c.b16 %v1697, %v1685
        %v2442 = vpack.c.b16 %v1698, %v1686
        %v2443 = vpack.c.b16 %v1699, %v1687
        %v2444 = vpack.c.b16 %v1700, %v1688
        %v2445 = vpack.c.b16 %v1701, %v1689
        %v2446 = vpack.c.b16 %v1702, %v1690
        %v2447 = vpack.c.b16 %v1703, %v1691
        %v2448 = vpack.c.b16 %v1704, %v1692
        %v2449 = vpack.c.b16 %v1705, %v1693
        %v2450 = vpack.c.b16 %v1718, %v1706
        %v2451 = vpack.c.b16 %v1719, %v1707
        %v2452 = vpack.c.b16 %v1720, %v1708
        %v2453 = vpack.c.b16 %v1721, %v1709
        %v2454 = vpack.c.b16 %v1722, %v1710
        %v2455 = vpack.c.b16 %v1723, %v1711
        %v2456 = vpack.c.b16 %v1724, %v1712
        %v2457 = vpack.c.b16 %v1725, %v1713
        %v2458 = vpack.c.b16 %v1726, %v1714
        %v2459 = vpack.c.b16 %v1727, %v1715
        %v2460 = vpack.c.b16 %v1728, %v1716
        %v2461 = vpack.c.b16 %v1729, %v1717
        %v2462 = vpack.c.b16 %v1742, %v1730
        %v2463 = vpack.c.b16 %v1743, %v1731
        %v2464 = vpack.c.b16 %v1744, %v1732
        %v2465 = vpack.c.b16 %v1745, %v1733
        %v2466 = vpack.c.b16 %v1746, %v1734
        %v2467 = vpack.c.b16 %v1747, %v1735
        %v2468 = vpack.c.b16 %v1748, %v1736
        %v2469 = vpack.c.b16 %v1749, %v1737
        %v2470 = vpack.c.b16 %v1750, %v1738
        %v2471 = vpack.c.b16 %v1751, %v1739
        %v2472 = vpack.c.b16 %v1752, %v1740
        %v2473 = vpack.c.b16 %v1753, %v1741
        %v2474 = vpack.c.b16 %v1766, %v1754
        %v2475 = vpack.c.b16 %v1767, %v1755
        %v2476 = vpack.c.b16 %v1768, %v1756
        %v2477 = vpack.c.b16 %v1769, %v1757
        %v2478 = vpack.c.b16 %v1770, %v1758
        %v2479 = vpack.c.b16 %v1771, %v1759
        %v2480 = vpack.c.b16 %v1772, %v1760
        %v2481 = vpack.c.b16 %v1773, %v1761
        %v2482 = vpack.c.b16 %v1774, %v1762
        %v2483 = vpack.c.b16 %v1775, %v1763
        %v2484 = vpack.c.b16 %v1776, %v1764
        %v2485 = vpack.c.b16 %v1777, %v1765
        %v2486 = vpack.c.b16 %v1790, %v1778
        %v2487 = vpack.c.b16 %v1791, %v1779
        %v2488 = vpack.c.b16 %v1792, %v1780
        %v2489 = vpack.c.b16 %v1793, %v1781
        %v2490 = vpack.c.b16 %v1794, %v1782
        %v2491 = vpack.c.b16 %v1795, %v1783
        %v2492 = vpack.c.b16 %v1796, %v1784
        %v2493 = vpack.c.b16 %v1797, %v1785
        %v2494 = vpack.c.b16 %v1798, %v1786
        %v2495 = vpack.c.b16 %v1799, %v1787
        %v2496 = vpack.c.b16 %v1800, %v1788
        %v2497 = vpack.c.b16 %v1801, %v1789
        %v2498 = vpack.c.b16 %v1814, %v1802
        %v2499 = vpack.c.b16 %v1815, %v1803
        %v2500 = vpack.c.b16 %v1816, %v1804
        %v2501 = vpack.c.b16 %v1817, %v1805
        %v2502 = vpack.c.b16 %v1818, %v1806
        %v2503 = vpack.c.b16 %v1819, %v1807
        %v2504 = vpack.c.b16 %v1820, %v1808
        %v2505 = vpack.c.b16 %v1821, %v1809
        %v2506 = vpack.c.b16 %v1822, %v1810
        %v2507 = vpack.c.b16 %v1823, %v1811
        %v2508 = vpack.c.b16 %v1824, %v1812
        %v2509 = vpack.c.b16 %v1825, %v1813
        %v2510 = vpack.c.b16 %v1838, %v1826
        %v2511 = vpack.c.b16 %v1839, %v1827
        %v2512 = vpack.c.b16 %v1840, %v1828
        %v2513 = vpack.c.b16 %v1841, %v1829
        %v2514 = vpack.c.b16 %v1842, %v1830
        %v2515 = vpack.c.b16 %v1843, %v1831
        %v2516 = vpack.c.b16 %v1844, %v1832
        %v2517 = vpack.c.b16 %v1845, %v1833
        %v2518 = vpack.c.b16 %v1846, %v1834
        %v2519 = vpack.c.b16 %v1847, %v1835
        %v2520 = vpack.c.b16 %v1848, %v1836
        %v2521 = vpack.c.b16 %v1849, %v1837
        %v2522 = vpack.c.b16 %v1862, %v1850
        %v2523 = vpack.c.b16 %v1863, %v1851
        %v2524 = vpack.c.b16 %v1864, %v1852
        %v2525 = vpack.c.b16 %v1865, %v1853
        %v2526 = vpack.c.b16 %v1866, %v1854
        %v2527 = vpack.c.b16 %v1867, %v1855
        %v2528 = vpack.c.b16 %v1868, %v1856
        %v2529 = vpack.c.b16 %v1869, %v1857
        %v2530 = vpack.c.b16 %v1870, %v1858
        %v2531 = vpack.c.b16 %v1871, %v1859
        %v2532 = vpack.c.b16 %v1872, %v1860
        %v2533 = vpack.c.b16 %v1873, %v1861
        %v2534 = vpack.c.b16 %v1886, %v1874
        %v2535 = vpack.c.b16 %v1887, %v1875
        %v2536 = vpack.c.b16 %v1888, %v1876
        %v2537 = vpack.c.b16 %v1889, %v1877
        %v2538 = vpack.c.b16 %v1890, %v1878
        %v2539 = vpack.c.b16 %v1891, %v1879
        %v2540 = vpack.c.b16 %v1892, %v1880
        %v2541 = vpack.c.b16 %v1893, %v1881
        %v2542 = vpack.c.b16 %v1894, %v1882
        %v2543 = vpack.c.b16 %v1895, %v1883
        %v2544 = vpack.c.b16 %v1896, %v1884
        %v2545 = vpack.c.b16 %v1897, %v1885
        %v2546 = vpack.c.b16 %v1910, %v1898
        %v2547 = vpack.c.b16 %v1911, %v1899
        %v2548 = vpack.c.b16 %v1912, %v1900
        %v2549 = vpack.c.b16 %v1913, %v1901
        %v2550 = vpack.c.b16 %v1914, %v1902
        %v2551 = vpack.c.b16 %v1915, %v1903
        %v2552 = vpack.c.b16 %v1916, %v1904
        %v2553 = vpack.c.b16 %v1917, %v1905
        %v2554 = vpack.c.b16 %v1918, %v1906
        %v2555 = vpack.c.b16 %v1919, %v1907
        %v2556 = vpack.c.b16 %v1920, %v1908
        %v2557 = vpack.c.b16 %v1921, %v1909
        %v2558 = vpack.c.b16 %v1934, %v1922
        %v2559 = vpack.c.b16 %v1935, %v1923
        %v2560 = vpack.c.b16 %v1936, %v1924
        %v2561 = vpack.c.b16 %v1937, %v1925
        %v2562 = vpack.c.b16 %v1938, %v1926
        %v2563 = vpack.c.b16 %v1939, %v1927
        %v2564 = vpack.c.b16 %v1940, %v1928
        %v2565 = vpack.c.b16 %v1941, %v1929
        %v2566 = vpack.c.b16 %v1942, %v1930
        %v2567 = vpack.c.b16 %v1943, %v1931
        %v2568 = vpack.c.b16 %v1944, %v1932
        %v2569 = vpack.c.b16 %v1945, %v1933
        %v2570 = vpack.c.b16 %v1958, %v1946
        %v2571 = vpack.c.b16 %v1959, %v1947
        %v2572 = vpack.c.b16 %v1960, %v1948
        %v2573 = vpack.c.b16 %v1961, %v1949
        %v2574 = vpack.c.b16 %v1962, %v1950
        %v2575 = vpack.c.b16 %v1963, %v1951
        %v2576 = vpack.c.b16 %v1964, %v1952
        %v2577 = vpack.c.b16 %v1965, %v1953
        %v2578 = vpack.c.b16 %v1966, %v1954
        %v2579 = vpack.c.b16 %v1967, %v1955
        %v2580 = vpack.c.b16 %v1968, %v1956
        %v2581 = vpack.c.b16 %v1969, %v1957
        %v2582 = vpack.c.b16 %v1982, %v1970
        %v2583 = vpack.c.b16 %v1983, %v1971
        %v2584 = vpack.c.b16 %v1984, %v1972
        %v2585 = vpack.c.b16 %v1985, %v1973
        %v2586 = vpack.c.b16 %v1986, %v1974
        %v2587 = vpack.c.b16 %v1987, %v1975
        %v2588 = vpack.c.b16 %v1988, %v1976
        %v2589 = vpack.c.b16 %v1989, %v1977
        %v2590 = vpack.c.b16 %v1990, %v1978
        %v2591 = vpack.c.b16 %v1991, %v1979
        %v2592 = vpack.c.b16 %v1992, %v1980
        %v2593 = vpack.c.b16 %v1993, %v1981
        %v2594 = vpack.c.b16 %v2006, %v1994
        %v2595 = vpack.c.b16 %v2007, %v1995
        %v2596 = vpack.c.b16 %v2008, %v1996
        %v2597 = vpack.c.b16 %v2009, %v1997
        %v2598 = vpack.c.b16 %v2010, %v1998
        %v2599 = vpack.c.b16 %v2011, %v1999
        %v2600 = vpack.c.b16 %v2012, %v2000
        %v2601 = vpack.c.b16 %v2013, %v2001
        %v2602 = vpack.c.b16 %v2014, %v2002
        %v2603 = vpack.c.b16 %v2015, %v2003
        %v2604 = vpack.c.b16 %v2016, %v2004
        %v2605 = vpack.c.b16 %v2017, %v2005
        %v2606 = vpack.c.b16 %v2030, %v2018
        %v2607 = vpack.c.b16 %v2031, %v2019
        %v2608 = vpack.c.b16 %v2032, %v2020
        %v2609 = vpack.c.b16 %v2033, %v2021
        %v2610 = vpack.c.b16 %v2034, %v2022
        %v2611 = vpack.c.b16 %v2035, %v2023
        %v2612 = vpack.c.b16 %v2036, %v2024
        %v2613 = vpack.c.b16 %v2037, %v2025
        %v2614 = vpack.c.b16 %v2038, %v2026
        %v2615 = vpack.c.b16 %v2039, %v2027
        %v2616 = vpack.c.b16 %v2040, %v2028
        %v2617 = vpack.c.b16 %v2041, %v2029
        %v2618 = vpack.c.b16 %v2054, %v2042
        %v2619 = vpack.c.b16 %v2055, %v2043
        %v2620 = vpack.c.b16 %v2056, %v2044
        %v2621 = vpack.c.b16 %v2057, %v2045
        %v2622 = vpack.c.b16 %v2058, %v2046
        %v2623 = vpack.c.b16 %v2059, %v2047
        %v2624 = vpack.c.b16 %v2060, %v2048
        %v2625 = vpack.c.b16 %v2061, %v2049
        %v2626 = vpack.c.b16 %v2062, %v2050
        %v2627 = vpack.c.b16 %v2063, %v2051
        %v2628 = vpack.c.b16 %v2064, %v2052
        %v2629 = vpack.c.b16 %v2065, %v2053
        %v2630 = vpack.c.b16 %v2078, %v2066
        %v2631 = vpack.c.b16 %v2079, %v2067
        %v2632 = vpack.c.b16 %v2080, %v2068
        %v2633 = vpack.c.b16 %v2081, %v2069
        %v2634 = vpack.c.b16 %v2082, %v2070
        %v2635 = vpack.c.b16 %v2083, %v2071
        %v2636 = vpack.c.b16 %v2084, %v2072
        %v2637 = vpack.c.b16 %v2085, %v2073
        %v2638 = vpack.c.b16 %v2086, %v2074
        %v2639 = vpack.c.b16 %v2087, %v2075
        %v2640 = vpack.c.b16 %v2088, %v2076
        %v2641 = vpack.c.b16 %v2089, %v2077
        %v2642 = vpack.c.b16 %v2102, %v2090
        %v2643 = vpack.c.b16 %v2103, %v2091
        %v2644 = vpack.c.b16 %v2104, %v2092
        %v2645 = vpack.c.b16 %v2105, %v2093
        %v2646 = vpack.c.b16 %v2106, %v2094
        %v2647 = vpack.c.b16 %v2107, %v2095
        %v2648 = vpack.c.b16 %v2108, %v2096
        %v2649 = vpack.c.b16 %v2109, %v2097
        %v2650 = vpack.c.b16 %v2110, %v2098
        %v2651 = vpack.c.b16 %v2111, %v2099
        %v2652 = vpack.c.b16 %v2112, %v2100
        %v2653 = vpack.c.b16 %v2113, %v2101
        %v2654 = vpack.c.b16 %v2126, %v2114
        %v2655 = vpack.c.b16 %v2127, %v2115
        %v2656 = vpack.c.b16 %v2128, %v2116
        %v2657 = vpack.c.b16 %v2129, %v2117
        %v2658 = vpack.c.b16 %v2130, %v2118
        %v2659 = vpack.c.b16 %v2131, %v2119
        %v2660 = vpack.c.b16 %v2132, %v2120
        %v2661 = vpack.c.b16 %v2133, %v2121
        %v2662 = vpack.c.b16 %v2134, %v2122
        %v2663 = vpack.c.b16 %v2135, %v2123
        %v2664 = vpack.c.b16 %v2136, %v2124
        %v2665 = vpack.c.b16 %v2137, %v2125
        %v2666 = vpack.c.b16 %v2150, %v2138
        %v2667 = vpack.c.b16 %v2151, %v2139
        %v2668 = vpack.c.b16 %v2152, %v2140
        %v2669 = vpack.c.b16 %v2153, %v2141
        %v2670 = vpack.c.b16 %v2154, %v2142
        %v2671 = vpack.c.b16 %v2155, %v2143
        %v2672 = vpack.c.b16 %v2156, %v2144
        %v2673 = vpack.c.b16 %v2157, %v2145
        %v2674 = vpack.c.b16 %v2158, %v2146
        %v2675 = vpack.c.b16 %v2159, %v2147
        %v2676 = vpack.c.b16 %v2160, %v2148
        %v2677 = vpack.c.b16 %v2161, %v2149
        %v2678 = vpack.c.b16 %v2174, %v2162
        %v2679 = vpack.c.b16 %v2175, %v2163
        %v2680 = vpack.c.b16 %v2176, %v2164
        %v2681 = vpack.c.b16 %v2177, %v2165
        %v2682 = vpack.c.b16 %v2178, %v2166
        %v2683 = vpack.c.b16 %v2179, %v2167
        %v2684 = vpack.c.b16 %v2180, %v2168
        %v2685 = vpack.c.b16 %v2181, %v2169
        %v2686 = vpack.c.b16 %v2182, %v2170
        %v2687 = vpack.c.b16 %v2183, %v2171
        %v2688 = vpack.c.b16 %v2184, %v2172
        %v2689 = vpack.c.b16 %v2185, %v2173
        %v2690 = vpack.c.b16 %v2198, %v2186
        %v2691 = vpack.c.b16 %v2199, %v2187
        %v2692 = vpack.c.b16 %v2200, %v2188
        %v2693 = vpack.c.b16 %v2201, %v2189
        %v2694 = vpack.c.b16 %v2202, %v2190
        %v2695 = vpack.c.b16 %v2203, %v2191
        %v2696 = vpack.c.b16 %v2204, %v2192
        %v2697 = vpack.c.b16 %v2205, %v2193
        %v2698 = vpack.c.b16 %v2206, %v2194
        %v2699 = vpack.c.b16 %v2207, %v2195
        %v2700 = vpack.c.b16 %v2208, %v2196
        %v2701 = vpack.c.b16 %v2209, %v2197
        %v2702 = vpack.c.b16 %v2222, %v2210
        %v2703 = vpack.c.b16 %v2223, %v2211
        %v2704 = vpack.c.b16 %v2224, %v2212
        %v2705 = vpack.c.b16 %v2225, %v2213
        %v2706 = vpack.c.b16 %v2226, %v2214
        %v2707 = vpack.c.b16 %v2227, %v2215
        %v2708 = vpack.c.b16 %v2228, %v2216
        %v2709 = vpack.c.b16 %v2229, %v2217
        %v2710 = vpack.c.b16 %v2230, %v2218
        %v2711 = vpack.c.b16 %v2231, %v2219
        %v2712 = vpack.c.b16 %v2232, %v2220
        %v2713 = vpack.c.b16 %v2233, %v2221
        %v2714 = vpack.c.b16 %v2246, %v2234
        %v2715 = vpack.c.b16 %v2247, %v2235
        %v2716 = vpack.c.b16 %v2248, %v2236
        %v2717 = vpack.c.b16 %v2249, %v2237
        %v2718 = vpack.c.b16 %v2250, %v2238
        %v2719 = vpack.c.b16 %v2251, %v2239
        %v2720 = vpack.c.b16 %v2252, %v2240
        %v2721 = vpack.c.b16 %v2253, %v2241
        %v2722 = vpack.c.b16 %v2254, %v2242
        %v2723 = vpack.c.b16 %v2255, %v2243
        %v2724 = vpack.c.b16 %v2256, %v2244
        %v2725 = vpack.c.b16 %v2257, %v2245
        %v2726 = vpack.c.b16 %v2270, %v2258
        %v2727 = vpack.c.b16 %v2271, %v2259
        %v2728 = vpack.c.b16 %v2272, %v2260
        %v2729 = vpack.c.b16 %v2273, %v2261
        %v2730 = vpack.c.b16 %v2274, %v2262
        %v2731 = vpack.c.b16 %v2275, %v2263
        %v2732 = vpack.c.b16 %v2276, %v2264
        %v2733 = vpack.c.b16 %v2277, %v2265
        %v2734 = vpack.c.b16 %v2278, %v2266
        %v2735 = vpack.c.b16 %v2279, %v2267
        %v2736 = vpack.c.b16 %v2280, %v2268
        %v2737 = vpack.c.b16 %v2281, %v2269
        %v2738 = vpack.c.b16 %v2294, %v2282
        %v2739 = vpack.c.b16 %v2295, %v2283
        %v2740 = vpack.c.b16 %v2296, %v2284
        %v2741 = vpack.c.b16 %v2297, %v2285
        %v2742 = vpack.c.b16 %v2298, %v2286
        %v2743 = vpack.c.b16 %v2299, %v2287
        %v2744 = vpack.c.b16 %v2300, %v2288
        %v2745 = vpack.c.b16 %v2301, %v2289
        %v2746 = vpack.c.b16 %v2302, %v2290
        %v2747 = vpack.c.b16 %v2303, %v2291
        %v2748 = vpack.c.b16 %v2304, %v2292
        %v2749 = vpack.c.b16 %v2305, %v2293
        %v2750 = vpack.c.b16 %v2318, %v2306
        %v2751 = vpack.c.b16 %v2319, %v2307
        %v2752 = vpack.c.b16 %v2320, %v2308
        %v2753 = vpack.c.b16 %v2321, %v2309
        %v2754 = vpack.c.b16 %v2322, %v2310
        %v2755 = vpack.c.b16 %v2323, %v2311
        %v2756 = vpack.c.b16 %v2324, %v2312
        %v2757 = vpack.c.b16 %v2325, %v2313
        %v2758 = vpack.c.b16 %v2326, %v2314
        %v2759 = vpack.c.b16 %v2327, %v2315
        %v2760 = vpack.c.b16 %v2328, %v2316
        %v2761 = vpack.c.b16 %v2329, %v2317
        %v2762 = vpack.c.b16 %v2342, %v2330
        %v2763 = vpack.c.b16 %v2343, %v2331
        %v2764 = vpack.c.b16 %v2344, %v2332
        %v2765 = vpack.c.b16 %v2345, %v2333
        %v2766 = vpack.c.b16 %v2346, %v2334
        %v2767 = vpack.c.b16 %v2347, %v2335
        %v2768 = vpack.c.b16 %v2348, %v2336
        %v2769 = vpack.c.b16 %v2349, %v2337
        %v2770 = vpack.c.b16 %v2350, %v2338
        %v2771 = vpack.c.b16 %v2351, %v2339
        %v2772 = vpack.c.b16 %v2352, %v2340
        %v2773 = vpack.c.b16 %v2353, %v2341
        %v2774 = vpack.c.b16 %v2366, %v2354
        %v2775 = vpack.c.b16 %v2367, %v2355
        %v2776 = vpack.c.b16 %v2368, %v2356
        %v2777 = vpack.c.b16 %v2369, %v2357
        %v2778 = vpack.c.b16 %v2370, %v2358
        %v2779 = vpack.c.b16 %v2371, %v2359
        %v2780 = vpack.c.b16 %v2372, %v2360
        %v2781 = vpack.c.b16 %v2373, %v2361
        %v2782 = vpack.c.b16 %v2374, %v2362
        %v2783 = vpack.c.b16 %v2375, %v2363
        %v2784 = vpack.c.b16 %v2376, %v2364
        %v2785 = vpack.c.b16 %v2377, %v2365
        %v2786 = vpack.c.b16 %v2390, %v2378
        %v2787 = vpack.c.b16 %v2391, %v2379
        %v2788 = vpack.c.b16 %v2392, %v2380
        %v2789 = vpack.c.b16 %v2393, %v2381
        %v2790 = vpack.c.b16 %v2394, %v2382
        %v2791 = vpack.c.b16 %v2395, %v2383
        %v2792 = vpack.c.b16 %v2396, %v2384
        %v2793 = vpack.c.b16 %v2397, %v2385
        %v2794 = vpack.c.b16 %v2398, %v2386
        %v2795 = vpack.c.b16 %v2399, %v2387
        %v2796 = vpack.c.b16 %v2400, %v2388
        %v2797 = vpack.c.b16 %v2401, %v2389
        %v2798 = vpack.c.b16 %v2414, %v2402
        %v2799 = vpack.c.b16 %v2415, %v2403
        %v2800 = vpack.c.b16 %v2416, %v2404
        %v2801 = vpack.c.b16 %v2417, %v2405
        %v2802 = vpack.c.b16 %v2418, %v2406
        %v2803 = vpack.c.b16 %v2419, %v2407
        %v2804 = vpack.c.b16 %v2420, %v2408
        %v2805 = vpack.c.b16 %v2421, %v2409
        %v2806 = vpack.c.b16 %v2422, %v2410
        %v2807 = vpack.c.b16 %v2423, %v2411
        %v2808 = vpack.c.b16 %v2424, %v2412
        %v2809 = vpack.c.b16 %v2425, %v2413
        %3194 = vmatprep.subr.bf16.mxu0 %v2427
        %3195 = vmatpush1.bf16.msra.mxu0 %v2426
        %3196 = vmatprep.subr.bf16.mxu0 %v2439
        %3197 = vmatpush1.bf16.msra.mxu0 %v2438
        %3198 = vmatprep.subr.bf16.mxu0 %v2451
        %3199 = vmatpush1.bf16.msra.mxu0 %v2450
        %3200 = vmatprep.subr.bf16.mxu0 %v2463
        %3201 = vmatpush1.bf16.msra.mxu0 %v2462
        %3202 = vmatprep.subr.bf16.mxu0 %v2475
        %3203 = vmatpush1.bf16.msra.mxu0 %v2474
        %3204 = vmatprep.subr.bf16.mxu0 %v2487
        %3205 = vmatpush1.bf16.msra.mxu0 %v2486
        %3206 = vmatprep.subr.bf16.mxu0 %v2499
        %3207 = vmatpush1.bf16.msra.mxu0 %v2498
        %3208 = vmatprep.subr.bf16.mxu0 %v2511
        %3209 = vmatpush1.bf16.msra.mxu0 %v2510
        %3210 = vmatprep.subr.bf16.mxu0 %v2523
        %3211 = vmatpush1.bf16.msra.mxu0 %v2522
        %3212 = vmatprep.subr.bf16.mxu0 %v2535
        %3213 = vmatpush1.bf16.msra.mxu0 %v2534
        %3214 = vmatprep.subr.bf16.mxu0 %v2547
        %3215 = vmatpush1.bf16.msra.mxu0 %v2546
        %3216 = vmatprep.subr.bf16.mxu0 %v2559
        %3217 = vmatpush1.bf16.msra.mxu0 %v2558
        %3218 = vmatprep.subr.bf16.mxu0 %v2571
        %3219 = vmatpush1.bf16.msra.mxu0 %v2570
        %3220 = vmatprep.subr.bf16.mxu0 %v2583
        %3221 = vmatpush1.bf16.msra.mxu0 %v2582
        %3222 = vmatprep.subr.bf16.mxu0 %v2595
        %3223 = vmatpush1.bf16.msra.mxu0 %v2594
        %3224 = vmatprep.subr.bf16.mxu0 %v2607
        %3225 = vmatpush1.bf16.msra.mxu0 %v2606
        %3226 = vmatprep.mubr.bf16.mxu0 %v819
        %3227 = vmatmul.mubr.bf16.gmra.mrb[0].mxu0 %v818
        %v3228 = vpop.f32.mrb[0].mxu0
        %v3229 = vadd.f32 %v1217, %v3228
        %v3230 = vpop.f32.mrb[0].mxu0
        %v3231 = vadd.f32 %v1221, %v3230
        %v3232 = vpop.f32.mrb[0].mxu0
        %v3233 = vadd.f32 %v1217, %v3232
        %v3234 = vpop.f32.mrb[0].mxu0
        %v3235 = vadd.f32 %v1221, %v3234
        %3236 = vmatprep.mubr.bf16.mxu0 %v823
        %3237 = vmatmul.mubr.bf16.gmra.mrb[0].mxu0 %v822
        %v3238 = vpop.f32.mrb[0].mxu0
        %v3239 = vadd.f32 %v1217, %v3238
        %v3240 = vpop.f32.mrb[0].mxu0
        %v3241 = vadd.f32 %v1221, %v3240
        %v3242 = vpop.f32.mrb[0].mxu0
        %v3243 = vadd.f32 %v1217, %v3242
        %v3244 = vpop.f32.mrb[0].mxu0
        %v3245 = vadd.f32 %v1221, %v3244
        %3246 = vdwg.mxu0
        %3247 = vmatprep.subr.bf16.mxu0 %v2619
        %3248 = vmatpush1.bf16.msra.mxu0 %v2618
        %3249 = vmatprep.subr.bf16.mxu0 %v2631
        %3250 = vmatpush1.bf16.msra.mxu0 %v2630
        %3251 = vmatprep.subr.bf16.mxu0 %v2643
        %3252 = vmatpush1.bf16.msra.mxu0 %v2642
        %3253 = vmatprep.subr.bf16.mxu0 %v2655
        %3254 = vmatpush1.bf16.msra.mxu0 %v2654
        %3255 = vmatprep.subr.bf16.mxu0 %v2667
        %3256 = vmatpush1.bf16.msra.mxu0 %v2666
        %3257 = vmatprep.subr.bf16.mxu0 %v2679
        %3258 = vmatpush1.bf16.msra.mxu0 %v2678
        %3259 = vmatprep.subr.bf16.mxu0 %v2691
        %3260 = vmatpush1.bf16.msra.mxu0 %v2690
        %3261 = vmatprep.subr.bf16.mxu0 %v2703
        %3262 = vmatpush1.bf16.msra.mxu0 %v2702
        %3263 = vmatprep.subr.bf16.mxu0 %v2715
        %3264 = vmatpush1.bf16.msra.mxu0 %v2714
        %3265 = vmatprep.subr.bf16.mxu0 %v2727
        %3266 = vmatpush1.bf16.msra.mxu0 %v2726
        %3267 = vmatprep.subr.bf16.mxu0 %v2739
        %3268 = vmatpush1.bf16.msra.mxu0 %v2738
        %3269 = vmatprep.subr.bf16.mxu0 %v2751
        %3270 = vmatpush1.bf16.msra.mxu0 %v2750
        %3271 = vmatprep.subr.bf16.mxu0 %v2763
        %3272 = vmatpush1.bf16.msra.mxu0 %v2762
        %3273 = vmatprep.subr.bf16.mxu0 %v2775
        %3274 = vmatpush1.bf16.msra.mxu0 %v2774
        %3275 = vmatprep.subr.bf16.mxu0 %v2787
        %3276 = vmatpush1.bf16.msra.mxu0 %v2786
        %3277 = vmatprep.subr.bf16.mxu0 %v2799
        %3278 = vmatpush1.bf16.msra.mxu0 %v2798
        %3279 = vmatprep.mubr.bf16.mxu0 %v821
        %3280 = vmatmul.mubr.bf16.gmra.mrb[0].mxu0 %v820
        %v3281 = vpop.f32.mrb[0].mxu0
        %v3282 = vadd.f32 %v3229, %v3281
        %v3283 = vpop.f32.mrb[0].mxu0
        %v3284 = vadd.f32 %v3231, %v3283
        %v3285 = vpop.f32.mrb[0].mxu0
        %v3286 = vadd.f32 %v3233, %v3285
        %v3287 = vpop.f32.mrb[0].mxu0
        %v3288 = vadd.f32 %v3235, %v3287
        %3289 = vmatprep.mubr.bf16.mxu0 %v825
        %3290 = vmatmul.mubr.bf16.gmra.mrb[0].mxu0 %v824
        %v3291 = vpop.f32.mrb[0].mxu0
        %v3292 = vadd.f32 %v3239, %v3291
        %v3293 = vpop.f32.mrb[0].mxu0
        %v3294 = vadd.f32 %v3241, %v3293
        %v3295 = vpop.f32.mrb[0].mxu0
        %v3296 = vadd.f32 %v3243, %v3295
        %v3297 = vpop.f32.mrb[0].mxu0
        %v3298 = vadd.f32 %v3245, %v3297
        %3299 = vdwg.mxu0
        %3300 = vmatprep.subr.bf16.mxu0 %v2429
        %3301 = vmatpush1.bf16.msra.mxu0 %v2428
        %3302 = vmatprep.subr.bf16.mxu0 %v2441
        %3303 = vmatpush1.bf16.msra.mxu0 %v2440
        %3304 = vmatprep.subr.bf16.mxu0 %v2453
        %3305 = vmatpush1.bf16.msra.mxu0 %v2452
        %3306 = vmatprep.subr.bf16.mxu0 %v2465
        %3307 = vmatpush1.bf16.msra.mxu0 %v2464
        %3308 = vmatprep.subr.bf16.mxu0 %v2477
        %3309 = vmatpush1.bf16.msra.mxu0 %v2476
        %3310 = vmatprep.subr.bf16.mxu0 %v2489
        %3311 = vmatpush1.bf16.msra.mxu0 %v2488
        %3312 = vmatprep.subr.bf16.mxu0 %v2501
        %3313 = vmatpush1.bf16.msra.mxu0 %v2500
        %3314 = vmatprep.subr.bf16.mxu0 %v2513
        %3315 = vmatpush1.bf16.msra.mxu0 %v2512
        %3316 = vmatprep.subr.bf16.mxu0 %v2525
        %3317 = vmatpush1.bf16.msra.mxu0 %v2524
        %3318 = vmatprep.subr.bf16.mxu0 %v2537
        %3319 = vmatpush1.bf16.msra.mxu0 %v2536
        %3320 = vmatprep.subr.bf16.mxu0 %v2549
        %3321 = vmatpush1.bf16.msra.mxu0 %v2548
        %3322 = vmatprep.subr.bf16.mxu0 %v2561
        %3323 = vmatpush1.bf16.msra.mxu0 %v2560
        %3324 = vmatprep.subr.bf16.mxu0 %v2573
        %3325 = vmatpush1.bf16.msra.mxu0 %v2572
        %3326 = vmatprep.subr.bf16.mxu0 %v2585
        %3327 = vmatpush1.bf16.msra.mxu0 %v2584
        %3328 = vmatprep.subr.bf16.mxu0 %v2597
        %3329 = vmatpush1.bf16.msra.mxu0 %v2596
        %3330 = vmatprep.subr.bf16.mxu0 %v2609
        %3331 = vmatpush1.bf16.msra.mxu0 %v2608
        %3332 = vmatprep.mubr.bf16.mxu0 %v819
        %3333 = vmatmul.mubr.bf16.gmra.mrb[0].mxu0 %v818
        %v3334 = vpop.f32.mrb[0].mxu0
        %v3335 = vadd.f32 %v1225, %v3334
        %v3336 = vpop.f32.mrb[0].mxu0
        %v3337 = vadd.f32 %v1229, %v3336
        %v3338 = vpop.f32.mrb[0].mxu0
        %v3339 = vadd.f32 %v1225, %v3338
        %v3340 = vpop.f32.mrb[0].mxu0
        %v3341 = vadd.f32 %v1229, %v3340
        %3342 = vmatprep.mubr.bf16.mxu0 %v823
        %3343 = vmatmul.mubr.bf16.gmra.mrb[0].mxu0 %v822
        %v3344 = vpop.f32.mrb[0].mxu0
        %v3345 = vadd.f32 %v1225, %v3344
        %v3346 = vpop.f32.mrb[0].mxu0
        %v3347 = vadd.f32 %v1229, %v3346
        %v3348 = vpop.f32.mrb[0].mxu0
        %v3349 = vadd.f32 %v1225, %v3348
        %v3350 = vpop.f32.mrb[0].mxu0
        %v3351 = vadd.f32 %v1229, %v3350
        %3352 = vdwg.mxu0
        %3353 = vmatprep.subr.bf16.mxu0 %v2621
        %3354 = vmatpush1.bf16.msra.mxu0 %v2620
        %3355 = vmatprep.subr.bf16.mxu0 %v2633
        %3356 = vmatpush1.bf16.msra.mxu0 %v2632
        %3357 = vmatprep.subr.bf16.mxu0 %v2645
        %3358 = vmatpush1.bf16.msra.mxu0 %v2644
        %3359 = vmatprep.subr.bf16.mxu0 %v2657
        %3360 = vmatpush1.bf16.msra.mxu0 %v2656
        %3361 = vmatprep.subr.bf16.mxu0 %v2669
        %3362 = vmatpush1.bf16.msra.mxu0 %v2668
        %3363 = vmatprep.subr.bf16.mxu0 %v2681
        %3364 = vmatpush1.bf16.msra.mxu0 %v2680
        %3365 = vmatprep.subr.bf16.mxu0 %v2693
        %3366 = vmatpush1.bf16.msra.mxu0 %v2692
        %3367 = vmatprep.subr.bf16.mxu0 %v2705
        %3368 = vmatpush1.bf16.msra.mxu0 %v2704
        %3369 = vmatprep.subr.bf16.mxu0 %v2717
        %3370 = vmatpush1.bf16.msra.mxu0 %v2716
        %3371 = vmatprep.subr.bf16.mxu0 %v2729
        %3372 = vmatpush1.bf16.msra.mxu0 %v2728
        %3373 = vmatprep.subr.bf16.mxu0 %v2741
        %3374 = vmatpush1.bf16.msra.mxu0 %v2740
        %3375 = vmatprep.subr.bf16.mxu0 %v2753
        %3376 = vmatpush1.bf16.msra.mxu0 %v2752
        %3377 = vmatprep.subr.bf16.mxu0 %v2765
        %3378 = vmatpush1.bf16.msra.mxu0 %v2764
        %3379 = vmatprep.subr.bf16.mxu0 %v2777
        %3380 = vmatpush1.bf16.msra.mxu0 %v2776
        %3381 = vmatprep.subr.bf16.mxu0 %v2789
        %3382 = vmatpush1.bf16.msra.mxu0 %v2788
        %3383 = vmatprep.subr.bf16.mxu0 %v2801
        %3384 = vmatpush1.bf16.msra.mxu0 %v2800
        %3385 = vmatprep.mubr.bf16.mxu0 %v821
        %3386 = vmatmul.mubr.bf16.gmra.mrb[0].mxu0 %v820
        %v3387 = vpop.f32.mrb[0].mxu0
        %v3388 = vadd.f32 %v3335, %v3387
        %v3389 = vpop.f32.mrb[0].mxu0
        %v3390 = vadd.f32 %v3337, %v3389
        %v3391 = vpop.f32.mrb[0].mxu0
        %v3392 = vadd.f32 %v3339, %v3391
        %v3393 = vpop.f32.mrb[0].mxu0
        %v3394 = vadd.f32 %v3341, %v3393
        %3395 = vmatprep.mubr.bf16.mxu0 %v825
        %3396 = vmatmul.mubr.bf16.gmra.mrb[0].mxu0 %v824
        %v3397 = vpop.f32.mrb[0].mxu0
        %v3398 = vadd.f32 %v3345, %v3397
        %v3399 = vpop.f32.mrb[0].mxu0
        %v3400 = vadd.f32 %v3347, %v3399
        %v3401 = vpop.f32.mrb[0].mxu0
        %v3402 = vadd.f32 %v3349, %v3401
        %v3403 = vpop.f32.mrb[0].mxu0
        %v3404 = vadd.f32 %v3351, %v3403
        %3405 = vdwg.mxu0
        %3406 = vmatprep.subr.bf16.mxu0 %v2431
        %3407 = vmatpush1.bf16.msra.mxu0 %v2430
        %3408 = vmatprep.subr.bf16.mxu0 %v2443
        %3409 = vmatpush1.bf16.msra.mxu0 %v2442
        %3410 = vmatprep.subr.bf16.mxu0 %v2455
        %3411 = vmatpush1.bf16.msra.mxu0 %v2454
        %3412 = vmatprep.subr.bf16.mxu0 %v2467
        %3413 = vmatpush1.bf16.msra.mxu0 %v2466
        %3414 = vmatprep.subr.bf16.mxu0 %v2479
        %3415 = vmatpush1.bf16.msra.mxu0 %v2478
        %3416 = vmatprep.subr.bf16.mxu0 %v2491
        %3417 = vmatpush1.bf16.msra.mxu0 %v2490
        %3418 = vmatprep.subr.bf16.mxu0 %v2503
        %3419 = vmatpush1.bf16.msra.mxu0 %v2502
        %3420 = vmatprep.subr.bf16.mxu0 %v2515
        %3421 = vmatpush1.bf16.msra.mxu0 %v2514
        %3422 = vmatprep.subr.bf16.mxu0 %v2527
        %3423 = vmatpush1.bf16.msra.mxu0 %v2526
        %3424 = vmatprep.subr.bf16.mxu0 %v2539
        %3425 = vmatpush1.bf16.msra.mxu0 %v2538
        %3426 = vmatprep.subr.bf16.mxu0 %v2551
        %3427 = vmatpush1.bf16.msra.mxu0 %v2550
        %3428 = vmatprep.subr.bf16.mxu0 %v2563
        %3429 = vmatpush1.bf16.msra.mxu0 %v2562
        %3430 = vmatprep.subr.bf16.mxu0 %v2575
        %3431 = vmatpush1.bf16.msra.mxu0 %v2574
        %3432 = vmatprep.subr.bf16.mxu0 %v2587
        %3433 = vmatpush1.bf16.msra.mxu0 %v2586
        %3434 = vmatprep.subr.bf16.mxu0 %v2599
        %3435 = vmatpush1.bf16.msra.mxu0 %v2598
        %3436 = vmatprep.subr.bf16.mxu0 %v2611
        %3437 = vmatpush1.bf16.msra.mxu0 %v2610
        %3438 = vmatprep.mubr.bf16.mxu0 %v819
        %3439 = vmatmul.mubr.bf16.gmra.mrb[0].mxu0 %v818
        %v3440 = vpop.f32.mrb[0].mxu0
        %v3441 = vadd.f32 %v1233, %v3440
        %v3442 = vpop.f32.mrb[0].mxu0
        %v3443 = vadd.f32 %v1237, %v3442
        %v3444 = vpop.f32.mrb[0].mxu0
        %v3445 = vadd.f32 %v1233, %v3444
        %v3446 = vpop.f32.mrb[0].mxu0
        %v3447 = vadd.f32 %v1237, %v3446
        %3448 = vmatprep.mubr.bf16.mxu0 %v823
        %3449 = vmatmul.mubr.bf16.gmra.mrb[0].mxu0 %v822
        %v3450 = vpop.f32.mrb[0].mxu0
        %v3451 = vadd.f32 %v1233, %v3450
        %v3452 = vpop.f32.mrb[0].mxu0
        %v3453 = vadd.f32 %v1237, %v3452
        %v3454 = vpop.f32.mrb[0].mxu0
        %v3455 = vadd.f32 %v1233, %v3454
        %v3456 = vpop.f32.mrb[0].mxu0
        %v3457 = vadd.f32 %v1237, %v3456
        %3458 = vdwg.mxu0
        %3459 = vmatprep.subr.bf16.mxu0 %v2623
        %3460 = vmatpush1.bf16.msra.mxu0 %v2622
        %3461 = vmatprep.subr.bf16.mxu0 %v2635
        %3462 = vmatpush1.bf16.msra.mxu0 %v2634
        %3463 = vmatprep.subr.bf16.mxu0 %v2647
        %3464 = vmatpush1.bf16.msra.mxu0 %v2646
        %3465 = vmatprep.subr.bf16.mxu0 %v2659
        %3466 = vmatpush1.bf16.msra.mxu0 %v2658
        %3467 = vmatprep.subr.bf16.mxu0 %v2671
        %3468 = vmatpush1.bf16.msra.mxu0 %v2670
        %3469 = vmatprep.subr.bf16.mxu0 %v2683
        %3470 = vmatpush1.bf16.msra.mxu0 %v2682
        %3471 = vmatprep.subr.bf16.mxu0 %v2695
        %3472 = vmatpush1.bf16.msra.mxu0 %v2694
        %3473 = vmatprep.subr.bf16.mxu0 %v2707
        %3474 = vmatpush1.bf16.msra.mxu0 %v2706
        %3475 = vmatprep.subr.bf16.mxu0 %v2719
        %3476 = vmatpush1.bf16.msra.mxu0 %v2718
        %3477 = vmatprep.subr.bf16.mxu0 %v2731
        %3478 = vmatpush1.bf16.msra.mxu0 %v2730
        %3479 = vmatprep.subr.bf16.mxu0 %v2743
        %3480 = vmatpush1.bf16.msra.mxu0 %v2742
        %3481 = vmatprep.subr.bf16.mxu0 %v2755
        %3482 = vmatpush1.bf16.msra.mxu0 %v2754
        %3483 = vmatprep.subr.bf16.mxu0 %v2767
        %3484 = vmatpush1.bf16.msra.mxu0 %v2766
        %3485 = vmatprep.subr.bf16.mxu0 %v2779
        %3486 = vmatpush1.bf16.msra.mxu0 %v2778
        %3487 = vmatprep.subr.bf16.mxu0 %v2791
        %3488 = vmatpush1.bf16.msra.mxu0 %v2790
        %3489 = vmatprep.subr.bf16.mxu0 %v2803
        %3490 = vmatpush1.bf16.msra.mxu0 %v2802
        %3491 = vmatprep.mubr.bf16.mxu0 %v821
        %3492 = vmatmul.mubr.bf16.gmra.mrb[0].mxu0 %v820
        %v3493 = vpop.f32.mrb[0].mxu0
        %v3494 = vadd.f32 %v3441, %v3493
        %v3495 = vpop.f32.mrb[0].mxu0
        %v3496 = vadd.f32 %v3443, %v3495
        %v3497 = vpop.f32.mrb[0].mxu0
        %v3498 = vadd.f32 %v3445, %v3497
        %v3499 = vpop.f32.mrb[0].mxu0
        %v3500 = vadd.f32 %v3447, %v3499
        %3501 = vmatprep.mubr.bf16.mxu0 %v825
        %3502 = vmatmul.mubr.bf16.gmra.mrb[0].mxu0 %v824
        %v3503 = vpop.f32.mrb[0].mxu0
        %v3504 = vadd.f32 %v3451, %v3503
        %v3505 = vpop.f32.mrb[0].mxu0
        %v3506 = vadd.f32 %v3453, %v3505
        %v3507 = vpop.f32.mrb[0].mxu0
        %v3508 = vadd.f32 %v3455, %v3507
        %v3509 = vpop.f32.mrb[0].mxu0
        %v3510 = vadd.f32 %v3457, %v3509
        %3511 = vdwg.mxu0
        %3512 = vmatprep.subr.bf16.mxu0 %v2433
        %3513 = vmatpush1.bf16.msra.mxu0 %v2432
        %3514 = vmatprep.subr.bf16.mxu0 %v2445
        %3515 = vmatpush1.bf16.msra.mxu0 %v2444
        %3516 = vmatprep.subr.bf16.mxu0 %v2457
        %3517 = vmatpush1.bf16.msra.mxu0 %v2456
        %3518 = vmatprep.subr.bf16.mxu0 %v2469
        %3519 = vmatpush1.bf16.msra.mxu0 %v2468
        %3520 = vmatprep.subr.bf16.mxu0 %v2481
        %3521 = vmatpush1.bf16.msra.mxu0 %v2480
        %3522 = vmatprep.subr.bf16.mxu0 %v2493
        %3523 = vmatpush1.bf16.msra.mxu0 %v2492
        %3524 = vmatprep.subr.bf16.mxu0 %v2505
        %3525 = vmatpush1.bf16.msra.mxu0 %v2504
        %3526 = vmatprep.subr.bf16.mxu0 %v2517
        %3527 = vmatpush1.bf16.msra.mxu0 %v2516
        %3528 = vmatprep.subr.bf16.mxu0 %v2529
        %3529 = vmatpush1.bf16.msra.mxu0 %v2528
        %3530 = vmatprep.subr.bf16.mxu0 %v2541
        %3531 = vmatpush1.bf16.msra.mxu0 %v2540
        %3532 = vmatprep.subr.bf16.mxu0 %v2553
        %3533 = vmatpush1.bf16.msra.mxu0 %v2552
        %3534 = vmatprep.subr.bf16.mxu0 %v2565
        %3535 = vmatpush1.bf16.msra.mxu0 %v2564
        %3536 = vmatprep.subr.bf16.mxu0 %v2577
        %3537 = vmatpush1.bf16.msra.mxu0 %v2576
        %3538 = vmatprep.subr.bf16.mxu0 %v2589
        %3539 = vmatpush1.bf16.msra.mxu0 %v2588
        %3540 = vmatprep.subr.bf16.mxu0 %v2601
        %3541 = vmatpush1.bf16.msra.mxu0 %v2600
        %3542 = vmatprep.subr.bf16.mxu0 %v2613
        %3543 = vmatpush1.bf16.msra.mxu0 %v2612
        %3544 = vmatprep.mubr.bf16.mxu0 %v819
        %3545 = vmatmul.mubr.bf16.gmra.mrb[0].mxu0 %v818
        %v3546 = vpop.f32.mrb[0].mxu0
        %v3547 = vadd.f32 %v1241, %v3546
        %v3548 = vpop.f32.mrb[0].mxu0
        %v3549 = vadd.f32 %v1245, %v3548
        %v3550 = vpop.f32.mrb[0].mxu0
        %v3551 = vadd.f32 %v1241, %v3550
        %v3552 = vpop.f32.mrb[0].mxu0
        %v3553 = vadd.f32 %v1245, %v3552
        %3554 = vmatprep.mubr.bf16.mxu0 %v823
        %3555 = vmatmul.mubr.bf16.gmra.mrb[0].mxu0 %v822
        %v3556 = vpop.f32.mrb[0].mxu0
        %v3557 = vadd.f32 %v1241, %v3556
        %v3558 = vpop.f32.mrb[0].mxu0
        %v3559 = vadd.f32 %v1245, %v3558
        %v3560 = vpop.f32.mrb[0].mxu0
        %v3561 = vadd.f32 %v1241, %v3560
        %v3562 = vpop.f32.mrb[0].mxu0
        %v3563 = vadd.f32 %v1245, %v3562
        %3564 = vdwg.mxu0
        %3565 = vmatprep.subr.bf16.mxu0 %v2625
        %3566 = vmatpush1.bf16.msra.mxu0 %v2624
        %3567 = vmatprep.subr.bf16.mxu0 %v2637
        %3568 = vmatpush1.bf16.msra.mxu0 %v2636
        %3569 = vmatprep.subr.bf16.mxu0 %v2649
        %3570 = vmatpush1.bf16.msra.mxu0 %v2648
        %3571 = vmatprep.subr.bf16.mxu0 %v2661
        %3572 = vmatpush1.bf16.msra.mxu0 %v2660
        %3573 = vmatprep.subr.bf16.mxu0 %v2673
        %3574 = vmatpush1.bf16.msra.mxu0 %v2672
        %3575 = vmatprep.subr.bf16.mxu0 %v2685
        %3576 = vmatpush1.bf16.msra.mxu0 %v2684
        %3577 = vmatprep.subr.bf16.mxu0 %v2697
        %3578 = vmatpush1.bf16.msra.mxu0 %v2696
        %3579 = vmatprep.subr.bf16.mxu0 %v2709
        %3580 = vmatpush1.bf16.msra.mxu0 %v2708
        %3581 = vmatprep.subr.bf16.mxu0 %v2721
        %3582 = vmatpush1.bf16.msra.mxu0 %v2720
        %3583 = vmatprep.subr.bf16.mxu0 %v2733
        %3584 = vmatpush1.bf16.msra.mxu0 %v2732
        %3585 = vmatprep.subr.bf16.mxu0 %v2745
        %3586 = vmatpush1.bf16.msra.mxu0 %v2744
        %3587 = vmatprep.subr.bf16.mxu0 %v2757
        %3588 = vmatpush1.bf16.msra.mxu0 %v2756
        %3589 = vmatprep.subr.bf16.mxu0 %v2769
        %3590 = vmatpush1.bf16.msra.mxu0 %v2768
        %3591 = vmatprep.subr.bf16.mxu0 %v2781
        %3592 = vmatpush1.bf16.msra.mxu0 %v2780
        %3593 = vmatprep.subr.bf16.mxu0 %v2793
        %3594 = vmatpush1.bf16.msra.mxu0 %v2792
        %3595 = vmatprep.subr.bf16.mxu0 %v2805
        %3596 = vmatpush1.bf16.msra.mxu0 %v2804
        %3597 = vmatprep.mubr.bf16.mxu0 %v821
        %3598 = vmatmul.mubr.bf16.gmra.mrb[0].mxu0 %v820
        %v3599 = vpop.f32.mrb[0].mxu0
        %v3600 = vadd.f32 %v3547, %v3599
        %v3601 = vpop.f32.mrb[0].mxu0
        %v3602 = vadd.f32 %v3549, %v3601
        %v3603 = vpop.f32.mrb[0].mxu0
        %v3604 = vadd.f32 %v3551, %v3603
        %v3605 = vpop.f32.mrb[0].mxu0
        %v3606 = vadd.f32 %v3553, %v3605
        %3607 = vmatprep.mubr.bf16.mxu0 %v825
        %3608 = vmatmul.mubr.bf16.gmra.mrb[0].mxu0 %v824
        %v3609 = vpop.f32.mrb[0].mxu0
        %v3610 = vadd.f32 %v3557, %v3609
        %v3611 = vpop.f32.mrb[0].mxu0
        %v3612 = vadd.f32 %v3559, %v3611
        %v3613 = vpop.f32.mrb[0].mxu0
        %v3614 = vadd.f32 %v3561, %v3613
        %v3615 = vpop.f32.mrb[0].mxu0
        %v3616 = vadd.f32 %v3563, %v3615
        %3617 = vdwg.mxu0
        %3618 = vmatprep.subr.bf16.mxu0 %v2435
        %3619 = vmatpush1.bf16.msra.mxu0 %v2434
        %3620 = vmatprep.subr.bf16.mxu0 %v2447
        %3621 = vmatpush1.bf16.msra.mxu0 %v2446
        %3622 = vmatprep.subr.bf16.mxu0 %v2459
        %3623 = vmatpush1.bf16.msra.mxu0 %v2458
        %3624 = vmatprep.subr.bf16.mxu0 %v2471
        %3625 = vmatpush1.bf16.msra.mxu0 %v2470
        %3626 = vmatprep.subr.bf16.mxu0 %v2483
        %3627 = vmatpush1.bf16.msra.mxu0 %v2482
        %3628 = vmatprep.subr.bf16.mxu0 %v2495
        %3629 = vmatpush1.bf16.msra.mxu0 %v2494
        %3630 = vmatprep.subr.bf16.mxu0 %v2507
        %3631 = vmatpush1.bf16.msra.mxu0 %v2506
        %3632 = vmatprep.subr.bf16.mxu0 %v2519
        %3633 = vmatpush1.bf16.msra.mxu0 %v2518
        %3634 = vmatprep.subr.bf16.mxu0 %v2531
        %3635 = vmatpush1.bf16.msra.mxu0 %v2530
        %3636 = vmatprep.subr.bf16.mxu0 %v2543
        %3637 = vmatpush1.bf16.msra.mxu0 %v2542
        %3638 = vmatprep.subr.bf16.mxu0 %v2555
        %3639 = vmatpush1.bf16.msra.mxu0 %v2554
        %3640 = vmatprep.subr.bf16.mxu0 %v2567
        %3641 = vmatpush1.bf16.msra.mxu0 %v2566
        %3642 = vmatprep.subr.bf16.mxu0 %v2579
        %3643 = vmatpush1.bf16.msra.mxu0 %v2578
        %3644 = vmatprep.subr.bf16.mxu0 %v2591
        %3645 = vmatpush1.bf16.msra.mxu0 %v2590
        %3646 = vmatprep.subr.bf16.mxu0 %v2603
        %3647 = vmatpush1.bf16.msra.mxu0 %v2602
        %3648 = vmatprep.subr.bf16.mxu0 %v2615
        %3649 = vmatpush1.bf16.msra.mxu0 %v2614
        %3650 = vmatprep.mubr.bf16.mxu0 %v819
        %3651 = vmatmul.mubr.bf16.gmra.mrb[0].mxu0 %v818
        %v3652 = vpop.f32.mrb[0].mxu0
        %v3653 = vadd.f32 %v1249, %v3652
        %v3654 = vpop.f32.mrb[0].mxu0
        %v3655 = vadd.f32 %v1253, %v3654
        %v3656 = vpop.f32.mrb[0].mxu0
        %v3657 = vadd.f32 %v1249, %v3656
        %v3658 = vpop.f32.mrb[0].mxu0
        %v3659 = vadd.f32 %v1253, %v3658
        %3660 = vmatprep.mubr.bf16.mxu0 %v823
        %3661 = vmatmul.mubr.bf16.gmra.mrb[0].mxu0 %v822
        %v3662 = vpop.f32.mrb[0].mxu0
        %v3663 = vadd.f32 %v1249, %v3662
        %v3664 = vpop.f32.mrb[0].mxu0
        %v3665 = vadd.f32 %v1253, %v3664
        %v3666 = vpop.f32.mrb[0].mxu0
        %v3667 = vadd.f32 %v1249, %v3666
        %v3668 = vpop.f32.mrb[0].mxu0
        %v3669 = vadd.f32 %v1253, %v3668
        %3670 = vdwg.mxu0
        %3671 = vmatprep.subr.bf16.mxu0 %v2627
        %3672 = vmatpush1.bf16.msra.mxu0 %v2626
        %3673 = vmatprep.subr.bf16.mxu0 %v2639
        %3674 = vmatpush1.bf16.msra.mxu0 %v2638
        %3675 = vmatprep.subr.bf16.mxu0 %v2651
        %3676 = vmatpush1.bf16.msra.mxu0 %v2650
        %3677 = vmatprep.subr.bf16.mxu0 %v2663
        %3678 = vmatpush1.bf16.msra.mxu0 %v2662
        %3679 = vmatprep.subr.bf16.mxu0 %v2675
        %3680 = vmatpush1.bf16.msra.mxu0 %v2674
        %3681 = vmatprep.subr.bf16.mxu0 %v2687
        %3682 = vmatpush1.bf16.msra.mxu0 %v2686
        %3683 = vmatprep.subr.bf16.mxu0 %v2699
        %3684 = vmatpush1.bf16.msra.mxu0 %v2698
        %3685 = vmatprep.subr.bf16.mxu0 %v2711
        %3686 = vmatpush1.bf16.msra.mxu0 %v2710
        %3687 = vmatprep.subr.bf16.mxu0 %v2723
        %3688 = vmatpush1.bf16.msra.mxu0 %v2722
        %3689 = vmatprep.subr.bf16.mxu0 %v2735
        %3690 = vmatpush1.bf16.msra.mxu0 %v2734
        %3691 = vmatprep.subr.bf16.mxu0 %v2747
        %3692 = vmatpush1.bf16.msra.mxu0 %v2746
        %3693 = vmatprep.subr.bf16.mxu0 %v2759
        %3694 = vmatpush1.bf16.msra.mxu0 %v2758
        %3695 = vmatprep.subr.bf16.mxu0 %v2771
        %3696 = vmatpush1.bf16.msra.mxu0 %v2770
        %3697 = vmatprep.subr.bf16.mxu0 %v2783
        %3698 = vmatpush1.bf16.msra.mxu0 %v2782
        %3699 = vmatprep.subr.bf16.mxu0 %v2795
        %3700 = vmatpush1.bf16.msra.mxu0 %v2794
        %3701 = vmatprep.subr.bf16.mxu0 %v2807
        %3702 = vmatpush1.bf16.msra.mxu0 %v2806
        %3703 = vmatprep.mubr.bf16.mxu0 %v821
        %3704 = vmatmul.mubr.bf16.gmra.mrb[0].mxu0 %v820
        %v3705 = vpop.f32.mrb[0].mxu0
        %v3706 = vadd.f32 %v3653, %v3705
        %v3707 = vpop.f32.mrb[0].mxu0
        %v3708 = vadd.f32 %v3655, %v3707
        %v3709 = vpop.f32.mrb[0].mxu0
        %v3710 = vadd.f32 %v3657, %v3709
        %v3711 = vpop.f32.mrb[0].mxu0
        %v3712 = vadd.f32 %v3659, %v3711
        %3713 = vmatprep.mubr.bf16.mxu0 %v825
        %3714 = vmatmul.mubr.bf16.gmra.mrb[0].mxu0 %v824
        %v3715 = vpop.f32.mrb[0].mxu0
        %v3716 = vadd.f32 %v3663, %v3715
        %v3717 = vpop.f32.mrb[0].mxu0
        %v3718 = vadd.f32 %v3665, %v3717
        %v3719 = vpop.f32.mrb[0].mxu0
        %v3720 = vadd.f32 %v3667, %v3719
        %v3721 = vpop.f32.mrb[0].mxu0
        %v3722 = vadd.f32 %v3669, %v3721
        %3723 = vdwg.mxu0
        %3724 = vmatprep.subr.bf16.mxu0 %v2437
        %3725 = vmatpush1.bf16.msra.mxu0 %v2436
        %3726 = vmatprep.subr.bf16.mxu0 %v2449
        %3727 = vmatpush1.bf16.msra.mxu0 %v2448
        %3728 = vmatprep.subr.bf16.mxu0 %v2461
        %3729 = vmatpush1.bf16.msra.mxu0 %v2460
        %3730 = vmatprep.subr.bf16.mxu0 %v2473
        %3731 = vmatpush1.bf16.msra.mxu0 %v2472
        %3732 = vmatprep.subr.bf16.mxu0 %v2485
        %3733 = vmatpush1.bf16.msra.mxu0 %v2484
        %3734 = vmatprep.subr.bf16.mxu0 %v2497
        %3735 = vmatpush1.bf16.msra.mxu0 %v2496
        %3736 = vmatprep.subr.bf16.mxu0 %v2509
        %3737 = vmatpush1.bf16.msra.mxu0 %v2508
        %3738 = vmatprep.subr.bf16.mxu0 %v2521
        %3739 = vmatpush1.bf16.msra.mxu0 %v2520
        %3740 = vmatprep.subr.bf16.mxu0 %v2533
        %3741 = vmatpush1.bf16.msra.mxu0 %v2532
        %3742 = vmatprep.subr.bf16.mxu0 %v2545
        %3743 = vmatpush1.bf16.msra.mxu0 %v2544
        %3744 = vmatprep.subr.bf16.mxu0 %v2557
        %3745 = vmatpush1.bf16.msra.mxu0 %v2556
        %3746 = vmatprep.subr.bf16.mxu0 %v2569
        %3747 = vmatpush1.bf16.msra.mxu0 %v2568
        %3748 = vmatprep.subr.bf16.mxu0 %v2581
        %3749 = vmatpush1.bf16.msra.mxu0 %v2580
        %3750 = vmatprep.subr.bf16.mxu0 %v2593
        %3751 = vmatpush1.bf16.msra.mxu0 %v2592
        %3752 = vmatprep.subr.bf16.mxu0 %v2605
        %3753 = vmatpush1.bf16.msra.mxu0 %v2604
        %3754 = vmatprep.subr.bf16.mxu0 %v2617
        %3755 = vmatpush1.bf16.msra.mxu0 %v2616
        %3756 = vmatprep.mubr.bf16.mxu0 %v819
        %3757 = vmatmul.mubr.bf16.gmra.mrb[0].mxu0 %v818
        %v3758 = vpop.f32.mrb[0].mxu0
        %v3759 = vadd.f32 %v1257, %v3758
        %v3760 = vpop.f32.mrb[0].mxu0
        %v3761 = vadd.f32 %v1261, %v3760
        %v3762 = vpop.f32.mrb[0].mxu0
        %v3763 = vadd.f32 %v1257, %v3762
        %v3764 = vpop.f32.mrb[0].mxu0
        %v3765 = vadd.f32 %v1261, %v3764
        %3766 = vmatprep.mubr.bf16.mxu0 %v823
        %3767 = vmatmul.mubr.bf16.gmra.mrb[0].mxu0 %v822
        %v3768 = vpop.f32.mrb[0].mxu0
        %v3769 = vadd.f32 %v1257, %v3768
        %v3770 = vpop.f32.mrb[0].mxu0
        %v3771 = vadd.f32 %v1261, %v3770
        %v3772 = vpop.f32.mrb[0].mxu0
        %v3773 = vadd.f32 %v1257, %v3772
        %v3774 = vpop.f32.mrb[0].mxu0
        %v3775 = vadd.f32 %v1261, %v3774
        %3776 = vdwg.mxu0
        %3777 = vmatprep.subr.bf16.mxu0 %v2629
        %3778 = vmatpush1.bf16.msra.mxu0 %v2628
        %3779 = vmatprep.subr.bf16.mxu0 %v2641
        %3780 = vmatpush1.bf16.msra.mxu0 %v2640
        %3781 = vmatprep.subr.bf16.mxu0 %v2653
        %3782 = vmatpush1.bf16.msra.mxu0 %v2652
        %3783 = vmatprep.subr.bf16.mxu0 %v2665
        %3784 = vmatpush1.bf16.msra.mxu0 %v2664
        %3785 = vmatprep.subr.bf16.mxu0 %v2677
        %3786 = vmatpush1.bf16.msra.mxu0 %v2676
        %3787 = vmatprep.subr.bf16.mxu0 %v2689
        %3788 = vmatpush1.bf16.msra.mxu0 %v2688
        %3789 = vmatprep.subr.bf16.mxu0 %v2701
        %3790 = vmatpush1.bf16.msra.mxu0 %v2700
        %3791 = vmatprep.subr.bf16.mxu0 %v2713
        %3792 = vmatpush1.bf16.msra.mxu0 %v2712
        %3793 = vmatprep.subr.bf16.mxu0 %v2725
        %3794 = vmatpush1.bf16.msra.mxu0 %v2724
        %3795 = vmatprep.subr.bf16.mxu0 %v2737
        %3796 = vmatpush1.bf16.msra.mxu0 %v2736
        %3797 = vmatprep.subr.bf16.mxu0 %v2749
        %3798 = vmatpush1.bf16.msra.mxu0 %v2748
        %3799 = vmatprep.subr.bf16.mxu0 %v2761
        %3800 = vmatpush1.bf16.msra.mxu0 %v2760
        %3801 = vmatprep.subr.bf16.mxu0 %v2773
        %3802 = vmatpush1.bf16.msra.mxu0 %v2772
        %3803 = vmatprep.subr.bf16.mxu0 %v2785
        %3804 = vmatpush1.bf16.msra.mxu0 %v2784
        %3805 = vmatprep.subr.bf16.mxu0 %v2797
        %3806 = vmatpush1.bf16.msra.mxu0 %v2796
        %3807 = vmatprep.subr.bf16.mxu0 %v2809
        %3808 = vmatpush1.bf16.msra.mxu0 %v2808
        %3809 = vmatprep.mubr.bf16.mxu0 %v821
        %3810 = vmatmul.mubr.bf16.gmra.mrb[0].mxu0 %v820
        %v3811 = vpop.f32.mrb[0].mxu0
        %v3812 = vadd.f32 %v3759, %v3811
        %v3813 = vpop.f32.mrb[0].mxu0
        %v3814 = vadd.f32 %v3761, %v3813
        %v3815 = vpop.f32.mrb[0].mxu0
        %v3816 = vadd.f32 %v3763, %v3815
        %v3817 = vpop.f32.mrb[0].mxu0
        %v3818 = vadd.f32 %v3765, %v3817
        %3819 = vmatprep.mubr.bf16.mxu0 %v825
        %3820 = vmatmul.mubr.bf16.gmra.mrb[0].mxu0 %v824
        %v3821 = vpop.f32.mrb[0].mxu0
        %v3822 = vadd.f32 %v3769, %v3821
        %v3823 = vpop.f32.mrb[0].mxu0
        %v3824 = vadd.f32 %v3771, %v3823
        %v3825 = vpop.f32.mrb[0].mxu0
        %v3826 = vadd.f32 %v3773, %v3825
        %v3827 = vpop.f32.mrb[0].mxu0
        %v3828 = vadd.f32 %v3775, %v3827
        %3829 = vdwg.mxu0
        %v3830 = vpack.c.bf16 %v3286, %v3282
        %v3831 = vpack.c.bf16 %v3498, %v3494
        %v3832 = vpack.c.bf16 %v3710, %v3706
        %3833 = vmatprep.subr.bf16.mxu0 0
        %3834 = vmatpush1.bf16.xpose.msra.mxu0 %v3831
        %3835 = vmatprep.subr.bf16.mxu0 0
        %3836 = vmatpush1.bf16.xpose.msra.mxu0 0
        %3837 = vmatprep.subr.bf16.mxu0 0
        %3838 = vmatpush1.bf16.xpose.msra.mxu0 0
        %3839 = vmatprep.subr.bf16.mxu0 0
        %3840 = vmatpush1.bf16.xpose.msra.mxu0 0
        %3841 = vmatprep.subr.bf16.mxu0 0
        %3842 = vmatpush1.bf16.xpose.msra.mxu0 0
        %3843 = vmatprep.subr.bf16.mxu0 0
        %3844 = vmatpush1.bf16.xpose.msra.mxu0 0
        %3845 = vmatprep.subr.bf16.mxu0 0
        %3846 = vmatpush1.bf16.xpose.msra.mxu0 0
        %3847 = vmatprep.subr.bf16.mxu0 0
        %3848 = vmatpush1.bf16.xpose.msra.mxu0 0
        %3849 = vmatprep.subr.bf16.mxu0 0
        %3850 = vmatpush1.bf16.xpose.msra.mxu0 0
        %3851 = vmatprep.subr.bf16.mxu0 0
        %3852 = vmatpush1.bf16.xpose.msra.mxu0 0
        %3853 = vmatprep.subr.bf16.mxu0 0
        %3854 = vmatpush1.bf16.xpose.msra.mxu0 0
        %3855 = vmatprep.subr.bf16.mxu0 0
        %3856 = vmatpush1.bf16.xpose.msra.mxu0 0
        %3857 = vmatprep.subr.bf16.mxu0 0
        %3858 = vmatpush1.bf16.xpose.msra.mxu0 0
        %3859 = vmatprep.subr.bf16.mxu0 0
        %3860 = vmatpush1.bf16.xpose.msra.mxu0 0
        %3861 = vmatprep.subr.bf16.mxu0 0
        %3862 = vmatpush1.bf16.xpose.msra.mxu0 0
        %3863 = vmatprep.subr.bf16.mxu0 0
        %3864 = vmatpush1.bf16.xpose.msra.mxu0 0
        %3865 = vmatprep.mubr.bf16.mxu0 0
        %3866 = vmatmul.mubr.bf16.gmra.mrb[0].mxu0 %v3830
        %v3867 = vpop.f32.mrb[0].mxu0
        %v3868 = vadd.f32 0.0, %v3867
        %v3869 = vpop.f32.mrb[0].mxu0
        %v3870 = vpop.f32.mrb[0].mxu0
        %v3871 = vadd.f32 0.0, %v3870
        %v3872 = vpop.f32.mrb[0].mxu0
        %3873 = vdwg.mxu0
        %vm3874 = vcmask 130048
        %v3875 = vsel %vm3874, %v3868, -inf
        %3876 = vmax.xlane.f32.xlu0 %v3875
        %v3877 = vpop.xlane.xlu0 %3876
        %v3878 = vsel %vm3874, %v3871, -inf
        %3879 = vmax.xlane.f32.xlu0 %v3878
        %v3880 = vpop.xlane.xlu0 %3879
        %v3881 = vsub.f32 %v3868, %v3877
        %v3882 = vsub.f32 %v3871, %v3880
        %v3883 = vmul.f32 %v3881, 1.442695
        %v3884 = vpow.pop %v3883
        %v3885 = vmul.f32 %v3882, 1.442695
        %v3886 = vpow.pop %v3885
        %v3887 = vsel %vm3874, %v3884, 0.0
        %3888 = vadd.xlane.f32.xlu0 %v3887
        %v3889 = vpop.xlane.xlu0 %3888
        %v3890 = vsel %vm3874, %v3886, 0.0
        %3891 = vadd.xlane.f32.xlu0 %v3890
        %v3892 = vpop.xlane.xlu0 %3891
        %v3893 = vrcp.pop %v3889
        %v3894 = vrcp.pop %v3892
        %v3895 = vmul.f32 %v3884, %v3893
        %v3896 = vmul.f32 %v3886, %v3894
        %v3897 = vpack.c.bf16 %v3896, %v3895
        %v3899 = vsel %vm3874, %v3897, 0
        %3901 = vmatprep.subr.bf16.mxu0 0
        %3902 = vmatpush1.bf16.msra.mxu0 %v3832
        %3903 = vmatprep.subr.bf16.mxu0 0
        %3904 = vmatpush1.bf16.msra.mxu0 0
        %3905 = vmatprep.subr.bf16.mxu0 0
        %3906 = vmatpush1.bf16.msra.mxu0 0
        %3907 = vmatprep.subr.bf16.mxu0 0
        %3908 = vmatpush1.bf16.msra.mxu0 0
        %3909 = vmatprep.subr.bf16.mxu0 0
        %3910 = vmatpush1.bf16.msra.mxu0 0
        %3911 = vmatprep.subr.bf16.mxu0 0
        %3912 = vmatpush1.bf16.msra.mxu0 0
        %3913 = vmatprep.subr.bf16.mxu0 0
        %3914 = vmatpush1.bf16.msra.mxu0 0
        %3915 = vmatprep.subr.bf16.mxu0 0
        %3916 = vmatpush1.bf16.msra.mxu0 0
        %3917 = vmatprep.subr.bf16.mxu0 0
        %3918 = vmatpush1.bf16.msra.mxu0 0
        %3919 = vmatprep.subr.bf16.mxu0 0
        %3920 = vmatpush1.bf16.msra.mxu0 0
        %3921 = vmatprep.subr.bf16.mxu0 0
        %3922 = vmatpush1.bf16.msra.mxu0 0
        %3923 = vmatprep.subr.bf16.mxu0 0
        %3924 = vmatpush1.bf16.msra.mxu0 0
        %3925 = vmatprep.subr.bf16.mxu0 0
        %3926 = vmatpush1.bf16.msra.mxu0 0
        %3927 = vmatprep.subr.bf16.mxu0 0
        %3928 = vmatpush1.bf16.msra.mxu0 0
        %3929 = vmatprep.subr.bf16.mxu0 0
        %3930 = vmatpush1.bf16.msra.mxu0 0
        %3931 = vmatprep.subr.bf16.mxu0 0
        %3932 = vmatpush1.bf16.msra.mxu0 0
        %3933 = vmatprep.mubr.bf16.mxu0 0
        %3934 = vmatmul.mubr.bf16.gmra.mrb[0].mxu0 %v3899
        %v3935 = vpop.f32.mrb[0].mxu0
        %v3936 = vadd.f32 0.0, %v3935
        %v3937 = vpop.f32.mrb[0].mxu0
        %v3938 = vpop.f32.mrb[0].mxu0
        %v3939 = vadd.f32 0.0, %v3938
        %v3940 = vpop.f32.mrb[0].mxu0
        %3941 = vdwg.mxu0
        %3942 = vst [vmem:[#allocation2] sm:$0xff] %v3936
        %3943 = vst [vmem:[#allocation2 + $0x20] sm:$0xff] %v3939
        %v3944 = vpack.c.bf16 %v3288, %v3284
        %v3945 = vpack.c.bf16 %v3500, %v3496
        %v3946 = vpack.c.bf16 %v3712, %v3708
        %3947 = vmatprep.subr.bf16.mxu0 0
        %3948 = vmatpush1.bf16.xpose.msra.mxu0 %v3945
        %3949 = vmatprep.subr.bf16.mxu0 0
        %3950 = vmatpush1.bf16.xpose.msra.mxu0 0
        %3951 = vmatprep.subr.bf16.mxu0 0
        %3952 = vmatpush1.bf16.xpose.msra.mxu0 0
        %3953 = vmatprep.subr.bf16.mxu0 0
        %3954 = vmatpush1.bf16.xpose.msra.mxu0 0
        %3955 = vmatprep.subr.bf16.mxu0 0
        %3956 = vmatpush1.bf16.xpose.msra.mxu0 0
        %3957 = vmatprep.subr.bf16.mxu0 0
        %3958 = vmatpush1.bf16.xpose.msra.mxu0 0
        %3959 = vmatprep.subr.bf16.mxu0 0
        %3960 = vmatpush1.bf16.xpose.msra.mxu0 0
        %3961 = vmatprep.subr.bf16.mxu0 0
        %3962 = vmatpush1.bf16.xpose.msra.mxu0 0
        %3963 = vmatprep.subr.bf16.mxu0 0
        %3964 = vmatpush1.bf16.xpose.msra.mxu0 0
        %3965 = vmatprep.subr.bf16.mxu0 0
        %3966 = vmatpush1.bf16.xpose.msra.mxu0 0
        %3967 = vmatprep.subr.bf16.mxu0 0
        %3968 = vmatpush1.bf16.xpose.msra.mxu0 0
        %3969 = vmatprep.subr.bf16.mxu0 0
        %3970 = vmatpush1.bf16.xpose.msra.mxu0 0
        %3971 = vmatprep.subr.bf16.mxu0 0
        %3972 = vmatpush1.bf16.xpose.msra.mxu0 0
        %3973 = vmatprep.subr.bf16.mxu0 0
        %3974 = vmatpush1.bf16.xpose.msra.mxu0 0
        %3975 = vmatprep.subr.bf16.mxu0 0
        %3976 = vmatpush1.bf16.xpose.msra.mxu0 0
        %3977 = vmatprep.subr.bf16.mxu0 0
        %3978 = vmatpush1.bf16.xpose.msra.mxu0 0
        %3979 = vmatprep.mubr.bf16.mxu0 0
        %3980 = vmatmul.mubr.bf16.gmra.mrb[0].mxu0 %v3944
        %v3981 = vpop.f32.mrb[0].mxu0
        %v3982 = vadd.f32 0.0, %v3981
        %v3983 = vpop.f32.mrb[0].mxu0
        %v3984 = vpop.f32.mrb[0].mxu0
        %v3985 = vadd.f32 0.0, %v3984
        %v3986 = vpop.f32.mrb[0].mxu0
        %3987 = vdwg.mxu0
        %v3988 = vsel %vm3874, %v3982, -inf
        %3989 = vmax.xlane.f32.xlu0 %v3988
        %v3990 = vpop.xlane.xlu0 %3989
        %v3991 = vsel %vm3874, %v3985, -inf
        %3992 = vmax.xlane.f32.xlu0 %v3991
        %v3993 = vpop.xlane.xlu0 %3992
        %v3994 = vsub.f32 %v3982, %v3990
        %v3995 = vsub.f32 %v3985, %v3993
        %v3996 = vmul.f32 %v3994, 1.442695
        %v3997 = vpow.pop %v3996
        %v3998 = vmul.f32 %v3995, 1.442695
        %v3999 = vpow.pop %v3998
        %v4000 = vsel %vm3874, %v3997, 0.0
        %4001 = vadd.xlane.f32.xlu0 %v4000
        %v4002 = vpop.xlane.xlu0 %4001
        %v4003 = vsel %vm3874, %v3999, 0.0
        %4004 = vadd.xlane.f32.xlu0 %v4003
        %v4005 = vpop.xlane.xlu0 %4004
        %v4006 = vrcp.pop %v4002
        %v4007 = vrcp.pop %v4005
        %v4008 = vmul.f32 %v3997, %v4006
        %v4009 = vmul.f32 %v3999, %v4007
        %v4010 = vpack.c.bf16 %v4009, %v4008
        %v4012 = vsel %vm3874, %v4010, 0
        %4014 = vmatprep.subr.bf16.mxu0 0
        %4015 = vmatpush1.bf16.msra.mxu0 %v3946
        %4016 = vmatprep.subr.bf16.mxu0 0
        %4017 = vmatpush1.bf16.msra.mxu0 0
        %4018 = vmatprep.subr.bf16.mxu0 0
        %4019 = vmatpush1.bf16.msra.mxu0 0
        %4020 = vmatprep.subr.bf16.mxu0 0
        %4021 = vmatpush1.bf16.msra.mxu0 0
        %4022 = vmatprep.subr.bf16.mxu0 0
        %4023 = vmatpush1.bf16.msra.mxu0 0
        %4024 = vmatprep.subr.bf16.mxu0 0
        %4025 = vmatpush1.bf16.msra.mxu0 0
        %4026 = vmatprep.subr.bf16.mxu0 0
        %4027 = vmatpush1.bf16.msra.mxu0 0
        %4028 = vmatprep.subr.bf16.mxu0 0
        %4029 = vmatpush1.bf16.msra.mxu0 0
        %4030 = vmatprep.subr.bf16.mxu0 0
        %4031 = vmatpush1.bf16.msra.mxu0 0
        %4032 = vmatprep.subr.bf16.mxu0 0
        %4033 = vmatpush1.bf16.msra.mxu0 0
        %4034 = vmatprep.subr.bf16.mxu0 0
        %4035 = vmatpush1.bf16.msra.mxu0 0
        %4036 = vmatprep.subr.bf16.mxu0 0
        %4037 = vmatpush1.bf16.msra.mxu0 0
        %4038 = vmatprep.subr.bf16.mxu0 0
        %4039 = vmatpush1.bf16.msra.mxu0 0
        %4040 = vmatprep.subr.bf16.mxu0 0
        %4041 = vmatpush1.bf16.msra.mxu0 0
        %4042 = vmatprep.subr.bf16.mxu0 0
        %4043 = vmatpush1.bf16.msra.mxu0 0
        %4044 = vmatprep.subr.bf16.mxu0 0
        %4045 = vmatpush1.bf16.msra.mxu0 0
        %4046 = vmatprep.mubr.bf16.mxu0 0
        %4047 = vmatmul.mubr.bf16.gmra.mrb[0].mxu0 %v4012
        %v4048 = vpop.f32.mrb[0].mxu0
        %v4049 = vadd.f32 0.0, %v4048
        %v4050 = vpop.f32.mrb[0].mxu0
        %v4051 = vpop.f32.mrb[0].mxu0
        %v4052 = vadd.f32 0.0, %v4051
        %v4053 = vpop.f32.mrb[0].mxu0
        %4054 = vdwg.mxu0
        %4055 = vst [vmem:[#allocation2 + $0x8] sm:$0xff] %v4049
        %4056 = vst [vmem:[#allocation2 + $0x28] sm:$0xff] %v4052
        %v4057 = vpack.c.bf16 %v3392, %v3388
        %v4058 = vpack.c.bf16 %v3604, %v3600
        %v4059 = vpack.c.bf16 %v3816, %v3812
        %4060 = vmatprep.subr.bf16.mxu0 0
        %4061 = vmatpush1.bf16.xpose.msra.mxu0 %v4058
        %4062 = vmatprep.subr.bf16.mxu0 0
        %4063 = vmatpush1.bf16.xpose.msra.mxu0 0
        %4064 = vmatprep.subr.bf16.mxu0 0
        %4065 = vmatpush1.bf16.xpose.msra.mxu0 0
        %4066 = vmatprep.subr.bf16.mxu0 0
        %4067 = vmatpush1.bf16.xpose.msra.mxu0 0
        %4068 = vmatprep.subr.bf16.mxu0 0
        %4069 = vmatpush1.bf16.xpose.msra.mxu0 0
        %4070 = vmatprep.subr.bf16.mxu0 0
        %4071 = vmatpush1.bf16.xpose.msra.mxu0 0
        %4072 = vmatprep.subr.bf16.mxu0 0
        %4073 = vmatpush1.bf16.xpose.msra.mxu0 0
        %4074 = vmatprep.subr.bf16.mxu0 0
        %4075 = vmatpush1.bf16.xpose.msra.mxu0 0
        %4076 = vmatprep.subr.bf16.mxu0 0
        %4077 = vmatpush1.bf16.xpose.msra.mxu0 0
        %4078 = vmatprep.subr.bf16.mxu0 0
        %4079 = vmatpush1.bf16.xpose.msra.mxu0 0
        %4080 = vmatprep.subr.bf16.mxu0 0
        %4081 = vmatpush1.bf16.xpose.msra.mxu0 0
        %4082 = vmatprep.subr.bf16.mxu0 0
        %4083 = vmatpush1.bf16.xpose.msra.mxu0 0
        %4084 = vmatprep.subr.bf16.mxu0 0
        %4085 = vmatpush1.bf16.xpose.msra.mxu0 0
        %4086 = vmatprep.subr.bf16.mxu0 0
        %4087 = vmatpush1.bf16.xpose.msra.mxu0 0
        %4088 = vmatprep.subr.bf16.mxu0 0
        %4089 = vmatpush1.bf16.xpose.msra.mxu0 0
        %4090 = vmatprep.subr.bf16.mxu0 0
        %4091 = vmatpush1.bf16.xpose.msra.mxu0 0
        %4092 = vmatprep.mubr.bf16.mxu0 0
        %4093 = vmatmul.mubr.bf16.gmra.mrb[0].mxu0 %v4057
        %v4094 = vpop.f32.mrb[0].mxu0
        %v4095 = vadd.f32 0.0, %v4094
        %v4096 = vpop.f32.mrb[0].mxu0
        %v4097 = vpop.f32.mrb[0].mxu0
        %v4098 = vadd.f32 0.0, %v4097
        %v4099 = vpop.f32.mrb[0].mxu0
        %4100 = vdwg.mxu0
        %v4101 = vsel %vm3874, %v4095, -inf
        %4102 = vmax.xlane.f32.xlu0 %v4101
        %v4103 = vpop.xlane.xlu0 %4102
        %v4104 = vsel %vm3874, %v4098, -inf
        %4105 = vmax.xlane.f32.xlu0 %v4104
        %v4106 = vpop.xlane.xlu0 %4105
        %v4107 = vsub.f32 %v4095, %v4103
        %v4108 = vsub.f32 %v4098, %v4106
        %v4109 = vmul.f32 %v4107, 1.442695
        %v4110 = vpow.pop %v4109
        %v4111 = vmul.f32 %v4108, 1.442695
        %v4112 = vpow.pop %v4111
        %v4113 = vsel %vm3874, %v4110, 0.0
        %4114 = vadd.xlane.f32.xlu0 %v4113
        %v4115 = vpop.xlane.xlu0 %4114
        %v4116 = vsel %vm3874, %v4112, 0.0
        %4117 = vadd.xlane.f32.xlu0 %v4116
        %v4118 = vpop.xlane.xlu0 %4117
        %v4119 = vrcp.pop %v4115
        %v4120 = vrcp.pop %v4118
        %v4121 = vmul.f32 %v4110, %v4119
        %v4122 = vmul.f32 %v4112, %v4120
        %v4123 = vpack.c.bf16 %v4122, %v4121
        %v4125 = vsel %vm3874, %v4123, 0
        %4127 = vmatprep.subr.bf16.mxu0 0
        %4128 = vmatpush1.bf16.msra.mxu0 %v4059
        %4129 = vmatprep.subr.bf16.mxu0 0
        %4130 = vmatpush1.bf16.msra.mxu0 0
        %4131 = vmatprep.subr.bf16.mxu0 0
        %4132 = vmatpush1.bf16.msra.mxu0 0
        %4133 = vmatprep.subr.bf16.mxu0 0
        %4134 = vmatpush1.bf16.msra.mxu0 0
        %4135 = vmatprep.subr.bf16.mxu0 0
        %4136 = vmatpush1.bf16.msra.mxu0 0
        %4137 = vmatprep.subr.bf16.mxu0 0
        %4138 = vmatpush1.bf16.msra.mxu0 0
        %4139 = vmatprep.subr.bf16.mxu0 0
        %4140 = vmatpush1.bf16.msra.mxu0 0
        %4141 = vmatprep.subr.bf16.mxu0 0
        %4142 = vmatpush1.bf16.msra.mxu0 0
        %4143 = vmatprep.subr.bf16.mxu0 0
        %4144 = vmatpush1.bf16.msra.mxu0 0
        %4145 = vmatprep.subr.bf16.mxu0 0
        %4146 = vmatpush1.bf16.msra.mxu0 0
        %4147 = vmatprep.subr.bf16.mxu0 0
        %4148 = vmatpush1.bf16.msra.mxu0 0
        %4149 = vmatprep.subr.bf16.mxu0 0
        %4150 = vmatpush1.bf16.msra.mxu0 0
        %4151 = vmatprep.subr.bf16.mxu0 0
        %4152 = vmatpush1.bf16.msra.mxu0 0
        %4153 = vmatprep.subr.bf16.mxu0 0
        %4154 = vmatpush1.bf16.msra.mxu0 0
        %4155 = vmatprep.subr.bf16.mxu0 0
        %4156 = vmatpush1.bf16.msra.mxu0 0
        %4157 = vmatprep.subr.bf16.mxu0 0
        %4158 = vmatpush1.bf16.msra.mxu0 0
        %4159 = vmatprep.mubr.bf16.mxu0 0
        %4160 = vmatmul.mubr.bf16.gmra.mrb[0].mxu0 %v4125
        %v4161 = vpop.f32.mrb[0].mxu0
        %v4162 = vadd.f32 0.0, %v4161
        %v4163 = vpop.f32.mrb[0].mxu0
        %v4164 = vpop.f32.mrb[0].mxu0
        %v4165 = vadd.f32 0.0, %v4164
        %v4166 = vpop.f32.mrb[0].mxu0
        %4167 = vdwg.mxu0
        %4168 = vst [vmem:[#allocation2 + $0x10] sm:$0xff] %v4162
        %4169 = vst [vmem:[#allocation2 + $0x30] sm:$0xff] %v4165
        %v4170 = vpack.c.bf16 %v3394, %v3390
        %v4171 = vpack.c.bf16 %v3606, %v3602
        %v4172 = vpack.c.bf16 %v3818, %v3814
        %4173 = vmatprep.subr.bf16.mxu0 0
        %4174 = vmatpush1.bf16.xpose.msra.mxu0 %v4171
        %4175 = vmatprep.subr.bf16.mxu0 0
        %4176 = vmatpush1.bf16.xpose.msra.mxu0 0
        %4177 = vmatprep.subr.bf16.mxu0 0
        %4178 = vmatpush1.bf16.xpose.msra.mxu0 0
        %4179 = vmatprep.subr.bf16.mxu0 0
        %4180 = vmatpush1.bf16.xpose.msra.mxu0 0
        %4181 = vmatprep.subr.bf16.mxu0 0
        %4182 = vmatpush1.bf16.xpose.msra.mxu0 0
        %4183 = vmatprep.subr.bf16.mxu0 0
        %4184 = vmatpush1.bf16.xpose.msra.mxu0 0
        %4185 = vmatprep.subr.bf16.mxu0 0
        %4186 = vmatpush1.bf16.xpose.msra.mxu0 0
        %4187 = vmatprep.subr.bf16.mxu0 0
        %4188 = vmatpush1.bf16.xpose.msra.mxu0 0
        %4189 = vmatprep.subr.bf16.mxu0 0
        %4190 = vmatpush1.bf16.xpose.msra.mxu0 0
        %4191 = vmatprep.subr.bf16.mxu0 0
        %4192 = vmatpush1.bf16.xpose.msra.mxu0 0
        %4193 = vmatprep.subr.bf16.mxu0 0
        %4194 = vmatpush1.bf16.xpose.msra.mxu0 0
        %4195 = vmatprep.subr.bf16.mxu0 0
        %4196 = vmatpush1.bf16.xpose.msra.mxu0 0
        %4197 = vmatprep.subr.bf16.mxu0 0
        %4198 = vmatpush1.bf16.xpose.msra.mxu0 0
        %4199 = vmatprep.subr.bf16.mxu0 0
        %4200 = vmatpush1.bf16.xpose.msra.mxu0 0
        %4201 = vmatprep.subr.bf16.mxu0 0
        %4202 = vmatpush1.bf16.xpose.msra.mxu0 0
        %4203 = vmatprep.subr.bf16.mxu0 0
        %4204 = vmatpush1.bf16.xpose.msra.mxu0 0
        %4205 = vmatprep.mubr.bf16.mxu0 0
        %4206 = vmatmul.mubr.bf16.gmra.mrb[0].mxu0 %v4170
        %v4207 = vpop.f32.mrb[0].mxu0
        %v4208 = vadd.f32 0.0, %v4207
        %v4209 = vpop.f32.mrb[0].mxu0
        %v4210 = vpop.f32.mrb[0].mxu0
        %v4211 = vadd.f32 0.0, %v4210
        %v4212 = vpop.f32.mrb[0].mxu0
        %4213 = vdwg.mxu0
        %v4214 = vsel %vm3874, %v4208, -inf
        %4215 = vmax.xlane.f32.xlu0 %v4214
        %v4216 = vpop.xlane.xlu0 %4215
        %v4217 = vsel %vm3874, %v4211, -inf
        %4218 = vmax.xlane.f32.xlu0 %v4217
        %v4219 = vpop.xlane.xlu0 %4218
        %v4220 = vsub.f32 %v4208, %v4216
        %v4221 = vsub.f32 %v4211, %v4219
        %v4222 = vmul.f32 %v4220, 1.442695
        %v4223 = vpow.pop %v4222
        %v4224 = vmul.f32 %v4221, 1.442695
        %v4225 = vpow.pop %v4224
        %v4226 = vsel %vm3874, %v4223, 0.0
        %4227 = vadd.xlane.f32.xlu0 %v4226
        %v4228 = vpop.xlane.xlu0 %4227
        %v4229 = vsel %vm3874, %v4225, 0.0
        %4230 = vadd.xlane.f32.xlu0 %v4229
        %v4231 = vpop.xlane.xlu0 %4230
        %v4232 = vrcp.pop %v4228
        %v4233 = vrcp.pop %v4231
        %v4234 = vmul.f32 %v4223, %v4232
        %v4235 = vmul.f32 %v4225, %v4233
        %v4236 = vpack.c.bf16 %v4235, %v4234
        %v4238 = vsel %vm3874, %v4236, 0
        %4240 = vmatprep.subr.bf16.mxu0 0
        %4241 = vmatpush1.bf16.msra.mxu0 %v4172
        %4242 = vmatprep.subr.bf16.mxu0 0
        %4243 = vmatpush1.bf16.msra.mxu0 0
        %4244 = vmatprep.subr.bf16.mxu0 0
        %4245 = vmatpush1.bf16.msra.mxu0 0
        %4246 = vmatprep.subr.bf16.mxu0 0
        %4247 = vmatpush1.bf16.msra.mxu0 0
        %4248 = vmatprep.subr.bf16.mxu0 0
        %4249 = vmatpush1.bf16.msra.mxu0 0
        %4250 = vmatprep.subr.bf16.mxu0 0
        %4251 = vmatpush1.bf16.msra.mxu0 0
        %4252 = vmatprep.subr.bf16.mxu0 0
        %4253 = vmatpush1.bf16.msra.mxu0 0
        %4254 = vmatprep.subr.bf16.mxu0 0
        %4255 = vmatpush1.bf16.msra.mxu0 0
        %4256 = vmatprep.subr.bf16.mxu0 0
        %4257 = vmatpush1.bf16.msra.mxu0 0
        %4258 = vmatprep.subr.bf16.mxu0 0
        %4259 = vmatpush1.bf16.msra.mxu0 0
        %4260 = vmatprep.subr.bf16.mxu0 0
        %4261 = vmatpush1.bf16.msra.mxu0 0
        %4262 = vmatprep.subr.bf16.mxu0 0
        %4263 = vmatpush1.bf16.msra.mxu0 0
        %4264 = vmatprep.subr.bf16.mxu0 0
        %4265 = vmatpush1.bf16.msra.mxu0 0
        %4266 = vmatprep.subr.bf16.mxu0 0
        %4267 = vmatpush1.bf16.msra.mxu0 0
        %4268 = vmatprep.subr.bf16.mxu0 0
        %4269 = vmatpush1.bf16.msra.mxu0 0
        %4270 = vmatprep.subr.bf16.mxu0 0
        %4271 = vmatpush1.bf16.msra.mxu0 0
        %4272 = vmatprep.mubr.bf16.mxu0 0
        %4273 = vmatmul.mubr.bf16.gmra.mrb[0].mxu0 %v4238
        %v4274 = vpop.f32.mrb[0].mxu0
        %v4275 = vadd.f32 0.0, %v4274
        %v4276 = vpop.f32.mrb[0].mxu0
        %v4277 = vpop.f32.mrb[0].mxu0
        %v4278 = vadd.f32 0.0, %v4277
        %v4279 = vpop.f32.mrb[0].mxu0
        %4280 = vdwg.mxu0
        %4281 = vst [vmem:[#allocation2 + $0x18] sm:$0xff] %v4275
        %4282 = vst [vmem:[#allocation2 + $0x38] sm:$0xff] %v4278
        %v4283 = vpack.c.bf16 %v3296, %v3292
        %v4284 = vpack.c.bf16 %v3508, %v3504
        %v4285 = vpack.c.bf16 %v3720, %v3716
        %4286 = vmatprep.subr.bf16.mxu0 0
        %4287 = vmatpush1.bf16.xpose.msra.mxu0 %v4284
        %4288 = vmatprep.subr.bf16.mxu0 0
        %4289 = vmatpush1.bf16.xpose.msra.mxu0 0
        %4290 = vmatprep.subr.bf16.mxu0 0
        %4291 = vmatpush1.bf16.xpose.msra.mxu0 0
        %4292 = vmatprep.subr.bf16.mxu0 0
        %4293 = vmatpush1.bf16.xpose.msra.mxu0 0
        %4294 = vmatprep.subr.bf16.mxu0 0
        %4295 = vmatpush1.bf16.xpose.msra.mxu0 0
        %4296 = vmatprep.subr.bf16.mxu0 0
        %4297 = vmatpush1.bf16.xpose.msra.mxu0 0
        %4298 = vmatprep.subr.bf16.mxu0 0
        %4299 = vmatpush1.bf16.xpose.msra.mxu0 0
        %4300 = vmatprep.subr.bf16.mxu0 0
        %4301 = vmatpush1.bf16.xpose.msra.mxu0 0
        %4302 = vmatprep.subr.bf16.mxu0 0
        %4303 = vmatpush1.bf16.xpose.msra.mxu0 0
        %4304 = vmatprep.subr.bf16.mxu0 0
        %4305 = vmatpush1.bf16.xpose.msra.mxu0 0
        %4306 = vmatprep.subr.bf16.mxu0 0
        %4307 = vmatpush1.bf16.xpose.msra.mxu0 0
        %4308 = vmatprep.subr.bf16.mxu0 0
        %4309 = vmatpush1.bf16.xpose.msra.mxu0 0
        %4310 = vmatprep.subr.bf16.mxu0 0
        %4311 = vmatpush1.bf16.xpose.msra.mxu0 0
        %4312 = vmatprep.subr.bf16.mxu0 0
        %4313 = vmatpush1.bf16.xpose.msra.mxu0 0
        %4314 = vmatprep.subr.bf16.mxu0 0
        %4315 = vmatpush1.bf16.xpose.msra.mxu0 0
        %4316 = vmatprep.subr.bf16.mxu0 0
        %4317 = vmatpush1.bf16.xpose.msra.mxu0 0
        %4318 = vmatprep.mubr.bf16.mxu0 0
        %4319 = vmatmul.mubr.bf16.gmra.mrb[0].mxu0 %v4283
        %v4320 = vpop.f32.mrb[0].mxu0
        %v4321 = vadd.f32 0.0, %v4320
        %v4322 = vpop.f32.mrb[0].mxu0
        %v4323 = vpop.f32.mrb[0].mxu0
        %v4324 = vadd.f32 0.0, %v4323
        %v4325 = vpop.f32.mrb[0].mxu0
        %4326 = vdwg.mxu0
        %v4327 = vsel %vm3874, %v4321, -inf
        %4328 = vmax.xlane.f32.xlu0 %v4327
        %v4329 = vpop.xlane.xlu0 %4328
        %v4330 = vsel %vm3874, %v4324, -inf
        %4331 = vmax.xlane.f32.xlu0 %v4330
        %v4332 = vpop.xlane.xlu0 %4331
        %v4333 = vsub.f32 %v4321, %v4329
        %v4334 = vsub.f32 %v4324, %v4332
        %v4335 = vmul.f32 %v4333, 1.442695
        %v4336 = vpow.pop %v4335
        %v4337 = vmul.f32 %v4334, 1.442695
        %v4338 = vpow.pop %v4337
        %v4339 = vsel %vm3874, %v4336, 0.0
        %4340 = vadd.xlane.f32.xlu0 %v4339
        %v4341 = vpop.xlane.xlu0 %4340
        %v4342 = vsel %vm3874, %v4338, 0.0
        %4343 = vadd.xlane.f32.xlu0 %v4342
        %v4344 = vpop.xlane.xlu0 %4343
        %v4345 = vrcp.pop %v4341
        %v4346 = vrcp.pop %v4344
        %v4347 = vmul.f32 %v4336, %v4345
        %v4348 = vmul.f32 %v4338, %v4346
        %v4349 = vpack.c.bf16 %v4348, %v4347
        %v4351 = vsel %vm3874, %v4349, 0
        %4353 = vmatprep.subr.bf16.mxu0 0
        %4354 = vmatpush1.bf16.msra.mxu0 %v4285
        %4355 = vmatprep.subr.bf16.mxu0 0
        %4356 = vmatpush1.bf16.msra.mxu0 0
        %4357 = vmatprep.subr.bf16.mxu0 0
        %4358 = vmatpush1.bf16.msra.mxu0 0
        %4359 = vmatprep.subr.bf16.mxu0 0
        %4360 = vmatpush1.bf16.msra.mxu0 0
        %4361 = vmatprep.subr.bf16.mxu0 0
        %4362 = vmatpush1.bf16.msra.mxu0 0
        %4363 = vmatprep.subr.bf16.mxu0 0
        %4364 = vmatpush1.bf16.msra.mxu0 0
        %4365 = vmatprep.subr.bf16.mxu0 0
        %4366 = vmatpush1.bf16.msra.mxu0 0
        %4367 = vmatprep.subr.bf16.mxu0 0
        %4368 = vmatpush1.bf16.msra.mxu0 0
        %4369 = vmatprep.subr.bf16.mxu0 0
        %4370 = vmatpush1.bf16.msra.mxu0 0
        %4371 = vmatprep.subr.bf16.mxu0 0
        %4372 = vmatpush1.bf16.msra.mxu0 0
        %4373 = vmatprep.subr.bf16.mxu0 0
        %4374 = vmatpush1.bf16.msra.mxu0 0
        %4375 = vmatprep.subr.bf16.mxu0 0
        %4376 = vmatpush1.bf16.msra.mxu0 0
        %4377 = vmatprep.subr.bf16.mxu0 0
        %4378 = vmatpush1.bf16.msra.mxu0 0
        %4379 = vmatprep.subr.bf16.mxu0 0
        %4380 = vmatpush1.bf16.msra.mxu0 0
        %4381 = vmatprep.subr.bf16.mxu0 0
        %4382 = vmatpush1.bf16.msra.mxu0 0
        %4383 = vmatprep.subr.bf16.mxu0 0
        %4384 = vmatpush1.bf16.msra.mxu0 0
        %4385 = vmatprep.mubr.bf16.mxu0 0
        %4386 = vmatmul.mubr.bf16.gmra.mrb[0].mxu0 %v4351
        %v4387 = vpop.f32.mrb[0].mxu0
        %v4388 = vadd.f32 0.0, %v4387
        %v4389 = vpop.f32.mrb[0].mxu0
        %v4390 = vpop.f32.mrb[0].mxu0
        %v4391 = vadd.f32 0.0, %v4390
        %v4392 = vpop.f32.mrb[0].mxu0
        %4393 = vdwg.mxu0
        %4394 = vst [vmem:[#allocation2 + $0x40] sm:$0xff] %v4388
        %4395 = vst [vmem:[#allocation2 + $0x60] sm:$0xff] %v4391
        %v4396 = vpack.c.bf16 %v3298, %v3294
        %v4397 = vpack.c.bf16 %v3510, %v3506
        %v4398 = vpack.c.bf16 %v3722, %v3718
        %4399 = vmatprep.subr.bf16.mxu0 0
        %4400 = vmatpush1.bf16.xpose.msra.mxu0 %v4397
        %4401 = vmatprep.subr.bf16.mxu0 0
        %4402 = vmatpush1.bf16.xpose.msra.mxu0 0
        %4403 = vmatprep.subr.bf16.mxu0 0
        %4404 = vmatpush1.bf16.xpose.msra.mxu0 0
        %4405 = vmatprep.subr.bf16.mxu0 0
        %4406 = vmatpush1.bf16.xpose.msra.mxu0 0
        %4407 = vmatprep.subr.bf16.mxu0 0
        %4408 = vmatpush1.bf16.xpose.msra.mxu0 0
        %4409 = vmatprep.subr.bf16.mxu0 0
        %4410 = vmatpush1.bf16.xpose.msra.mxu0 0
        %4411 = vmatprep.subr.bf16.mxu0 0
        %4412 = vmatpush1.bf16.xpose.msra.mxu0 0
        %4413 = vmatprep.subr.bf16.mxu0 0
        %4414 = vmatpush1.bf16.xpose.msra.mxu0 0
        %4415 = vmatprep.subr.bf16.mxu0 0
        %4416 = vmatpush1.bf16.xpose.msra.mxu0 0
        %4417 = vmatprep.subr.bf16.mxu0 0
        %4418 = vmatpush1.bf16.xpose.msra.mxu0 0
        %4419 = vmatprep.subr.bf16.mxu0 0
        %4420 = vmatpush1.bf16.xpose.msra.mxu0 0
        %4421 = vmatprep.subr.bf16.mxu0 0
        %4422 = vmatpush1.bf16.xpose.msra.mxu0 0
        %4423 = vmatprep.subr.bf16.mxu0 0
        %4424 = vmatpush1.bf16.xpose.msra.mxu0 0
        %4425 = vmatprep.subr.bf16.mxu0 0
        %4426 = vmatpush1.bf16.xpose.msra.mxu0 0
        %4427 = vmatprep.subr.bf16.mxu0 0
        %4428 = vmatpush1.bf16.xpose.msra.mxu0 0
        %4429 = vmatprep.subr.bf16.mxu0 0
        %4430 = vmatpush1.bf16.xpose.msra.mxu0 0
        %4431 = vmatprep.mubr.bf16.mxu0 0
        %4432 = vmatmul.mubr.bf16.gmra.mrb[0].mxu0 %v4396
        %v4433 = vpop.f32.mrb[0].mxu0
        %v4434 = vadd.f32 0.0, %v4433
        %v4435 = vpop.f32.mrb[0].mxu0
        %v4436 = vpop.f32.mrb[0].mxu0
        %v4437 = vadd.f32 0.0, %v4436
        %v4438 = vpop.f32.mrb[0].mxu0
        %4439 = vdwg.mxu0
        %v4440 = vsel %vm3874, %v4434, -inf
        %4441 = vmax.xlane.f32.xlu0 %v4440
        %v4442 = vpop.xlane.xlu0 %4441
        %v4443 = vsel %vm3874, %v4437, -inf
        %4444 = vmax.xlane.f32.xlu0 %v4443
        %v4445 = vpop.xlane.xlu0 %4444
        %v4446 = vsub.f32 %v4434, %v4442
        %v4447 = vsub.f32 %v4437, %v4445
        %v4448 = vmul.f32 %v4446, 1.442695
        %v4449 = vpow.pop %v4448
        %v4450 = vmul.f32 %v4447, 1.442695
        %v4451 = vpow.pop %v4450
        %v4452 = vsel %vm3874, %v4449, 0.0
        %4453 = vadd.xlane.f32.xlu0 %v4452
        %v4454 = vpop.xlane.xlu0 %4453
        %v4455 = vsel %vm3874, %v4451, 0.0
        %4456 = vadd.xlane.f32.xlu0 %v4455
        %v4457 = vpop.xlane.xlu0 %4456
        %v4458 = vrcp.pop %v4454
        %v4459 = vrcp.pop %v4457
        %v4460 = vmul.f32 %v4449, %v4458
        %v4461 = vmul.f32 %v4451, %v4459
        %v4462 = vpack.c.bf16 %v4461, %v4460
        %v4464 = vsel %vm3874, %v4462, 0
        %4466 = vmatprep.subr.bf16.mxu0 0
        %4467 = vmatpush1.bf16.msra.mxu0 %v4398
        %4468 = vmatprep.subr.bf16.mxu0 0
        %4469 = vmatpush1.bf16.msra.mxu0 0
        %4470 = vmatprep.subr.bf16.mxu0 0
        %4471 = vmatpush1.bf16.msra.mxu0 0
        %4472 = vmatprep.subr.bf16.mxu0 0
        %4473 = vmatpush1.bf16.msra.mxu0 0
        %4474 = vmatprep.subr.bf16.mxu0 0
        %4475 = vmatpush1.bf16.msra.mxu0 0
        %4476 = vmatprep.subr.bf16.mxu0 0
        %4477 = vmatpush1.bf16.msra.mxu0 0
        %4478 = vmatprep.subr.bf16.mxu0 0
        %4479 = vmatpush1.bf16.msra.mxu0 0
        %4480 = vmatprep.subr.bf16.mxu0 0
        %4481 = vmatpush1.bf16.msra.mxu0 0
        %4482 = vmatprep.subr.bf16.mxu0 0
        %4483 = vmatpush1.bf16.msra.mxu0 0
        %4484 = vmatprep.subr.bf16.mxu0 0
        %4485 = vmatpush1.bf16.msra.mxu0 0
        %4486 = vmatprep.subr.bf16.mxu0 0
        %4487 = vmatpush1.bf16.msra.mxu0 0
        %4488 = vmatprep.subr.bf16.mxu0 0
        %4489 = vmatpush1.bf16.msra.mxu0 0
        %4490 = vmatprep.subr.bf16.mxu0 0
        %4491 = vmatpush1.bf16.msra.mxu0 0
        %4492 = vmatprep.subr.bf16.mxu0 0
        %4493 = vmatpush1.bf16.msra.mxu0 0
        %4494 = vmatprep.subr.bf16.mxu0 0
        %4495 = vmatpush1.bf16.msra.mxu0 0
        %4496 = vmatprep.subr.bf16.mxu0 0
        %4497 = vmatpush1.bf16.msra.mxu0 0
        %4498 = vmatprep.mubr.bf16.mxu0 0
        %4499 = vmatmul.mubr.bf16.gmra.mrb[0].mxu0 %v4464
        %v4500 = vpop.f32.mrb[0].mxu0
        %v4501 = vadd.f32 0.0, %v4500
        %v4502 = vpop.f32.mrb[0].mxu0
        %v4503 = vpop.f32.mrb[0].mxu0
        %v4504 = vadd.f32 0.0, %v4503
        %v4505 = vpop.f32.mrb[0].mxu0
        %4506 = vdwg.mxu0
        %4507 = vst [vmem:[#allocation2 + $0x48] sm:$0xff] %v4501
        %4508 = vst [vmem:[#allocation2 + $0x68] sm:$0xff] %v4504
        %v4509 = vpack.c.bf16 %v3402, %v3398
        %v4510 = vpack.c.bf16 %v3614, %v3610
        %v4511 = vpack.c.bf16 %v3826, %v3822
        %4512 = vmatprep.subr.bf16.mxu0 0
        %4513 = vmatpush1.bf16.xpose.msra.mxu0 %v4510
        %4514 = vmatprep.subr.bf16.mxu0 0
        %4515 = vmatpush1.bf16.xpose.msra.mxu0 0
        %4516 = vmatprep.subr.bf16.mxu0 0
        %4517 = vmatpush1.bf16.xpose.msra.mxu0 0
        %4518 = vmatprep.subr.bf16.mxu0 0
        %4519 = vmatpush1.bf16.xpose.msra.mxu0 0
        %4520 = vmatprep.subr.bf16.mxu0 0
        %4521 = vmatpush1.bf16.xpose.msra.mxu0 0
        %4522 = vmatprep.subr.bf16.mxu0 0
        %4523 = vmatpush1.bf16.xpose.msra.mxu0 0
        %4524 = vmatprep.subr.bf16.mxu0 0
        %4525 = vmatpush1.bf16.xpose.msra.mxu0 0
        %4526 = vmatprep.subr.bf16.mxu0 0
        %4527 = vmatpush1.bf16.xpose.msra.mxu0 0
        %4528 = vmatprep.subr.bf16.mxu0 0
        %4529 = vmatpush1.bf16.xpose.msra.mxu0 0
        %4530 = vmatprep.subr.bf16.mxu0 0
        %4531 = vmatpush1.bf16.xpose.msra.mxu0 0
        %4532 = vmatprep.subr.bf16.mxu0 0
        %4533 = vmatpush1.bf16.xpose.msra.mxu0 0
        %4534 = vmatprep.subr.bf16.mxu0 0
        %4535 = vmatpush1.bf16.xpose.msra.mxu0 0
        %4536 = vmatprep.subr.bf16.mxu0 0
        %4537 = vmatpush1.bf16.xpose.msra.mxu0 0
        %4538 = vmatprep.subr.bf16.mxu0 0
        %4539 = vmatpush1.bf16.xpose.msra.mxu0 0
        %4540 = vmatprep.subr.bf16.mxu0 0
        %4541 = vmatpush1.bf16.xpose.msra.mxu0 0
        %4542 = vmatprep.subr.bf16.mxu0 0
        %4543 = vmatpush1.bf16.xpose.msra.mxu0 0
        %4544 = vmatprep.mubr.bf16.mxu0 0
        %4545 = vmatmul.mubr.bf16.gmra.mrb[0].mxu0 %v4509
        %v4546 = vpop.f32.mrb[0].mxu0
        %v4547 = vadd.f32 0.0, %v4546
        %v4548 = vpop.f32.mrb[0].mxu0
        %v4549 = vpop.f32.mrb[0].mxu0
        %v4550 = vadd.f32 0.0, %v4549
        %v4551 = vpop.f32.mrb[0].mxu0
        %4552 = vdwg.mxu0
        %v4553 = vsel %vm3874, %v4547, -inf
        %4554 = vmax.xlane.f32.xlu0 %v4553
        %v4555 = vpop.xlane.xlu0 %4554
        %v4556 = vsel %vm3874, %v4550, -inf
        %4557 = vmax.xlane.f32.xlu0 %v4556
        %v4558 = vpop.xlane.xlu0 %4557
        %v4559 = vsub.f32 %v4547, %v4555
        %v4560 = vsub.f32 %v4550, %v4558
        %v4561 = vmul.f32 %v4559, 1.442695
        %v4562 = vpow.pop %v4561
        %v4563 = vmul.f32 %v4560, 1.442695
        %v4564 = vpow.pop %v4563
        %v4565 = vsel %vm3874, %v4562, 0.0
        %4566 = vadd.xlane.f32.xlu0 %v4565
        %v4567 = vpop.xlane.xlu0 %4566
        %v4568 = vsel %vm3874, %v4564, 0.0
        %4569 = vadd.xlane.f32.xlu0 %v4568
        %v4570 = vpop.xlane.xlu0 %4569
        %v4571 = vrcp.pop %v4567
        %v4572 = vrcp.pop %v4570
        %v4573 = vmul.f32 %v4562, %v4571
        %v4574 = vmul.f32 %v4564, %v4572
        %v4575 = vpack.c.bf16 %v4574, %v4573
        %v4577 = vsel %vm3874, %v4575, 0
        %4579 = vmatprep.subr.bf16.mxu0 0
        %4580 = vmatpush1.bf16.msra.mxu0 %v4511
        %4581 = vmatprep.subr.bf16.mxu0 0
        %4582 = vmatpush1.bf16.msra.mxu0 0
        %4583 = vmatprep.subr.bf16.mxu0 0
        %4584 = vmatpush1.bf16.msra.mxu0 0
        %4585 = vmatprep.subr.bf16.mxu0 0
        %4586 = vmatpush1.bf16.msra.mxu0 0
        %4587 = vmatprep.subr.bf16.mxu0 0
        %4588 = vmatpush1.bf16.msra.mxu0 0
        %4589 = vmatprep.subr.bf16.mxu0 0
        %4590 = vmatpush1.bf16.msra.mxu0 0
        %4591 = vmatprep.subr.bf16.mxu0 0
        %4592 = vmatpush1.bf16.msra.mxu0 0
        %4593 = vmatprep.subr.bf16.mxu0 0
        %4594 = vmatpush1.bf16.msra.mxu0 0
        %4595 = vmatprep.subr.bf16.mxu0 0
        %4596 = vmatpush1.bf16.msra.mxu0 0
        %4597 = vmatprep.subr.bf16.mxu0 0
        %4598 = vmatpush1.bf16.msra.mxu0 0
        %4599 = vmatprep.subr.bf16.mxu0 0
        %4600 = vmatpush1.bf16.msra.mxu0 0
        %4601 = vmatprep.subr.bf16.mxu0 0
        %4602 = vmatpush1.bf16.msra.mxu0 0
        %4603 = vmatprep.subr.bf16.mxu0 0
        %4604 = vmatpush1.bf16.msra.mxu0 0
        %4605 = vmatprep.subr.bf16.mxu0 0
        %4606 = vmatpush1.bf16.msra.mxu0 0
        %4607 = vmatprep.subr.bf16.mxu0 0
        %4608 = vmatpush1.bf16.msra.mxu0 0
        %4609 = vmatprep.subr.bf16.mxu0 0
        %4610 = vmatpush1.bf16.msra.mxu0 0
        %4611 = vmatprep.mubr.bf16.mxu0 0
        %4612 = vmatmul.mubr.bf16.gmra.mrb[0].mxu0 %v4577
        %v4613 = vpop.f32.mrb[0].mxu0
        %v4614 = vadd.f32 0.0, %v4613
        %v4615 = vpop.f32.mrb[0].mxu0
        %v4616 = vpop.f32.mrb[0].mxu0
        %v4617 = vadd.f32 0.0, %v4616
        %v4618 = vpop.f32.mrb[0].mxu0
        %4619 = vdwg.mxu0
        %4620 = vst [vmem:[#allocation2 + $0x50] sm:$0xff] %v4614
        %4621 = vst [vmem:[#allocation2 + $0x70] sm:$0xff] %v4617
        %v4622 = vpack.c.bf16 %v3404, %v3400
        %v4623 = vpack.c.bf16 %v3616, %v3612
        %v4624 = vpack.c.bf16 %v3828, %v3824
        %4625 = vmatprep.subr.bf16.mxu0 0
        %4626 = vmatpush1.bf16.xpose.msra.mxu0 %v4623
        %4627 = vmatprep.subr.bf16.mxu0 0
        %4628 = vmatpush1.bf16.xpose.msra.mxu0 0
        %4629 = vmatprep.subr.bf16.mxu0 0
        %4630 = vmatpush1.bf16.xpose.msra.mxu0 0
        %4631 = vmatprep.subr.bf16.mxu0 0
        %4632 = vmatpush1.bf16.xpose.msra.mxu0 0
        %4633 = vmatprep.subr.bf16.mxu0 0
        %4634 = vmatpush1.bf16.xpose.msra.mxu0 0
        %4635 = vmatprep.subr.bf16.mxu0 0
        %4636 = vmatpush1.bf16.xpose.msra.mxu0 0
        %4637 = vmatprep.subr.bf16.mxu0 0
        %4638 = vmatpush1.bf16.xpose.msra.mxu0 0
        %4639 = vmatprep.subr.bf16.mxu0 0
        %4640 = vmatpush1.bf16.xpose.msra.mxu0 0
        %4641 = vmatprep.subr.bf16.mxu0 0
        %4642 = vmatpush1.bf16.xpose.msra.mxu0 0
        %4643 = vmatprep.subr.bf16.mxu0 0
        %4644 = vmatpush1.bf16.xpose.msra.mxu0 0
        %4645 = vmatprep.subr.bf16.mxu0 0
        %4646 = vmatpush1.bf16.xpose.msra.mxu0 0
        %4647 = vmatprep.subr.bf16.mxu0 0
        %4648 = vmatpush1.bf16.xpose.msra.mxu0 0
        %4649 = vmatprep.subr.bf16.mxu0 0
        %4650 = vmatpush1.bf16.xpose.msra.mxu0 0
        %4651 = vmatprep.subr.bf16.mxu0 0
        %4652 = vmatpush1.bf16.xpose.msra.mxu0 0
        %4653 = vmatprep.subr.bf16.mxu0 0
        %4654 = vmatpush1.bf16.xpose.msra.mxu0 0
        %4655 = vmatprep.subr.bf16.mxu0 0
        %4656 = vmatpush1.bf16.xpose.msra.mxu0 0
        %4657 = vmatprep.mubr.bf16.mxu0 0
        %4658 = vmatmul.mubr.bf16.gmra.mrb[0].mxu0 %v4622
        %v4659 = vpop.f32.mrb[0].mxu0
        %v4660 = vadd.f32 0.0, %v4659
        %v4661 = vpop.f32.mrb[0].mxu0
        %v4662 = vpop.f32.mrb[0].mxu0
        %v4663 = vadd.f32 0.0, %v4662
        %v4664 = vpop.f32.mrb[0].mxu0
        %4665 = vdwg.mxu0
        %v4666 = vsel %vm3874, %v4660, -inf
        %4667 = vmax.xlane.f32.xlu0 %v4666
        %v4668 = vpop.xlane.xlu0 %4667
        %v4669 = vsel %vm3874, %v4663, -inf
        %4670 = vmax.xlane.f32.xlu0 %v4669
        %v4671 = vpop.xlane.xlu0 %4670
        %v4672 = vsub.f32 %v4660, %v4668
        %v4673 = vsub.f32 %v4663, %v4671
        %v4674 = vmul.f32 %v4672, 1.442695
        %v4675 = vpow.pop %v4674
        %v4676 = vmul.f32 %v4673, 1.442695
        %v4677 = vpow.pop %v4676
        %v4678 = vsel %vm3874, %v4675, 0.0
        %4679 = vadd.xlane.f32.xlu0 %v4678
        %v4680 = vpop.xlane.xlu0 %4679
        %v4681 = vsel %vm3874, %v4677, 0.0
        %4682 = vadd.xlane.f32.xlu0 %v4681
        %v4683 = vpop.xlane.xlu0 %4682
        %v4684 = vrcp.pop %v4680
        %v4685 = vrcp.pop %v4683
        %v4686 = vmul.f32 %v4675, %v4684
        %v4687 = vmul.f32 %v4677, %v4685
        %v4688 = vpack.c.bf16 %v4687, %v4686
        %v4690 = vsel %vm3874, %v4688, 0
        %4692 = vmatprep.subr.bf16.mxu0 0
        %4693 = vmatpush1.bf16.msra.mxu0 %v4624
        %4694 = vmatprep.subr.bf16.mxu0 0
        %4695 = vmatpush1.bf16.msra.mxu0 0
        %4696 = vmatprep.subr.bf16.mxu0 0
        %4697 = vmatpush1.bf16.msra.mxu0 0
        %4698 = vmatprep.subr.bf16.mxu0 0
        %4699 = vmatpush1.bf16.msra.mxu0 0
        %4700 = vmatprep.subr.bf16.mxu0 0
        %4701 = vmatpush1.bf16.msra.mxu0 0
        %4702 = vmatprep.subr.bf16.mxu0 0
        %4703 = vmatpush1.bf16.msra.mxu0 0
        %4704 = vmatprep.subr.bf16.mxu0 0
        %4705 = vmatpush1.bf16.msra.mxu0 0
        %4706 = vmatprep.subr.bf16.mxu0 0
        %4707 = vmatpush1.bf16.msra.mxu0 0
        %4708 = vmatprep.subr.bf16.mxu0 0
        %4709 = vmatpush1.bf16.msra.mxu0 0
        %4710 = vmatprep.subr.bf16.mxu0 0
        %4711 = vmatpush1.bf16.msra.mxu0 0
        %4712 = vmatprep.subr.bf16.mxu0 0
        %4713 = vmatpush1.bf16.msra.mxu0 0
        %4714 = vmatprep.subr.bf16.mxu0 0
        %4715 = vmatpush1.bf16.msra.mxu0 0
        %4716 = vmatprep.subr.bf16.mxu0 0
        %4717 = vmatpush1.bf16.msra.mxu0 0
        %4718 = vmatprep.subr.bf16.mxu0 0
        %4719 = vmatpush1.bf16.msra.mxu0 0
        %4720 = vmatprep.subr.bf16.mxu0 0
        %4721 = vmatpush1.bf16.msra.mxu0 0
        %4722 = vmatprep.subr.bf16.mxu0 0
        %4723 = vmatpush1.bf16.msra.mxu0 0
        %4724 = vmatprep.mubr.bf16.mxu0 0
        %4725 = vmatmul.mubr.bf16.gmra.mrb[0].mxu0 %v4690
        %v4726 = vpop.f32.mrb[0].mxu0
        %v4727 = vadd.f32 0.0, %v4726
        %v4728 = vpop.f32.mrb[0].mxu0
        %v4729 = vpop.f32.mrb[0].mxu0
        %v4730 = vadd.f32 0.0, %v4729
        %v4731 = vpop.f32.mrb[0].mxu0
        %4732 = vdwg.mxu0
        %4733 = vst [vmem:[#allocation2 + $0x58] sm:$0xff] %v4727
        %4734 = vst [vmem:[#allocation2 + $0x78] sm:$0xff] %v4730
        %v4735 = vld [vmem:[#allocation2] sm:$0xff]
        %v4736 = vld [vmem:[#allocation2 + $0x8] sm:$0xff]
        %v4737 = vld [vmem:[#allocation2 + $0x10] sm:$0xff]
        %v4738 = vld [vmem:[#allocation2 + $0x18] sm:$0xff]
        %v4739 = vld [vmem:[#allocation2 + $0x20] sm:$0xff]
        %v4740 = vld [vmem:[#allocation2 + $0x28] sm:$0xff]
        %v4741 = vld [vmem:[#allocation2 + $0x30] sm:$0xff]
        %v4742 = vld [vmem:[#allocation2 + $0x38] sm:$0xff]
        %v4743 = vld [vmem:[#allocation2 + $0x40] sm:$0xff]
        %v4744 = vld [vmem:[#allocation2 + $0x48] sm:$0xff]
        %v4745 = vld [vmem:[#allocation2 + $0x50] sm:$0xff]
        %v4746 = vld [vmem:[#allocation2 + $0x58] sm:$0xff]
        %v4747 = vld [vmem:[#allocation2 + $0x60] sm:$0xff]
        %v4748 = vld [vmem:[#allocation2 + $0x68] sm:$0xff]
        %v4749 = vld [vmem:[#allocation2 + $0x70] sm:$0xff]
        %v4750 = vld [vmem:[#allocation2 + $0x78] sm:$0xff]
        %v4751 = vpack.c.bf16 %v4739, %v4735
        %v4752 = vpack.c.bf16 %v4740, %v4736
        %v4753 = vpack.c.bf16 %v4741, %v4737
        %v4754 = vpack.c.bf16 %v4742, %v4738
        %v4755 = vpack.c.bf16 %v4747, %v4743
        %v4756 = vpack.c.bf16 %v4748, %v4744
        %v4757 = vpack.c.bf16 %v4749, %v4745
        %v4758 = vpack.c.bf16 %v4750, %v4746
        %v4759 = vld [vmem:[#allocation12] sm:$0xff]
        %v4760 = vld [vmem:[#allocation12 + $0x8] sm:$0xff]
        %v4761 = vld [vmem:[#allocation12 + $0x10] sm:$0xff]
        %v4762 = vld [vmem:[#allocation12 + $0x18] sm:$0xff]
        %v4763 = vld [vmem:[#allocation12 + $0x20] sm:$0xff]
        %v4764 = vld [vmem:[#allocation12 + $0x28] sm:$0xff]
        %v4765 = vld [vmem:[#allocation12 + $0x30] sm:$0xff]
        %v4766 = vld [vmem:[#allocation12 + $0x38] sm:$0xff]
        %v4767 = vld [vmem:[#allocation12 + $0x40] sm:$0xff]
        %v4768 = vld [vmem:[#allocation12 + $0x48] sm:$0xff]
        %v4769 = vld [vmem:[#allocation12 + $0x50] sm:$0xff]
        %v4770 = vld [vmem:[#allocation12 + $0x58] sm:$0xff]
        %v4771 = vld [vmem:[#allocation12 + $0x60] sm:$0xff]
        %v4772 = vld [vmem:[#allocation12 + $0x68] sm:$0xff]
        %v4773 = vld [vmem:[#allocation12 + $0x70] sm:$0xff]
        %v4774 = vld [vmem:[#allocation12 + $0x78] sm:$0xff]
        %v4775 = vld [vmem:[#allocation12 + $0x80] sm:$0xff]
        %v4776 = vld [vmem:[#allocation12 + $0x88] sm:$0xff]
        %v4777 = vld [vmem:[#allocation12 + $0x90] sm:$0xff]
        %v4778 = vld [vmem:[#allocation12 + $0x98] sm:$0xff]
        %v4779 = vld [vmem:[#allocation12 + $0xa0] sm:$0xff]
        %v4780 = vld [vmem:[#allocation12 + $0xa8] sm:$0xff]
        %v4781 = vld [vmem:[#allocation12 + $0xb0] sm:$0xff]
        %v4782 = vld [vmem:[#allocation12 + $0xb8] sm:$0xff]
        %v4783 = vld [vmem:[#allocation12 + $0xc0] sm:$0xff]
        %v4784 = vld [vmem:[#allocation12 + $0xc8] sm:$0xff]
        %v4785 = vld [vmem:[#allocation12 + $0xd0] sm:$0xff]
        %v4786 = vld [vmem:[#allocation12 + $0xd8] sm:$0xff]
        %v4787 = vld [vmem:[#allocation12 + $0xe0] sm:$0xff]
        %v4788 = vld [vmem:[#allocation12 + $0xe8] sm:$0xff]
        %v4789 = vld [vmem:[#allocation12 + $0xf0] sm:$0xff]
        %v4790 = vld [vmem:[#allocation12 + $0xf8] sm:$0xff]
        %v4791 = vld [vmem:[#allocation12 + $0x100] sm:$0xff]
        %v4792 = vld [vmem:[#allocation12 + $0x108] sm:$0xff]
        %v4793 = vld [vmem:[#allocation12 + $0x110] sm:$0xff]
        %v4794 = vld [vmem:[#allocation12 + $0x118] sm:$0xff]
        %v4795 = vld [vmem:[#allocation12 + $0x120] sm:$0xff]
        %v4796 = vld [vmem:[#allocation12 + $0x128] sm:$0xff]
        %v4797 = vld [vmem:[#allocation12 + $0x130] sm:$0xff]
        %v4798 = vld [vmem:[#allocation12 + $0x138] sm:$0xff]
        %v4799 = vld [vmem:[#allocation12 + $0x140] sm:$0xff]
        %v4800 = vld [vmem:[#allocation12 + $0x148] sm:$0xff]
        %v4801 = vld [vmem:[#allocation12 + $0x150] sm:$0xff]
        %v4802 = vld [vmem:[#allocation12 + $0x158] sm:$0xff]
        %v4803 = vld [vmem:[#allocation12 + $0x160] sm:$0xff]
        %v4804 = vld [vmem:[#allocation12 + $0x168] sm:$0xff]
        %v4805 = vld [vmem:[#allocation12 + $0x170] sm:$0xff]
        %v4806 = vld [vmem:[#allocation12 + $0x178] sm:$0xff]
        %v4807 = vld [vmem:[#allocation12 + $0x180] sm:$0xff]
        %v4808 = vld [vmem:[#allocation12 + $0x188] sm:$0xff]
        %v4809 = vld [vmem:[#allocation12 + $0x190] sm:$0xff]
        %v4810 = vld [vmem:[#allocation12 + $0x198] sm:$0xff]
        %v4811 = vld [vmem:[#allocation12 + $0x1a0] sm:$0xff]
        %v4812 = vld [vmem:[#allocation12 + $0x1a8] sm:$0xff]
        %v4813 = vld [vmem:[#allocation12 + $0x1b0] sm:$0xff]
        %v4814 = vld [vmem:[#allocation12 + $0x1b8] sm:$0xff]
        %v4815 = vld [vmem:[#allocation12 + $0x1c0] sm:$0xff]
        %v4816 = vld [vmem:[#allocation12 + $0x1c8] sm:$0xff]
        %v4817 = vld [vmem:[#allocation12 + $0x1d0] sm:$0xff]
        %v4818 = vld [vmem:[#allocation12 + $0x1d8] sm:$0xff]
        %v4819 = vld [vmem:[#allocation12 + $0x1e0] sm:$0xff]
        %v4820 = vld [vmem:[#allocation12 + $0x1e8] sm:$0xff]
        %v4821 = vld [vmem:[#allocation12 + $0x1f0] sm:$0xff]
        %v4822 = vld [vmem:[#allocation12 + $0x1f8] sm:$0xff]
        %v4823 = vld [vmem:[#allocation12 + $0x200] sm:$0xff]
        %v4824 = vld [vmem:[#allocation12 + $0x208] sm:$0xff]
        %v4825 = vld [vmem:[#allocation12 + $0x210] sm:$0xff]
        %v4826 = vld [vmem:[#allocation12 + $0x218] sm:$0xff]
        %v4827 = vld [vmem:[#allocation12 + $0x220] sm:$0xff]
        %v4828 = vld [vmem:[#allocation12 + $0x228] sm:$0xff]
        %v4829 = vld [vmem:[#allocation12 + $0x230] sm:$0xff]
        %v4830 = vld [vmem:[#allocation12 + $0x238] sm:$0xff]
        %v4831 = vld [vmem:[#allocation12 + $0x240] sm:$0xff]
        %v4832 = vld [vmem:[#allocation12 + $0x248] sm:$0xff]
        %v4833 = vld [vmem:[#allocation12 + $0x250] sm:$0xff]
        %v4834 = vld [vmem:[#allocation12 + $0x258] sm:$0xff]
        %v4835 = vld [vmem:[#allocation12 + $0x260] sm:$0xff]
        %v4836 = vld [vmem:[#allocation12 + $0x268] sm:$0xff]
        %v4837 = vld [vmem:[#allocation12 + $0x270] sm:$0xff]
        %v4838 = vld [vmem:[#allocation12 + $0x278] sm:$0xff]
        %v4839 = vld [vmem:[#allocation12 + $0x280] sm:$0xff]
        %v4840 = vld [vmem:[#allocation12 + $0x288] sm:$0xff]
        %v4841 = vld [vmem:[#allocation12 + $0x290] sm:$0xff]
        %v4842 = vld [vmem:[#allocation12 + $0x298] sm:$0xff]
        %v4843 = vld [vmem:[#allocation12 + $0x2a0] sm:$0xff]
        %v4844 = vld [vmem:[#allocation12 + $0x2a8] sm:$0xff]
        %v4845 = vld [vmem:[#allocation12 + $0x2b0] sm:$0xff]
        %v4846 = vld [vmem:[#allocation12 + $0x2b8] sm:$0xff]
        %v4847 = vld [vmem:[#allocation12 + $0x2c0] sm:$0xff]
        %v4848 = vld [vmem:[#allocation12 + $0x2c8] sm:$0xff]
        %v4849 = vld [vmem:[#allocation12 + $0x2d0] sm:$0xff]
        %v4850 = vld [vmem:[#allocation12 + $0x2d8] sm:$0xff]
        %v4851 = vld [vmem:[#allocation12 + $0x2e0] sm:$0xff]
        %v4852 = vld [vmem:[#allocation12 + $0x2e8] sm:$0xff]
        %v4853 = vld [vmem:[#allocation12 + $0x2f0] sm:$0xff]
        %v4854 = vld [vmem:[#allocation12 + $0x2f8] sm:$0xff]
        %v4855 = vld [vmem:[#allocation12 + $0x300] sm:$0xff]
        %v4856 = vld [vmem:[#allocation12 + $0x308] sm:$0xff]
        %v4857 = vld [vmem:[#allocation12 + $0x310] sm:$0xff]
        %v4858 = vld [vmem:[#allocation12 + $0x318] sm:$0xff]
        %v4859 = vld [vmem:[#allocation12 + $0x320] sm:$0xff]
        %v4860 = vld [vmem:[#allocation12 + $0x328] sm:$0xff]
        %v4861 = vld [vmem:[#allocation12 + $0x330] sm:$0xff]
        %v4862 = vld [vmem:[#allocation12 + $0x338] sm:$0xff]
        %v4863 = vld [vmem:[#allocation12 + $0x340] sm:$0xff]
        %v4864 = vld [vmem:[#allocation12 + $0x348] sm:$0xff]
        %v4865 = vld [vmem:[#allocation12 + $0x350] sm:$0xff]
        %v4866 = vld [vmem:[#allocation12 + $0x358] sm:$0xff]
        %v4867 = vld [vmem:[#allocation12 + $0x360] sm:$0xff]
        %v4868 = vld [vmem:[#allocation12 + $0x368] sm:$0xff]
        %v4869 = vld [vmem:[#allocation12 + $0x370] sm:$0xff]
        %v4870 = vld [vmem:[#allocation12 + $0x378] sm:$0xff]
        %v4871 = vld [vmem:[#allocation12 + $0x380] sm:$0xff]
        %v4872 = vld [vmem:[#allocation12 + $0x388] sm:$0xff]
        %v4873 = vld [vmem:[#allocation12 + $0x390] sm:$0xff]
        %v4874 = vld [vmem:[#allocation12 + $0x398] sm:$0xff]
        %v4875 = vld [vmem:[#allocation12 + $0x3a0] sm:$0xff]
        %v4876 = vld [vmem:[#allocation12 + $0x3a8] sm:$0xff]
        %v4877 = vld [vmem:[#allocation12 + $0x3b0] sm:$0xff]
        %v4878 = vld [vmem:[#allocation12 + $0x3b8] sm:$0xff]
        %v4879 = vld [vmem:[#allocation12 + $0x3c0] sm:$0xff]
        %v4880 = vld [vmem:[#allocation12 + $0x3c8] sm:$0xff]
        %v4881 = vld [vmem:[#allocation12 + $0x3d0] sm:$0xff]
        %v4882 = vld [vmem:[#allocation12 + $0x3d8] sm:$0xff]
        %v4883 = vld [vmem:[#allocation12 + $0x3e0] sm:$0xff]
        %v4884 = vld [vmem:[#allocation12 + $0x3e8] sm:$0xff]
        %v4885 = vld [vmem:[#allocation12 + $0x3f0] sm:$0xff]
        %v4886 = vld [vmem:[#allocation12 + $0x3f8] sm:$0xff]
        %v4887 = vld [vmem:[#allocation14] sm:$0xf]
        %v4889 = vlaneseq
        %v4890 = vshrl.u32 %v4889, 7
        %v4891 = vsub.s32 0, %v4890
        %v4892 = vrot.slane %v4887, %v4891
        %v4893 = vlaneseq
        %v4894 = vshrl.u32 %v4893, 7
        %v4895 = vsub.s32 1, %v4894
        %v4896 = vrot.slane %v4887, %v4895
        %v4897 = vlaneseq
        %v4898 = vshrl.u32 %v4897, 7
        %v4899 = vsub.s32 2, %v4898
        %v4900 = vrot.slane %v4887, %v4899
        %v4901 = vlaneseq
        %v4902 = vshrl.u32 %v4901, 7
        %v4903 = vsub.s32 3, %v4902
        %v4904 = vrot.slane %v4887, %v4903
        %v5037 = vunpack.c.l.b16 %v4759
        %v5038 = vunpack.c.h.b16 %v4759
        %v5039 = vunpack.c.l.b16 %v4760
        %v5040 = vunpack.c.h.b16 %v4760
        %v5041 = vunpack.c.l.b16 %v4761
        %v5042 = vunpack.c.h.b16 %v4761
        %v5043 = vunpack.c.l.b16 %v4762
        %v5044 = vunpack.c.h.b16 %v4762
        %v5045 = vunpack.c.l.b16 %v4763
        %v5046 = vunpack.c.h.b16 %v4763
        %v5047 = vunpack.c.l.b16 %v4764
        %v5048 = vunpack.c.h.b16 %v4764
        %v5049 = vunpack.c.l.b16 %v4765
        %v5050 = vunpack.c.h.b16 %v4765
        %v5051 = vunpack.c.l.b16 %v4766
        %v5052 = vunpack.c.h.b16 %v4766
        %v5053 = vunpack.c.l.b16 %v4767
        %v5054 = vunpack.c.h.b16 %v4767
        %v5055 = vunpack.c.l.b16 %v4768
        %v5056 = vunpack.c.h.b16 %v4768
        %v5057 = vunpack.c.l.b16 %v4769
        %v5058 = vunpack.c.h.b16 %v4769
        %v5059 = vunpack.c.l.b16 %v4770
        %v5060 = vunpack.c.h.b16 %v4770
        %v5061 = vunpack.c.l.b16 %v4771
        %v5062 = vunpack.c.h.b16 %v4771
        %v5063 = vunpack.c.l.b16 %v4772
        %v5064 = vunpack.c.h.b16 %v4772
        %v5065 = vunpack.c.l.b16 %v4773
        %v5066 = vunpack.c.h.b16 %v4773
        %v5067 = vunpack.c.l.b16 %v4774
        %v5068 = vunpack.c.h.b16 %v4774
        %v5069 = vunpack.c.l.b16 %v4775
        %v5070 = vunpack.c.h.b16 %v4775
        %v5071 = vunpack.c.l.b16 %v4776
        %v5072 = vunpack.c.h.b16 %v4776
        %v5073 = vunpack.c.l.b16 %v4777
        %v5074 = vunpack.c.h.b16 %v4777
        %v5075 = vunpack.c.l.b16 %v4778
        %v5076 = vunpack.c.h.b16 %v4778
        %v5077 = vunpack.c.l.b16 %v4779
        %v5078 = vunpack.c.h.b16 %v4779
        %v5079 = vunpack.c.l.b16 %v4780
        %v5080 = vunpack.c.h.b16 %v4780
        %v5081 = vunpack.c.l.b16 %v4781
        %v5082 = vunpack.c.h.b16 %v4781
        %v5083 = vunpack.c.l.b16 %v4782
        %v5084 = vunpack.c.h.b16 %v4782
        %v5085 = vunpack.c.l.b16 %v4783
        %v5086 = vunpack.c.h.b16 %v4783
        %v5087 = vunpack.c.l.b16 %v4784
        %v5088 = vunpack.c.h.b16 %v4784
        %v5089 = vunpack.c.l.b16 %v4785
        %v5090 = vunpack.c.h.b16 %v4785
        %v5091 = vunpack.c.l.b16 %v4786
        %v5092 = vunpack.c.h.b16 %v4786
        %v5093 = vunpack.c.l.b16 %v4787
        %v5094 = vunpack.c.h.b16 %v4787
        %v5095 = vunpack.c.l.b16 %v4788
        %v5096 = vunpack.c.h.b16 %v4788
        %v5097 = vunpack.c.l.b16 %v4789
        %v5098 = vunpack.c.h.b16 %v4789
        %v5099 = vunpack.c.l.b16 %v4790
        %v5100 = vunpack.c.h.b16 %v4790
        %v5101 = vunpack.c.l.b16 %v4791
        %v5102 = vunpack.c.h.b16 %v4791
        %v5103 = vunpack.c.l.b16 %v4792
        %v5104 = vunpack.c.h.b16 %v4792
        %v5105 = vunpack.c.l.b16 %v4793
        %v5106 = vunpack.c.h.b16 %v4793
        %v5107 = vunpack.c.l.b16 %v4794
        %v5108 = vunpack.c.h.b16 %v4794
        %v5109 = vunpack.c.l.b16 %v4795
        %v5110 = vunpack.c.h.b16 %v4795
        %v5111 = vunpack.c.l.b16 %v4796
        %v5112 = vunpack.c.h.b16 %v4796
        %v5113 = vunpack.c.l.b16 %v4797
        %v5114 = vunpack.c.h.b16 %v4797
        %v5115 = vunpack.c.l.b16 %v4798
        %v5116 = vunpack.c.h.b16 %v4798
        %v5117 = vunpack.c.l.b16 %v4799
        %v5118 = vunpack.c.h.b16 %v4799
        %v5119 = vunpack.c.l.b16 %v4800
        %v5120 = vunpack.c.h.b16 %v4800
        %v5121 = vunpack.c.l.b16 %v4801
        %v5122 = vunpack.c.h.b16 %v4801
        %v5123 = vunpack.c.l.b16 %v4802
        %v5124 = vunpack.c.h.b16 %v4802
        %v5125 = vunpack.c.l.b16 %v4803
        %v5126 = vunpack.c.h.b16 %v4803
        %v5127 = vunpack.c.l.b16 %v4804
        %v5128 = vunpack.c.h.b16 %v4804
        %v5129 = vunpack.c.l.b16 %v4805
        %v5130 = vunpack.c.h.b16 %v4805
        %v5131 = vunpack.c.l.b16 %v4806
        %v5132 = vunpack.c.h.b16 %v4806
        %v5133 = vunpack.c.l.b16 %v4807
        %v5134 = vunpack.c.h.b16 %v4807
        %v5135 = vunpack.c.l.b16 %v4808
        %v5136 = vunpack.c.h.b16 %v4808
        %v5137 = vunpack.c.l.b16 %v4809
        %v5138 = vunpack.c.h.b16 %v4809
        %v5139 = vunpack.c.l.b16 %v4810
        %v5140 = vunpack.c.h.b16 %v4810
        %v5141 = vunpack.c.l.b16 %v4811
        %v5142 = vunpack.c.h.b16 %v4811
        %v5143 = vunpack.c.l.b16 %v4812
        %v5144 = vunpack.c.h.b16 %v4812
        %v5145 = vunpack.c.l.b16 %v4813
        %v5146 = vunpack.c.h.b16 %v4813
        %v5147 = vunpack.c.l.b16 %v4814
        %v5148 = vunpack.c.h.b16 %v4814
        %v5149 = vunpack.c.l.b16 %v4815
        %v5150 = vunpack.c.h.b16 %v4815
        %v5151 = vunpack.c.l.b16 %v4816
        %v5152 = vunpack.c.h.b16 %v4816
        %v5153 = vunpack.c.l.b16 %v4817
        %v5154 = vunpack.c.h.b16 %v4817
        %v5155 = vunpack.c.l.b16 %v4818
        %v5156 = vunpack.c.h.b16 %v4818
        %v5157 = vunpack.c.l.b16 %v4819
        %v5158 = vunpack.c.h.b16 %v4819
        %v5159 = vunpack.c.l.b16 %v4820
        %v5160 = vunpack.c.h.b16 %v4820
        %v5161 = vunpack.c.l.b16 %v4821
        %v5162 = vunpack.c.h.b16 %v4821
        %v5163 = vunpack.c.l.b16 %v4822
        %v5164 = vunpack.c.h.b16 %v4822
        %v5165 = vunpack.c.l.b16 %v4823
        %v5166 = vunpack.c.h.b16 %v4823
        %v5167 = vunpack.c.l.b16 %v4824
        %v5168 = vunpack.c.h.b16 %v4824
        %v5169 = vunpack.c.l.b16 %v4825
        %v5170 = vunpack.c.h.b16 %v4825
        %v5171 = vunpack.c.l.b16 %v4826
        %v5172 = vunpack.c.h.b16 %v4826
        %v5173 = vunpack.c.l.b16 %v4827
        %v5174 = vunpack.c.h.b16 %v4827
        %v5175 = vunpack.c.l.b16 %v4828
        %v5176 = vunpack.c.h.b16 %v4828
        %v5177 = vunpack.c.l.b16 %v4829
        %v5178 = vunpack.c.h.b16 %v4829
        %v5179 = vunpack.c.l.b16 %v4830
        %v5180 = vunpack.c.h.b16 %v4830
        %v5181 = vunpack.c.l.b16 %v4831
        %v5182 = vunpack.c.h.b16 %v4831
        %v5183 = vunpack.c.l.b16 %v4832
        %v5184 = vunpack.c.h.b16 %v4832
        %v5185 = vunpack.c.l.b16 %v4833
        %v5186 = vunpack.c.h.b16 %v4833
        %v5187 = vunpack.c.l.b16 %v4834
        %v5188 = vunpack.c.h.b16 %v4834
        %v5189 = vunpack.c.l.b16 %v4835
        %v5190 = vunpack.c.h.b16 %v4835
        %v5191 = vunpack.c.l.b16 %v4836
        %v5192 = vunpack.c.h.b16 %v4836
        %v5193 = vunpack.c.l.b16 %v4837
        %v5194 = vunpack.c.h.b16 %v4837
        %v5195 = vunpack.c.l.b16 %v4838
        %v5196 = vunpack.c.h.b16 %v4838
        %v5197 = vunpack.c.l.b16 %v4839
        %v5198 = vunpack.c.h.b16 %v4839
        %v5199 = vunpack.c.l.b16 %v4840
        %v5200 = vunpack.c.h.b16 %v4840
        %v5201 = vunpack.c.l.b16 %v4841
        %v5202 = vunpack.c.h.b16 %v4841
        %v5203 = vunpack.c.l.b16 %v4842
        %v5204 = vunpack.c.h.b16 %v4842
        %v5205 = vunpack.c.l.b16 %v4843
        %v5206 = vunpack.c.h.b16 %v4843
        %v5207 = vunpack.c.l.b16 %v4844
        %v5208 = vunpack.c.h.b16 %v4844
        %v5209 = vunpack.c.l.b16 %v4845
        %v5210 = vunpack.c.h.b16 %v4845
        %v5211 = vunpack.c.l.b16 %v4846
        %v5212 = vunpack.c.h.b16 %v4846
        %v5213 = vunpack.c.l.b16 %v4847
        %v5214 = vunpack.c.h.b16 %v4847
        %v5215 = vunpack.c.l.b16 %v4848
        %v5216 = vunpack.c.h.b16 %v4848
        %v5217 = vunpack.c.l.b16 %v4849
        %v5218 = vunpack.c.h.b16 %v4849
        %v5219 = vunpack.c.l.b16 %v4850
        %v5220 = vunpack.c.h.b16 %v4850
        %v5221 = vunpack.c.l.b16 %v4851
        %v5222 = vunpack.c.h.b16 %v4851
        %v5223 = vunpack.c.l.b16 %v4852
        %v5224 = vunpack.c.h.b16 %v4852
        %v5225 = vunpack.c.l.b16 %v4853
        %v5226 = vunpack.c.h.b16 %v4853
        %v5227 = vunpack.c.l.b16 %v4854
        %v5228 = vunpack.c.h.b16 %v4854
        %v5229 = vunpack.c.l.b16 %v4855
        %v5230 = vunpack.c.h.b16 %v4855
        %v5231 = vunpack.c.l.b16 %v4856
        %v5232 = vunpack.c.h.b16 %v4856
        %v5233 = vunpack.c.l.b16 %v4857
        %v5234 = vunpack.c.h.b16 %v4857
        %v5235 = vunpack.c.l.b16 %v4858
        %v5236 = vunpack.c.h.b16 %v4858
        %v5237 = vunpack.c.l.b16 %v4859
        %v5238 = vunpack.c.h.b16 %v4859
        %v5239 = vunpack.c.l.b16 %v4860
        %v5240 = vunpack.c.h.b16 %v4860
        %v5241 = vunpack.c.l.b16 %v4861
        %v5242 = vunpack.c.h.b16 %v4861
        %v5243 = vunpack.c.l.b16 %v4862
        %v5244 = vunpack.c.h.b16 %v4862
        %v5245 = vunpack.c.l.b16 %v4863
        %v5246 = vunpack.c.h.b16 %v4863
        %v5247 = vunpack.c.l.b16 %v4864
        %v5248 = vunpack.c.h.b16 %v4864
        %v5249 = vunpack.c.l.b16 %v4865
        %v5250 = vunpack.c.h.b16 %v4865
        %v5251 = vunpack.c.l.b16 %v4866
        %v5252 = vunpack.c.h.b16 %v4866
        %v5253 = vunpack.c.l.b16 %v4867
        %v5254 = vunpack.c.h.b16 %v4867
        %v5255 = vunpack.c.l.b16 %v4868
        %v5256 = vunpack.c.h.b16 %v4868
        %v5257 = vunpack.c.l.b16 %v4869
        %v5258 = vunpack.c.h.b16 %v4869
        %v5259 = vunpack.c.l.b16 %v4870
        %v5260 = vunpack.c.h.b16 %v4870
        %v5261 = vunpack.c.l.b16 %v4871
        %v5262 = vunpack.c.h.b16 %v4871
        %v5263 = vunpack.c.l.b16 %v4872
        %v5264 = vunpack.c.h.b16 %v4872
        %v5265 = vunpack.c.l.b16 %v4873
        %v5266 = vunpack.c.h.b16 %v4873
        %v5267 = vunpack.c.l.b16 %v4874
        %v5268 = vunpack.c.h.b16 %v4874
        %v5269 = vunpack.c.l.b16 %v4875
        %v5270 = vunpack.c.h.b16 %v4875
        %v5271 = vunpack.c.l.b16 %v4876
        %v5272 = vunpack.c.h.b16 %v4876
        %v5273 = vunpack.c.l.b16 %v4877
        %v5274 = vunpack.c.h.b16 %v4877
        %v5275 = vunpack.c.l.b16 %v4878
        %v5276 = vunpack.c.h.b16 %v4878
        %v5277 = vunpack.c.l.b16 %v4879
        %v5278 = vunpack.c.h.b16 %v4879
        %v5279 = vunpack.c.l.b16 %v4880
        %v5280 = vunpack.c.h.b16 %v4880
        %v5281 = vunpack.c.l.b16 %v4881
        %v5282 = vunpack.c.h.b16 %v4881
        %v5283 = vunpack.c.l.b16 %v4882
        %v5284 = vunpack.c.h.b16 %v4882
        %v5285 = vunpack.c.l.b16 %v4883
        %v5286 = vunpack.c.h.b16 %v4883
        %v5287 = vunpack.c.l.b16 %v4884
        %v5288 = vunpack.c.h.b16 %v4884
        %v5289 = vunpack.c.l.b16 %v4885
        %v5290 = vunpack.c.h.b16 %v4885
        %v5291 = vunpack.c.l.b16 %v4886
        %v5292 = vunpack.c.h.b16 %v4886
        %v5293 = vpack.c.b16 %v5041, %v5037
        %v5294 = vpack.c.b16 %v5042, %v5038
        %v5295 = vpack.c.b16 %v5043, %v5039
        %v5296 = vpack.c.b16 %v5044, %v5040
        %v5297 = vpack.c.b16 %v5049, %v5045
        %v5298 = vpack.c.b16 %v5050, %v5046
        %v5299 = vpack.c.b16 %v5051, %v5047
        %v5300 = vpack.c.b16 %v5052, %v5048
        %v5301 = vpack.c.b16 %v5057, %v5053
        %v5302 = vpack.c.b16 %v5058, %v5054
        %v5303 = vpack.c.b16 %v5059, %v5055
        %v5304 = vpack.c.b16 %v5060, %v5056
        %v5305 = vpack.c.b16 %v5065, %v5061
        %v5306 = vpack.c.b16 %v5066, %v5062
        %v5307 = vpack.c.b16 %v5067, %v5063
        %v5308 = vpack.c.b16 %v5068, %v5064
        %v5309 = vpack.c.b16 %v5073, %v5069
        %v5310 = vpack.c.b16 %v5074, %v5070
        %v5311 = vpack.c.b16 %v5075, %v5071
        %v5312 = vpack.c.b16 %v5076, %v5072
        %v5313 = vpack.c.b16 %v5081, %v5077
        %v5314 = vpack.c.b16 %v5082, %v5078
        %v5315 = vpack.c.b16 %v5083, %v5079
        %v5316 = vpack.c.b16 %v5084, %v5080
        %v5317 = vpack.c.b16 %v5089, %v5085
        %v5318 = vpack.c.b16 %v5090, %v5086
        %v5319 = vpack.c.b16 %v5091, %v5087
        %v5320 = vpack.c.b16 %v5092, %v5088
        %v5321 = vpack.c.b16 %v5097, %v5093
        %v5322 = vpack.c.b16 %v5098, %v5094
        %v5323 = vpack.c.b16 %v5099, %v5095
        %v5324 = vpack.c.b16 %v5100, %v5096
        %v5325 = vpack.c.b16 %v5105, %v5101
        %v5326 = vpack.c.b16 %v5106, %v5102
        %v5327 = vpack.c.b16 %v5107, %v5103
        %v5328 = vpack.c.b16 %v5108, %v5104
        %v5329 = vpack.c.b16 %v5113, %v5109
        %v5330 = vpack.c.b16 %v5114, %v5110
        %v5331 = vpack.c.b16 %v5115, %v5111
        %v5332 = vpack.c.b16 %v5116, %v5112
        %v5333 = vpack.c.b16 %v5121, %v5117
        %v5334 = vpack.c.b16 %v5122, %v5118
        %v5335 = vpack.c.b16 %v5123, %v5119
        %v5336 = vpack.c.b16 %v5124, %v5120
        %v5337 = vpack.c.b16 %v5129, %v5125
        %v5338 = vpack.c.b16 %v5130, %v5126
        %v5339 = vpack.c.b16 %v5131, %v5127
        %v5340 = vpack.c.b16 %v5132, %v5128
        %v5341 = vpack.c.b16 %v5137, %v5133
        %v5342 = vpack.c.b16 %v5138, %v5134
        %v5343 = vpack.c.b16 %v5139, %v5135
        %v5344 = vpack.c.b16 %v5140, %v5136
        %v5345 = vpack.c.b16 %v5145, %v5141
        %v5346 = vpack.c.b16 %v5146, %v5142
        %v5347 = vpack.c.b16 %v5147, %v5143
        %v5348 = vpack.c.b16 %v5148, %v5144
        %v5349 = vpack.c.b16 %v5153, %v5149
        %v5350 = vpack.c.b16 %v5154, %v5150
        %v5351 = vpack.c.b16 %v5155, %v5151
        %v5352 = vpack.c.b16 %v5156, %v5152
        %v5353 = vpack.c.b16 %v5161, %v5157
        %v5354 = vpack.c.b16 %v5162, %v5158
        %v5355 = vpack.c.b16 %v5163, %v5159
        %v5356 = vpack.c.b16 %v5164, %v5160
        %v5357 = vpack.c.b16 %v5169, %v5165
        %v5358 = vpack.c.b16 %v5170, %v5166
        %v5359 = vpack.c.b16 %v5171, %v5167
        %v5360 = vpack.c.b16 %v5172, %v5168
        %v5361 = vpack.c.b16 %v5177, %v5173
        %v5362 = vpack.c.b16 %v5178, %v5174
        %v5363 = vpack.c.b16 %v5179, %v5175
        %v5364 = vpack.c.b16 %v5180, %v5176
        %v5365 = vpack.c.b16 %v5185, %v5181
        %v5366 = vpack.c.b16 %v5186, %v5182
        %v5367 = vpack.c.b16 %v5187, %v5183
        %v5368 = vpack.c.b16 %v5188, %v5184
        %v5369 = vpack.c.b16 %v5193, %v5189
        %v5370 = vpack.c.b16 %v5194, %v5190
        %v5371 = vpack.c.b16 %v5195, %v5191
        %v5372 = vpack.c.b16 %v5196, %v5192
        %v5373 = vpack.c.b16 %v5201, %v5197
        %v5374 = vpack.c.b16 %v5202, %v5198
        %v5375 = vpack.c.b16 %v5203, %v5199
        %v5376 = vpack.c.b16 %v5204, %v5200
        %v5377 = vpack.c.b16 %v5209, %v5205
        %v5378 = vpack.c.b16 %v5210, %v5206
        %v5379 = vpack.c.b16 %v5211, %v5207
        %v5380 = vpack.c.b16 %v5212, %v5208
        %v5381 = vpack.c.b16 %v5217, %v5213
        %v5382 = vpack.c.b16 %v5218, %v5214
        %v5383 = vpack.c.b16 %v5219, %v5215
        %v5384 = vpack.c.b16 %v5220, %v5216
        %v5385 = vpack.c.b16 %v5225, %v5221
        %v5386 = vpack.c.b16 %v5226, %v5222
        %v5387 = vpack.c.b16 %v5227, %v5223
        %v5388 = vpack.c.b16 %v5228, %v5224
        %v5389 = vpack.c.b16 %v5233, %v5229
        %v5390 = vpack.c.b16 %v5234, %v5230
        %v5391 = vpack.c.b16 %v5235, %v5231
        %v5392 = vpack.c.b16 %v5236, %v5232
        %v5393 = vpack.c.b16 %v5241, %v5237
        %v5394 = vpack.c.b16 %v5242, %v5238
        %v5395 = vpack.c.b16 %v5243, %v5239
        %v5396 = vpack.c.b16 %v5244, %v5240
        %v5397 = vpack.c.b16 %v5249, %v5245
        %v5398 = vpack.c.b16 %v5250, %v5246
        %v5399 = vpack.c.b16 %v5251, %v5247
        %v5400 = vpack.c.b16 %v5252, %v5248
        %v5401 = vpack.c.b16 %v5257, %v5253
        %v5402 = vpack.c.b16 %v5258, %v5254
        %v5403 = vpack.c.b16 %v5259, %v5255
        %v5404 = vpack.c.b16 %v5260, %v5256
        %v5405 = vpack.c.b16 %v5265, %v5261
        %v5406 = vpack.c.b16 %v5266, %v5262
        %v5407 = vpack.c.b16 %v5267, %v5263
        %v5408 = vpack.c.b16 %v5268, %v5264
        %v5409 = vpack.c.b16 %v5273, %v5269
        %v5410 = vpack.c.b16 %v5274, %v5270
        %v5411 = vpack.c.b16 %v5275, %v5271
        %v5412 = vpack.c.b16 %v5276, %v5272
        %v5413 = vpack.c.b16 %v5281, %v5277
        %v5414 = vpack.c.b16 %v5282, %v5278
        %v5415 = vpack.c.b16 %v5283, %v5279
        %v5416 = vpack.c.b16 %v5284, %v5280
        %v5417 = vpack.c.b16 %v5289, %v5285
        %v5418 = vpack.c.b16 %v5290, %v5286
        %v5419 = vpack.c.b16 %v5291, %v5287
        %v5420 = vpack.c.b16 %v5292, %v5288
        %5549 = vmatprep.subr.bf16.mxu0 %v5294
        %5550 = vmatpush1.bf16.msra.mxu0 %v5293
        %5551 = vmatprep.subr.bf16.mxu0 %v5298
        %5552 = vmatpush1.bf16.msra.mxu0 %v5297
        %5553 = vmatprep.subr.bf16.mxu0 %v5302
        %5554 = vmatpush1.bf16.msra.mxu0 %v5301
        %5555 = vmatprep.subr.bf16.mxu0 %v5306
        %5556 = vmatpush1.bf16.msra.mxu0 %v5305
        %5557 = vmatprep.subr.bf16.mxu0 %v5310
        %5558 = vmatpush1.bf16.msra.mxu0 %v5309
        %5559 = vmatprep.subr.bf16.mxu0 %v5314
        %5560 = vmatpush1.bf16.msra.mxu0 %v5313
        %5561 = vmatprep.subr.bf16.mxu0 %v5318
        %5562 = vmatpush1.bf16.msra.mxu0 %v5317
        %5563 = vmatprep.subr.bf16.mxu0 %v5322
        %5564 = vmatpush1.bf16.msra.mxu0 %v5321
        %5565 = vmatprep.subr.bf16.mxu0 %v5326
        %5566 = vmatpush1.bf16.msra.mxu0 %v5325
        %5567 = vmatprep.subr.bf16.mxu0 %v5330
        %5568 = vmatpush1.bf16.msra.mxu0 %v5329
        %5569 = vmatprep.subr.bf16.mxu0 %v5334
        %5570 = vmatpush1.bf16.msra.mxu0 %v5333
        %5571 = vmatprep.subr.bf16.mxu0 %v5338
        %5572 = vmatpush1.bf16.msra.mxu0 %v5337
        %5573 = vmatprep.subr.bf16.mxu0 %v5342
        %5574 = vmatpush1.bf16.msra.mxu0 %v5341
        %5575 = vmatprep.subr.bf16.mxu0 %v5346
        %5576 = vmatpush1.bf16.msra.mxu0 %v5345
        %5577 = vmatprep.subr.bf16.mxu0 %v5350
        %5578 = vmatpush1.bf16.msra.mxu0 %v5349
        %5579 = vmatprep.subr.bf16.mxu0 %v5354
        %5580 = vmatpush1.bf16.msra.mxu0 %v5353
        %5581 = vmatprep.mubr.bf16.mxu0 %v4752
        %5582 = vmatmul.mubr.bf16.gmra.mrb[0].mxu0 %v4751
        %v5583 = vpop.f32.mrb[0].mxu0
        %v5584 = vadd.f32 %v4892, %v5583
        %v5585 = vpop.f32.mrb[0].mxu0
        %v5586 = vadd.f32 %v4896, %v5585
        %v5587 = vpop.f32.mrb[0].mxu0
        %v5588 = vadd.f32 %v4892, %v5587
        %v5589 = vpop.f32.mrb[0].mxu0
        %v5590 = vadd.f32 %v4896, %v5589
        %5591 = vmatprep.mubr.bf16.mxu0 %v4756
        %5592 = vmatmul.mubr.bf16.gmra.mrb[0].mxu0 %v4755
        %v5593 = vpop.f32.mrb[0].mxu0
        %v5594 = vadd.f32 %v4892, %v5593
        %v5595 = vpop.f32.mrb[0].mxu0
        %v5596 = vadd.f32 %v4896, %v5595
        %v5597 = vpop.f32.mrb[0].mxu0
        %v5598 = vadd.f32 %v4892, %v5597
        %v5599 = vpop.f32.mrb[0].mxu0
        %v5600 = vadd.f32 %v4896, %v5599
        %5601 = vdwg.mxu0
        %5602 = vmatprep.subr.bf16.mxu0 %v5358
        %5603 = vmatpush1.bf16.msra.mxu0 %v5357
        %5604 = vmatprep.subr.bf16.mxu0 %v5362
        %5605 = vmatpush1.bf16.msra.mxu0 %v5361
        %5606 = vmatprep.subr.bf16.mxu0 %v5366
        %5607 = vmatpush1.bf16.msra.mxu0 %v5365
        %5608 = vmatprep.subr.bf16.mxu0 %v5370
        %5609 = vmatpush1.bf16.msra.mxu0 %v5369
        %5610 = vmatprep.subr.bf16.mxu0 %v5374
        %5611 = vmatpush1.bf16.msra.mxu0 %v5373
        %5612 = vmatprep.subr.bf16.mxu0 %v5378
        %5613 = vmatpush1.bf16.msra.mxu0 %v5377
        %5614 = vmatprep.subr.bf16.mxu0 %v5382
        %5615 = vmatpush1.bf16.msra.mxu0 %v5381
        %5616 = vmatprep.subr.bf16.mxu0 %v5386
        %5617 = vmatpush1.bf16.msra.mxu0 %v5385
        %5618 = vmatprep.subr.bf16.mxu0 %v5390
        %5619 = vmatpush1.bf16.msra.mxu0 %v5389
        %5620 = vmatprep.subr.bf16.mxu0 %v5394
        %5621 = vmatpush1.bf16.msra.mxu0 %v5393
        %5622 = vmatprep.subr.bf16.mxu0 %v5398
        %5623 = vmatpush1.bf16.msra.mxu0 %v5397
        %5624 = vmatprep.subr.bf16.mxu0 %v5402
        %5625 = vmatpush1.bf16.msra.mxu0 %v5401
        %5626 = vmatprep.subr.bf16.mxu0 %v5406
        %5627 = vmatpush1.bf16.msra.mxu0 %v5405
        %5628 = vmatprep.subr.bf16.mxu0 %v5410
        %5629 = vmatpush1.bf16.msra.mxu0 %v5409
        %5630 = vmatprep.subr.bf16.mxu0 %v5414
        %5631 = vmatpush1.bf16.msra.mxu0 %v5413
        %5632 = vmatprep.subr.bf16.mxu0 %v5418
        %5633 = vmatpush1.bf16.msra.mxu0 %v5417
        %5634 = vmatprep.mubr.bf16.mxu0 %v4754
        %5635 = vmatmul.mubr.bf16.gmra.mrb[0].mxu0 %v4753
        %v5636 = vpop.f32.mrb[0].mxu0
        %v5637 = vadd.f32 %v5584, %v5636
        %v5638 = vpop.f32.mrb[0].mxu0
        %v5639 = vadd.f32 %v5586, %v5638
        %v5640 = vpop.f32.mrb[0].mxu0
        %v5641 = vadd.f32 %v5588, %v5640
        %v5642 = vpop.f32.mrb[0].mxu0
        %v5643 = vadd.f32 %v5590, %v5642
        %5644 = vmatprep.mubr.bf16.mxu0 %v4758
        %5645 = vmatmul.mubr.bf16.gmra.mrb[0].mxu0 %v4757
        %v5646 = vpop.f32.mrb[0].mxu0
        %v5647 = vadd.f32 %v5594, %v5646
        %v5648 = vpop.f32.mrb[0].mxu0
        %v5649 = vadd.f32 %v5596, %v5648
        %v5650 = vpop.f32.mrb[0].mxu0
        %v5651 = vadd.f32 %v5598, %v5650
        %v5652 = vpop.f32.mrb[0].mxu0
        %v5653 = vadd.f32 %v5600, %v5652
        %5654 = vdwg.mxu0
        %5655 = vmatprep.subr.bf16.mxu0 %v5296
        %5656 = vmatpush1.bf16.msra.mxu0 %v5295
        %5657 = vmatprep.subr.bf16.mxu0 %v5300
        %5658 = vmatpush1.bf16.msra.mxu0 %v5299
        %5659 = vmatprep.subr.bf16.mxu0 %v5304
        %5660 = vmatpush1.bf16.msra.mxu0 %v5303
        %5661 = vmatprep.subr.bf16.mxu0 %v5308
        %5662 = vmatpush1.bf16.msra.mxu0 %v5307
        %5663 = vmatprep.subr.bf16.mxu0 %v5312
        %5664 = vmatpush1.bf16.msra.mxu0 %v5311
        %5665 = vmatprep.subr.bf16.mxu0 %v5316
        %5666 = vmatpush1.bf16.msra.mxu0 %v5315
        %5667 = vmatprep.subr.bf16.mxu0 %v5320
        %5668 = vmatpush1.bf16.msra.mxu0 %v5319
        %5669 = vmatprep.subr.bf16.mxu0 %v5324
        %5670 = vmatpush1.bf16.msra.mxu0 %v5323
        %5671 = vmatprep.subr.bf16.mxu0 %v5328
        %5672 = vmatpush1.bf16.msra.mxu0 %v5327
        %5673 = vmatprep.subr.bf16.mxu0 %v5332
        %5674 = vmatpush1.bf16.msra.mxu0 %v5331
        %5675 = vmatprep.subr.bf16.mxu0 %v5336
        %5676 = vmatpush1.bf16.msra.mxu0 %v5335
        %5677 = vmatprep.subr.bf16.mxu0 %v5340
        %5678 = vmatpush1.bf16.msra.mxu0 %v5339
        %5679 = vmatprep.subr.bf16.mxu0 %v5344
        %5680 = vmatpush1.bf16.msra.mxu0 %v5343
        %5681 = vmatprep.subr.bf16.mxu0 %v5348
        %5682 = vmatpush1.bf16.msra.mxu0 %v5347
        %5683 = vmatprep.subr.bf16.mxu0 %v5352
        %5684 = vmatpush1.bf16.msra.mxu0 %v5351
        %5685 = vmatprep.subr.bf16.mxu0 %v5356
        %5686 = vmatpush1.bf16.msra.mxu0 %v5355
        %5687 = vmatprep.mubr.bf16.mxu0 %v4752
        %5688 = vmatmul.mubr.bf16.gmra.mrb[0].mxu0 %v4751
        %v5689 = vpop.f32.mrb[0].mxu0
        %v5690 = vadd.f32 %v4900, %v5689
        %v5691 = vpop.f32.mrb[0].mxu0
        %v5692 = vadd.f32 %v4904, %v5691
        %v5693 = vpop.f32.mrb[0].mxu0
        %v5694 = vadd.f32 %v4900, %v5693
        %v5695 = vpop.f32.mrb[0].mxu0
        %v5696 = vadd.f32 %v4904, %v5695
        %5697 = vmatprep.mubr.bf16.mxu0 %v4756
        %5698 = vmatmul.mubr.bf16.gmra.mrb[0].mxu0 %v4755
        %v5699 = vpop.f32.mrb[0].mxu0
        %v5700 = vadd.f32 %v4900, %v5699
        %v5701 = vpop.f32.mrb[0].mxu0
        %v5702 = vadd.f32 %v4904, %v5701
        %v5703 = vpop.f32.mrb[0].mxu0
        %v5704 = vadd.f32 %v4900, %v5703
        %v5705 = vpop.f32.mrb[0].mxu0
        %v5706 = vadd.f32 %v4904, %v5705
        %5707 = vdwg.mxu0
        %5708 = vmatprep.subr.bf16.mxu0 %v5360
        %5709 = vmatpush1.bf16.msra.mxu0 %v5359
        %5710 = vmatprep.subr.bf16.mxu0 %v5364
        %5711 = vmatpush1.bf16.msra.mxu0 %v5363
        %5712 = vmatprep.subr.bf16.mxu0 %v5368
        %5713 = vmatpush1.bf16.msra.mxu0 %v5367
        %5714 = vmatprep.subr.bf16.mxu0 %v5372
        %5715 = vmatpush1.bf16.msra.mxu0 %v5371
        %5716 = vmatprep.subr.bf16.mxu0 %v5376
        %5717 = vmatpush1.bf16.msra.mxu0 %v5375
        %5718 = vmatprep.subr.bf16.mxu0 %v5380
        %5719 = vmatpush1.bf16.msra.mxu0 %v5379
        %5720 = vmatprep.subr.bf16.mxu0 %v5384
        %5721 = vmatpush1.bf16.msra.mxu0 %v5383
        %5722 = vmatprep.subr.bf16.mxu0 %v5388
        %5723 = vmatpush1.bf16.msra.mxu0 %v5387
        %5724 = vmatprep.subr.bf16.mxu0 %v5392
        %5725 = vmatpush1.bf16.msra.mxu0 %v5391
        %5726 = vmatprep.subr.bf16.mxu0 %v5396
        %5727 = vmatpush1.bf16.msra.mxu0 %v5395
        %5728 = vmatprep.subr.bf16.mxu0 %v5400
        %5729 = vmatpush1.bf16.msra.mxu0 %v5399
        %5730 = vmatprep.subr.bf16.mxu0 %v5404
        %5731 = vmatpush1.bf16.msra.mxu0 %v5403
        %5732 = vmatprep.subr.bf16.mxu0 %v5408
        %5733 = vmatpush1.bf16.msra.mxu0 %v5407
        %5734 = vmatprep.subr.bf16.mxu0 %v5412
        %5735 = vmatpush1.bf16.msra.mxu0 %v5411
        %5736 = vmatprep.subr.bf16.mxu0 %v5416
        %5737 = vmatpush1.bf16.msra.mxu0 %v5415
        %5738 = vmatprep.subr.bf16.mxu0 %v5420
        %5739 = vmatpush1.bf16.msra.mxu0 %v5419
        %5740 = vmatprep.mubr.bf16.mxu0 %v4754
        %5741 = vmatmul.mubr.bf16.gmra.mrb[0].mxu0 %v4753
        %v5742 = vpop.f32.mrb[0].mxu0
        %v5743 = vadd.f32 %v5690, %v5742
        %v5744 = vpop.f32.mrb[0].mxu0
        %v5745 = vadd.f32 %v5692, %v5744
        %v5746 = vpop.f32.mrb[0].mxu0
        %v5747 = vadd.f32 %v5694, %v5746
        %v5748 = vpop.f32.mrb[0].mxu0
        %v5749 = vadd.f32 %v5696, %v5748
        %5750 = vmatprep.mubr.bf16.mxu0 %v4758
        %5751 = vmatmul.mubr.bf16.gmra.mrb[0].mxu0 %v4757
        %v5752 = vpop.f32.mrb[0].mxu0
        %v5753 = vadd.f32 %v5700, %v5752
        %v5754 = vpop.f32.mrb[0].mxu0
        %v5755 = vadd.f32 %v5702, %v5754
        %v5756 = vpop.f32.mrb[0].mxu0
        %v5757 = vadd.f32 %v5704, %v5756
        %v5758 = vpop.f32.mrb[0].mxu0
        %v5759 = vadd.f32 %v5706, %v5758
        %5760 = vdwg.mxu0
        %v5761 = vadd.f32 %v5637, %v621
        %v5762 = vadd.f32 %v5639, %v622
        %v5763 = vadd.f32 %v5743, %v623
        %v5764 = vadd.f32 %v5745, %v624
        %v5765 = vadd.f32 %v5641, %v625
        %v5766 = vadd.f32 %v5643, %v626
        %v5767 = vadd.f32 %v5747, %v627
        %v5768 = vadd.f32 %v5749, %v628
        %v5769 = vadd.f32 %v5647, %v629
        %v5770 = vadd.f32 %v5649, %v630
        %v5771 = vadd.f32 %v5753, %v631
        %v5772 = vadd.f32 %v5755, %v632
        %v5773 = vadd.f32 %v5651, %v633
        %v5774 = vadd.f32 %v5653, %v634
        %v5775 = vadd.f32 %v5757, %v635
        %v5776 = vadd.f32 %v5759, %v636
        %v5777 = vld [vmem:[#allocation15] sm:$0xf]
        %v5778 = vld [vmem:[#allocation17] sm:$0xf]
        %v5779 = vadd.f32 %v5761, %v5762
        %v5780 = vadd.f32 %v5779, %v5763
        %v5781 = vadd.f32 %v5780, %v5764
        %5782 = vadd.xlane.f32.xlu0 %v5781
        %v5783 = vpop.xlane.xlu0 %5782
        %v5784 = vadd.f32 %v5765, %v5766
        %v5785 = vadd.f32 %v5784, %v5767
        %v5786 = vadd.f32 %v5785, %v5768
        %5787 = vadd.xlane.f32.xlu0 %v5786
        %v5788 = vpop.xlane.xlu0 %5787
        %v5789 = vadd.f32 %v5769, %v5770
        %v5790 = vadd.f32 %v5789, %v5771
        %v5791 = vadd.f32 %v5790, %v5772
        %5792 = vadd.xlane.f32.xlu0 %v5791
        %v5793 = vpop.xlane.xlu0 %5792
        %v5794 = vadd.f32 %v5773, %v5774
        %v5795 = vadd.f32 %v5794, %v5775
        %v5796 = vadd.f32 %v5795, %v5776
        %5797 = vadd.xlane.f32.xlu0 %v5796
        %v5798 = vpop.xlane.xlu0 %5797
        %v5799 = vmul.f32 %v5783, %v659
        %v5800 = vmul.f32 %v5788, %v659
        %v5801 = vmul.f32 %v5793, %v659
        %v5802 = vmul.f32 %v5798, %v659
        %v5803 = vsub.f32 %v5761, %v5799
        %v5804 = vsub.f32 %v5762, %v5799
        %v5805 = vsub.f32 %v5763, %v5799
        %v5806 = vsub.f32 %v5764, %v5799
        %v5807 = vsub.f32 %v5765, %v5800
        %v5808 = vsub.f32 %v5766, %v5800
        %v5809 = vsub.f32 %v5767, %v5800
        %v5810 = vsub.f32 %v5768, %v5800
        %v5811 = vsub.f32 %v5769, %v5801
        %v5812 = vsub.f32 %v5770, %v5801
        %v5813 = vsub.f32 %v5771, %v5801
        %v5814 = vsub.f32 %v5772, %v5801
        %v5815 = vsub.f32 %v5773, %v5802
        %v5816 = vsub.f32 %v5774, %v5802
        %v5817 = vsub.f32 %v5775, %v5802
        %v5818 = vsub.f32 %v5776, %v5802
        %v5819 = vmul.f32 %v5803, %v5803
        %v5820 = vmul.f32 %v5804, %v5804
        %v5821 = vmul.f32 %v5805, %v5805
        %v5822 = vmul.f32 %v5806, %v5806
        %v5823 = vmul.f32 %v5807, %v5807
        %v5824 = vmul.f32 %v5808, %v5808
        %v5825 = vmul.f32 %v5809, %v5809
        %v5826 = vmul.f32 %v5810, %v5810
        %v5827 = vmul.f32 %v5811, %v5811
        %v5828 = vmul.f32 %v5812, %v5812
        %v5829 = vmul.f32 %v5813, %v5813
        %v5830 = vmul.f32 %v5814, %v5814
        %v5831 = vmul.f32 %v5815, %v5815
        %v5832 = vmul.f32 %v5816, %v5816
        %v5833 = vmul.f32 %v5817, %v5817
        %v5834 = vmul.f32 %v5818, %v5818
        %v5835 = vadd.f32 %v5819, %v5820
        %v5836 = vadd.f32 %v5835, %v5821
        %v5837 = vadd.f32 %v5836, %v5822
        %5838 = vadd.xlane.f32.xlu0 %v5837
        %v5839 = vpop.xlane.xlu0 %5838
        %v5840 = vadd.f32 %v5823, %v5824
        %v5841 = vadd.f32 %v5840, %v5825
        %v5842 = vadd.f32 %v5841, %v5826
        %5843 = vadd.xlane.f32.xlu0 %v5842
        %v5844 = vpop.xlane.xlu0 %5843
        %v5845 = vadd.f32 %v5827, %v5828
        %v5846 = vadd.f32 %v5845, %v5829
        %v5847 = vadd.f32 %v5846, %v5830
        %5848 = vadd.xlane.f32.xlu0 %v5847
        %v5849 = vpop.xlane.xlu0 %5848
        %v5850 = vadd.f32 %v5831, %v5832
        %v5851 = vadd.f32 %v5850, %v5833
        %v5852 = vadd.f32 %v5851, %v5834
        %5853 = vadd.xlane.f32.xlu0 %v5852
        %v5854 = vpop.xlane.xlu0 %5853
        %v5855 = vmul.f32 %v5839, %v659
        %v5856 = vmul.f32 %v5844, %v659
        %v5857 = vmul.f32 %v5849, %v659
        %v5858 = vmul.f32 %v5854, %v659
        %v5859 = vadd.f32 %v5855, 1e-05
        %v5860 = vadd.f32 %v5856, 1e-05
        %v5861 = vadd.f32 %v5857, 1e-05
        %v5862 = vadd.f32 %v5858, 1e-05
        %v5863 = vrsqrt.pop %v5859
        %v5864 = vrsqrt.pop %v5860
        %v5865 = vrsqrt.pop %v5861
        %v5866 = vrsqrt.pop %v5862
        %v5867 = vmul.f32 %v5803, %v5863
        %v5868 = vmul.f32 %v5804, %v5863
        %v5869 = vmul.f32 %v5805, %v5863
        %v5870 = vmul.f32 %v5806, %v5863
        %v5871 = vmul.f32 %v5807, %v5864
        %v5872 = vmul.f32 %v5808, %v5864
        %v5873 = vmul.f32 %v5809, %v5864
        %v5874 = vmul.f32 %v5810, %v5864
        %v5875 = vmul.f32 %v5811, %v5865
        %v5876 = vmul.f32 %v5812, %v5865
        %v5877 = vmul.f32 %v5813, %v5865
        %v5878 = vmul.f32 %v5814, %v5865
        %v5879 = vmul.f32 %v5815, %v5866
        %v5880 = vmul.f32 %v5816, %v5866
        %v5881 = vmul.f32 %v5817, %v5866
        %v5882 = vmul.f32 %v5818, %v5866
        %v5884 = vlaneseq
        %v5885 = vshrl.u32 %v5884, 7
        %v5886 = vsub.s32 0, %v5885
        %v5887 = vrot.slane %v5777, %v5886
        %v5888 = vlaneseq
        %v5889 = vshrl.u32 %v5888, 7
        %v5890 = vsub.s32 1, %v5889
        %v5891 = vrot.slane %v5777, %v5890
        %v5892 = vlaneseq
        %v5893 = vshrl.u32 %v5892, 7
        %v5894 = vsub.s32 2, %v5893
        %v5895 = vrot.slane %v5777, %v5894
        %v5896 = vlaneseq
        %v5897 = vshrl.u32 %v5896, 7
        %v5898 = vsub.s32 3, %v5897
        %v5899 = vrot.slane %v5777, %v5898
        %v5904 = vmul.f32 %v5867, %v5887
        %v5905 = vmul.f32 %v5868, %v5891
        %v5906 = vmul.f32 %v5869, %v5895
        %v5907 = vmul.f32 %v5870, %v5899
        %v5908 = vmul.f32 %v5871, %v5887
        %v5909 = vmul.f32 %v5872, %v5891
        %v5910 = vmul.f32 %v5873, %v5895
        %v5911 = vmul.f32 %v5874, %v5899
        %v5912 = vmul.f32 %v5875, %v5887
        %v5913 = vmul.f32 %v5876, %v5891
        %v5914 = vmul.f32 %v5877, %v5895
        %v5915 = vmul.f32 %v5878, %v5899
        %v5916 = vmul.f32 %v5879, %v5887
        %v5917 = vmul.f32 %v5880, %v5891
        %v5918 = vmul.f32 %v5881, %v5895
        %v5919 = vmul.f32 %v5882, %v5899
        %v5921 = vlaneseq
        %v5922 = vshrl.u32 %v5921, 7
        %v5923 = vsub.s32 0, %v5922
        %v5924 = vrot.slane %v5778, %v5923
        %v5925 = vlaneseq
        %v5926 = vshrl.u32 %v5925, 7
        %v5927 = vsub.s32 1, %v5926
        %v5928 = vrot.slane %v5778, %v5927
        %v5929 = vlaneseq
        %v5930 = vshrl.u32 %v5929, 7
        %v5931 = vsub.s32 2, %v5930
        %v5932 = vrot.slane %v5778, %v5931
        %v5933 = vlaneseq
        %v5934 = vshrl.u32 %v5933, 7
        %v5935 = vsub.s32 3, %v5934
        %v5936 = vrot.slane %v5778, %v5935
        %v5941 = vadd.f32 %v5904, %v5924
        %v5942 = vadd.f32 %v5905, %v5928
        %v5943 = vadd.f32 %v5906, %v5932
        %v5944 = vadd.f32 %v5907, %v5936
        %v5945 = vadd.f32 %v5908, %v5924
        %v5946 = vadd.f32 %v5909, %v5928
        %v5947 = vadd.f32 %v5910, %v5932
        %v5948 = vadd.f32 %v5911, %v5936
        %v5949 = vadd.f32 %v5912, %v5924
        %v5950 = vadd.f32 %v5913, %v5928
        %v5951 = vadd.f32 %v5914, %v5932
        %v5952 = vadd.f32 %v5915, %v5936
        %v5953 = vadd.f32 %v5916, %v5924
        %v5954 = vadd.f32 %v5917, %v5928
        %v5955 = vadd.f32 %v5918, %v5932
        %v5956 = vadd.f32 %v5919, %v5936
        %v5957 = vpack.c.bf16 %v5945, %v5941
        %v5958 = vpack.c.bf16 %v5946, %v5942
        %v5959 = vpack.c.bf16 %v5947, %v5943
        %v5960 = vpack.c.bf16 %v5948, %v5944
        %v5961 = vpack.c.bf16 %v5953, %v5949
        %v5962 = vpack.c.bf16 %v5954, %v5950
        %v5963 = vpack.c.bf16 %v5955, %v5951
        %v5964 = vpack.c.bf16 %v5956, %v5952
        %v5965 = vld [vmem:[#allocation18] sm:$0xff]
        %v5966 = vld [vmem:[#allocation18 + $0x8] sm:$0xff]
        %v5967 = vld [vmem:[#allocation18 + $0x10] sm:$0xff]
        %v5968 = vld [vmem:[#allocation18 + $0x18] sm:$0xff]
        %v5969 = vld [vmem:[#allocation18 + $0x20] sm:$0xff]
        %v5970 = vld [vmem:[#allocation18 + $0x28] sm:$0xff]
        %v5971 = vld [vmem:[#allocation18 + $0x30] sm:$0xff]
        %v5972 = vld [vmem:[#allocation18 + $0x38] sm:$0xff]
        %v5973 = vld [vmem:[#allocation18 + $0x40] sm:$0xff]
        %v5974 = vld [vmem:[#allocation18 + $0x48] sm:$0xff]
        %v5975 = vld [vmem:[#allocation18 + $0x50] sm:$0xff]
        %v5976 = vld [vmem:[#allocation18 + $0x58] sm:$0xff]
        %v5977 = vld [vmem:[#allocation18 + $0x60] sm:$0xff]
        %v5978 = vld [vmem:[#allocation18 + $0x68] sm:$0xff]
        %v5979 = vld [vmem:[#allocation18 + $0x70] sm:$0xff]
        %v5980 = vld [vmem:[#allocation18 + $0x78] sm:$0xff]
        %v5981 = vld [vmem:[#allocation18 + $0x80] sm:$0xff]
        %v5982 = vld [vmem:[#allocation18 + $0x88] sm:$0xff]
        %v5983 = vld [vmem:[#allocation18 + $0x90] sm:$0xff]
        %v5984 = vld [vmem:[#allocation18 + $0x98] sm:$0xff]
        %v5985 = vld [vmem:[#allocation18 + $0xa0] sm:$0xff]
        %v5986 = vld [vmem:[#allocation18 + $0xa8] sm:$0xff]
        %v5987 = vld [vmem:[#allocation18 + $0xb0] sm:$0xff]
        %v5988 = vld [vmem:[#allocation18 + $0xb8] sm:$0xff]
        %v5989 = vld [vmem:[#allocation18 + $0xc0] sm:$0xff]
        %v5990 = vld [vmem:[#allocation18 + $0xc8] sm:$0xff]
        %v5991 = vld [vmem:[#allocation18 + $0xd0] sm:$0xff]
        %v5992 = vld [vmem:[#allocation18 + $0xd8] sm:$0xff]
        %v5993 = vld [vmem:[#allocation18 + $0xe0] sm:$0xff]
        %v5994 = vld [vmem:[#allocation18 + $0xe8] sm:$0xff]
        %v5995 = vld [vmem:[#allocation18 + $0xf0] sm:$0xff]
        %v5996 = vld [vmem:[#allocation18 + $0xf8] sm:$0xff]
        %v5997 = vld [vmem:[#allocation18 + $0x100] sm:$0xff]
        %v5998 = vld [vmem:[#allocation18 + $0x108] sm:$0xff]
        %v5999 = vld [vmem:[#allocation18 + $0x110] sm:$0xff]
        %v6000 = vld [vmem:[#allocation18 + $0x118] sm:$0xff]
        %v6001 = vld [vmem:[#allocation18 + $0x120] sm:$0xff]
        %v6002 = vld [vmem:[#allocation18 + $0x128] sm:$0xff]
        %v6003 = vld [vmem:[#allocation18 + $0x130] sm:$0xff]
        %v6004 = vld [vmem:[#allocation18 + $0x138] sm:$0xff]
        %v6005 = vld [vmem:[#allocation18 + $0x140] sm:$0xff]
        %v6006 = vld [vmem:[#allocation18 + $0x148] sm:$0xff]
        %v6007 = vld [vmem:[#allocation18 + $0x150] sm:$0xff]
        %v6008 = vld [vmem:[#allocation18 + $0x158] sm:$0xff]
        %v6009 = vld [vmem:[#allocation18 + $0x160] sm:$0xff]
        %v6010 = vld [vmem:[#allocation18 + $0x168] sm:$0xff]
        %v6011 = vld [vmem:[#allocation18 + $0x170] sm:$0xff]
        %v6012 = vld [vmem:[#allocation18 + $0x178] sm:$0xff]
        %v6013 = vld [vmem:[#allocation18 + $0x180] sm:$0xff]
        %v6014 = vld [vmem:[#allocation18 + $0x188] sm:$0xff]
        %v6015 = vld [vmem:[#allocation18 + $0x190] sm:$0xff]
        %v6016 = vld [vmem:[#allocation18 + $0x198] sm:$0xff]
        %v6017 = vld [vmem:[#allocation18 + $0x1a0] sm:$0xff]
        %v6018 = vld [vmem:[#allocation18 + $0x1a8] sm:$0xff]
        %v6019 = vld [vmem:[#allocation18 + $0x1b0] sm:$0xff]
        %v6020 = vld [vmem:[#allocation18 + $0x1b8] sm:$0xff]
        %v6021 = vld [vmem:[#allocation18 + $0x1c0] sm:$0xff]
        %v6022 = vld [vmem:[#allocation18 + $0x1c8] sm:$0xff]
        %v6023 = vld [vmem:[#allocation18 + $0x1d0] sm:$0xff]
        %v6024 = vld [vmem:[#allocation18 + $0x1d8] sm:$0xff]
        %v6025 = vld [vmem:[#allocation18 + $0x1e0] sm:$0xff]
        %v6026 = vld [vmem:[#allocation18 + $0x1e8] sm:$0xff]
        %v6027 = vld [vmem:[#allocation18 + $0x1f0] sm:$0xff]
        %v6028 = vld [vmem:[#allocation18 + $0x1f8] sm:$0xff]
        %v6029 = vld [vmem:[#allocation18 + $0x200] sm:$0xff]
        %v6030 = vld [vmem:[#allocation18 + $0x208] sm:$0xff]
        %v6031 = vld [vmem:[#allocation18 + $0x210] sm:$0xff]
        %v6032 = vld [vmem:[#allocation18 + $0x218] sm:$0xff]
        %v6033 = vld [vmem:[#allocation18 + $0x220] sm:$0xff]
        %v6034 = vld [vmem:[#allocation18 + $0x228] sm:$0xff]
        %v6035 = vld [vmem:[#allocation18 + $0x230] sm:$0xff]
        %v6036 = vld [vmem:[#allocation18 + $0x238] sm:$0xff]
        %v6037 = vld [vmem:[#allocation18 + $0x240] sm:$0xff]
        %v6038 = vld [vmem:[#allocation18 + $0x248] sm:$0xff]
        %v6039 = vld [vmem:[#allocation18 + $0x250] sm:$0xff]
        %v6040 = vld [vmem:[#allocation18 + $0x258] sm:$0xff]
        %v6041 = vld [vmem:[#allocation18 + $0x260] sm:$0xff]
        %v6042 = vld [vmem:[#allocation18 + $0x268] sm:$0xff]
        %v6043 = vld [vmem:[#allocation18 + $0x270] sm:$0xff]
        %v6044 = vld [vmem:[#allocation18 + $0x278] sm:$0xff]
        %v6045 = vld [vmem:[#allocation18 + $0x280] sm:$0xff]
        %v6046 = vld [vmem:[#allocation18 + $0x288] sm:$0xff]
        %v6047 = vld [vmem:[#allocation18 + $0x290] sm:$0xff]
        %v6048 = vld [vmem:[#allocation18 + $0x298] sm:$0xff]
        %v6049 = vld [vmem:[#allocation18 + $0x2a0] sm:$0xff]
        %v6050 = vld [vmem:[#allocation18 + $0x2a8] sm:$0xff]
        %v6051 = vld [vmem:[#allocation18 + $0x2b0] sm:$0xff]
        %v6052 = vld [vmem:[#allocation18 + $0x2b8] sm:$0xff]
        %v6053 = vld [vmem:[#allocation18 + $0x2c0] sm:$0xff]
        %v6054 = vld [vmem:[#allocation18 + $0x2c8] sm:$0xff]
        %v6055 = vld [vmem:[#allocation18 + $0x2d0] sm:$0xff]
        %v6056 = vld [vmem:[#allocation18 + $0x2d8] sm:$0xff]
        %v6057 = vld [vmem:[#allocation18 + $0x2e0] sm:$0xff]
        %v6058 = vld [vmem:[#allocation18 + $0x2e8] sm:$0xff]
        %v6059 = vld [vmem:[#allocation18 + $0x2f0] sm:$0xff]
        %v6060 = vld [vmem:[#allocation18 + $0x2f8] sm:$0xff]
        %v6061 = vld [vmem:[#allocation18 + $0x300] sm:$0xff]
        %v6062 = vld [vmem:[#allocation18 + $0x308] sm:$0xff]
        %v6063 = vld [vmem:[#allocation18 + $0x310] sm:$0xff]
        %v6064 = vld [vmem:[#allocation18 + $0x318] sm:$0xff]
        %v6065 = vld [vmem:[#allocation18 + $0x320] sm:$0xff]
        %v6066 = vld [vmem:[#allocation18 + $0x328] sm:$0xff]
        %v6067 = vld [vmem:[#allocation18 + $0x330] sm:$0xff]
        %v6068 = vld [vmem:[#allocation18 + $0x338] sm:$0xff]
        %v6069 = vld [vmem:[#allocation18 + $0x340] sm:$0xff]
        %v6070 = vld [vmem:[#allocation18 + $0x348] sm:$0xff]
        %v6071 = vld [vmem:[#allocation18 + $0x350] sm:$0xff]
        %v6072 = vld [vmem:[#allocation18 + $0x358] sm:$0xff]
        %v6073 = vld [vmem:[#allocation18 + $0x360] sm:$0xff]
        %v6074 = vld [vmem:[#allocation18 + $0x368] sm:$0xff]
        %v6075 = vld [vmem:[#allocation18 + $0x370] sm:$0xff]
        %v6076 = vld [vmem:[#allocation18 + $0x378] sm:$0xff]
        %v6077 = vld [vmem:[#allocation18 + $0x380] sm:$0xff]
        %v6078 = vld [vmem:[#allocation18 + $0x388] sm:$0xff]
        %v6079 = vld [vmem:[#allocation18 + $0x390] sm:$0xff]
        %v6080 = vld [vmem:[#allocation18 + $0x398] sm:$0xff]
        %v6081 = vld [vmem:[#allocation18 + $0x3a0] sm:$0xff]
        %v6082 = vld [vmem:[#allocation18 + $0x3a8] sm:$0xff]
        %v6083 = vld [vmem:[#allocation18 + $0x3b0] sm:$0xff]
        %v6084 = vld [vmem:[#allocation18 + $0x3b8] sm:$0xff]
        %v6085 = vld [vmem:[#allocation18 + $0x3c0] sm:$0xff]
        %v6086 = vld [vmem:[#allocation18 + $0x3c8] sm:$0xff]
        %v6087 = vld [vmem:[#allocation18 + $0x3d0] sm:$0xff]
        %v6088 = vld [vmem:[#allocation18 + $0x3d8] sm:$0xff]
        %v6089 = vld [vmem:[#allocation18 + $0x3e0] sm:$0xff]
        %v6090 = vld [vmem:[#allocation18 + $0x3e8] sm:$0xff]
        %v6091 = vld [vmem:[#allocation18 + $0x3f0] sm:$0xff]
        %v6092 = vld [vmem:[#allocation18 + $0x3f8] sm:$0xff]
        %v6093 = vld [vmem:[#allocation18 + $0x400] sm:$0xff]
        %v6094 = vld [vmem:[#allocation18 + $0x408] sm:$0xff]
        %v6095 = vld [vmem:[#allocation18 + $0x410] sm:$0xff]
        %v6096 = vld [vmem:[#allocation18 + $0x418] sm:$0xff]
        %v6097 = vld [vmem:[#allocation18 + $0x420] sm:$0xff]
        %v6098 = vld [vmem:[#allocation18 + $0x428] sm:$0xff]
        %v6099 = vld [vmem:[#allocation18 + $0x430] sm:$0xff]
        %v6100 = vld [vmem:[#allocation18 + $0x438] sm:$0xff]
        %v6101 = vld [vmem:[#allocation18 + $0x440] sm:$0xff]
        %v6102 = vld [vmem:[#allocation18 + $0x448] sm:$0xff]
        %v6103 = vld [vmem:[#allocation18 + $0x450] sm:$0xff]
        %v6104 = vld [vmem:[#allocation18 + $0x458] sm:$0xff]
        %v6105 = vld [vmem:[#allocation18 + $0x460] sm:$0xff]
        %v6106 = vld [vmem:[#allocation18 + $0x468] sm:$0xff]
        %v6107 = vld [vmem:[#allocation18 + $0x470] sm:$0xff]
        %v6108 = vld [vmem:[#allocation18 + $0x478] sm:$0xff]
        %v6109 = vld [vmem:[#allocation18 + $0x480] sm:$0xff]
        %v6110 = vld [vmem:[#allocation18 + $0x488] sm:$0xff]
        %v6111 = vld [vmem:[#allocation18 + $0x490] sm:$0xff]
        %v6112 = vld [vmem:[#allocation18 + $0x498] sm:$0xff]
        %v6113 = vld [vmem:[#allocation18 + $0x4a0] sm:$0xff]
        %v6114 = vld [vmem:[#allocation18 + $0x4a8] sm:$0xff]
        %v6115 = vld [vmem:[#allocation18 + $0x4b0] sm:$0xff]
        %v6116 = vld [vmem:[#allocation18 + $0x4b8] sm:$0xff]
        %v6117 = vld [vmem:[#allocation18 + $0x4c0] sm:$0xff]
        %v6118 = vld [vmem:[#allocation18 + $0x4c8] sm:$0xff]
        %v6119 = vld [vmem:[#allocation18 + $0x4d0] sm:$0xff]
        %v6120 = vld [vmem:[#allocation18 + $0x4d8] sm:$0xff]
        %v6121 = vld [vmem:[#allocation18 + $0x4e0] sm:$0xff]
        %v6122 = vld [vmem:[#allocation18 + $0x4e8] sm:$0xff]
        %v6123 = vld [vmem:[#allocation18 + $0x4f0] sm:$0xff]
        %v6124 = vld [vmem:[#allocation18 + $0x4f8] sm:$0xff]
        %v6125 = vld [vmem:[#allocation18 + $0x500] sm:$0xff]
        %v6126 = vld [vmem:[#allocation18 + $0x508] sm:$0xff]
        %v6127 = vld [vmem:[#allocation18 + $0x510] sm:$0xff]
        %v6128 = vld [vmem:[#allocation18 + $0x518] sm:$0xff]
        %v6129 = vld [vmem:[#allocation18 + $0x520] sm:$0xff]
        %v6130 = vld [vmem:[#allocation18 + $0x528] sm:$0xff]
        %v6131 = vld [vmem:[#allocation18 + $0x530] sm:$0xff]
        %v6132 = vld [vmem:[#allocation18 + $0x538] sm:$0xff]
        %v6133 = vld [vmem:[#allocation18 + $0x540] sm:$0xff]
        %v6134 = vld [vmem:[#allocation18 + $0x548] sm:$0xff]
        %v6135 = vld [vmem:[#allocation18 + $0x550] sm:$0xff]
        %v6136 = vld [vmem:[#allocation18 + $0x558] sm:$0xff]
        %v6137 = vld [vmem:[#allocation18 + $0x560] sm:$0xff]
        %v6138 = vld [vmem:[#allocation18 + $0x568] sm:$0xff]
        %v6139 = vld [vmem:[#allocation18 + $0x570] sm:$0xff]
        %v6140 = vld [vmem:[#allocation18 + $0x578] sm:$0xff]
        %v6141 = vld [vmem:[#allocation18 + $0x580] sm:$0xff]
        %v6142 = vld [vmem:[#allocation18 + $0x588] sm:$0xff]
        %v6143 = vld [vmem:[#allocation18 + $0x590] sm:$0xff]
        %v6144 = vld [vmem:[#allocation18 + $0x598] sm:$0xff]
        %v6145 = vld [vmem:[#allocation18 + $0x5a0] sm:$0xff]
        %v6146 = vld [vmem:[#allocation18 + $0x5a8] sm:$0xff]
        %v6147 = vld [vmem:[#allocation18 + $0x5b0] sm:$0xff]
        %v6148 = vld [vmem:[#allocation18 + $0x5b8] sm:$0xff]
        %v6149 = vld [vmem:[#allocation18 + $0x5c0] sm:$0xff]
        %v6150 = vld [vmem:[#allocation18 + $0x5c8] sm:$0xff]
        %v6151 = vld [vmem:[#allocation18 + $0x5d0] sm:$0xff]
        %v6152 = vld [vmem:[#allocation18 + $0x5d8] sm:$0xff]
        %v6153 = vld [vmem:[#allocation18 + $0x5e0] sm:$0xff]
        %v6154 = vld [vmem:[#allocation18 + $0x5e8] sm:$0xff]
        %v6155 = vld [vmem:[#allocation18 + $0x5f0] sm:$0xff]
        %v6156 = vld [vmem:[#allocation18 + $0x5f8] sm:$0xff]
        %v6157 = vld [vmem:[#allocation18 + $0x600] sm:$0xff]
        %v6158 = vld [vmem:[#allocation18 + $0x608] sm:$0xff]
        %v6159 = vld [vmem:[#allocation18 + $0x610] sm:$0xff]
        %v6160 = vld [vmem:[#allocation18 + $0x618] sm:$0xff]
        %v6161 = vld [vmem:[#allocation18 + $0x620] sm:$0xff]
        %v6162 = vld [vmem:[#allocation18 + $0x628] sm:$0xff]
        %v6163 = vld [vmem:[#allocation18 + $0x630] sm:$0xff]
        %v6164 = vld [vmem:[#allocation18 + $0x638] sm:$0xff]
        %v6165 = vld [vmem:[#allocation18 + $0x640] sm:$0xff]
        %v6166 = vld [vmem:[#allocation18 + $0x648] sm:$0xff]
        %v6167 = vld [vmem:[#allocation18 + $0x650] sm:$0xff]
        %v6168 = vld [vmem:[#allocation18 + $0x658] sm:$0xff]
        %v6169 = vld [vmem:[#allocation18 + $0x660] sm:$0xff]
        %v6170 = vld [vmem:[#allocation18 + $0x668] sm:$0xff]
        %v6171 = vld [vmem:[#allocation18 + $0x670] sm:$0xff]
        %v6172 = vld [vmem:[#allocation18 + $0x678] sm:$0xff]
        %v6173 = vld [vmem:[#allocation18 + $0x680] sm:$0xff]
        %v6174 = vld [vmem:[#allocation18 + $0x688] sm:$0xff]
        %v6175 = vld [vmem:[#allocation18 + $0x690] sm:$0xff]
        %v6176 = vld [vmem:[#allocation18 + $0x698] sm:$0xff]
        %v6177 = vld [vmem:[#allocation18 + $0x6a0] sm:$0xff]
        %v6178 = vld [vmem:[#allocation18 + $0x6a8] sm:$0xff]
        %v6179 = vld [vmem:[#allocation18 + $0x6b0] sm:$0xff]
        %v6180 = vld [vmem:[#allocation18 + $0x6b8] sm:$0xff]
        %v6181 = vld [vmem:[#allocation18 + $0x6c0] sm:$0xff]
        %v6182 = vld [vmem:[#allocation18 + $0x6c8] sm:$0xff]
        %v6183 = vld [vmem:[#allocation18 + $0x6d0] sm:$0xff]
        %v6184 = vld [vmem:[#allocation18 + $0x6d8] sm:$0xff]
        %v6185 = vld [vmem:[#allocation18 + $0x6e0] sm:$0xff]
        %v6186 = vld [vmem:[#allocation18 + $0x6e8] sm:$0xff]
        %v6187 = vld [vmem:[#allocation18 + $0x6f0] sm:$0xff]
        %v6188 = vld [vmem:[#allocation18 + $0x6f8] sm:$0xff]
        %v6189 = vld [vmem:[#allocation18 + $0x700] sm:$0xff]
        %v6190 = vld [vmem:[#allocation18 + $0x708] sm:$0xff]
        %v6191 = vld [vmem:[#allocation18 + $0x710] sm:$0xff]
        %v6192 = vld [vmem:[#allocation18 + $0x718] sm:$0xff]
        %v6193 = vld [vmem:[#allocation18 + $0x720] sm:$0xff]
        %v6194 = vld [vmem:[#allocation18 + $0x728] sm:$0xff]
        %v6195 = vld [vmem:[#allocation18 + $0x730] sm:$0xff]
        %v6196 = vld [vmem:[#allocation18 + $0x738] sm:$0xff]
        %v6197 = vld [vmem:[#allocation18 + $0x740] sm:$0xff]
        %v6198 = vld [vmem:[#allocation18 + $0x748] sm:$0xff]
        %v6199 = vld [vmem:[#allocation18 + $0x750] sm:$0xff]
        %v6200 = vld [vmem:[#allocation18 + $0x758] sm:$0xff]
        %v6201 = vld [vmem:[#allocation18 + $0x760] sm:$0xff]
        %v6202 = vld [vmem:[#allocation18 + $0x768] sm:$0xff]
        %v6203 = vld [vmem:[#allocation18 + $0x770] sm:$0xff]
        %v6204 = vld [vmem:[#allocation18 + $0x778] sm:$0xff]
        %v6205 = vld [vmem:[#allocation18 + $0x780] sm:$0xff]
        %v6206 = vld [vmem:[#allocation18 + $0x788] sm:$0xff]
        %v6207 = vld [vmem:[#allocation18 + $0x790] sm:$0xff]
        %v6208 = vld [vmem:[#allocation18 + $0x798] sm:$0xff]
        %v6209 = vld [vmem:[#allocation18 + $0x7a0] sm:$0xff]
        %v6210 = vld [vmem:[#allocation18 + $0x7a8] sm:$0xff]
        %v6211 = vld [vmem:[#allocation18 + $0x7b0] sm:$0xff]
        %v6212 = vld [vmem:[#allocation18 + $0x7b8] sm:$0xff]
        %v6213 = vld [vmem:[#allocation18 + $0x7c0] sm:$0xff]
        %v6214 = vld [vmem:[#allocation18 + $0x7c8] sm:$0xff]
        %v6215 = vld [vmem:[#allocation18 + $0x7d0] sm:$0xff]
        %v6216 = vld [vmem:[#allocation18 + $0x7d8] sm:$0xff]
        %v6217 = vld [vmem:[#allocation18 + $0x7e0] sm:$0xff]
        %v6218 = vld [vmem:[#allocation18 + $0x7e8] sm:$0xff]
        %v6219 = vld [vmem:[#allocation18 + $0x7f0] sm:$0xff]
        %v6220 = vld [vmem:[#allocation18 + $0x7f8] sm:$0xff]
        %v6221 = vld [vmem:[#allocation20] sm:$0xff]
        %v6223 = vlaneseq
        %v6224 = vshrl.u32 %v6223, 7
        %v6225 = vsub.s32 0, %v6224
        %v6226 = vrot.slane %v6221, %v6225
        %v6227 = vlaneseq
        %v6228 = vshrl.u32 %v6227, 7
        %v6229 = vsub.s32 1, %v6228
        %v6230 = vrot.slane %v6221, %v6229
        %v6231 = vlaneseq
        %v6232 = vshrl.u32 %v6231, 7
        %v6233 = vsub.s32 2, %v6232
        %v6234 = vrot.slane %v6221, %v6233
        %v6235 = vlaneseq
        %v6236 = vshrl.u32 %v6235, 7
        %v6237 = vsub.s32 3, %v6236
        %v6238 = vrot.slane %v6221, %v6237
        %v6239 = vlaneseq
        %v6240 = vshrl.u32 %v6239, 7
        %v6241 = vsub.s32 4, %v6240
        %v6242 = vrot.slane %v6221, %v6241
        %v6243 = vlaneseq
        %v6244 = vshrl.u32 %v6243, 7
        %v6245 = vsub.s32 5, %v6244
        %v6246 = vrot.slane %v6221, %v6245
        %v6247 = vlaneseq
        %v6248 = vshrl.u32 %v6247, 7
        %v6249 = vsub.s32 6, %v6248
        %v6250 = vrot.slane %v6221, %v6249
        %v6251 = vlaneseq
        %v6252 = vshrl.u32 %v6251, 7
        %v6253 = vsub.s32 7, %v6252
        %v6254 = vrot.slane %v6221, %v6253
        %v6519 = vunpack.c.l.b16 %v5965
        %v6520 = vunpack.c.h.b16 %v5965
        %v6521 = vunpack.c.l.b16 %v5966
        %v6522 = vunpack.c.h.b16 %v5966
        %v6523 = vunpack.c.l.b16 %v5967
        %v6524 = vunpack.c.h.b16 %v5967
        %v6525 = vunpack.c.l.b16 %v5968
        %v6526 = vunpack.c.h.b16 %v5968
        %v6527 = vunpack.c.l.b16 %v5969
        %v6528 = vunpack.c.h.b16 %v5969
        %v6529 = vunpack.c.l.b16 %v5970
        %v6530 = vunpack.c.h.b16 %v5970
        %v6531 = vunpack.c.l.b16 %v5971
        %v6532 = vunpack.c.h.b16 %v5971
        %v6533 = vunpack.c.l.b16 %v5972
        %v6534 = vunpack.c.h.b16 %v5972
        %v6535 = vunpack.c.l.b16 %v5973
        %v6536 = vunpack.c.h.b16 %v5973
        %v6537 = vunpack.c.l.b16 %v5974
        %v6538 = vunpack.c.h.b16 %v5974
        %v6539 = vunpack.c.l.b16 %v5975
        %v6540 = vunpack.c.h.b16 %v5975
        %v6541 = vunpack.c.l.b16 %v5976
        %v6542 = vunpack.c.h.b16 %v5976
        %v6543 = vunpack.c.l.b16 %v5977
        %v6544 = vunpack.c.h.b16 %v5977
        %v6545 = vunpack.c.l.b16 %v5978
        %v6546 = vunpack.c.h.b16 %v5978
        %v6547 = vunpack.c.l.b16 %v5979
        %v6548 = vunpack.c.h.b16 %v5979
        %v6549 = vunpack.c.l.b16 %v5980
        %v6550 = vunpack.c.h.b16 %v5980
        %v6551 = vunpack.c.l.b16 %v5981
        %v6552 = vunpack.c.h.b16 %v5981
        %v6553 = vunpack.c.l.b16 %v5982
        %v6554 = vunpack.c.h.b16 %v5982
        %v6555 = vunpack.c.l.b16 %v5983
        %v6556 = vunpack.c.h.b16 %v5983
        %v6557 = vunpack.c.l.b16 %v5984
        %v6558 = vunpack.c.h.b16 %v5984
        %v6559 = vunpack.c.l.b16 %v5985
        %v6560 = vunpack.c.h.b16 %v5985
        %v6561 = vunpack.c.l.b16 %v5986
        %v6562 = vunpack.c.h.b16 %v5986
        %v6563 = vunpack.c.l.b16 %v5987
        %v6564 = vunpack.c.h.b16 %v5987
        %v6565 = vunpack.c.l.b16 %v5988
        %v6566 = vunpack.c.h.b16 %v5988
        %v6567 = vunpack.c.l.b16 %v5989
        %v6568 = vunpack.c.h.b16 %v5989
        %v6569 = vunpack.c.l.b16 %v5990
        %v6570 = vunpack.c.h.b16 %v5990
        %v6571 = vunpack.c.l.b16 %v5991
        %v6572 = vunpack.c.h.b16 %v5991
        %v6573 = vunpack.c.l.b16 %v5992
        %v6574 = vunpack.c.h.b16 %v5992
        %v6575 = vunpack.c.l.b16 %v5993
        %v6576 = vunpack.c.h.b16 %v5993
        %v6577 = vunpack.c.l.b16 %v5994
        %v6578 = vunpack.c.h.b16 %v5994
        %v6579 = vunpack.c.l.b16 %v5995
        %v6580 = vunpack.c.h.b16 %v5995
        %v6581 = vunpack.c.l.b16 %v5996
        %v6582 = vunpack.c.h.b16 %v5996
        %v6583 = vunpack.c.l.b16 %v5997
        %v6584 = vunpack.c.h.b16 %v5997
        %v6585 = vunpack.c.l.b16 %v5998
        %v6586 = vunpack.c.h.b16 %v5998
        %v6587 = vunpack.c.l.b16 %v5999
        %v6588 = vunpack.c.h.b16 %v5999
        %v6589 = vunpack.c.l.b16 %v6000
        %v6590 = vunpack.c.h.b16 %v6000
        %v6591 = vunpack.c.l.b16 %v6001
        %v6592 = vunpack.c.h.b16 %v6001
        %v6593 = vunpack.c.l.b16 %v6002
        %v6594 = vunpack.c.h.b16 %v6002
        %v6595 = vunpack.c.l.b16 %v6003
        %v6596 = vunpack.c.h.b16 %v6003
        %v6597 = vunpack.c.l.b16 %v6004
        %v6598 = vunpack.c.h.b16 %v6004
        %v6599 = vunpack.c.l.b16 %v6005
        %v6600 = vunpack.c.h.b16 %v6005
        %v6601 = vunpack.c.l.b16 %v6006
        %v6602 = vunpack.c.h.b16 %v6006
        %v6603 = vunpack.c.l.b16 %v6007
        %v6604 = vunpack.c.h.b16 %v6007
        %v6605 = vunpack.c.l.b16 %v6008
        %v6606 = vunpack.c.h.b16 %v6008
        %v6607 = vunpack.c.l.b16 %v6009
        %v6608 = vunpack.c.h.b16 %v6009
        %v6609 = vunpack.c.l.b16 %v6010
        %v6610 = vunpack.c.h.b16 %v6010
        %v6611 = vunpack.c.l.b16 %v6011
        %v6612 = vunpack.c.h.b16 %v6011
        %v6613 = vunpack.c.l.b16 %v6012
        %v6614 = vunpack.c.h.b16 %v6012
        %v6615 = vunpack.c.l.b16 %v6013
        %v6616 = vunpack.c.h.b16 %v6013
        %v6617 = vunpack.c.l.b16 %v6014
        %v6618 = vunpack.c.h.b16 %v6014
        %v6619 = vunpack.c.l.b16 %v6015
        %v6620 = vunpack.c.h.b16 %v6015
        %v6621 = vunpack.c.l.b16 %v6016
        %v6622 = vunpack.c.h.b16 %v6016
        %v6623 = vunpack.c.l.b16 %v6017
        %v6624 = vunpack.c.h.b16 %v6017
        %v6625 = vunpack.c.l.b16 %v6018
        %v6626 = vunpack.c.h.b16 %v6018
        %v6627 = vunpack.c.l.b16 %v6019
        %v6628 = vunpack.c.h.b16 %v6019
        %v6629 = vunpack.c.l.b16 %v6020
        %v6630 = vunpack.c.h.b16 %v6020
        %v6631 = vunpack.c.l.b16 %v6021
        %v6632 = vunpack.c.h.b16 %v6021
        %v6633 = vunpack.c.l.b16 %v6022
        %v6634 = vunpack.c.h.b16 %v6022
        %v6635 = vunpack.c.l.b16 %v6023
        %v6636 = vunpack.c.h.b16 %v6023
        %v6637 = vunpack.c.l.b16 %v6024
        %v6638 = vunpack.c.h.b16 %v6024
        %v6639 = vunpack.c.l.b16 %v6025
        %v6640 = vunpack.c.h.b16 %v6025
        %v6641 = vunpack.c.l.b16 %v6026
        %v6642 = vunpack.c.h.b16 %v6026
        %v6643 = vunpack.c.l.b16 %v6027
        %v6644 = vunpack.c.h.b16 %v6027
        %v6645 = vunpack.c.l.b16 %v6028
        %v6646 = vunpack.c.h.b16 %v6028
        %v6647 = vunpack.c.l.b16 %v6029
        %v6648 = vunpack.c.h.b16 %v6029
        %v6649 = vunpack.c.l.b16 %v6030
        %v6650 = vunpack.c.h.b16 %v6030
        %v6651 = vunpack.c.l.b16 %v6031
        %v6652 = vunpack.c.h.b16 %v6031
        %v6653 = vunpack.c.l.b16 %v6032
        %v6654 = vunpack.c.h.b16 %v6032
        %v6655 = vunpack.c.l.b16 %v6033
        %v6656 = vunpack.c.h.b16 %v6033
        %v6657 = vunpack.c.l.b16 %v6034
        %v6658 = vunpack.c.h.b16 %v6034
        %v6659 = vunpack.c.l.b16 %v6035
        %v6660 = vunpack.c.h.b16 %v6035
        %v6661 = vunpack.c.l.b16 %v6036
        %v6662 = vunpack.c.h.b16 %v6036
        %v6663 = vunpack.c.l.b16 %v6037
        %v6664 = vunpack.c.h.b16 %v6037
        %v6665 = vunpack.c.l.b16 %v6038
        %v6666 = vunpack.c.h.b16 %v6038
        %v6667 = vunpack.c.l.b16 %v6039
        %v6668 = vunpack.c.h.b16 %v6039
        %v6669 = vunpack.c.l.b16 %v6040
        %v6670 = vunpack.c.h.b16 %v6040
        %v6671 = vunpack.c.l.b16 %v6041
        %v6672 = vunpack.c.h.b16 %v6041
        %v6673 = vunpack.c.l.b16 %v6042
        %v6674 = vunpack.c.h.b16 %v6042
        %v6675 = vunpack.c.l.b16 %v6043
        %v6676 = vunpack.c.h.b16 %v6043
        %v6677 = vunpack.c.l.b16 %v6044
        %v6678 = vunpack.c.h.b16 %v6044
        %v6679 = vunpack.c.l.b16 %v6045
        %v6680 = vunpack.c.h.b16 %v6045
        %v6681 = vunpack.c.l.b16 %v6046
        %v6682 = vunpack.c.h.b16 %v6046
        %v6683 = vunpack.c.l.b16 %v6047
        %v6684 = vunpack.c.h.b16 %v6047
        %v6685 = vunpack.c.l.b16 %v6048
        %v6686 = vunpack.c.h.b16 %v6048
        %v6687 = vunpack.c.l.b16 %v6049
        %v6688 = vunpack.c.h.b16 %v6049
        %v6689 = vunpack.c.l.b16 %v6050
        %v6690 = vunpack.c.h.b16 %v6050
        %v6691 = vunpack.c.l.b16 %v6051
        %v6692 = vunpack.c.h.b16 %v6051
        %v6693 = vunpack.c.l.b16 %v6052
        %v6694 = vunpack.c.h.b16 %v6052
        %v6695 = vunpack.c.l.b16 %v6053
        %v6696 = vunpack.c.h.b16 %v6053
        %v6697 = vunpack.c.l.b16 %v6054
        %v6698 = vunpack.c.h.b16 %v6054
        %v6699 = vunpack.c.l.b16 %v6055
        %v6700 = vunpack.c.h.b16 %v6055
        %v6701 = vunpack.c.l.b16 %v6056
        %v6702 = vunpack.c.h.b16 %v6056
        %v6703 = vunpack.c.l.b16 %v6057
        %v6704 = vunpack.c.h.b16 %v6057
        %v6705 = vunpack.c.l.b16 %v6058
        %v6706 = vunpack.c.h.b16 %v6058
        %v6707 = vunpack.c.l.b16 %v6059
        %v6708 = vunpack.c.h.b16 %v6059
        %v6709 = vunpack.c.l.b16 %v6060
        %v6710 = vunpack.c.h.b16 %v6060
        %v6711 = vunpack.c.l.b16 %v6061
        %v6712 = vunpack.c.h.b16 %v6061
        %v6713 = vunpack.c.l.b16 %v6062
        %v6714 = vunpack.c.h.b16 %v6062
        %v6715 = vunpack.c.l.b16 %v6063
        %v6716 = vunpack.c.h.b16 %v6063
        %v6717 = vunpack.c.l.b16 %v6064
        %v6718 = vunpack.c.h.b16 %v6064
        %v6719 = vunpack.c.l.b16 %v6065
        %v6720 = vunpack.c.h.b16 %v6065
        %v6721 = vunpack.c.l.b16 %v6066
        %v6722 = vunpack.c.h.b16 %v6066
        %v6723 = vunpack.c.l.b16 %v6067
        %v6724 = vunpack.c.h.b16 %v6067
        %v6725 = vunpack.c.l.b16 %v6068
        %v6726 = vunpack.c.h.b16 %v6068
        %v6727 = vunpack.c.l.b16 %v6069
        %v6728 = vunpack.c.h.b16 %v6069
        %v6729 = vunpack.c.l.b16 %v6070
        %v6730 = vunpack.c.h.b16 %v6070
        %v6731 = vunpack.c.l.b16 %v6071
        %v6732 = vunpack.c.h.b16 %v6071
        %v6733 = vunpack.c.l.b16 %v6072
        %v6734 = vunpack.c.h.b16 %v6072
        %v6735 = vunpack.c.l.b16 %v6073
        %v6736 = vunpack.c.h.b16 %v6073
        %v6737 = vunpack.c.l.b16 %v6074
        %v6738 = vunpack.c.h.b16 %v6074
        %v6739 = vunpack.c.l.b16 %v6075
        %v6740 = vunpack.c.h.b16 %v6075
        %v6741 = vunpack.c.l.b16 %v6076
        %v6742 = vunpack.c.h.b16 %v6076
        %v6743 = vunpack.c.l.b16 %v6077
        %v6744 = vunpack.c.h.b16 %v6077
        %v6745 = vunpack.c.l.b16 %v6078
        %v6746 = vunpack.c.h.b16 %v6078
        %v6747 = vunpack.c.l.b16 %v6079
        %v6748 = vunpack.c.h.b16 %v6079
        %v6749 = vunpack.c.l.b16 %v6080
        %v6750 = vunpack.c.h.b16 %v6080
        %v6751 = vunpack.c.l.b16 %v6081
        %v6752 = vunpack.c.h.b16 %v6081
        %v6753 = vunpack.c.l.b16 %v6082
        %v6754 = vunpack.c.h.b16 %v6082
        %v6755 = vunpack.c.l.b16 %v6083
        %v6756 = vunpack.c.h.b16 %v6083
        %v6757 = vunpack.c.l.b16 %v6084
        %v6758 = vunpack.c.h.b16 %v6084
        %v6759 = vunpack.c.l.b16 %v6085
        %v6760 = vunpack.c.h.b16 %v6085
        %v6761 = vunpack.c.l.b16 %v6086
        %v6762 = vunpack.c.h.b16 %v6086
        %v6763 = vunpack.c.l.b16 %v6087
        %v6764 = vunpack.c.h.b16 %v6087
        %v6765 = vunpack.c.l.b16 %v6088
        %v6766 = vunpack.c.h.b16 %v6088
        %v6767 = vunpack.c.l.b16 %v6089
        %v6768 = vunpack.c.h.b16 %v6089
        %v6769 = vunpack.c.l.b16 %v6090
        %v6770 = vunpack.c.h.b16 %v6090
        %v6771 = vunpack.c.l.b16 %v6091
        %v6772 = vunpack.c.h.b16 %v6091
        %v6773 = vunpack.c.l.b16 %v6092
        %v6774 = vunpack.c.h.b16 %v6092
        %v6775 = vunpack.c.l.b16 %v6093
        %v6776 = vunpack.c.h.b16 %v6093
        %v6777 = vunpack.c.l.b16 %v6094
        %v6778 = vunpack.c.h.b16 %v6094
        %v6779 = vunpack.c.l.b16 %v6095
        %v6780 = vunpack.c.h.b16 %v6095
        %v6781 = vunpack.c.l.b16 %v6096
        %v6782 = vunpack.c.h.b16 %v6096
        %v6783 = vunpack.c.l.b16 %v6097
        %v6784 = vunpack.c.h.b16 %v6097
        %v6785 = vunpack.c.l.b16 %v6098
        %v6786 = vunpack.c.h.b16 %v6098
        %v6787 = vunpack.c.l.b16 %v6099
        %v6788 = vunpack.c.h.b16 %v6099
        %v6789 = vunpack.c.l.b16 %v6100
        %v6790 = vunpack.c.h.b16 %v6100
        %v6791 = vunpack.c.l.b16 %v6101
        %v6792 = vunpack.c.h.b16 %v6101
        %v6793 = vunpack.c.l.b16 %v6102
        %v6794 = vunpack.c.h.b16 %v6102
        %v6795 = vunpack.c.l.b16 %v6103
        %v6796 = vunpack.c.h.b16 %v6103
        %v6797 = vunpack.c.l.b16 %v6104
        %v6798 = vunpack.c.h.b16 %v6104
        %v6799 = vunpack.c.l.b16 %v6105
        %v6800 = vunpack.c.h.b16 %v6105
        %v6801 = vunpack.c.l.b16 %v6106
        %v6802 = vunpack.c.h.b16 %v6106
        %v6803 = vunpack.c.l.b16 %v6107
        %v6804 = vunpack.c.h.b16 %v6107
        %v6805 = vunpack.c.l.b16 %v6108
        %v6806 = vunpack.c.h.b16 %v6108
        %v6807 = vunpack.c.l.b16 %v6109
        %v6808 = vunpack.c.h.b16 %v6109
        %v6809 = vunpack.c.l.b16 %v6110
        %v6810 = vunpack.c.h.b16 %v6110
        %v6811 = vunpack.c.l.b16 %v6111
        %v6812 = vunpack.c.h.b16 %v6111
        %v6813 = vunpack.c.l.b16 %v6112
        %v6814 = vunpack.c.h.b16 %v6112
        %v6815 = vunpack.c.l.b16 %v6113
        %v6816 = vunpack.c.h.b16 %v6113
        %v6817 = vunpack.c.l.b16 %v6114
        %v6818 = vunpack.c.h.b16 %v6114
        %v6819 = vunpack.c.l.b16 %v6115
        %v6820 = vunpack.c.h.b16 %v6115
        %v6821 = vunpack.c.l.b16 %v6116
        %v6822 = vunpack.c.h.b16 %v6116
        %v6823 = vunpack.c.l.b16 %v6117
        %v6824 = vunpack.c.h.b16 %v6117
        %v6825 = vunpack.c.l.b16 %v6118
        %v6826 = vunpack.c.h.b16 %v6118
        %v6827 = vunpack.c.l.b16 %v6119
        %v6828 = vunpack.c.h.b16 %v6119
        %v6829 = vunpack.c.l.b16 %v6120
        %v6830 = vunpack.c.h.b16 %v6120
        %v6831 = vunpack.c.l.b16 %v6121
        %v6832 = vunpack.c.h.b16 %v6121
        %v6833 = vunpack.c.l.b16 %v6122
        %v6834 = vunpack.c.h.b16 %v6122
        %v6835 = vunpack.c.l.b16 %v6123
        %v6836 = vunpack.c.h.b16 %v6123
        %v6837 = vunpack.c.l.b16 %v6124
        %v6838 = vunpack.c.h.b16 %v6124
        %v6839 = vunpack.c.l.b16 %v6125
        %v6840 = vunpack.c.h.b16 %v6125
        %v6841 = vunpack.c.l.b16 %v6126
        %v6842 = vunpack.c.h.b16 %v6126
        %v6843 = vunpack.c.l.b16 %v6127
        %v6844 = vunpack.c.h.b16 %v6127
        %v6845 = vunpack.c.l.b16 %v6128
        %v6846 = vunpack.c.h.b16 %v6128
        %v6847 = vunpack.c.l.b16 %v6129
        %v6848 = vunpack.c.h.b16 %v6129
        %v6849 = vunpack.c.l.b16 %v6130
        %v6850 = vunpack.c.h.b16 %v6130
        %v6851 = vunpack.c.l.b16 %v6131
        %v6852 = vunpack.c.h.b16 %v6131
        %v6853 = vunpack.c.l.b16 %v6132
        %v6854 = vunpack.c.h.b16 %v6132
        %v6855 = vunpack.c.l.b16 %v6133
        %v6856 = vunpack.c.h.b16 %v6133
        %v6857 = vunpack.c.l.b16 %v6134
        %v6858 = vunpack.c.h.b16 %v6134
        %v6859 = vunpack.c.l.b16 %v6135
        %v6860 = vunpack.c.h.b16 %v6135
        %v6861 = vunpack.c.l.b16 %v6136
        %v6862 = vunpack.c.h.b16 %v6136
        %v6863 = vunpack.c.l.b16 %v6137
        %v6864 = vunpack.c.h.b16 %v6137
        %v6865 = vunpack.c.l.b16 %v6138
        %v6866 = vunpack.c.h.b16 %v6138
        %v6867 = vunpack.c.l.b16 %v6139
        %v6868 = vunpack.c.h.b16 %v6139
        %v6869 = vunpack.c.l.b16 %v6140
        %v6870 = vunpack.c.h.b16 %v6140
        %v6871 = vunpack.c.l.b16 %v6141
        %v6872 = vunpack.c.h.b16 %v6141
        %v6873 = vunpack.c.l.b16 %v6142
        %v6874 = vunpack.c.h.b16 %v6142
        %v6875 = vunpack.c.l.b16 %v6143
        %v6876 = vunpack.c.h.b16 %v6143
        %v6877 = vunpack.c.l.b16 %v6144
        %v6878 = vunpack.c.h.b16 %v6144
        %v6879 = vunpack.c.l.b16 %v6145
        %v6880 = vunpack.c.h.b16 %v6145
        %v6881 = vunpack.c.l.b16 %v6146
        %v6882 = vunpack.c.h.b16 %v6146
        %v6883 = vunpack.c.l.b16 %v6147
        %v6884 = vunpack.c.h.b16 %v6147
        %v6885 = vunpack.c.l.b16 %v6148
        %v6886 = vunpack.c.h.b16 %v6148
        %v6887 = vunpack.c.l.b16 %v6149
        %v6888 = vunpack.c.h.b16 %v6149
        %v6889 = vunpack.c.l.b16 %v6150
        %v6890 = vunpack.c.h.b16 %v6150
        %v6891 = vunpack.c.l.b16 %v6151
        %v6892 = vunpack.c.h.b16 %v6151
        %v6893 = vunpack.c.l.b16 %v6152
        %v6894 = vunpack.c.h.b16 %v6152
        %v6895 = vunpack.c.l.b16 %v6153
        %v6896 = vunpack.c.h.b16 %v6153
        %v6897 = vunpack.c.l.b16 %v6154
        %v6898 = vunpack.c.h.b16 %v6154
        %v6899 = vunpack.c.l.b16 %v6155
        %v6900 = vunpack.c.h.b16 %v6155
        %v6901 = vunpack.c.l.b16 %v6156
        %v6902 = vunpack.c.h.b16 %v6156
        %v6903 = vunpack.c.l.b16 %v6157
        %v6904 = vunpack.c.h.b16 %v6157
        %v6905 = vunpack.c.l.b16 %v6158
        %v6906 = vunpack.c.h.b16 %v6158
        %v6907 = vunpack.c.l.b16 %v6159
        %v6908 = vunpack.c.h.b16 %v6159
        %v6909 = vunpack.c.l.b16 %v6160
        %v6910 = vunpack.c.h.b16 %v6160
        %v6911 = vunpack.c.l.b16 %v6161
        %v6912 = vunpack.c.h.b16 %v6161
        %v6913 = vunpack.c.l.b16 %v6162
        %v6914 = vunpack.c.h.b16 %v6162
        %v6915 = vunpack.c.l.b16 %v6163
        %v6916 = vunpack.c.h.b16 %v6163
        %v6917 = vunpack.c.l.b16 %v6164
        %v6918 = vunpack.c.h.b16 %v6164
        %v6919 = vunpack.c.l.b16 %v6165
        %v6920 = vunpack.c.h.b16 %v6165
        %v6921 = vunpack.c.l.b16 %v6166
        %v6922 = vunpack.c.h.b16 %v6166
        %v6923 = vunpack.c.l.b16 %v6167
        %v6924 = vunpack.c.h.b16 %v6167
        %v6925 = vunpack.c.l.b16 %v6168
        %v6926 = vunpack.c.h.b16 %v6168
        %v6927 = vunpack.c.l.b16 %v6169
        %v6928 = vunpack.c.h.b16 %v6169
        %v6929 = vunpack.c.l.b16 %v6170
        %v6930 = vunpack.c.h.b16 %v6170
        %v6931 = vunpack.c.l.b16 %v6171
        %v6932 = vunpack.c.h.b16 %v6171
        %v6933 = vunpack.c.l.b16 %v6172
        %v6934 = vunpack.c.h.b16 %v6172
        %v6935 = vunpack.c.l.b16 %v6173
        %v6936 = vunpack.c.h.b16 %v6173
        %v6937 = vunpack.c.l.b16 %v6174
        %v6938 = vunpack.c.h.b16 %v6174
        %v6939 = vunpack.c.l.b16 %v6175
        %v6940 = vunpack.c.h.b16 %v6175
        %v6941 = vunpack.c.l.b16 %v6176
        %v6942 = vunpack.c.h.b16 %v6176
        %v6943 = vunpack.c.l.b16 %v6177
        %v6944 = vunpack.c.h.b16 %v6177
        %v6945 = vunpack.c.l.b16 %v6178
        %v6946 = vunpack.c.h.b16 %v6178
        %v6947 = vunpack.c.l.b16 %v6179
        %v6948 = vunpack.c.h.b16 %v6179
        %v6949 = vunpack.c.l.b16 %v6180
        %v6950 = vunpack.c.h.b16 %v6180
        %v6951 = vunpack.c.l.b16 %v6181
        %v6952 = vunpack.c.h.b16 %v6181
        %v6953 = vunpack.c.l.b16 %v6182
        %v6954 = vunpack.c.h.b16 %v6182
        %v6955 = vunpack.c.l.b16 %v6183
        %v6956 = vunpack.c.h.b16 %v6183
        %v6957 = vunpack.c.l.b16 %v6184
        %v6958 = vunpack.c.h.b16 %v6184
        %v6959 = vunpack.c.l.b16 %v6185
        %v6960 = vunpack.c.h.b16 %v6185
        %v6961 = vunpack.c.l.b16 %v6186
        %v6962 = vunpack.c.h.b16 %v6186
        %v6963 = vunpack.c.l.b16 %v6187
        %v6964 = vunpack.c.h.b16 %v6187
        %v6965 = vunpack.c.l.b16 %v6188
        %v6966 = vunpack.c.h.b16 %v6188
        %v6967 = vunpack.c.l.b16 %v6189
        %v6968 = vunpack.c.h.b16 %v6189
        %v6969 = vunpack.c.l.b16 %v6190
        %v6970 = vunpack.c.h.b16 %v6190
        %v6971 = vunpack.c.l.b16 %v6191
        %v6972 = vunpack.c.h.b16 %v6191
        %v6973 = vunpack.c.l.b16 %v6192
        %v6974 = vunpack.c.h.b16 %v6192
        %v6975 = vunpack.c.l.b16 %v6193
        %v6976 = vunpack.c.h.b16 %v6193
        %v6977 = vunpack.c.l.b16 %v6194
        %v6978 = vunpack.c.h.b16 %v6194
        %v6979 = vunpack.c.l.b16 %v6195
        %v6980 = vunpack.c.h.b16 %v6195
        %v6981 = vunpack.c.l.b16 %v6196
        %v6982 = vunpack.c.h.b16 %v6196
        %v6983 = vunpack.c.l.b16 %v6197
        %v6984 = vunpack.c.h.b16 %v6197
        %v6985 = vunpack.c.l.b16 %v6198
        %v6986 = vunpack.c.h.b16 %v6198
        %v6987 = vunpack.c.l.b16 %v6199
        %v6988 = vunpack.c.h.b16 %v6199
        %v6989 = vunpack.c.l.b16 %v6200
        %v6990 = vunpack.c.h.b16 %v6200
        %v6991 = vunpack.c.l.b16 %v6201
        %v6992 = vunpack.c.h.b16 %v6201
        %v6993 = vunpack.c.l.b16 %v6202
        %v6994 = vunpack.c.h.b16 %v6202
        %v6995 = vunpack.c.l.b16 %v6203
        %v6996 = vunpack.c.h.b16 %v6203
        %v6997 = vunpack.c.l.b16 %v6204
        %v6998 = vunpack.c.h.b16 %v6204
        %v6999 = vunpack.c.l.b16 %v6205
        %v7000 = vunpack.c.h.b16 %v6205
        %v7001 = vunpack.c.l.b16 %v6206
        %v7002 = vunpack.c.h.b16 %v6206
        %v7003 = vunpack.c.l.b16 %v6207
        %v7004 = vunpack.c.h.b16 %v6207
        %v7005 = vunpack.c.l.b16 %v6208
        %v7006 = vunpack.c.h.b16 %v6208
        %v7007 = vunpack.c.l.b16 %v6209
        %v7008 = vunpack.c.h.b16 %v6209
        %v7009 = vunpack.c.l.b16 %v6210
        %v7010 = vunpack.c.h.b16 %v6210
        %v7011 = vunpack.c.l.b16 %v6211
        %v7012 = vunpack.c.h.b16 %v6211
        %v7013 = vunpack.c.l.b16 %v6212
        %v7014 = vunpack.c.h.b16 %v6212
        %v7015 = vunpack.c.l.b16 %v6213
        %v7016 = vunpack.c.h.b16 %v6213
        %v7017 = vunpack.c.l.b16 %v6214
        %v7018 = vunpack.c.h.b16 %v6214
        %v7019 = vunpack.c.l.b16 %v6215
        %v7020 = vunpack.c.h.b16 %v6215
        %v7021 = vunpack.c.l.b16 %v6216
        %v7022 = vunpack.c.h.b16 %v6216
        %v7023 = vunpack.c.l.b16 %v6217
        %v7024 = vunpack.c.h.b16 %v6217
        %v7025 = vunpack.c.l.b16 %v6218
        %v7026 = vunpack.c.h.b16 %v6218
        %v7027 = vunpack.c.l.b16 %v6219
        %v7028 = vunpack.c.h.b16 %v6219
        %v7029 = vunpack.c.l.b16 %v6220
        %v7030 = vunpack.c.h.b16 %v6220
        %v7031 = vpack.c.b16 %v6527, %v6519
        %v7032 = vpack.c.b16 %v6528, %v6520
        %v7033 = vpack.c.b16 %v6529, %v6521
        %v7034 = vpack.c.b16 %v6530, %v6522
        %v7035 = vpack.c.b16 %v6531, %v6523
        %v7036 = vpack.c.b16 %v6532, %v6524
        %v7037 = vpack.c.b16 %v6533, %v6525
        %v7038 = vpack.c.b16 %v6534, %v6526
        %v7039 = vpack.c.b16 %v6543, %v6535
        %v7040 = vpack.c.b16 %v6544, %v6536
        %v7041 = vpack.c.b16 %v6545, %v6537
        %v7042 = vpack.c.b16 %v6546, %v6538
        %v7043 = vpack.c.b16 %v6547, %v6539
        %v7044 = vpack.c.b16 %v6548, %v6540
        %v7045 = vpack.c.b16 %v6549, %v6541
        %v7046 = vpack.c.b16 %v6550, %v6542
        %v7047 = vpack.c.b16 %v6559, %v6551
        %v7048 = vpack.c.b16 %v6560, %v6552
        %v7049 = vpack.c.b16 %v6561, %v6553
        %v7050 = vpack.c.b16 %v6562, %v6554
        %v7051 = vpack.c.b16 %v6563, %v6555
        %v7052 = vpack.c.b16 %v6564, %v6556
        %v7053 = vpack.c.b16 %v6565, %v6557
        %v7054 = vpack.c.b16 %v6566, %v6558
        %v7055 = vpack.c.b16 %v6575, %v6567
        %v7056 = vpack.c.b16 %v6576, %v6568
        %v7057 = vpack.c.b16 %v6577, %v6569
        %v7058 = vpack.c.b16 %v6578, %v6570
        %v7059 = vpack.c.b16 %v6579, %v6571
        %v7060 = vpack.c.b16 %v6580, %v6572
        %v7061 = vpack.c.b16 %v6581, %v6573
        %v7062 = vpack.c.b16 %v6582, %v6574
        %v7063 = vpack.c.b16 %v6591, %v6583
        %v7064 = vpack.c.b16 %v6592, %v6584
        %v7065 = vpack.c.b16 %v6593, %v6585
        %v7066 = vpack.c.b16 %v6594, %v6586
        %v7067 = vpack.c.b16 %v6595, %v6587
        %v7068 = vpack.c.b16 %v6596, %v6588
        %v7069 = vpack.c.b16 %v6597, %v6589
        %v7070 = vpack.c.b16 %v6598, %v6590
        %v7071 = vpack.c.b16 %v6607, %v6599
        %v7072 = vpack.c.b16 %v6608, %v6600
        %v7073 = vpack.c.b16 %v6609, %v6601
        %v7074 = vpack.c.b16 %v6610, %v6602
        %v7075 = vpack.c.b16 %v6611, %v6603
        %v7076 = vpack.c.b16 %v6612, %v6604
        %v7077 = vpack.c.b16 %v6613, %v6605
        %v7078 = vpack.c.b16 %v6614, %v6606
        %v7079 = vpack.c.b16 %v6623, %v6615
        %v7080 = vpack.c.b16 %v6624, %v6616
        %v7081 = vpack.c.b16 %v6625, %v6617
        %v7082 = vpack.c.b16 %v6626, %v6618
        %v7083 = vpack.c.b16 %v6627, %v6619
        %v7084 = vpack.c.b16 %v6628, %v6620
        %v7085 = vpack.c.b16 %v6629, %v6621
        %v7086 = vpack.c.b16 %v6630, %v6622
        %v7087 = vpack.c.b16 %v6639, %v6631
        %v7088 = vpack.c.b16 %v6640, %v6632
        %v7089 = vpack.c.b16 %v6641, %v6633
        %v7090 = vpack.c.b16 %v6642, %v6634
        %v7091 = vpack.c.b16 %v6643, %v6635
        %v7092 = vpack.c.b16 %v6644, %v6636
        %v7093 = vpack.c.b16 %v6645, %v6637
        %v7094 = vpack.c.b16 %v6646, %v6638
        %v7095 = vpack.c.b16 %v6655, %v6647
        %v7096 = vpack.c.b16 %v6656, %v6648
        %v7097 = vpack.c.b16 %v6657, %v6649
        %v7098 = vpack.c.b16 %v6658, %v6650
        %v7099 = vpack.c.b16 %v6659, %v6651
        %v7100 = vpack.c.b16 %v6660, %v6652
        %v7101 = vpack.c.b16 %v6661, %v6653
        %v7102 = vpack.c.b16 %v6662, %v6654
        %v7103 = vpack.c.b16 %v6671, %v6663
        %v7104 = vpack.c.b16 %v6672, %v6664
        %v7105 = vpack.c.b16 %v6673, %v6665
        %v7106 = vpack.c.b16 %v6674, %v6666
        %v7107 = vpack.c.b16 %v6675, %v6667
        %v7108 = vpack.c.b16 %v6676, %v6668
        %v7109 = vpack.c.b16 %v6677, %v6669
        %v7110 = vpack.c.b16 %v6678, %v6670
        %v7111 = vpack.c.b16 %v6687, %v6679
        %v7112 = vpack.c.b16 %v6688, %v6680
        %v7113 = vpack.c.b16 %v6689, %v6681
        %v7114 = vpack.c.b16 %v6690, %v6682
        %v7115 = vpack.c.b16 %v6691, %v6683
        %v7116 = vpack.c.b16 %v6692, %v6684
        %v7117 = vpack.c.b16 %v6693, %v6685
        %v7118 = vpack.c.b16 %v6694, %v6686
        %v7119 = vpack.c.b16 %v6703, %v6695
        %v7120 = vpack.c.b16 %v6704, %v6696
        %v7121 = vpack.c.b16 %v6705, %v6697
        %v7122 = vpack.c.b16 %v6706, %v6698
        %v7123 = vpack.c.b16 %v6707, %v6699
        %v7124 = vpack.c.b16 %v6708, %v6700
        %v7125 = vpack.c.b16 %v6709, %v6701
        %v7126 = vpack.c.b16 %v6710, %v6702
        %v7127 = vpack.c.b16 %v6719, %v6711
        %v7128 = vpack.c.b16 %v6720, %v6712
        %v7129 = vpack.c.b16 %v6721, %v6713
        %v7130 = vpack.c.b16 %v6722, %v6714
        %v7131 = vpack.c.b16 %v6723, %v6715
        %v7132 = vpack.c.b16 %v6724, %v6716
        %v7133 = vpack.c.b16 %v6725, %v6717
        %v7134 = vpack.c.b16 %v6726, %v6718
        %v7135 = vpack.c.b16 %v6735, %v6727
        %v7136 = vpack.c.b16 %v6736, %v6728
        %v7137 = vpack.c.b16 %v6737, %v6729
        %v7138 = vpack.c.b16 %v6738, %v6730
        %v7139 = vpack.c.b16 %v6739, %v6731
        %v7140 = vpack.c.b16 %v6740, %v6732
        %v7141 = vpack.c.b16 %v6741, %v6733
        %v7142 = vpack.c.b16 %v6742, %v6734
        %v7143 = vpack.c.b16 %v6751, %v6743
        %v7144 = vpack.c.b16 %v6752, %v6744
        %v7145 = vpack.c.b16 %v6753, %v6745
        %v7146 = vpack.c.b16 %v6754, %v6746
        %v7147 = vpack.c.b16 %v6755, %v6747
        %v7148 = vpack.c.b16 %v6756, %v6748
        %v7149 = vpack.c.b16 %v6757, %v6749
        %v7150 = vpack.c.b16 %v6758, %v6750
        %v7151 = vpack.c.b16 %v6767, %v6759
        %v7152 = vpack.c.b16 %v6768, %v6760
        %v7153 = vpack.c.b16 %v6769, %v6761
        %v7154 = vpack.c.b16 %v6770, %v6762
        %v7155 = vpack.c.b16 %v6771, %v6763
        %v7156 = vpack.c.b16 %v6772, %v6764
        %v7157 = vpack.c.b16 %v6773, %v6765
        %v7158 = vpack.c.b16 %v6774, %v6766
        %v7159 = vpack.c.b16 %v6783, %v6775
        %v7160 = vpack.c.b16 %v6784, %v6776
        %v7161 = vpack.c.b16 %v6785, %v6777
        %v7162 = vpack.c.b16 %v6786, %v6778
        %v7163 = vpack.c.b16 %v6787, %v6779
        %v7164 = vpack.c.b16 %v6788, %v6780
        %v7165 = vpack.c.b16 %v6789, %v6781
        %v7166 = vpack.c.b16 %v6790, %v6782
        %v7167 = vpack.c.b16 %v6799, %v6791
        %v7168 = vpack.c.b16 %v6800, %v6792
        %v7169 = vpack.c.b16 %v6801, %v6793
        %v7170 = vpack.c.b16 %v6802, %v6794
        %v7171 = vpack.c.b16 %v6803, %v6795
        %v7172 = vpack.c.b16 %v6804, %v6796
        %v7173 = vpack.c.b16 %v6805, %v6797
        %v7174 = vpack.c.b16 %v6806, %v6798
        %v7175 = vpack.c.b16 %v6815, %v6807
        %v7176 = vpack.c.b16 %v6816, %v6808
        %v7177 = vpack.c.b16 %v6817, %v6809
        %v7178 = vpack.c.b16 %v6818, %v6810
        %v7179 = vpack.c.b16 %v6819, %v6811
        %v7180 = vpack.c.b16 %v6820, %v6812
        %v7181 = vpack.c.b16 %v6821, %v6813
        %v7182 = vpack.c.b16 %v6822, %v6814
        %v7183 = vpack.c.b16 %v6831, %v6823
        %v7184 = vpack.c.b16 %v6832, %v6824
        %v7185 = vpack.c.b16 %v6833, %v6825
        %v7186 = vpack.c.b16 %v6834, %v6826
        %v7187 = vpack.c.b16 %v6835, %v6827
        %v7188 = vpack.c.b16 %v6836, %v6828
        %v7189 = vpack.c.b16 %v6837, %v6829
        %v7190 = vpack.c.b16 %v6838, %v6830
        %v7191 = vpack.c.b16 %v6847, %v6839
        %v7192 = vpack.c.b16 %v6848, %v6840
        %v7193 = vpack.c.b16 %v6849, %v6841
        %v7194 = vpack.c.b16 %v6850, %v6842
        %v7195 = vpack.c.b16 %v6851, %v6843
        %v7196 = vpack.c.b16 %v6852, %v6844
        %v7197 = vpack.c.b16 %v6853, %v6845
        %v7198 = vpack.c.b16 %v6854, %v6846
        %v7199 = vpack.c.b16 %v6863, %v6855
        %v7200 = vpack.c.b16 %v6864, %v6856
        %v7201 = vpack.c.b16 %v6865, %v6857
        %v7202 = vpack.c.b16 %v6866, %v6858
        %v7203 = vpack.c.b16 %v6867, %v6859
        %v7204 = vpack.c.b16 %v6868, %v6860
        %v7205 = vpack.c.b16 %v6869, %v6861
        %v7206 = vpack.c.b16 %v6870, %v6862
        %v7207 = vpack.c.b16 %v6879, %v6871
        %v7208 = vpack.c.b16 %v6880, %v6872
        %v7209 = vpack.c.b16 %v6881, %v6873
        %v7210 = vpack.c.b16 %v6882, %v6874
        %v7211 = vpack.c.b16 %v6883, %v6875
        %v7212 = vpack.c.b16 %v6884, %v6876
        %v7213 = vpack.c.b16 %v6885, %v6877
        %v7214 = vpack.c.b16 %v6886, %v6878
        %v7215 = vpack.c.b16 %v6895, %v6887
        %v7216 = vpack.c.b16 %v6896, %v6888
        %v7217 = vpack.c.b16 %v6897, %v6889
        %v7218 = vpack.c.b16 %v6898, %v6890
        %v7219 = vpack.c.b16 %v6899, %v6891
        %v7220 = vpack.c.b16 %v6900, %v6892
        %v7221 = vpack.c.b16 %v6901, %v6893
        %v7222 = vpack.c.b16 %v6902, %v6894
        %v7223 = vpack.c.b16 %v6911, %v6903
        %v7224 = vpack.c.b16 %v6912, %v6904
        %v7225 = vpack.c.b16 %v6913, %v6905
        %v7226 = vpack.c.b16 %v6914, %v6906
        %v7227 = vpack.c.b16 %v6915, %v6907
        %v7228 = vpack.c.b16 %v6916, %v6908
        %v7229 = vpack.c.b16 %v6917, %v6909
        %v7230 = vpack.c.b16 %v6918, %v6910
        %v7231 = vpack.c.b16 %v6927, %v6919
        %v7232 = vpack.c.b16 %v6928, %v6920
        %v7233 = vpack.c.b16 %v6929, %v6921
        %v7234 = vpack.c.b16 %v6930, %v6922
        %v7235 = vpack.c.b16 %v6931, %v6923
        %v7236 = vpack.c.b16 %v6932, %v6924
        %v7237 = vpack.c.b16 %v6933, %v6925
        %v7238 = vpack.c.b16 %v6934, %v6926
        %v7239 = vpack.c.b16 %v6943, %v6935
        %v7240 = vpack.c.b16 %v6944, %v6936
        %v7241 = vpack.c.b16 %v6945, %v6937
        %v7242 = vpack.c.b16 %v6946, %v6938
        %v7243 = vpack.c.b16 %v6947, %v6939
        %v7244 = vpack.c.b16 %v6948, %v6940
        %v7245 = vpack.c.b16 %v6949, %v6941
        %v7246 = vpack.c.b16 %v6950, %v6942
        %v7247 = vpack.c.b16 %v6959, %v6951
        %v7248 = vpack.c.b16 %v6960, %v6952
        %v7249 = vpack.c.b16 %v6961, %v6953
        %v7250 = vpack.c.b16 %v6962, %v6954
        %v7251 = vpack.c.b16 %v6963, %v6955
        %v7252 = vpack.c.b16 %v6964, %v6956
        %v7253 = vpack.c.b16 %v6965, %v6957
        %v7254 = vpack.c.b16 %v6966, %v6958
        %v7255 = vpack.c.b16 %v6975, %v6967
        %v7256 = vpack.c.b16 %v6976, %v6968
        %v7257 = vpack.c.b16 %v6977, %v6969
        %v7258 = vpack.c.b16 %v6978, %v6970
        %v7259 = vpack.c.b16 %v6979, %v6971
        %v7260 = vpack.c.b16 %v6980, %v6972
        %v7261 = vpack.c.b16 %v6981, %v6973
        %v7262 = vpack.c.b16 %v6982, %v6974
        %v7263 = vpack.c.b16 %v6991, %v6983
        %v7264 = vpack.c.b16 %v6992, %v6984
        %v7265 = vpack.c.b16 %v6993, %v6985
        %v7266 = vpack.c.b16 %v6994, %v6986
        %v7267 = vpack.c.b16 %v6995, %v6987
        %v7268 = vpack.c.b16 %v6996, %v6988
        %v7269 = vpack.c.b16 %v6997, %v6989
        %v7270 = vpack.c.b16 %v6998, %v6990
        %v7271 = vpack.c.b16 %v7007, %v6999
        %v7272 = vpack.c.b16 %v7008, %v7000
        %v7273 = vpack.c.b16 %v7009, %v7001
        %v7274 = vpack.c.b16 %v7010, %v7002
        %v7275 = vpack.c.b16 %v7011, %v7003
        %v7276 = vpack.c.b16 %v7012, %v7004
        %v7277 = vpack.c.b16 %v7013, %v7005
        %v7278 = vpack.c.b16 %v7014, %v7006
        %v7279 = vpack.c.b16 %v7023, %v7015
        %v7280 = vpack.c.b16 %v7024, %v7016
        %v7281 = vpack.c.b16 %v7025, %v7017
        %v7282 = vpack.c.b16 %v7026, %v7018
        %v7283 = vpack.c.b16 %v7027, %v7019
        %v7284 = vpack.c.b16 %v7028, %v7020
        %v7285 = vpack.c.b16 %v7029, %v7021
        %v7286 = vpack.c.b16 %v7030, %v7022
        %7543 = vmatprep.subr.bf16.mxu0 %v7032
        %7544 = vmatpush1.bf16.msra.mxu0 %v7031
        %7545 = vmatprep.subr.bf16.mxu0 %v7040
        %7546 = vmatpush1.bf16.msra.mxu0 %v7039
        %7547 = vmatprep.subr.bf16.mxu0 %v7048
        %7548 = vmatpush1.bf16.msra.mxu0 %v7047
        %7549 = vmatprep.subr.bf16.mxu0 %v7056
        %7550 = vmatpush1.bf16.msra.mxu0 %v7055
        %7551 = vmatprep.subr.bf16.mxu0 %v7064
        %7552 = vmatpush1.bf16.msra.mxu0 %v7063
        %7553 = vmatprep.subr.bf16.mxu0 %v7072
        %7554 = vmatpush1.bf16.msra.mxu0 %v7071
        %7555 = vmatprep.subr.bf16.mxu0 %v7080
        %7556 = vmatpush1.bf16.msra.mxu0 %v7079
        %7557 = vmatprep.subr.bf16.mxu0 %v7088
        %7558 = vmatpush1.bf16.msra.mxu0 %v7087
        %7559 = vmatprep.subr.bf16.mxu0 %v7096
        %7560 = vmatpush1.bf16.msra.mxu0 %v7095
        %7561 = vmatprep.subr.bf16.mxu0 %v7104
        %7562 = vmatpush1.bf16.msra.mxu0 %v7103
        %7563 = vmatprep.subr.bf16.mxu0 %v7112
        %7564 = vmatpush1.bf16.msra.mxu0 %v7111
        %7565 = vmatprep.subr.bf16.mxu0 %v7120
        %7566 = vmatpush1.bf16.msra.mxu0 %v7119
        %7567 = vmatprep.subr.bf16.mxu0 %v7128
        %7568 = vmatpush1.bf16.msra.mxu0 %v7127
        %7569 = vmatprep.subr.bf16.mxu0 %v7136
        %7570 = vmatpush1.bf16.msra.mxu0 %v7135
        %7571 = vmatprep.subr.bf16.mxu0 %v7144
        %7572 = vmatpush1.bf16.msra.mxu0 %v7143
        %7573 = vmatprep.subr.bf16.mxu0 %v7152
        %7574 = vmatpush1.bf16.msra.mxu0 %v7151
        %7575 = vmatprep.mubr.bf16.mxu0 %v5958
        %7576 = vmatmul.mubr.bf16.gmra.mrb[0].mxu0 %v5957
        %v7577 = vpop.f32.mrb[0].mxu0
        %v7578 = vadd.f32 %v6226, %v7577
        %v7579 = vpop.f32.mrb[0].mxu0
        %v7580 = vadd.f32 %v6230, %v7579
        %v7581 = vpop.f32.mrb[0].mxu0
        %v7582 = vadd.f32 %v6226, %v7581
        %v7583 = vpop.f32.mrb[0].mxu0
        %v7584 = vadd.f32 %v6230, %v7583
        %7585 = vmatprep.mubr.bf16.mxu0 %v5962
        %7586 = vmatmul.mubr.bf16.gmra.mrb[0].mxu0 %v5961
        %v7587 = vpop.f32.mrb[0].mxu0
        %v7588 = vadd.f32 %v6226, %v7587
        %v7589 = vpop.f32.mrb[0].mxu0
        %v7590 = vadd.f32 %v6230, %v7589
        %v7591 = vpop.f32.mrb[0].mxu0
        %v7592 = vadd.f32 %v6226, %v7591
        %v7593 = vpop.f32.mrb[0].mxu0
        %v7594 = vadd.f32 %v6230, %v7593
        %7595 = vdwg.mxu0
        %7596 = vmatprep.subr.bf16.mxu0 %v7160
        %7597 = vmatpush1.bf16.msra.mxu0 %v7159
        %7598 = vmatprep.subr.bf16.mxu0 %v7168
        %7599 = vmatpush1.bf16.msra.mxu0 %v7167
        %7600 = vmatprep.subr.bf16.mxu0 %v7176
        %7601 = vmatpush1.bf16.msra.mxu0 %v7175
        %7602 = vmatprep.subr.bf16.mxu0 %v7184
        %7603 = vmatpush1.bf16.msra.mxu0 %v7183
        %7604 = vmatprep.subr.bf16.mxu0 %v7192
        %7605 = vmatpush1.bf16.msra.mxu0 %v7191
        %7606 = vmatprep.subr.bf16.mxu0 %v7200
        %7607 = vmatpush1.bf16.msra.mxu0 %v7199
        %7608 = vmatprep.subr.bf16.mxu0 %v7208
        %7609 = vmatpush1.bf16.msra.mxu0 %v7207
        %7610 = vmatprep.subr.bf16.mxu0 %v7216
        %7611 = vmatpush1.bf16.msra.mxu0 %v7215
        %7612 = vmatprep.subr.bf16.mxu0 %v7224
        %7613 = vmatpush1.bf16.msra.mxu0 %v7223
        %7614 = vmatprep.subr.bf16.mxu0 %v7232
        %7615 = vmatpush1.bf16.msra.mxu0 %v7231
        %7616 = vmatprep.subr.bf16.mxu0 %v7240
        %7617 = vmatpush1.bf16.msra.mxu0 %v7239
        %7618 = vmatprep.subr.bf16.mxu0 %v7248
        %7619 = vmatpush1.bf16.msra.mxu0 %v7247
        %7620 = vmatprep.subr.bf16.mxu0 %v7256
        %7621 = vmatpush1.bf16.msra.mxu0 %v7255
        %7622 = vmatprep.subr.bf16.mxu0 %v7264
        %7623 = vmatpush1.bf16.msra.mxu0 %v7263
        %7624 = vmatprep.subr.bf16.mxu0 %v7272
        %7625 = vmatpush1.bf16.msra.mxu0 %v7271
        %7626 = vmatprep.subr.bf16.mxu0 %v7280
        %7627 = vmatpush1.bf16.msra.mxu0 %v7279
        %7628 = vmatprep.mubr.bf16.mxu0 %v5960
        %7629 = vmatmul.mubr.bf16.gmra.mrb[0].mxu0 %v5959
        %v7630 = vpop.f32.mrb[0].mxu0
        %v7631 = vadd.f32 %v7578, %v7630
        %v7632 = vpop.f32.mrb[0].mxu0
        %v7633 = vadd.f32 %v7580, %v7632
        %v7634 = vpop.f32.mrb[0].mxu0
        %v7635 = vadd.f32 %v7582, %v7634
        %v7636 = vpop.f32.mrb[0].mxu0
        %v7637 = vadd.f32 %v7584, %v7636
        %7638 = vmatprep.mubr.bf16.mxu0 %v5964
        %7639 = vmatmul.mubr.bf16.gmra.mrb[0].mxu0 %v5963
        %v7640 = vpop.f32.mrb[0].mxu0
        %v7641 = vadd.f32 %v7588, %v7640
        %v7642 = vpop.f32.mrb[0].mxu0
        %v7643 = vadd.f32 %v7590, %v7642
        %v7644 = vpop.f32.mrb[0].mxu0
        %v7645 = vadd.f32 %v7592, %v7644
        %v7646 = vpop.f32.mrb[0].mxu0
        %v7647 = vadd.f32 %v7594, %v7646
        %7648 = vdwg.mxu0
        %7649 = vmatprep.subr.bf16.mxu0 %v7034
        %7650 = vmatpush1.bf16.msra.mxu0 %v7033
        %7651 = vmatprep.subr.bf16.mxu0 %v7042
        %7652 = vmatpush1.bf16.msra.mxu0 %v7041
        %7653 = vmatprep.subr.bf16.mxu0 %v7050
        %7654 = vmatpush1.bf16.msra.mxu0 %v7049
        %7655 = vmatprep.subr.bf16.mxu0 %v7058
        %7656 = vmatpush1.bf16.msra.mxu0 %v7057
        %7657 = vmatprep.subr.bf16.mxu0 %v7066
        %7658 = vmatpush1.bf16.msra.mxu0 %v7065
        %7659 = vmatprep.subr.bf16.mxu0 %v7074
        %7660 = vmatpush1.bf16.msra.mxu0 %v7073
        %7661 = vmatprep.subr.bf16.mxu0 %v7082
        %7662 = vmatpush1.bf16.msra.mxu0 %v7081
        %7663 = vmatprep.subr.bf16.mxu0 %v7090
        %7664 = vmatpush1.bf16.msra.mxu0 %v7089
        %7665 = vmatprep.subr.bf16.mxu0 %v7098
        %7666 = vmatpush1.bf16.msra.mxu0 %v7097
        %7667 = vmatprep.subr.bf16.mxu0 %v7106
        %7668 = vmatpush1.bf16.msra.mxu0 %v7105
        %7669 = vmatprep.subr.bf16.mxu0 %v7114
        %7670 = vmatpush1.bf16.msra.mxu0 %v7113
        %7671 = vmatprep.subr.bf16.mxu0 %v7122
        %7672 = vmatpush1.bf16.msra.mxu0 %v7121
        %7673 = vmatprep.subr.bf16.mxu0 %v7130
        %7674 = vmatpush1.bf16.msra.mxu0 %v7129
        %7675 = vmatprep.subr.bf16.mxu0 %v7138
        %7676 = vmatpush1.bf16.msra.mxu0 %v7137
        %7677 = vmatprep.subr.bf16.mxu0 %v7146
        %7678 = vmatpush1.bf16.msra.mxu0 %v7145
        %7679 = vmatprep.subr.bf16.mxu0 %v7154
        %7680 = vmatpush1.bf16.msra.mxu0 %v7153
        %7681 = vmatprep.mubr.bf16.mxu0 %v5958
        %7682 = vmatmul.mubr.bf16.gmra.mrb[0].mxu0 %v5957
        %v7683 = vpop.f32.mrb[0].mxu0
        %v7684 = vadd.f32 %v6234, %v7683
        %v7685 = vpop.f32.mrb[0].mxu0
        %v7686 = vadd.f32 %v6238, %v7685
        %v7687 = vpop.f32.mrb[0].mxu0
        %v7688 = vadd.f32 %v6234, %v7687
        %v7689 = vpop.f32.mrb[0].mxu0
        %v7690 = vadd.f32 %v6238, %v7689
        %7691 = vmatprep.mubr.bf16.mxu0 %v5962
        %7692 = vmatmul.mubr.bf16.gmra.mrb[0].mxu0 %v5961
        %v7693 = vpop.f32.mrb[0].mxu0
        %v7694 = vadd.f32 %v6234, %v7693
        %v7695 = vpop.f32.mrb[0].mxu0
        %v7696 = vadd.f32 %v6238, %v7695
        %v7697 = vpop.f32.mrb[0].mxu0
        %v7698 = vadd.f32 %v6234, %v7697
        %v7699 = vpop.f32.mrb[0].mxu0
        %v7700 = vadd.f32 %v6238, %v7699
        %7701 = vdwg.mxu0
        %7702 = vmatprep.subr.bf16.mxu0 %v7162
        %7703 = vmatpush1.bf16.msra.mxu0 %v7161
        %7704 = vmatprep.subr.bf16.mxu0 %v7170
        %7705 = vmatpush1.bf16.msra.mxu0 %v7169
        %7706 = vmatprep.subr.bf16.mxu0 %v7178
        %7707 = vmatpush1.bf16.msra.mxu0 %v7177
        %7708 = vmatprep.subr.bf16.mxu0 %v7186
        %7709 = vmatpush1.bf16.msra.mxu0 %v7185
        %7710 = vmatprep.subr.bf16.mxu0 %v7194
        %7711 = vmatpush1.bf16.msra.mxu0 %v7193
        %7712 = vmatprep.subr.bf16.mxu0 %v7202
        %7713 = vmatpush1.bf16.msra.mxu0 %v7201
        %7714 = vmatprep.subr.bf16.mxu0 %v7210
        %7715 = vmatpush1.bf16.msra.mxu0 %v7209
        %7716 = vmatprep.subr.bf16.mxu0 %v7218
        %7717 = vmatpush1.bf16.msra.mxu0 %v7217
        %7718 = vmatprep.subr.bf16.mxu0 %v7226
        %7719 = vmatpush1.bf16.msra.mxu0 %v7225
        %7720 = vmatprep.subr.bf16.mxu0 %v7234
        %7721 = vmatpush1.bf16.msra.mxu0 %v7233
        %7722 = vmatprep.subr.bf16.mxu0 %v7242
        %7723 = vmatpush1.bf16.msra.mxu0 %v7241
        %7724 = vmatprep.subr.bf16.mxu0 %v7250
        %7725 = vmatpush1.bf16.msra.mxu0 %v7249
        %7726 = vmatprep.subr.bf16.mxu0 %v7258
        %7727 = vmatpush1.bf16.msra.mxu0 %v7257
        %7728 = vmatprep.subr.bf16.mxu0 %v7266
        %7729 = vmatpush1.bf16.msra.mxu0 %v7265
        %7730 = vmatprep.subr.bf16.mxu0 %v7274
        %7731 = vmatpush1.bf16.msra.mxu0 %v7273
        %7732 = vmatprep.subr.bf16.mxu0 %v7282
        %7733 = vmatpush1.bf16.msra.mxu0 %v7281
        %7734 = vmatprep.mubr.bf16.mxu0 %v5960
        %7735 = vmatmul.mubr.bf16.gmra.mrb[0].mxu0 %v5959
        %v7736 = vpop.f32.mrb[0].mxu0
        %v7737 = vadd.f32 %v7684, %v7736
        %v7738 = vpop.f32.mrb[0].mxu0
        %v7739 = vadd.f32 %v7686, %v7738
        %v7740 = vpop.f32.mrb[0].mxu0
        %v7741 = vadd.f32 %v7688, %v7740
        %v7742 = vpop.f32.mrb[0].mxu0
        %v7743 = vadd.f32 %v7690, %v7742
        %7744 = vmatprep.mubr.bf16.mxu0 %v5964
        %7745 = vmatmul.mubr.bf16.gmra.mrb[0].mxu0 %v5963
        %v7746 = vpop.f32.mrb[0].mxu0
        %v7747 = vadd.f32 %v7694, %v7746
        %v7748 = vpop.f32.mrb[0].mxu0
        %v7749 = vadd.f32 %v7696, %v7748
        %v7750 = vpop.f32.mrb[0].mxu0
        %v7751 = vadd.f32 %v7698, %v7750
        %v7752 = vpop.f32.mrb[0].mxu0
        %v7753 = vadd.f32 %v7700, %v7752
        %7754 = vdwg.mxu0
        %7755 = vmatprep.subr.bf16.mxu0 %v7036
        %7756 = vmatpush1.bf16.msra.mxu0 %v7035
        %7757 = vmatprep.subr.bf16.mxu0 %v7044
        %7758 = vmatpush1.bf16.msra.mxu0 %v7043
        %7759 = vmatprep.subr.bf16.mxu0 %v7052
        %7760 = vmatpush1.bf16.msra.mxu0 %v7051
        %7761 = vmatprep.subr.bf16.mxu0 %v7060
        %7762 = vmatpush1.bf16.msra.mxu0 %v7059
        %7763 = vmatprep.subr.bf16.mxu0 %v7068
        %7764 = vmatpush1.bf16.msra.mxu0 %v7067
        %7765 = vmatprep.subr.bf16.mxu0 %v7076
        %7766 = vmatpush1.bf16.msra.mxu0 %v7075
        %7767 = vmatprep.subr.bf16.mxu0 %v7084
        %7768 = vmatpush1.bf16.msra.mxu0 %v7083
        %7769 = vmatprep.subr.bf16.mxu0 %v7092
        %7770 = vmatpush1.bf16.msra.mxu0 %v7091
        %7771 = vmatprep.subr.bf16.mxu0 %v7100
        %7772 = vmatpush1.bf16.msra.mxu0 %v7099
        %7773 = vmatprep.subr.bf16.mxu0 %v7108
        %7774 = vmatpush1.bf16.msra.mxu0 %v7107
        %7775 = vmatprep.subr.bf16.mxu0 %v7116
        %7776 = vmatpush1.bf16.msra.mxu0 %v7115
        %7777 = vmatprep.subr.bf16.mxu0 %v7124
        %7778 = vmatpush1.bf16.msra.mxu0 %v7123
        %7779 = vmatprep.subr.bf16.mxu0 %v7132
        %7780 = vmatpush1.bf16.msra.mxu0 %v7131
        %7781 = vmatprep.subr.bf16.mxu0 %v7140
        %7782 = vmatpush1.bf16.msra.mxu0 %v7139
        %7783 = vmatprep.subr.bf16.mxu0 %v7148
        %7784 = vmatpush1.bf16.msra.mxu0 %v7147
        %7785 = vmatprep.subr.bf16.mxu0 %v7156
        %7786 = vmatpush1.bf16.msra.mxu0 %v7155
        %7787 = vmatprep.mubr.bf16.mxu0 %v5958
        %7788 = vmatmul.mubr.bf16.gmra.mrb[0].mxu0 %v5957
        %v7789 = vpop.f32.mrb[0].mxu0
        %v7790 = vadd.f32 %v6242, %v7789
        %v7791 = vpop.f32.mrb[0].mxu0
        %v7792 = vadd.f32 %v6246, %v7791
        %v7793 = vpop.f32.mrb[0].mxu0
        %v7794 = vadd.f32 %v6242, %v7793
        %v7795 = vpop.f32.mrb[0].mxu0
        %v7796 = vadd.f32 %v6246, %v7795
        %7797 = vmatprep.mubr.bf16.mxu0 %v5962
        %7798 = vmatmul.mubr.bf16.gmra.mrb[0].mxu0 %v5961
        %v7799 = vpop.f32.mrb[0].mxu0
        %v7800 = vadd.f32 %v6242, %v7799
        %v7801 = vpop.f32.mrb[0].mxu0
        %v7802 = vadd.f32 %v6246, %v7801
        %v7803 = vpop.f32.mrb[0].mxu0
        %v7804 = vadd.f32 %v6242, %v7803
        %v7805 = vpop.f32.mrb[0].mxu0
        %v7806 = vadd.f32 %v6246, %v7805
        %7807 = vdwg.mxu0
        %7808 = vmatprep.subr.bf16.mxu0 %v7164
        %7809 = vmatpush1.bf16.msra.mxu0 %v7163
        %7810 = vmatprep.subr.bf16.mxu0 %v7172
        %7811 = vmatpush1.bf16.msra.mxu0 %v7171
        %7812 = vmatprep.subr.bf16.mxu0 %v7180
        %7813 = vmatpush1.bf16.msra.mxu0 %v7179
        %7814 = vmatprep.subr.bf16.mxu0 %v7188
        %7815 = vmatpush1.bf16.msra.mxu0 %v7187
        %7816 = vmatprep.subr.bf16.mxu0 %v7196
        %7817 = vmatpush1.bf16.msra.mxu0 %v7195
        %7818 = vmatprep.subr.bf16.mxu0 %v7204
        %7819 = vmatpush1.bf16.msra.mxu0 %v7203
        %7820 = vmatprep.subr.bf16.mxu0 %v7212
        %7821 = vmatpush1.bf16.msra.mxu0 %v7211
        %7822 = vmatprep.subr.bf16.mxu0 %v7220
        %7823 = vmatpush1.bf16.msra.mxu0 %v7219
        %7824 = vmatprep.subr.bf16.mxu0 %v7228
        %7825 = vmatpush1.bf16.msra.mxu0 %v7227
        %7826 = vmatprep.subr.bf16.mxu0 %v7236
        %7827 = vmatpush1.bf16.msra.mxu0 %v7235
        %7828 = vmatprep.subr.bf16.mxu0 %v7244
        %7829 = vmatpush1.bf16.msra.mxu0 %v7243
        %7830 = vmatprep.subr.bf16.mxu0 %v7252
        %7831 = vmatpush1.bf16.msra.mxu0 %v7251
        %7832 = vmatprep.subr.bf16.mxu0 %v7260
        %7833 = vmatpush1.bf16.msra.mxu0 %v7259
        %7834 = vmatprep.subr.bf16.mxu0 %v7268
        %7835 = vmatpush1.bf16.msra.mxu0 %v7267
        %7836 = vmatprep.subr.bf16.mxu0 %v7276
        %7837 = vmatpush1.bf16.msra.mxu0 %v7275
        %7838 = vmatprep.subr.bf16.mxu0 %v7284
        %7839 = vmatpush1.bf16.msra.mxu0 %v7283
        %7840 = vmatprep.mubr.bf16.mxu0 %v5960
        %7841 = vmatmul.mubr.bf16.gmra.mrb[0].mxu0 %v5959
        %v7842 = vpop.f32.mrb[0].mxu0
        %v7843 = vadd.f32 %v7790, %v7842
        %v7844 = vpop.f32.mrb[0].mxu0
        %v7845 = vadd.f32 %v7792, %v7844
        %v7846 = vpop.f32.mrb[0].mxu0
        %v7847 = vadd.f32 %v7794, %v7846
        %v7848 = vpop.f32.mrb[0].mxu0
        %v7849 = vadd.f32 %v7796, %v7848
        %7850 = vmatprep.mubr.bf16.mxu0 %v5964
        %7851 = vmatmul.mubr.bf16.gmra.mrb[0].mxu0 %v5963
        %v7852 = vpop.f32.mrb[0].mxu0
        %v7853 = vadd.f32 %v7800, %v7852
        %v7854 = vpop.f32.mrb[0].mxu0
        %v7855 = vadd.f32 %v7802, %v7854
        %v7856 = vpop.f32.mrb[0].mxu0
        %v7857 = vadd.f32 %v7804, %v7856
        %v7858 = vpop.f32.mrb[0].mxu0
        %v7859 = vadd.f32 %v7806, %v7858
        %7860 = vdwg.mxu0
        %7861 = vmatprep.subr.bf16.mxu0 %v7038
        %7862 = vmatpush1.bf16.msra.mxu0 %v7037
        %7863 = vmatprep.subr.bf16.mxu0 %v7046
        %7864 = vmatpush1.bf16.msra.mxu0 %v7045
        %7865 = vmatprep.subr.bf16.mxu0 %v7054
        %7866 = vmatpush1.bf16.msra.mxu0 %v7053
        %7867 = vmatprep.subr.bf16.mxu0 %v7062
        %7868 = vmatpush1.bf16.msra.mxu0 %v7061
        %7869 = vmatprep.subr.bf16.mxu0 %v7070
        %7870 = vmatpush1.bf16.msra.mxu0 %v7069
        %7871 = vmatprep.subr.bf16.mxu0 %v7078
        %7872 = vmatpush1.bf16.msra.mxu0 %v7077
        %7873 = vmatprep.subr.bf16.mxu0 %v7086
        %7874 = vmatpush1.bf16.msra.mxu0 %v7085
        %7875 = vmatprep.subr.bf16.mxu0 %v7094
        %7876 = vmatpush1.bf16.msra.mxu0 %v7093
        %7877 = vmatprep.subr.bf16.mxu0 %v7102
        %7878 = vmatpush1.bf16.msra.mxu0 %v7101
        %7879 = vmatprep.subr.bf16.mxu0 %v7110
        %7880 = vmatpush1.bf16.msra.mxu0 %v7109
        %7881 = vmatprep.subr.bf16.mxu0 %v7118
        %7882 = vmatpush1.bf16.msra.mxu0 %v7117
        %7883 = vmatprep.subr.bf16.mxu0 %v7126
        %7884 = vmatpush1.bf16.msra.mxu0 %v7125
        %7885 = vmatprep.subr.bf16.mxu0 %v7134
        %7886 = vmatpush1.bf16.msra.mxu0 %v7133
        %7887 = vmatprep.subr.bf16.mxu0 %v7142
        %7888 = vmatpush1.bf16.msra.mxu0 %v7141
        %7889 = vmatprep.subr.bf16.mxu0 %v7150
        %7890 = vmatpush1.bf16.msra.mxu0 %v7149
        %7891 = vmatprep.subr.bf16.mxu0 %v7158
        %7892 = vmatpush1.bf16.msra.mxu0 %v7157
        %7893 = vmatprep.mubr.bf16.mxu0 %v5958
        %7894 = vmatmul.mubr.bf16.gmra.mrb[0].mxu0 %v5957
        %v7895 = vpop.f32.mrb[0].mxu0
        %v7896 = vadd.f32 %v6250, %v7895
        %v7897 = vpop.f32.mrb[0].mxu0
        %v7898 = vadd.f32 %v6254, %v7897
        %v7899 = vpop.f32.mrb[0].mxu0
        %v7900 = vadd.f32 %v6250, %v7899
        %v7901 = vpop.f32.mrb[0].mxu0
        %v7902 = vadd.f32 %v6254, %v7901
        %7903 = vmatprep.mubr.bf16.mxu0 %v5962
        %7904 = vmatmul.mubr.bf16.gmra.mrb[0].mxu0 %v5961
        %v7905 = vpop.f32.mrb[0].mxu0
        %v7906 = vadd.f32 %v6250, %v7905
        %v7907 = vpop.f32.mrb[0].mxu0
        %v7908 = vadd.f32 %v6254, %v7907
        %v7909 = vpop.f32.mrb[0].mxu0
        %v7910 = vadd.f32 %v6250, %v7909
        %v7911 = vpop.f32.mrb[0].mxu0
        %v7912 = vadd.f32 %v6254, %v7911
        %7913 = vdwg.mxu0
        %7914 = vmatprep.subr.bf16.mxu0 %v7166
        %7915 = vmatpush1.bf16.msra.mxu0 %v7165
        %7916 = vmatprep.subr.bf16.mxu0 %v7174
        %7917 = vmatpush1.bf16.msra.mxu0 %v7173
        %7918 = vmatprep.subr.bf16.mxu0 %v7182
        %7919 = vmatpush1.bf16.msra.mxu0 %v7181
        %7920 = vmatprep.subr.bf16.mxu0 %v7190
        %7921 = vmatpush1.bf16.msra.mxu0 %v7189
        %7922 = vmatprep.subr.bf16.mxu0 %v7198
        %7923 = vmatpush1.bf16.msra.mxu0 %v7197
        %7924 = vmatprep.subr.bf16.mxu0 %v7206
        %7925 = vmatpush1.bf16.msra.mxu0 %v7205
        %7926 = vmatprep.subr.bf16.mxu0 %v7214
        %7927 = vmatpush1.bf16.msra.mxu0 %v7213
        %7928 = vmatprep.subr.bf16.mxu0 %v7222
        %7929 = vmatpush1.bf16.msra.mxu0 %v7221
        %7930 = vmatprep.subr.bf16.mxu0 %v7230
        %7931 = vmatpush1.bf16.msra.mxu0 %v7229
        %7932 = vmatprep.subr.bf16.mxu0 %v7238
        %7933 = vmatpush1.bf16.msra.mxu0 %v7237
        %7934 = vmatprep.subr.bf16.mxu0 %v7246
        %7935 = vmatpush1.bf16.msra.mxu0 %v7245
        %7936 = vmatprep.subr.bf16.mxu0 %v7254
        %7937 = vmatpush1.bf16.msra.mxu0 %v7253
        %7938 = vmatprep.subr.bf16.mxu0 %v7262
        %7939 = vmatpush1.bf16.msra.mxu0 %v7261
        %7940 = vmatprep.subr.bf16.mxu0 %v7270
        %7941 = vmatpush1.bf16.msra.mxu0 %v7269
        %7942 = vmatprep.subr.bf16.mxu0 %v7278
        %7943 = vmatpush1.bf16.msra.mxu0 %v7277
        %7944 = vmatprep.subr.bf16.mxu0 %v7286
        %7945 = vmatpush1.bf16.msra.mxu0 %v7285
        %7946 = vmatprep.mubr.bf16.mxu0 %v5960
        %7947 = vmatmul.mubr.bf16.gmra.mrb[0].mxu0 %v5959
        %v7948 = vpop.f32.mrb[0].mxu0
        %v7949 = vadd.f32 %v7896, %v7948
        %v7950 = vpop.f32.mrb[0].mxu0
        %v7951 = vadd.f32 %v7898, %v7950
        %v7952 = vpop.f32.mrb[0].mxu0
        %v7953 = vadd.f32 %v7900, %v7952
        %v7954 = vpop.f32.mrb[0].mxu0
        %v7955 = vadd.f32 %v7902, %v7954
        %7956 = vmatprep.mubr.bf16.mxu0 %v5964
        %7957 = vmatmul.mubr.bf16.gmra.mrb[0].mxu0 %v5963
        %v7958 = vpop.f32.mrb[0].mxu0
        %v7959 = vadd.f32 %v7906, %v7958
        %v7960 = vpop.f32.mrb[0].mxu0
        %v7961 = vadd.f32 %v7908, %v7960
        %v7962 = vpop.f32.mrb[0].mxu0
        %v7963 = vadd.f32 %v7910, %v7962
        %v7964 = vpop.f32.mrb[0].mxu0
        %v7965 = vadd.f32 %v7912, %v7964
        %7966 = vdwg.mxu0
        %v7967 = vmul.f32 %v7631, 0.5
        %v7968 = vmul.f32 %v7633, 0.5
        %v7969 = vmul.f32 %v7737, 0.5
        %v7970 = vmul.f32 %v7739, 0.5
        %v7971 = vmul.f32 %v7843, 0.5
        %v7972 = vmul.f32 %v7845, 0.5
        %v7973 = vmul.f32 %v7949, 0.5
        %v7974 = vmul.f32 %v7951, 0.5
        %v7975 = vmul.f32 %v7635, 0.5
        %v7976 = vmul.f32 %v7637, 0.5
        %v7977 = vmul.f32 %v7741, 0.5
        %v7978 = vmul.f32 %v7743, 0.5
        %v7979 = vmul.f32 %v7847, 0.5
        %v7980 = vmul.f32 %v7849, 0.5
        %v7981 = vmul.f32 %v7953, 0.5
        %v7982 = vmul.f32 %v7955, 0.5
        %v7983 = vmul.f32 %v7641, 0.5
        %v7984 = vmul.f32 %v7643, 0.5
        %v7985 = vmul.f32 %v7747, 0.5
        %v7986 = vmul.f32 %v7749, 0.5
        %v7987 = vmul.f32 %v7853, 0.5
        %v7988 = vmul.f32 %v7855, 0.5
        %v7989 = vmul.f32 %v7959, 0.5
        %v7990 = vmul.f32 %v7961, 0.5
        %v7991 = vmul.f32 %v7645, 0.5
        %v7992 = vmul.f32 %v7647, 0.5
        %v7993 = vmul.f32 %v7751, 0.5
        %v7994 = vmul.f32 %v7753, 0.5
        %v7995 = vmul.f32 %v7857, 0.5
        %v7996 = vmul.f32 %v7859, 0.5
        %v7997 = vmul.f32 %v7963, 0.5
        %v7998 = vmul.f32 %v7965, 0.5
        %v7999 = vmul.f32 %v7631, 0.044715
        %v8000 = vmul.f32 %v7633, 0.044715
        %v8001 = vmul.f32 %v7737, 0.044715
        %v8002 = vmul.f32 %v7739, 0.044715
        %v8003 = vmul.f32 %v7843, 0.044715
        %v8004 = vmul.f32 %v7845, 0.044715
        %v8005 = vmul.f32 %v7949, 0.044715
        %v8006 = vmul.f32 %v7951, 0.044715
        %v8007 = vmul.f32 %v7635, 0.044715
        %v8008 = vmul.f32 %v7637, 0.044715
        %v8009 = vmul.f32 %v7741, 0.044715
        %v8010 = vmul.f32 %v7743, 0.044715
        %v8011 = vmul.f32 %v7847, 0.044715
        %v8012 = vmul.f32 %v7849, 0.044715
        %v8013 = vmul.f32 %v7953, 0.044715
        %v8014 = vmul.f32 %v7955, 0.044715
        %v8015 = vmul.f32 %v7641, 0.044715
        %v8016 = vmul.f32 %v7643, 0.044715
        %v8017 = vmul.f32 %v7747, 0.044715
        %v8018 = vmul.f32 %v7749, 0.044715
        %v8019 = vmul.f32 %v7853, 0.044715
        %v8020 = vmul.f32 %v7855, 0.044715
        %v8021 = vmul.f32 %v7959, 0.044715
        %v8022 = vmul.f32 %v7961, 0.044715
        %v8023 = vmul.f32 %v7645, 0.044715
        %v8024 = vmul.f32 %v7647, 0.044715
        %v8025 = vmul.f32 %v7751, 0.044715
        %v8026 = vmul.f32 %v7753, 0.044715
        %v8027 = vmul.f32 %v7857, 0.044715
        %v8028 = vmul.f32 %v7859, 0.044715
        %v8029 = vmul.f32 %v7963, 0.044715
        %v8030 = vmul.f32 %v7965, 0.044715
        %v8031 = vmul.f32 %v7999, %v7631
        %v8032 = vmul.f32 %v8000, %v7633
        %v8033 = vmul.f32 %v8001, %v7737
        %v8034 = vmul.f32 %v8002, %v7739
        %v8035 = vmul.f32 %v8003, %v7843
        %v8036 = vmul.f32 %v8004, %v7845
        %v8037 = vmul.f32 %v8005, %v7949
        %v8038 = vmul.f32 %v8006, %v7951
        %v8039 = vmul.f32 %v8007, %v7635
        %v8040 = vmul.f32 %v8008, %v7637
        %v8041 = vmul.f32 %v8009, %v7741
        %v8042 = vmul.f32 %v8010, %v7743
        %v8043 = vmul.f32 %v8011, %v7847
        %v8044 = vmul.f32 %v8012, %v7849
        %v8045 = vmul.f32 %v8013, %v7953
        %v8046 = vmul.f32 %v8014, %v7955
        %v8047 = vmul.f32 %v8015, %v7641
        %v8048 = vmul.f32 %v8016, %v7643
        %v8049 = vmul.f32 %v8017, %v7747
        %v8050 = vmul.f32 %v8018, %v7749
        %v8051 = vmul.f32 %v8019, %v7853
        %v8052 = vmul.f32 %v8020, %v7855
        %v8053 = vmul.f32 %v8021, %v7959
        %v8054 = vmul.f32 %v8022, %v7961
        %v8055 = vmul.f32 %v8023, %v7645
        %v8056 = vmul.f32 %v8024, %v7647
        %v8057 = vmul.f32 %v8025, %v7751
        %v8058 = vmul.f32 %v8026, %v7753
        %v8059 = vmul.f32 %v8027, %v7857
        %v8060 = vmul.f32 %v8028, %v7859
        %v8061 = vmul.f32 %v8029, %v7963
        %v8062 = vmul.f32 %v8030, %v7965
        %v8063 = vmul.f32 %v8031, %v7631
        %v8064 = vmul.f32 %v8032, %v7633
        %v8065 = vmul.f32 %v8033, %v7737
        %v8066 = vmul.f32 %v8034, %v7739
        %v8067 = vmul.f32 %v8035, %v7843
        %v8068 = vmul.f32 %v8036, %v7845
        %v8069 = vmul.f32 %v8037, %v7949
        %v8070 = vmul.f32 %v8038, %v7951
        %v8071 = vmul.f32 %v8039, %v7635
        %v8072 = vmul.f32 %v8040, %v7637
        %v8073 = vmul.f32 %v8041, %v7741
        %v8074 = vmul.f32 %v8042, %v7743
        %v8075 = vmul.f32 %v8043, %v7847
        %v8076 = vmul.f32 %v8044, %v7849
        %v8077 = vmul.f32 %v8045, %v7953
        %v8078 = vmul.f32 %v8046, %v7955
        %v8079 = vmul.f32 %v8047, %v7641
        %v8080 = vmul.f32 %v8048, %v7643
        %v8081 = vmul.f32 %v8049, %v7747
        %v8082 = vmul.f32 %v8050, %v7749
        %v8083 = vmul.f32 %v8051, %v7853
        %v8084 = vmul.f32 %v8052, %v7855
        %v8085 = vmul.f32 %v8053, %v7959
        %v8086 = vmul.f32 %v8054, %v7961
        %v8087 = vmul.f32 %v8055, %v7645
        %v8088 = vmul.f32 %v8056, %v7647
        %v8089 = vmul.f32 %v8057, %v7751
        %v8090 = vmul.f32 %v8058, %v7753
        %v8091 = vmul.f32 %v8059, %v7857
        %v8092 = vmul.f32 %v8060, %v7859
        %v8093 = vmul.f32 %v8061, %v7963
        %v8094 = vmul.f32 %v8062, %v7965
        %v8095 = vadd.f32 %v7631, %v8063
        %v8096 = vadd.f32 %v7633, %v8064
        %v8097 = vadd.f32 %v7737, %v8065
        %v8098 = vadd.f32 %v7739, %v8066
        %v8099 = vadd.f32 %v7843, %v8067
        %v8100 = vadd.f32 %v7845, %v8068
        %v8101 = vadd.f32 %v7949, %v8069
        %v8102 = vadd.f32 %v7951, %v8070
        %v8103 = vadd.f32 %v7635, %v8071
        %v8104 = vadd.f32 %v7637, %v8072
        %v8105 = vadd.f32 %v7741, %v8073
        %v8106 = vadd.f32 %v7743, %v8074
        %v8107 = vadd.f32 %v7847, %v8075
        %v8108 = vadd.f32 %v7849, %v8076
        %v8109 = vadd.f32 %v7953, %v8077
        %v8110 = vadd.f32 %v7955, %v8078
        %v8111 = vadd.f32 %v7641, %v8079
        %v8112 = vadd.f32 %v7643, %v8080
        %v8113 = vadd.f32 %v7747, %v8081
        %v8114 = vadd.f32 %v7749, %v8082
        %v8115 = vadd.f32 %v7853, %v8083
        %v8116 = vadd.f32 %v7855, %v8084
        %v8117 = vadd.f32 %v7959, %v8085
        %v8118 = vadd.f32 %v7961, %v8086
        %v8119 = vadd.f32 %v7645, %v8087
        %v8120 = vadd.f32 %v7647, %v8088
        %v8121 = vadd.f32 %v7751, %v8089
        %v8122 = vadd.f32 %v7753, %v8090
        %v8123 = vadd.f32 %v7857, %v8091
        %v8124 = vadd.f32 %v7859, %v8092
        %v8125 = vadd.f32 %v7963, %v8093
        %v8126 = vadd.f32 %v7965, %v8094
        %v8127 = vmul.f32 %v8095, 0.7978846
        %v8128 = vmul.f32 %v8096, 0.7978846
        %v8129 = vmul.f32 %v8097, 0.7978846
        %v8130 = vmul.f32 %v8098, 0.7978846
        %v8131 = vmul.f32 %v8099, 0.7978846
        %v8132 = vmul.f32 %v8100, 0.7978846
        %v8133 = vmul.f32 %v8101, 0.7978846
        %v8134 = vmul.f32 %v8102, 0.7978846
        %v8135 = vmul.f32 %v8103, 0.7978846
        %v8136 = vmul.f32 %v8104, 0.7978846
        %v8137 = vmul.f32 %v8105, 0.7978846
        %v8138 = vmul.f32 %v8106, 0.7978846
        %v8139 = vmul.f32 %v8107, 0.7978846
        %v8140 = vmul.f32 %v8108, 0.7978846
        %v8141 = vmul.f32 %v8109, 0.7978846
        %v8142 = vmul.f32 %v8110, 0.7978846
        %v8143 = vmul.f32 %v8111, 0.7978846
        %v8144 = vmul.f32 %v8112, 0.7978846
        %v8145 = vmul.f32 %v8113, 0.7978846
        %v8146 = vmul.f32 %v8114, 0.7978846
        %v8147 = vmul.f32 %v8115, 0.7978846
        %v8148 = vmul.f32 %v8116, 0.7978846
        %v8149 = vmul.f32 %v8117, 0.7978846
        %v8150 = vmul.f32 %v8118, 0.7978846
        %v8151 = vmul.f32 %v8119, 0.7978846
        %v8152 = vmul.f32 %v8120, 0.7978846
        %v8153 = vmul.f32 %v8121, 0.7978846
        %v8154 = vmul.f32 %v8122, 0.7978846
        %v8155 = vmul.f32 %v8123, 0.7978846
        %v8156 = vmul.f32 %v8124, 0.7978846
        %v8157 = vmul.f32 %v8125, 0.7978846
        %v8158 = vmul.f32 %v8126, 0.7978846
        %v8159 = vtanh.pop %v8127
        %v8160 = vtanh.pop %v8128
        %v8161 = vtanh.pop %v8129
        %v8162 = vtanh.pop %v8130
        %v8163 = vtanh.pop %v8131
        %v8164 = vtanh.pop %v8132
        %v8165 = vtanh.pop %v8133
        %v8166 = vtanh.pop %v8134
        %v8167 = vtanh.pop %v8135
        %v8168 = vtanh.pop %v8136
        %v8169 = vtanh.pop %v8137
        %v8170 = vtanh.pop %v8138
        %v8171 = vtanh.pop %v8139
        %v8172 = vtanh.pop %v8140
        %v8173 = vtanh.pop %v8141
        %v8174 = vtanh.pop %v8142
        %v8175 = vtanh.pop %v8143
        %v8176 = vtanh.pop %v8144
        %v8177 = vtanh.pop %v8145
        %v8178 = vtanh.pop %v8146
        %v8179 = vtanh.pop %v8147
        %v8180 = vtanh.pop %v8148
        %v8181 = vtanh.pop %v8149
        %v8182 = vtanh.pop %v8150
        %v8183 = vtanh.pop %v8151
        %v8184 = vtanh.pop %v8152
        %v8185 = vtanh.pop %v8153
        %v8186 = vtanh.pop %v8154
        %v8187 = vtanh.pop %v8155
        %v8188 = vtanh.pop %v8156
        %v8189 = vtanh.pop %v8157
        %v8190 = vtanh.pop %v8158
        %v8191 = vadd.f32 %v8159, 1.0
        %v8192 = vadd.f32 %v8160, 1.0
        %v8193 = vadd.f32 %v8161, 1.0
        %v8194 = vadd.f32 %v8162, 1.0
        %v8195 = vadd.f32 %v8163, 1.0
        %v8196 = vadd.f32 %v8164, 1.0
        %v8197 = vadd.f32 %v8165, 1.0
        %v8198 = vadd.f32 %v8166, 1.0
        %v8199 = vadd.f32 %v8167, 1.0
        %v8200 = vadd.f32 %v8168, 1.0
        %v8201 = vadd.f32 %v8169, 1.0
        %v8202 = vadd.f32 %v8170, 1.0
        %v8203 = vadd.f32 %v8171, 1.0
        %v8204 = vadd.f32 %v8172, 1.0
        %v8205 = vadd.f32 %v8173, 1.0
        %v8206 = vadd.f32 %v8174, 1.0
        %v8207 = vadd.f32 %v8175, 1.0
        %v8208 = vadd.f32 %v8176, 1.0
        %v8209 = vadd.f32 %v8177, 1.0
        %v8210 = vadd.f32 %v8178, 1.0
        %v8211 = vadd.f32 %v8179, 1.0
        %v8212 = vadd.f32 %v8180, 1.0
        %v8213 = vadd.f32 %v8181, 1.0
        %v8214 = vadd.f32 %v8182, 1.0
        %v8215 = vadd.f32 %v8183, 1.0
        %v8216 = vadd.f32 %v8184, 1.0
        %v8217 = vadd.f32 %v8185, 1.0
        %v8218 = vadd.f32 %v8186, 1.0
        %v8219 = vadd.f32 %v8187, 1.0
        %v8220 = vadd.f32 %v8188, 1.0
        %v8221 = vadd.f32 %v8189, 1.0
        %v8222 = vadd.f32 %v8190, 1.0
        %v8223 = vmul.f32 %v7967, %v8191
        %v8224 = vmul.f32 %v7968, %v8192
        %v8225 = vmul.f32 %v7969, %v8193
        %v8226 = vmul.f32 %v7970, %v8194
        %v8227 = vmul.f32 %v7971, %v8195
        %v8228 = vmul.f32 %v7972, %v8196
        %v8229 = vmul.f32 %v7973, %v8197
        %v8230 = vmul.f32 %v7974, %v8198
        %v8231 = vmul.f32 %v7975, %v8199
        %v8232 = vmul.f32 %v7976, %v8200
        %v8233 = vmul.f32 %v7977, %v8201
        %v8234 = vmul.f32 %v7978, %v8202
        %v8235 = vmul.f32 %v7979, %v8203
        %v8236 = vmul.f32 %v7980, %v8204
        %v8237 = vmul.f32 %v7981, %v8205
        %v8238 = vmul.f32 %v7982, %v8206
        %v8239 = vmul.f32 %v7983, %v8207
        %v8240 = vmul.f32 %v7984, %v8208
        %v8241 = vmul.f32 %v7985, %v8209
        %v8242 = vmul.f32 %v7986, %v8210
        %v8243 = vmul.f32 %v7987, %v8211
        %v8244 = vmul.f32 %v7988, %v8212
        %v8245 = vmul.f32 %v7989, %v8213
        %v8246 = vmul.f32 %v7990, %v8214
        %v8247 = vmul.f32 %v7991, %v8215
        %v8248 = vmul.f32 %v7992, %v8216
        %v8249 = vmul.f32 %v7993, %v8217
        %v8250 = vmul.f32 %v7994, %v8218
        %v8251 = vmul.f32 %v7995, %v8219
        %v8252 = vmul.f32 %v7996, %v8220
        %v8253 = vmul.f32 %v7997, %v8221
        %v8254 = vmul.f32 %v7998, %v8222
        %v8255 = vpack.c.bf16 %v8231, %v8223
        %v8256 = vpack.c.bf16 %v8232, %v8224
        %v8257 = vpack.c.bf16 %v8233, %v8225
        %v8258 = vpack.c.bf16 %v8234, %v8226
        %v8259 = vpack.c.bf16 %v8235, %v8227
        %v8260 = vpack.c.bf16 %v8236, %v8228
        %v8261 = vpack.c.bf16 %v8237, %v8229
        %v8262 = vpack.c.bf16 %v8238, %v8230
        %v8263 = vpack.c.bf16 %v8247, %v8239
        %v8264 = vpack.c.bf16 %v8248, %v8240
        %v8265 = vpack.c.bf16 %v8249, %v8241
        %v8266 = vpack.c.bf16 %v8250, %v8242
        %v8267 = vpack.c.bf16 %v8251, %v8243
        %v8268 = vpack.c.bf16 %v8252, %v8244
        %v8269 = vpack.c.bf16 %v8253, %v8245
        %v8270 = vpack.c.bf16 %v8254, %v8246
        %v8271 = vld [vmem:[#allocation21] sm:$0xff]
        %v8272 = vld [vmem:[#allocation21 + $0x8] sm:$0xff]
        %v8273 = vld [vmem:[#allocation21 + $0x10] sm:$0xff]
        %v8274 = vld [vmem:[#allocation21 + $0x18] sm:$0xff]
        %v8275 = vld [vmem:[#allocation21 + $0x20] sm:$0xff]
        %v8276 = vld [vmem:[#allocation21 + $0x28] sm:$0xff]
        %v8277 = vld [vmem:[#allocation21 + $0x30] sm:$0xff]
        %v8278 = vld [vmem:[#allocation21 + $0x38] sm:$0xff]
        %v8279 = vld [vmem:[#allocation21 + $0x40] sm:$0xff]
        %v8280 = vld [vmem:[#allocation21 + $0x48] sm:$0xff]
        %v8281 = vld [vmem:[#allocation21 + $0x50] sm:$0xff]
        %v8282 = vld [vmem:[#allocation21 + $0x58] sm:$0xff]
        %v8283 = vld [vmem:[#allocation21 + $0x60] sm:$0xff]
        %v8284 = vld [vmem:[#allocation21 + $0x68] sm:$0xff]
        %v8285 = vld [vmem:[#allocation21 + $0x70] sm:$0xff]
        %v8286 = vld [vmem:[#allocation21 + $0x78] sm:$0xff]
        %v8287 = vld [vmem:[#allocation21 + $0x80] sm:$0xff]
        %v8288 = vld [vmem:[#allocation21 + $0x88] sm:$0xff]
        %v8289 = vld [vmem:[#allocation21 + $0x90] sm:$0xff]
        %v8290 = vld [vmem:[#allocation21 + $0x98] sm:$0xff]
        %v8291 = vld [vmem:[#allocation21 + $0xa0] sm:$0xff]
        %v8292 = vld [vmem:[#allocation21 + $0xa8] sm:$0xff]
        %v8293 = vld [vmem:[#allocation21 + $0xb0] sm:$0xff]
        %v8294 = vld [vmem:[#allocation21 + $0xb8] sm:$0xff]
        %v8295 = vld [vmem:[#allocation21 + $0xc0] sm:$0xff]
        %v8296 = vld [vmem:[#allocation21 + $0xc8] sm:$0xff]
        %v8297 = vld [vmem:[#allocation21 + $0xd0] sm:$0xff]
        %v8298 = vld [vmem:[#allocation21 + $0xd8] sm:$0xff]
        %v8299 = vld [vmem:[#allocation21 + $0xe0] sm:$0xff]
        %v8300 = vld [vmem:[#allocation21 + $0xe8] sm:$0xff]
        %v8301 = vld [vmem:[#allocation21 + $0xf0] sm:$0xff]
        %v8302 = vld [vmem:[#allocation21 + $0xf8] sm:$0xff]
        %v8303 = vld [vmem:[#allocation21 + $0x100] sm:$0xff]
        %v8304 = vld [vmem:[#allocation21 + $0x108] sm:$0xff]
        %v8305 = vld [vmem:[#allocation21 + $0x110] sm:$0xff]
        %v8306 = vld [vmem:[#allocation21 + $0x118] sm:$0xff]
        %v8307 = vld [vmem:[#allocation21 + $0x120] sm:$0xff]
        %v8308 = vld [vmem:[#allocation21 + $0x128] sm:$0xff]
        %v8309 = vld [vmem:[#allocation21 + $0x130] sm:$0xff]
        %v8310 = vld [vmem:[#allocation21 + $0x138] sm:$0xff]
        %v8311 = vld [vmem:[#allocation21 + $0x140] sm:$0xff]
        %v8312 = vld [vmem:[#allocation21 + $0x148] sm:$0xff]
        %v8313 = vld [vmem:[#allocation21 + $0x150] sm:$0xff]
        %v8314 = vld [vmem:[#allocation21 + $0x158] sm:$0xff]
        %v8315 = vld [vmem:[#allocation21 + $0x160] sm:$0xff]
        %v8316 = vld [vmem:[#allocation21 + $0x168] sm:$0xff]
        %v8317 = vld [vmem:[#allocation21 + $0x170] sm:$0xff]
        %v8318 = vld [vmem:[#allocation21 + $0x178] sm:$0xff]
        %v8319 = vld [vmem:[#allocation21 + $0x180] sm:$0xff]
        %v8320 = vld [vmem:[#allocation21 + $0x188] sm:$0xff]
        %v8321 = vld [vmem:[#allocation21 + $0x190] sm:$0xff]
        %v8322 = vld [vmem:[#allocation21 + $0x198] sm:$0xff]
        %v8323 = vld [vmem:[#allocation21 + $0x1a0] sm:$0xff]
        %v8324 = vld [vmem:[#allocation21 + $0x1a8] sm:$0xff]
        %v8325 = vld [vmem:[#allocation21 + $0x1b0] sm:$0xff]
        %v8326 = vld [vmem:[#allocation21 + $0x1b8] sm:$0xff]
        %v8327 = vld [vmem:[#allocation21 + $0x1c0] sm:$0xff]
        %v8328 = vld [vmem:[#allocation21 + $0x1c8] sm:$0xff]
        %v8329 = vld [vmem:[#allocation21 + $0x1d0] sm:$0xff]
        %v8330 = vld [vmem:[#allocation21 + $0x1d8] sm:$0xff]
        %v8331 = vld [vmem:[#allocation21 + $0x1e0] sm:$0xff]
        %v8332 = vld [vmem:[#allocation21 + $0x1e8] sm:$0xff]
        %v8333 = vld [vmem:[#allocation21 + $0x1f0] sm:$0xff]
        %v8334 = vld [vmem:[#allocation21 + $0x1f8] sm:$0xff]
        %v8335 = vld [vmem:[#allocation21 + $0x200] sm:$0xff]
        %v8336 = vld [vmem:[#allocation21 + $0x208] sm:$0xff]
        %v8337 = vld [vmem:[#allocation21 + $0x210] sm:$0xff]
        %v8338 = vld [vmem:[#allocation21 + $0x218] sm:$0xff]
        %v8339 = vld [vmem:[#allocation21 + $0x220] sm:$0xff]
        %v8340 = vld [vmem:[#allocation21 + $0x228] sm:$0xff]
        %v8341 = vld [vmem:[#allocation21 + $0x230] sm:$0xff]
        %v8342 = vld [vmem:[#allocation21 + $0x238] sm:$0xff]
        %v8343 = vld [vmem:[#allocation21 + $0x240] sm:$0xff]
        %v8344 = vld [vmem:[#allocation21 + $0x248] sm:$0xff]
        %v8345 = vld [vmem:[#allocation21 + $0x250] sm:$0xff]
        %v8346 = vld [vmem:[#allocation21 + $0x258] sm:$0xff]
        %v8347 = vld [vmem:[#allocation21 + $0x260] sm:$0xff]
        %v8348 = vld [vmem:[#allocation21 + $0x268] sm:$0xff]
        %v8349 = vld [vmem:[#allocation21 + $0x270] sm:$0xff]
        %v8350 = vld [vmem:[#allocation21 + $0x278] sm:$0xff]
        %v8351 = vld [vmem:[#allocation21 + $0x280] sm:$0xff]
        %v8352 = vld [vmem:[#allocation21 + $0x288] sm:$0xff]
        %v8353 = vld [vmem:[#allocation21 + $0x290] sm:$0xff]
        %v8354 = vld [vmem:[#allocation21 + $0x298] sm:$0xff]
        %v8355 = vld [vmem:[#allocation21 + $0x2a0] sm:$0xff]
        %v8356 = vld [vmem:[#allocation21 + $0x2a8] sm:$0xff]
        %v8357 = vld [vmem:[#allocation21 + $0x2b0] sm:$0xff]
        %v8358 = vld [vmem:[#allocation21 + $0x2b8] sm:$0xff]
        %v8359 = vld [vmem:[#allocation21 + $0x2c0] sm:$0xff]
        %v8360 = vld [vmem:[#allocation21 + $0x2c8] sm:$0xff]
        %v8361 = vld [vmem:[#allocation21 + $0x2d0] sm:$0xff]
        %v8362 = vld [vmem:[#allocation21 + $0x2d8] sm:$0xff]
        %v8363 = vld [vmem:[#allocation21 + $0x2e0] sm:$0xff]
        %v8364 = vld [vmem:[#allocation21 + $0x2e8] sm:$0xff]
        %v8365 = vld [vmem:[#allocation21 + $0x2f0] sm:$0xff]
        %v8366 = vld [vmem:[#allocation21 + $0x2f8] sm:$0xff]
        %v8367 = vld [vmem:[#allocation21 + $0x300] sm:$0xff]
        %v8368 = vld [vmem:[#allocation21 + $0x308] sm:$0xff]
        %v8369 = vld [vmem:[#allocation21 + $0x310] sm:$0xff]
        %v8370 = vld [vmem:[#allocation21 + $0x318] sm:$0xff]
        %v8371 = vld [vmem:[#allocation21 + $0x320] sm:$0xff]
        %v8372 = vld [vmem:[#allocation21 + $0x328] sm:$0xff]
        %v8373 = vld [vmem:[#allocation21 + $0x330] sm:$0xff]
        %v8374 = vld [vmem:[#allocation21 + $0x338] sm:$0xff]
        %v8375 = vld [vmem:[#allocation21 + $0x340] sm:$0xff]
        %v8376 = vld [vmem:[#allocation21 + $0x348] sm:$0xff]
        %v8377 = vld [vmem:[#allocation21 + $0x350] sm:$0xff]
        %v8378 = vld [vmem:[#allocation21 + $0x358] sm:$0xff]
        %v8379 = vld [vmem:[#allocation21 + $0x360] sm:$0xff]
        %v8380 = vld [vmem:[#allocation21 + $0x368] sm:$0xff]
        %v8381 = vld [vmem:[#allocation21 + $0x370] sm:$0xff]
        %v8382 = vld [vmem:[#allocation21 + $0x378] sm:$0xff]
        %v8383 = vld [vmem:[#allocation21 + $0x380] sm:$0xff]
        %v8384 = vld [vmem:[#allocation21 + $0x388] sm:$0xff]
        %v8385 = vld [vmem:[#allocation21 + $0x390] sm:$0xff]
        %v8386 = vld [vmem:[#allocation21 + $0x398] sm:$0xff]
        %v8387 = vld [vmem:[#allocation21 + $0x3a0] sm:$0xff]
        %v8388 = vld [vmem:[#allocation21 + $0x3a8] sm:$0xff]
        %v8389 = vld [vmem:[#allocation21 + $0x3b0] sm:$0xff]
        %v8390 = vld [vmem:[#allocation21 + $0x3b8] sm:$0xff]
        %v8391 = vld [vmem:[#allocation21 + $0x3c0] sm:$0xff]
        %v8392 = vld [vmem:[#allocation21 + $0x3c8] sm:$0xff]
        %v8393 = vld [vmem:[#allocation21 + $0x3d0] sm:$0xff]
        %v8394 = vld [vmem:[#allocation21 + $0x3d8] sm:$0xff]
        %v8395 = vld [vmem:[#allocation21 + $0x3e0] sm:$0xff]
        %v8396 = vld [vmem:[#allocation21 + $0x3e8] sm:$0xff]
        %v8397 = vld [vmem:[#allocation21 + $0x3f0] sm:$0xff]
        %v8398 = vld [vmem:[#allocation21 + $0x3f8] sm:$0xff]
        %v8399 = vld [vmem:[#allocation21 + $0x400] sm:$0xff]
        %v8400 = vld [vmem:[#allocation21 + $0x408] sm:$0xff]
        %v8401 = vld [vmem:[#allocation21 + $0x410] sm:$0xff]
        %v8402 = vld [vmem:[#allocation21 + $0x418] sm:$0xff]
        %v8403 = vld [vmem:[#allocation21 + $0x420] sm:$0xff]
        %v8404 = vld [vmem:[#allocation21 + $0x428] sm:$0xff]
        %v8405 = vld [vmem:[#allocation21 + $0x430] sm:$0xff]
        %v8406 = vld [vmem:[#allocation21 + $0x438] sm:$0xff]
        %v8407 = vld [vmem:[#allocation21 + $0x440] sm:$0xff]
        %v8408 = vld [vmem:[#allocation21 + $0x448] sm:$0xff]
        %v8409 = vld [vmem:[#allocation21 + $0x450] sm:$0xff]
        %v8410 = vld [vmem:[#allocation21 + $0x458] sm:$0xff]
        %v8411 = vld [vmem:[#allocation21 + $0x460] sm:$0xff]
        %v8412 = vld [vmem:[#allocation21 + $0x468] sm:$0xff]
        %v8413 = vld [vmem:[#allocation21 + $0x470] sm:$0xff]
        %v8414 = vld [vmem:[#allocation21 + $0x478] sm:$0xff]
        %v8415 = vld [vmem:[#allocation21 + $0x480] sm:$0xff]
        %v8416 = vld [vmem:[#allocation21 + $0x488] sm:$0xff]
        %v8417 = vld [vmem:[#allocation21 + $0x490] sm:$0xff]
        %v8418 = vld [vmem:[#allocation21 + $0x498] sm:$0xff]
        %v8419 = vld [vmem:[#allocation21 + $0x4a0] sm:$0xff]
        %v8420 = vld [vmem:[#allocation21 + $0x4a8] sm:$0xff]
        %v8421 = vld [vmem:[#allocation21 + $0x4b0] sm:$0xff]
        %v8422 = vld [vmem:[#allocation21 + $0x4b8] sm:$0xff]
        %v8423 = vld [vmem:[#allocation21 + $0x4c0] sm:$0xff]
        %v8424 = vld [vmem:[#allocation21 + $0x4c8] sm:$0xff]
        %v8425 = vld [vmem:[#allocation21 + $0x4d0] sm:$0xff]
        %v8426 = vld [vmem:[#allocation21 + $0x4d8] sm:$0xff]
        %v8427 = vld [vmem:[#allocation21 + $0x4e0] sm:$0xff]
        %v8428 = vld [vmem:[#allocation21 + $0x4e8] sm:$0xff]
        %v8429 = vld [vmem:[#allocation21 + $0x4f0] sm:$0xff]
        %v8430 = vld [vmem:[#allocation21 + $0x4f8] sm:$0xff]
        %v8431 = vld [vmem:[#allocation21 + $0x500] sm:$0xff]
        %v8432 = vld [vmem:[#allocation21 + $0x508] sm:$0xff]
        %v8433 = vld [vmem:[#allocation21 + $0x510] sm:$0xff]
        %v8434 = vld [vmem:[#allocation21 + $0x518] sm:$0xff]
        %v8435 = vld [vmem:[#allocation21 + $0x520] sm:$0xff]
        %v8436 = vld [vmem:[#allocation21 + $0x528] sm:$0xff]
        %v8437 = vld [vmem:[#allocation21 + $0x530] sm:$0xff]
        %v8438 = vld [vmem:[#allocation21 + $0x538] sm:$0xff]
        %v8439 = vld [vmem:[#allocation21 + $0x540] sm:$0xff]
        %v8440 = vld [vmem:[#allocation21 + $0x548] sm:$0xff]
        %v8441 = vld [vmem:[#allocation21 + $0x550] sm:$0xff]
        %v8442 = vld [vmem:[#allocation21 + $0x558] sm:$0xff]
        %v8443 = vld [vmem:[#allocation21 + $0x560] sm:$0xff]
        %v8444 = vld [vmem:[#allocation21 + $0x568] sm:$0xff]
        %v8445 = vld [vmem:[#allocation21 + $0x570] sm:$0xff]
        %v8446 = vld [vmem:[#allocation21 + $0x578] sm:$0xff]
        %v8447 = vld [vmem:[#allocation21 + $0x580] sm:$0xff]
        %v8448 = vld [vmem:[#allocation21 + $0x588] sm:$0xff]
        %v8449 = vld [vmem:[#allocation21 + $0x590] sm:$0xff]
        %v8450 = vld [vmem:[#allocation21 + $0x598] sm:$0xff]
        %v8451 = vld [vmem:[#allocation21 + $0x5a0] sm:$0xff]
        %v8452 = vld [vmem:[#allocation21 + $0x5a8] sm:$0xff]
        %v8453 = vld [vmem:[#allocation21 + $0x5b0] sm:$0xff]
        %v8454 = vld [vmem:[#allocation21 + $0x5b8] sm:$0xff]
        %v8455 = vld [vmem:[#allocation21 + $0x5c0] sm:$0xff]
        %v8456 = vld [vmem:[#allocation21 + $0x5c8] sm:$0xff]
        %v8457 = vld [vmem:[#allocation21 + $0x5d0] sm:$0xff]
        %v8458 = vld [vmem:[#allocation21 + $0x5d8] sm:$0xff]
        %v8459 = vld [vmem:[#allocation21 + $0x5e0] sm:$0xff]
        %v8460 = vld [vmem:[#allocation21 + $0x5e8] sm:$0xff]
        %v8461 = vld [vmem:[#allocation21 + $0x5f0] sm:$0xff]
        %v8462 = vld [vmem:[#allocation21 + $0x5f8] sm:$0xff]
        %v8463 = vld [vmem:[#allocation21 + $0x600] sm:$0xff]
        %v8464 = vld [vmem:[#allocation21 + $0x608] sm:$0xff]
        %v8465 = vld [vmem:[#allocation21 + $0x610] sm:$0xff]
        %v8466 = vld [vmem:[#allocation21 + $0x618] sm:$0xff]
        %v8467 = vld [vmem:[#allocation21 + $0x620] sm:$0xff]
        %v8468 = vld [vmem:[#allocation21 + $0x628] sm:$0xff]
        %v8469 = vld [vmem:[#allocation21 + $0x630] sm:$0xff]
        %v8470 = vld [vmem:[#allocation21 + $0x638] sm:$0xff]
        %v8471 = vld [vmem:[#allocation21 + $0x640] sm:$0xff]
        %v8472 = vld [vmem:[#allocation21 + $0x648] sm:$0xff]
        %v8473 = vld [vmem:[#allocation21 + $0x650] sm:$0xff]
        %v8474 = vld [vmem:[#allocation21 + $0x658] sm:$0xff]
        %v8475 = vld [vmem:[#allocation21 + $0x660] sm:$0xff]
        %v8476 = vld [vmem:[#allocation21 + $0x668] sm:$0xff]
        %v8477 = vld [vmem:[#allocation21 + $0x670] sm:$0xff]
        %v8478 = vld [vmem:[#allocation21 + $0x678] sm:$0xff]
        %v8479 = vld [vmem:[#allocation21 + $0x680] sm:$0xff]
        %v8480 = vld [vmem:[#allocation21 + $0x688] sm:$0xff]
        %v8481 = vld [vmem:[#allocation21 + $0x690] sm:$0xff]
        %v8482 = vld [vmem:[#allocation21 + $0x698] sm:$0xff]
        %v8483 = vld [vmem:[#allocation21 + $0x6a0] sm:$0xff]
        %v8484 = vld [vmem:[#allocation21 + $0x6a8] sm:$0xff]
        %v8485 = vld [vmem:[#allocation21 + $0x6b0] sm:$0xff]
        %v8486 = vld [vmem:[#allocation21 + $0x6b8] sm:$0xff]
        %v8487 = vld [vmem:[#allocation21 + $0x6c0] sm:$0xff]
        %v8488 = vld [vmem:[#allocation21 + $0x6c8] sm:$0xff]
        %v8489 = vld [vmem:[#allocation21 + $0x6d0] sm:$0xff]
        %v8490 = vld [vmem:[#allocation21 + $0x6d8] sm:$0xff]
        %v8491 = vld [vmem:[#allocation21 + $0x6e0] sm:$0xff]
        %v8492 = vld [vmem:[#allocation21 + $0x6e8] sm:$0xff]
        %v8493 = vld [vmem:[#allocation21 + $0x6f0] sm:$0xff]
        %v8494 = vld [vmem:[#allocation21 + $0x6f8] sm:$0xff]
        %v8495 = vld [vmem:[#allocation21 + $0x700] sm:$0xff]
        %v8496 = vld [vmem:[#allocation21 + $0x708] sm:$0xff]
        %v8497 = vld [vmem:[#allocation21 + $0x710] sm:$0xff]
        %v8498 = vld [vmem:[#allocation21 + $0x718] sm:$0xff]
        %v8499 = vld [vmem:[#allocation21 + $0x720] sm:$0xff]
        %v8500 = vld [vmem:[#allocation21 + $0x728] sm:$0xff]
        %v8501 = vld [vmem:[#allocation21 + $0x730] sm:$0xff]
        %v8502 = vld [vmem:[#allocation21 + $0x738] sm:$0xff]
        %v8503 = vld [vmem:[#allocation21 + $0x740] sm:$0xff]
        %v8504 = vld [vmem:[#allocation21 + $0x748] sm:$0xff]
        %v8505 = vld [vmem:[#allocation21 + $0x750] sm:$0xff]
        %v8506 = vld [vmem:[#allocation21 + $0x758] sm:$0xff]
        %v8507 = vld [vmem:[#allocation21 + $0x760] sm:$0xff]
        %v8508 = vld [vmem:[#allocation21 + $0x768] sm:$0xff]
        %v8509 = vld [vmem:[#allocation21 + $0x770] sm:$0xff]
        %v8510 = vld [vmem:[#allocation21 + $0x778] sm:$0xff]
        %v8511 = vld [vmem:[#allocation21 + $0x780] sm:$0xff]
        %v8512 = vld [vmem:[#allocation21 + $0x788] sm:$0xff]
        %v8513 = vld [vmem:[#allocation21 + $0x790] sm:$0xff]
        %v8514 = vld [vmem:[#allocation21 + $0x798] sm:$0xff]
        %v8515 = vld [vmem:[#allocation21 + $0x7a0] sm:$0xff]
        %v8516 = vld [vmem:[#allocation21 + $0x7a8] sm:$0xff]
        %v8517 = vld [vmem:[#allocation21 + $0x7b0] sm:$0xff]
        %v8518 = vld [vmem:[#allocation21 + $0x7b8] sm:$0xff]
        %v8519 = vld [vmem:[#allocation21 + $0x7c0] sm:$0xff]
        %v8520 = vld [vmem:[#allocation21 + $0x7c8] sm:$0xff]
        %v8521 = vld [vmem:[#allocation21 + $0x7d0] sm:$0xff]
        %v8522 = vld [vmem:[#allocation21 + $0x7d8] sm:$0xff]
        %v8523 = vld [vmem:[#allocation21 + $0x7e0] sm:$0xff]
        %v8524 = vld [vmem:[#allocation21 + $0x7e8] sm:$0xff]
        %v8525 = vld [vmem:[#allocation21 + $0x7f0] sm:$0xff]
        %v8526 = vld [vmem:[#allocation21 + $0x7f8] sm:$0xff]
        %v8527 = vld [vmem:[#allocation23] sm:$0xf]
        %v8529 = vlaneseq
        %v8530 = vshrl.u32 %v8529, 7
        %v8531 = vsub.s32 0, %v8530
        %v8532 = vrot.slane %v8527, %v8531
        %v8533 = vlaneseq
        %v8534 = vshrl.u32 %v8533, 7
        %v8535 = vsub.s32 1, %v8534
        %v8536 = vrot.slane %v8527, %v8535
        %v8537 = vlaneseq
        %v8538 = vshrl.u32 %v8537, 7
        %v8539 = vsub.s32 2, %v8538
        %v8540 = vrot.slane %v8527, %v8539
        %v8541 = vlaneseq
        %v8542 = vshrl.u32 %v8541, 7
        %v8543 = vsub.s32 3, %v8542
        %v8544 = vrot.slane %v8527, %v8543
        %v8805 = vunpack.c.l.b16 %v8271
        %v8806 = vunpack.c.h.b16 %v8271
        %v8807 = vunpack.c.l.b16 %v8272
        %v8808 = vunpack.c.h.b16 %v8272
        %v8809 = vunpack.c.l.b16 %v8273
        %v8810 = vunpack.c.h.b16 %v8273
        %v8811 = vunpack.c.l.b16 %v8274
        %v8812 = vunpack.c.h.b16 %v8274
        %v8813 = vunpack.c.l.b16 %v8275
        %v8814 = vunpack.c.h.b16 %v8275
        %v8815 = vunpack.c.l.b16 %v8276
        %v8816 = vunpack.c.h.b16 %v8276
        %v8817 = vunpack.c.l.b16 %v8277
        %v8818 = vunpack.c.h.b16 %v8277
        %v8819 = vunpack.c.l.b16 %v8278
        %v8820 = vunpack.c.h.b16 %v8278
        %v8821 = vunpack.c.l.b16 %v8279
        %v8822 = vunpack.c.h.b16 %v8279
        %v8823 = vunpack.c.l.b16 %v8280
        %v8824 = vunpack.c.h.b16 %v8280
        %v8825 = vunpack.c.l.b16 %v8281
        %v8826 = vunpack.c.h.b16 %v8281
        %v8827 = vunpack.c.l.b16 %v8282
        %v8828 = vunpack.c.h.b16 %v8282
        %v8829 = vunpack.c.l.b16 %v8283
        %v8830 = vunpack.c.h.b16 %v8283
        %v8831 = vunpack.c.l.b16 %v8284
        %v8832 = vunpack.c.h.b16 %v8284
        %v8833 = vunpack.c.l.b16 %v8285
        %v8834 = vunpack.c.h.b16 %v8285
        %v8835 = vunpack.c.l.b16 %v8286
        %v8836 = vunpack.c.h.b16 %v8286
        %v8837 = vunpack.c.l.b16 %v8287
        %v8838 = vunpack.c.h.b16 %v8287
        %v8839 = vunpack.c.l.b16 %v8288
        %v8840 = vunpack.c.h.b16 %v8288
        %v8841 = vunpack.c.l.b16 %v8289
        %v8842 = vunpack.c.h.b16 %v8289
        %v8843 = vunpack.c.l.b16 %v8290
        %v8844 = vunpack.c.h.b16 %v8290
        %v8845 = vunpack.c.l.b16 %v8291
        %v8846 = vunpack.c.h.b16 %v8291
        %v8847 = vunpack.c.l.b16 %v8292
        %v8848 = vunpack.c.h.b16 %v8292
        %v8849 = vunpack.c.l.b16 %v8293
        %v8850 = vunpack.c.h.b16 %v8293
        %v8851 = vunpack.c.l.b16 %v8294
        %v8852 = vunpack.c.h.b16 %v8294
        %v8853 = vunpack.c.l.b16 %v8295
        %v8854 = vunpack.c.h.b16 %v8295
        %v8855 = vunpack.c.l.b16 %v8296
        %v8856 = vunpack.c.h.b16 %v8296
        %v8857 = vunpack.c.l.b16 %v8297
        %v8858 = vunpack.c.h.b16 %v8297
        %v8859 = vunpack.c.l.b16 %v8298
        %v8860 = vunpack.c.h.b16 %v8298
        %v8861 = vunpack.c.l.b16 %v8299
        %v8862 = vunpack.c.h.b16 %v8299
        %v8863 = vunpack.c.l.b16 %v8300
        %v8864 = vunpack.c.h.b16 %v8300
        %v8865 = vunpack.c.l.b16 %v8301
        %v8866 = vunpack.c.h.b16 %v8301
        %v8867 = vunpack.c.l.b16 %v8302
        %v8868 = vunpack.c.h.b16 %v8302
        %v8869 = vunpack.c.l.b16 %v8303
        %v8870 = vunpack.c.h.b16 %v8303
        %v8871 = vunpack.c.l.b16 %v8304
        %v8872 = vunpack.c.h.b16 %v8304
        %v8873 = vunpack.c.l.b16 %v8305
        %v8874 = vunpack.c.h.b16 %v8305
        %v8875 = vunpack.c.l.b16 %v8306
        %v8876 = vunpack.c.h.b16 %v8306
        %v8877 = vunpack.c.l.b16 %v8307
        %v8878 = vunpack.c.h.b16 %v8307
        %v8879 = vunpack.c.l.b16 %v8308
        %v8880 = vunpack.c.h.b16 %v8308
        %v8881 = vunpack.c.l.b16 %v8309
        %v8882 = vunpack.c.h.b16 %v8309
        %v8883 = vunpack.c.l.b16 %v8310
        %v8884 = vunpack.c.h.b16 %v8310
        %v8885 = vunpack.c.l.b16 %v8311
        %v8886 = vunpack.c.h.b16 %v8311
        %v8887 = vunpack.c.l.b16 %v8312
        %v8888 = vunpack.c.h.b16 %v8312
        %v8889 = vunpack.c.l.b16 %v8313
        %v8890 = vunpack.c.h.b16 %v8313
        %v8891 = vunpack.c.l.b16 %v8314
        %v8892 = vunpack.c.h.b16 %v8314
        %v8893 = vunpack.c.l.b16 %v8315
        %v8894 = vunpack.c.h.b16 %v8315
        %v8895 = vunpack.c.l.b16 %v8316
        %v8896 = vunpack.c.h.b16 %v8316
        %v8897 = vunpack.c.l.b16 %v8317
        %v8898 = vunpack.c.h.b16 %v8317
        %v8899 = vunpack.c.l.b16 %v8318
        %v8900 = vunpack.c.h.b16 %v8318
        %v8901 = vunpack.c.l.b16 %v8319
        %v8902 = vunpack.c.h.b16 %v8319
        %v8903 = vunpack.c.l.b16 %v8320
        %v8904 = vunpack.c.h.b16 %v8320
        %v8905 = vunpack.c.l.b16 %v8321
        %v8906 = vunpack.c.h.b16 %v8321
        %v8907 = vunpack.c.l.b16 %v8322
        %v8908 = vunpack.c.h.b16 %v8322
        %v8909 = vunpack.c.l.b16 %v8323
        %v8910 = vunpack.c.h.b16 %v8323
        %v8911 = vunpack.c.l.b16 %v8324
        %v8912 = vunpack.c.h.b16 %v8324
        %v8913 = vunpack.c.l.b16 %v8325
        %v8914 = vunpack.c.h.b16 %v8325
        %v8915 = vunpack.c.l.b16 %v8326
        %v8916 = vunpack.c.h.b16 %v8326
        %v8917 = vunpack.c.l.b16 %v8327
        %v8918 = vunpack.c.h.b16 %v8327
        %v8919 = vunpack.c.l.b16 %v8328
        %v8920 = vunpack.c.h.b16 %v8328
        %v8921 = vunpack.c.l.b16 %v8329
        %v8922 = vunpack.c.h.b16 %v8329
        %v8923 = vunpack.c.l.b16 %v8330
        %v8924 = vunpack.c.h.b16 %v8330
        %v8925 = vunpack.c.l.b16 %v8331
        %v8926 = vunpack.c.h.b16 %v8331
        %v8927 = vunpack.c.l.b16 %v8332
        %v8928 = vunpack.c.h.b16 %v8332
        %v8929 = vunpack.c.l.b16 %v8333
        %v8930 = vunpack.c.h.b16 %v8333
        %v8931 = vunpack.c.l.b16 %v8334
        %v8932 = vunpack.c.h.b16 %v8334
        %v8933 = vunpack.c.l.b16 %v8335
        %v8934 = vunpack.c.h.b16 %v8335
        %v8935 = vunpack.c.l.b16 %v8336
        %v8936 = vunpack.c.h.b16 %v8336
        %v8937 = vunpack.c.l.b16 %v8337
        %v8938 = vunpack.c.h.b16 %v8337
        %v8939 = vunpack.c.l.b16 %v8338
        %v8940 = vunpack.c.h.b16 %v8338
        %v8941 = vunpack.c.l.b16 %v8339
        %v8942 = vunpack.c.h.b16 %v8339
        %v8943 = vunpack.c.l.b16 %v8340
        %v8944 = vunpack.c.h.b16 %v8340
        %v8945 = vunpack.c.l.b16 %v8341
        %v8946 = vunpack.c.h.b16 %v8341
        %v8947 = vunpack.c.l.b16 %v8342
        %v8948 = vunpack.c.h.b16 %v8342
        %v8949 = vunpack.c.l.b16 %v8343
        %v8950 = vunpack.c.h.b16 %v8343
        %v8951 = vunpack.c.l.b16 %v8344
        %v8952 = vunpack.c.h.b16 %v8344
        %v8953 = vunpack.c.l.b16 %v8345
        %v8954 = vunpack.c.h.b16 %v8345
        %v8955 = vunpack.c.l.b16 %v8346
        %v8956 = vunpack.c.h.b16 %v8346
        %v8957 = vunpack.c.l.b16 %v8347
        %v8958 = vunpack.c.h.b16 %v8347
        %v8959 = vunpack.c.l.b16 %v8348
        %v8960 = vunpack.c.h.b16 %v8348
        %v8961 = vunpack.c.l.b16 %v8349
        %v8962 = vunpack.c.h.b16 %v8349
        %v8963 = vunpack.c.l.b16 %v8350
        %v8964 = vunpack.c.h.b16 %v8350
        %v8965 = vunpack.c.l.b16 %v8351
        %v8966 = vunpack.c.h.b16 %v8351
        %v8967 = vunpack.c.l.b16 %v8352
        %v8968 = vunpack.c.h.b16 %v8352
        %v8969 = vunpack.c.l.b16 %v8353
        %v8970 = vunpack.c.h.b16 %v8353
        %v8971 = vunpack.c.l.b16 %v8354
        %v8972 = vunpack.c.h.b16 %v8354
        %v8973 = vunpack.c.l.b16 %v8355
        %v8974 = vunpack.c.h.b16 %v8355
        %v8975 = vunpack.c.l.b16 %v8356
        %v8976 = vunpack.c.h.b16 %v8356
        %v8977 = vunpack.c.l.b16 %v8357
        %v8978 = vunpack.c.h.b16 %v8357
        %v8979 = vunpack.c.l.b16 %v8358
        %v8980 = vunpack.c.h.b16 %v8358
        %v8981 = vunpack.c.l.b16 %v8359
        %v8982 = vunpack.c.h.b16 %v8359
        %v8983 = vunpack.c.l.b16 %v8360
        %v8984 = vunpack.c.h.b16 %v8360
        %v8985 = vunpack.c.l.b16 %v8361
        %v8986 = vunpack.c.h.b16 %v8361
        %v8987 = vunpack.c.l.b16 %v8362
        %v8988 = vunpack.c.h.b16 %v8362
        %v8989 = vunpack.c.l.b16 %v8363
        %v8990 = vunpack.c.h.b16 %v8363
        %v8991 = vunpack.c.l.b16 %v8364
        %v8992 = vunpack.c.h.b16 %v8364
        %v8993 = vunpack.c.l.b16 %v8365
        %v8994 = vunpack.c.h.b16 %v8365
        %v8995 = vunpack.c.l.b16 %v8366
        %v8996 = vunpack.c.h.b16 %v8366
        %v8997 = vunpack.c.l.b16 %v8367
        %v8998 = vunpack.c.h.b16 %v8367
        %v8999 = vunpack.c.l.b16 %v8368
        %v9000 = vunpack.c.h.b16 %v8368
        %v9001 = vunpack.c.l.b16 %v8369
        %v9002 = vunpack.c.h.b16 %v8369
        %v9003 = vunpack.c.l.b16 %v8370
        %v9004 = vunpack.c.h.b16 %v8370
        %v9005 = vunpack.c.l.b16 %v8371
        %v9006 = vunpack.c.h.b16 %v8371
        %v9007 = vunpack.c.l.b16 %v8372
        %v9008 = vunpack.c.h.b16 %v8372
        %v9009 = vunpack.c.l.b16 %v8373
        %v9010 = vunpack.c.h.b16 %v8373
        %v9011 = vunpack.c.l.b16 %v8374
        %v9012 = vunpack.c.h.b16 %v8374
        %v9013 = vunpack.c.l.b16 %v8375
        %v9014 = vunpack.c.h.b16 %v8375
        %v9015 = vunpack.c.l.b16 %v8376
        %v9016 = vunpack.c.h.b16 %v8376
        %v9017 = vunpack.c.l.b16 %v8377
        %v9018 = vunpack.c.h.b16 %v8377
        %v9019 = vunpack.c.l.b16 %v8378
        %v9020 = vunpack.c.h.b16 %v8378
        %v9021 = vunpack.c.l.b16 %v8379
        %v9022 = vunpack.c.h.b16 %v8379
        %v9023 = vunpack.c.l.b16 %v8380
        %v9024 = vunpack.c.h.b16 %v8380
        %v9025 = vunpack.c.l.b16 %v8381
        %v9026 = vunpack.c.h.b16 %v8381
        %v9027 = vunpack.c.l.b16 %v8382
        %v9028 = vunpack.c.h.b16 %v8382
        %v9029 = vunpack.c.l.b16 %v8383
        %v9030 = vunpack.c.h.b16 %v8383
        %v9031 = vunpack.c.l.b16 %v8384
        %v9032 = vunpack.c.h.b16 %v8384
        %v9033 = vunpack.c.l.b16 %v8385
        %v9034 = vunpack.c.h.b16 %v8385
        %v9035 = vunpack.c.l.b16 %v8386
        %v9036 = vunpack.c.h.b16 %v8386
        %v9037 = vunpack.c.l.b16 %v8387
        %v9038 = vunpack.c.h.b16 %v8387
        %v9039 = vunpack.c.l.b16 %v8388
        %v9040 = vunpack.c.h.b16 %v8388
        %v9041 = vunpack.c.l.b16 %v8389
        %v9042 = vunpack.c.h.b16 %v8389
        %v9043 = vunpack.c.l.b16 %v8390
        %v9044 = vunpack.c.h.b16 %v8390
        %v9045 = vunpack.c.l.b16 %v8391
        %v9046 = vunpack.c.h.b16 %v8391
        %v9047 = vunpack.c.l.b16 %v8392
        %v9048 = vunpack.c.h.b16 %v8392
        %v9049 = vunpack.c.l.b16 %v8393
        %v9050 = vunpack.c.h.b16 %v8393
        %v9051 = vunpack.c.l.b16 %v8394
        %v9052 = vunpack.c.h.b16 %v8394
        %v9053 = vunpack.c.l.b16 %v8395
        %v9054 = vunpack.c.h.b16 %v8395
        %v9055 = vunpack.c.l.b16 %v8396
        %v9056 = vunpack.c.h.b16 %v8396
        %v9057 = vunpack.c.l.b16 %v8397
        %v9058 = vunpack.c.h.b16 %v8397
        %v9059 = vunpack.c.l.b16 %v8398
        %v9060 = vunpack.c.h.b16 %v8398
        %v9061 = vunpack.c.l.b16 %v8399
        %v9062 = vunpack.c.h.b16 %v8399
        %v9063 = vunpack.c.l.b16 %v8400
        %v9064 = vunpack.c.h.b16 %v8400
        %v9065 = vunpack.c.l.b16 %v8401
        %v9066 = vunpack.c.h.b16 %v8401
        %v9067 = vunpack.c.l.b16 %v8402
        %v9068 = vunpack.c.h.b16 %v8402
        %v9069 = vunpack.c.l.b16 %v8403
        %v9070 = vunpack.c.h.b16 %v8403
        %v9071 = vunpack.c.l.b16 %v8404
        %v9072 = vunpack.c.h.b16 %v8404
        %v9073 = vunpack.c.l.b16 %v8405
        %v9074 = vunpack.c.h.b16 %v8405
        %v9075 = vunpack.c.l.b16 %v8406
        %v9076 = vunpack.c.h.b16 %v8406
        %v9077 = vunpack.c.l.b16 %v8407
        %v9078 = vunpack.c.h.b16 %v8407
        %v9079 = vunpack.c.l.b16 %v8408
        %v9080 = vunpack.c.h.b16 %v8408
        %v9081 = vunpack.c.l.b16 %v8409
        %v9082 = vunpack.c.h.b16 %v8409
        %v9083 = vunpack.c.l.b16 %v8410
        %v9084 = vunpack.c.h.b16 %v8410
        %v9085 = vunpack.c.l.b16 %v8411
        %v9086 = vunpack.c.h.b16 %v8411
        %v9087 = vunpack.c.l.b16 %v8412
        %v9088 = vunpack.c.h.b16 %v8412
        %v9089 = vunpack.c.l.b16 %v8413
        %v9090 = vunpack.c.h.b16 %v8413
        %v9091 = vunpack.c.l.b16 %v8414
        %v9092 = vunpack.c.h.b16 %v8414
        %v9093 = vunpack.c.l.b16 %v8415
        %v9094 = vunpack.c.h.b16 %v8415
        %v9095 = vunpack.c.l.b16 %v8416
        %v9096 = vunpack.c.h.b16 %v8416
        %v9097 = vunpack.c.l.b16 %v8417
        %v9098 = vunpack.c.h.b16 %v8417
        %v9099 = vunpack.c.l.b16 %v8418
        %v9100 = vunpack.c.h.b16 %v8418
        %v9101 = vunpack.c.l.b16 %v8419
        %v9102 = vunpack.c.h.b16 %v8419
        %v9103 = vunpack.c.l.b16 %v8420
        %v9104 = vunpack.c.h.b16 %v8420
        %v9105 = vunpack.c.l.b16 %v8421
        %v9106 = vunpack.c.h.b16 %v8421
        %v9107 = vunpack.c.l.b16 %v8422
        %v9108 = vunpack.c.h.b16 %v8422
        %v9109 = vunpack.c.l.b16 %v8423
        %v9110 = vunpack.c.h.b16 %v8423
        %v9111 = vunpack.c.l.b16 %v8424
        %v9112 = vunpack.c.h.b16 %v8424
        %v9113 = vunpack.c.l.b16 %v8425
        %v9114 = vunpack.c.h.b16 %v8425
        %v9115 = vunpack.c.l.b16 %v8426
        %v9116 = vunpack.c.h.b16 %v8426
        %v9117 = vunpack.c.l.b16 %v8427
        %v9118 = vunpack.c.h.b16 %v8427
        %v9119 = vunpack.c.l.b16 %v8428
        %v9120 = vunpack.c.h.b16 %v8428
        %v9121 = vunpack.c.l.b16 %v8429
        %v9122 = vunpack.c.h.b16 %v8429
        %v9123 = vunpack.c.l.b16 %v8430
        %v9124 = vunpack.c.h.b16 %v8430
        %v9125 = vunpack.c.l.b16 %v8431
        %v9126 = vunpack.c.h.b16 %v8431
        %v9127 = vunpack.c.l.b16 %v8432
        %v9128 = vunpack.c.h.b16 %v8432
        %v9129 = vunpack.c.l.b16 %v8433
        %v9130 = vunpack.c.h.b16 %v8433
        %v9131 = vunpack.c.l.b16 %v8434
        %v9132 = vunpack.c.h.b16 %v8434
        %v9133 = vunpack.c.l.b16 %v8435
        %v9134 = vunpack.c.h.b16 %v8435
        %v9135 = vunpack.c.l.b16 %v8436
        %v9136 = vunpack.c.h.b16 %v8436
        %v9137 = vunpack.c.l.b16 %v8437
        %v9138 = vunpack.c.h.b16 %v8437
        %v9139 = vunpack.c.l.b16 %v8438
        %v9140 = vunpack.c.h.b16 %v8438
        %v9141 = vunpack.c.l.b16 %v8439
        %v9142 = vunpack.c.h.b16 %v8439
        %v9143 = vunpack.c.l.b16 %v8440
        %v9144 = vunpack.c.h.b16 %v8440
        %v9145 = vunpack.c.l.b16 %v8441
        %v9146 = vunpack.c.h.b16 %v8441
        %v9147 = vunpack.c.l.b16 %v8442
        %v9148 = vunpack.c.h.b16 %v8442
        %v9149 = vunpack.c.l.b16 %v8443
        %v9150 = vunpack.c.h.b16 %v8443
        %v9151 = vunpack.c.l.b16 %v8444
        %v9152 = vunpack.c.h.b16 %v8444
        %v9153 = vunpack.c.l.b16 %v8445
        %v9154 = vunpack.c.h.b16 %v8445
        %v9155 = vunpack.c.l.b16 %v8446
        %v9156 = vunpack.c.h.b16 %v8446
        %v9157 = vunpack.c.l.b16 %v8447
        %v9158 = vunpack.c.h.b16 %v8447
        %v9159 = vunpack.c.l.b16 %v8448
        %v9160 = vunpack.c.h.b16 %v8448
        %v9161 = vunpack.c.l.b16 %v8449
        %v9162 = vunpack.c.h.b16 %v8449
        %v9163 = vunpack.c.l.b16 %v8450
        %v9164 = vunpack.c.h.b16 %v8450
        %v9165 = vunpack.c.l.b16 %v8451
        %v9166 = vunpack.c.h.b16 %v8451
        %v9167 = vunpack.c.l.b16 %v8452
        %v9168 = vunpack.c.h.b16 %v8452
        %v9169 = vunpack.c.l.b16 %v8453
        %v9170 = vunpack.c.h.b16 %v8453
        %v9171 = vunpack.c.l.b16 %v8454
        %v9172 = vunpack.c.h.b16 %v8454
        %v9173 = vunpack.c.l.b16 %v8455
        %v9174 = vunpack.c.h.b16 %v8455
        %v9175 = vunpack.c.l.b16 %v8456
        %v9176 = vunpack.c.h.b16 %v8456
        %v9177 = vunpack.c.l.b16 %v8457
        %v9178 = vunpack.c.h.b16 %v8457
        %v9179 = vunpack.c.l.b16 %v8458
        %v9180 = vunpack.c.h.b16 %v8458
        %v9181 = vunpack.c.l.b16 %v8459
        %v9182 = vunpack.c.h.b16 %v8459
        %v9183 = vunpack.c.l.b16 %v8460
        %v9184 = vunpack.c.h.b16 %v8460
        %v9185 = vunpack.c.l.b16 %v8461
        %v9186 = vunpack.c.h.b16 %v8461
        %v9187 = vunpack.c.l.b16 %v8462
        %v9188 = vunpack.c.h.b16 %v8462
        %v9189 = vunpack.c.l.b16 %v8463
        %v9190 = vunpack.c.h.b16 %v8463
        %v9191 = vunpack.c.l.b16 %v8464
        %v9192 = vunpack.c.h.b16 %v8464
        %v9193 = vunpack.c.l.b16 %v8465
        %v9194 = vunpack.c.h.b16 %v8465
        %v9195 = vunpack.c.l.b16 %v8466
        %v9196 = vunpack.c.h.b16 %v8466
        %v9197 = vunpack.c.l.b16 %v8467
        %v9198 = vunpack.c.h.b16 %v8467
        %v9199 = vunpack.c.l.b16 %v8468
        %v9200 = vunpack.c.h.b16 %v8468
        %v9201 = vunpack.c.l.b16 %v8469
        %v9202 = vunpack.c.h.b16 %v8469
        %v9203 = vunpack.c.l.b16 %v8470
        %v9204 = vunpack.c.h.b16 %v8470
        %v9205 = vunpack.c.l.b16 %v8471
        %v9206 = vunpack.c.h.b16 %v8471
        %v9207 = vunpack.c.l.b16 %v8472
        %v9208 = vunpack.c.h.b16 %v8472
        %v9209 = vunpack.c.l.b16 %v8473
        %v9210 = vunpack.c.h.b16 %v8473
        %v9211 = vunpack.c.l.b16 %v8474
        %v9212 = vunpack.c.h.b16 %v8474
        %v9213 = vunpack.c.l.b16 %v8475
        %v9214 = vunpack.c.h.b16 %v8475
        %v9215 = vunpack.c.l.b16 %v8476
        %v9216 = vunpack.c.h.b16 %v8476
        %v9217 = vunpack.c.l.b16 %v8477
        %v9218 = vunpack.c.h.b16 %v8477
        %v9219 = vunpack.c.l.b16 %v8478
        %v9220 = vunpack.c.h.b16 %v8478
        %v9221 = vunpack.c.l.b16 %v8479
        %v9222 = vunpack.c.h.b16 %v8479
        %v9223 = vunpack.c.l.b16 %v8480
        %v9224 = vunpack.c.h.b16 %v8480
        %v9225 = vunpack.c.l.b16 %v8481
        %v9226 = vunpack.c.h.b16 %v8481
        %v9227 = vunpack.c.l.b16 %v8482
        %v9228 = vunpack.c.h.b16 %v8482
        %v9229 = vunpack.c.l.b16 %v8483
        %v9230 = vunpack.c.h.b16 %v8483
        %v9231 = vunpack.c.l.b16 %v8484
        %v9232 = vunpack.c.h.b16 %v8484
        %v9233 = vunpack.c.l.b16 %v8485
        %v9234 = vunpack.c.h.b16 %v8485
        %v9235 = vunpack.c.l.b16 %v8486
        %v9236 = vunpack.c.h.b16 %v8486
        %v9237 = vunpack.c.l.b16 %v8487
        %v9238 = vunpack.c.h.b16 %v8487
        %v9239 = vunpack.c.l.b16 %v8488
        %v9240 = vunpack.c.h.b16 %v8488
        %v9241 = vunpack.c.l.b16 %v8489
        %v9242 = vunpack.c.h.b16 %v8489
        %v9243 = vunpack.c.l.b16 %v8490
        %v9244 = vunpack.c.h.b16 %v8490
        %v9245 = vunpack.c.l.b16 %v8491
        %v9246 = vunpack.c.h.b16 %v8491
        %v9247 = vunpack.c.l.b16 %v8492
        %v9248 = vunpack.c.h.b16 %v8492
        %v9249 = vunpack.c.l.b16 %v8493
        %v9250 = vunpack.c.h.b16 %v8493
        %v9251 = vunpack.c.l.b16 %v8494
        %v9252 = vunpack.c.h.b16 %v8494
        %v9253 = vunpack.c.l.b16 %v8495
        %v9254 = vunpack.c.h.b16 %v8495
        %v9255 = vunpack.c.l.b16 %v8496
        %v9256 = vunpack.c.h.b16 %v8496
        %v9257 = vunpack.c.l.b16 %v8497
        %v9258 = vunpack.c.h.b16 %v8497
        %v9259 = vunpack.c.l.b16 %v8498
        %v9260 = vunpack.c.h.b16 %v8498
        %v9261 = vunpack.c.l.b16 %v8499
        %v9262 = vunpack.c.h.b16 %v8499
        %v9263 = vunpack.c.l.b16 %v8500
        %v9264 = vunpack.c.h.b16 %v8500
        %v9265 = vunpack.c.l.b16 %v8501
        %v9266 = vunpack.c.h.b16 %v8501
        %v9267 = vunpack.c.l.b16 %v8502
        %v9268 = vunpack.c.h.b16 %v8502
        %v9269 = vunpack.c.l.b16 %v8503
        %v9270 = vunpack.c.h.b16 %v8503
        %v9271 = vunpack.c.l.b16 %v8504
        %v9272 = vunpack.c.h.b16 %v8504
        %v9273 = vunpack.c.l.b16 %v8505
        %v9274 = vunpack.c.h.b16 %v8505
        %v9275 = vunpack.c.l.b16 %v8506
        %v9276 = vunpack.c.h.b16 %v8506
        %v9277 = vunpack.c.l.b16 %v8507
        %v9278 = vunpack.c.h.b16 %v8507
        %v9279 = vunpack.c.l.b16 %v8508
        %v9280 = vunpack.c.h.b16 %v8508
        %v9281 = vunpack.c.l.b16 %v8509
        %v9282 = vunpack.c.h.b16 %v8509
        %v9283 = vunpack.c.l.b16 %v8510
        %v9284 = vunpack.c.h.b16 %v8510
        %v9285 = vunpack.c.l.b16 %v8511
        %v9286 = vunpack.c.h.b16 %v8511
        %v9287 = vunpack.c.l.b16 %v8512
        %v9288 = vunpack.c.h.b16 %v8512
        %v9289 = vunpack.c.l.b16 %v8513
        %v9290 = vunpack.c.h.b16 %v8513
        %v9291 = vunpack.c.l.b16 %v8514
        %v9292 = vunpack.c.h.b16 %v8514
        %v9293 = vunpack.c.l.b16 %v8515
        %v9294 = vunpack.c.h.b16 %v8515
        %v9295 = vunpack.c.l.b16 %v8516
        %v9296 = vunpack.c.h.b16 %v8516
        %v9297 = vunpack.c.l.b16 %v8517
        %v9298 = vunpack.c.h.b16 %v8517
        %v9299 = vunpack.c.l.b16 %v8518
        %v9300 = vunpack.c.h.b16 %v8518
        %v9301 = vunpack.c.l.b16 %v8519
        %v9302 = vunpack.c.h.b16 %v8519
        %v9303 = vunpack.c.l.b16 %v8520
        %v9304 = vunpack.c.h.b16 %v8520
        %v9305 = vunpack.c.l.b16 %v8521
        %v9306 = vunpack.c.h.b16 %v8521
        %v9307 = vunpack.c.l.b16 %v8522
        %v9308 = vunpack.c.h.b16 %v8522
        %v9309 = vunpack.c.l.b16 %v8523
        %v9310 = vunpack.c.h.b16 %v8523
        %v9311 = vunpack.c.l.b16 %v8524
        %v9312 = vunpack.c.h.b16 %v8524
        %v9313 = vunpack.c.l.b16 %v8525
        %v9314 = vunpack.c.h.b16 %v8525
        %v9315 = vunpack.c.l.b16 %v8526
        %v9316 = vunpack.c.h.b16 %v8526
        %v9317 = vpack.c.b16 %v8809, %v8805
        %v9318 = vpack.c.b16 %v8810, %v8806
        %v9319 = vpack.c.b16 %v8811, %v8807
        %v9320 = vpack.c.b16 %v8812, %v8808
        %v9321 = vpack.c.b16 %v8817, %v8813
        %v9322 = vpack.c.b16 %v8818, %v8814
        %v9323 = vpack.c.b16 %v8819, %v8815
        %v9324 = vpack.c.b16 %v8820, %v8816
        %v9325 = vpack.c.b16 %v8825, %v8821
        %v9326 = vpack.c.b16 %v8826, %v8822
        %v9327 = vpack.c.b16 %v8827, %v8823
        %v9328 = vpack.c.b16 %v8828, %v8824
        %v9329 = vpack.c.b16 %v8833, %v8829
        %v9330 = vpack.c.b16 %v8834, %v8830
        %v9331 = vpack.c.b16 %v8835, %v8831
        %v9332 = vpack.c.b16 %v8836, %v8832
        %v9333 = vpack.c.b16 %v8841, %v8837
        %v9334 = vpack.c.b16 %v8842, %v8838
        %v9335 = vpack.c.b16 %v8843, %v8839
        %v9336 = vpack.c.b16 %v8844, %v8840
        %v9337 = vpack.c.b16 %v8849, %v8845
        %v9338 = vpack.c.b16 %v8850, %v8846
        %v9339 = vpack.c.b16 %v8851, %v8847
        %v9340 = vpack.c.b16 %v8852, %v8848
        %v9341 = vpack.c.b16 %v8857, %v8853
        %v9342 = vpack.c.b16 %v8858, %v8854
        %v9343 = vpack.c.b16 %v8859, %v8855
        %v9344 = vpack.c.b16 %v8860, %v8856
        %v9345 = vpack.c.b16 %v8865, %v8861
        %v9346 = vpack.c.b16 %v8866, %v8862
        %v9347 = vpack.c.b16 %v8867, %v8863
        %v9348 = vpack.c.b16 %v8868, %v8864
        %v9349 = vpack.c.b16 %v8873, %v8869
        %v9350 = vpack.c.b16 %v8874, %v8870
        %v9351 = vpack.c.b16 %v8875, %v8871
        %v9352 = vpack.c.b16 %v8876, %v8872
        %v9353 = vpack.c.b16 %v8881, %v8877
        %v9354 = vpack.c.b16 %v8882, %v8878
        %v9355 = vpack.c.b16 %v8883, %v8879
        %v9356 = vpack.c.b16 %v8884, %v8880
        %v9357 = vpack.c.b16 %v8889, %v8885
        %v9358 = vpack.c.b16 %v8890, %v8886
        %v9359 = vpack.c.b16 %v8891, %v8887
        %v9360 = vpack.c.b16 %v8892, %v8888
        %v9361 = vpack.c.b16 %v8897, %v8893
        %v9362 = vpack.c.b16 %v8898, %v8894
        %v9363 = vpack.c.b16 %v8899, %v8895
        %v9364 = vpack.c.b16 %v8900, %v8896
        %v9365 = vpack.c.b16 %v8905, %v8901
        %v9366 = vpack.c.b16 %v8906, %v8902
        %v9367 = vpack.c.b16 %v8907, %v8903
        %v9368 = vpack.c.b16 %v8908, %v8904
        %v9369 = vpack.c.b16 %v8913, %v8909
        %v9370 = vpack.c.b16 %v8914, %v8910
        %v9371 = vpack.c.b16 %v8915, %v8911
        %v9372 = vpack.c.b16 %v8916, %v8912
        %v9373 = vpack.c.b16 %v8921, %v8917
        %v9374 = vpack.c.b16 %v8922, %v8918
        %v9375 = vpack.c.b16 %v8923, %v8919
        %v9376 = vpack.c.b16 %v8924, %v8920
        %v9377 = vpack.c.b16 %v8929, %v8925
        %v9378 = vpack.c.b16 %v8930, %v8926
        %v9379 = vpack.c.b16 %v8931, %v8927
        %v9380 = vpack.c.b16 %v8932, %v8928
        %v9381 = vpack.c.b16 %v8937, %v8933
        %v9382 = vpack.c.b16 %v8938, %v8934
        %v9383 = vpack.c.b16 %v8939, %v8935
        %v9384 = vpack.c.b16 %v8940, %v8936
        %v9385 = vpack.c.b16 %v8945, %v8941
        %v9386 = vpack.c.b16 %v8946, %v8942
        %v9387 = vpack.c.b16 %v8947, %v8943
        %v9388 = vpack.c.b16 %v8948, %v8944
        %v9389 = vpack.c.b16 %v8953, %v8949
        %v9390 = vpack.c.b16 %v8954, %v8950
        %v9391 = vpack.c.b16 %v8955, %v8951
        %v9392 = vpack.c.b16 %v8956, %v8952
        %v9393 = vpack.c.b16 %v8961, %v8957
        %v9394 = vpack.c.b16 %v8962, %v8958
        %v9395 = vpack.c.b16 %v8963, %v8959
        %v9396 = vpack.c.b16 %v8964, %v8960
        %v9397 = vpack.c.b16 %v8969, %v8965
        %v9398 = vpack.c.b16 %v8970, %v8966
        %v9399 = vpack.c.b16 %v8971, %v8967
        %v9400 = vpack.c.b16 %v8972, %v8968
        %v9401 = vpack.c.b16 %v8977, %v8973
        %v9402 = vpack.c.b16 %v8978, %v8974
        %v9403 = vpack.c.b16 %v8979, %v8975
        %v9404 = vpack.c.b16 %v8980, %v8976
        %v9405 = vpack.c.b16 %v8985, %v8981
        %v9406 = vpack.c.b16 %v8986, %v8982
        %v9407 = vpack.c.b16 %v8987, %v8983
        %v9408 = vpack.c.b16 %v8988, %v8984
        %v9409 = vpack.c.b16 %v8993, %v8989
        %v9410 = vpack.c.b16 %v8994, %v8990
        %v9411 = vpack.c.b16 %v8995, %v8991
        %v9412 = vpack.c.b16 %v8996, %v8992
        %v9413 = vpack.c.b16 %v9001, %v8997
        %v9414 = vpack.c.b16 %v9002, %v8998
        %v9415 = vpack.c.b16 %v9003, %v8999
        %v9416 = vpack.c.b16 %v9004, %v9000
        %v9417 = vpack.c.b16 %v9009, %v9005
        %v9418 = vpack.c.b16 %v9010, %v9006
        %v9419 = vpack.c.b16 %v9011, %v9007
        %v9420 = vpack.c.b16 %v9012, %v9008
        %v9421 = vpack.c.b16 %v9017, %v9013
        %v9422 = vpack.c.b16 %v9018, %v9014
        %v9423 = vpack.c.b16 %v9019, %v9015
        %v9424 = vpack.c.b16 %v9020, %v9016
        %v9425 = vpack.c.b16 %v9025, %v9021
        %v9426 = vpack.c.b16 %v9026, %v9022
        %v9427 = vpack.c.b16 %v9027, %v9023
        %v9428 = vpack.c.b16 %v9028, %v9024
        %v9429 = vpack.c.b16 %v9033, %v9029
        %v9430 = vpack.c.b16 %v9034, %v9030
        %v9431 = vpack.c.b16 %v9035, %v9031
        %v9432 = vpack.c.b16 %v9036, %v9032
        %v9433 = vpack.c.b16 %v9041, %v9037
        %v9434 = vpack.c.b16 %v9042, %v9038
        %v9435 = vpack.c.b16 %v9043, %v9039
        %v9436 = vpack.c.b16 %v9044, %v9040
        %v9437 = vpack.c.b16 %v9049, %v9045
        %v9438 = vpack.c.b16 %v9050, %v9046
        %v9439 = vpack.c.b16 %v9051, %v9047
        %v9440 = vpack.c.b16 %v9052, %v9048
        %v9441 = vpack.c.b16 %v9057, %v9053
        %v9442 = vpack.c.b16 %v9058, %v9054
        %v9443 = vpack.c.b16 %v9059, %v9055
        %v9444 = vpack.c.b16 %v9060, %v9056
        %v9445 = vpack.c.b16 %v9065, %v9061
        %v9446 = vpack.c.b16 %v9066, %v9062
        %v9447 = vpack.c.b16 %v9067, %v9063
        %v9448 = vpack.c.b16 %v9068, %v9064
        %v9449 = vpack.c.b16 %v9073, %v9069
        %v9450 = vpack.c.b16 %v9074, %v9070
        %v9451 = vpack.c.b16 %v9075, %v9071
        %v9452 = vpack.c.b16 %v9076, %v9072
        %v9453 = vpack.c.b16 %v9081, %v9077
        %v9454 = vpack.c.b16 %v9082, %v9078
        %v9455 = vpack.c.b16 %v9083, %v9079
        %v9456 = vpack.c.b16 %v9084, %v9080
        %v9457 = vpack.c.b16 %v9089, %v9085
        %v9458 = vpack.c.b16 %v9090, %v9086
        %v9459 = vpack.c.b16 %v9091, %v9087
        %v9460 = vpack.c.b16 %v9092, %v9088
        %v9461 = vpack.c.b16 %v9097, %v9093
        %v9462 = vpack.c.b16 %v9098, %v9094
        %v9463 = vpack.c.b16 %v9099, %v9095
        %v9464 = vpack.c.b16 %v9100, %v9096
        %v9465 = vpack.c.b16 %v9105, %v9101
        %v9466 = vpack.c.b16 %v9106, %v9102
        %v9467 = vpack.c.b16 %v9107, %v9103
        %v9468 = vpack.c.b16 %v9108, %v9104
        %v9469 = vpack.c.b16 %v9113, %v9109
        %v9470 = vpack.c.b16 %v9114, %v9110
        %v9471 = vpack.c.b16 %v9115, %v9111
        %v9472 = vpack.c.b16 %v9116, %v9112
        %v9473 = vpack.c.b16 %v9121, %v9117
        %v9474 = vpack.c.b16 %v9122, %v9118
        %v9475 = vpack.c.b16 %v9123, %v9119
        %v9476 = vpack.c.b16 %v9124, %v9120
        %v9477 = vpack.c.b16 %v9129, %v9125
        %v9478 = vpack.c.b16 %v9130, %v9126
        %v9479 = vpack.c.b16 %v9131, %v9127
        %v9480 = vpack.c.b16 %v9132, %v9128
        %v9481 = vpack.c.b16 %v9137, %v9133
        %v9482 = vpack.c.b16 %v9138, %v9134
        %v9483 = vpack.c.b16 %v9139, %v9135
        %v9484 = vpack.c.b16 %v9140, %v9136
        %v9485 = vpack.c.b16 %v9145, %v9141
        %v9486 = vpack.c.b16 %v9146, %v9142
        %v9487 = vpack.c.b16 %v9147, %v9143
        %v9488 = vpack.c.b16 %v9148, %v9144
        %v9489 = vpack.c.b16 %v9153, %v9149
        %v9490 = vpack.c.b16 %v9154, %v9150
        %v9491 = vpack.c.b16 %v9155, %v9151
        %v9492 = vpack.c.b16 %v9156, %v9152
        %v9493 = vpack.c.b16 %v9161, %v9157
        %v9494 = vpack.c.b16 %v9162, %v9158
        %v9495 = vpack.c.b16 %v9163, %v9159
        %v9496 = vpack.c.b16 %v9164, %v9160
        %v9497 = vpack.c.b16 %v9169, %v9165
        %v9498 = vpack.c.b16 %v9170, %v9166
        %v9499 = vpack.c.b16 %v9171, %v9167
        %v9500 = vpack.c.b16 %v9172, %v9168
        %v9501 = vpack.c.b16 %v9177, %v9173
        %v9502 = vpack.c.b16 %v9178, %v9174
        %v9503 = vpack.c.b16 %v9179, %v9175
        %v9504 = vpack.c.b16 %v9180, %v9176
        %v9505 = vpack.c.b16 %v9185, %v9181
        %v9506 = vpack.c.b16 %v9186, %v9182
        %v9507 = vpack.c.b16 %v9187, %v9183
        %v9508 = vpack.c.b16 %v9188, %v9184
        %v9509 = vpack.c.b16 %v9193, %v9189
        %v9510 = vpack.c.b16 %v9194, %v9190
        %v9511 = vpack.c.b16 %v9195, %v9191
        %v9512 = vpack.c.b16 %v9196, %v9192
        %v9513 = vpack.c.b16 %v9201, %v9197
        %v9514 = vpack.c.b16 %v9202, %v9198
        %v9515 = vpack.c.b16 %v9203, %v9199
        %v9516 = vpack.c.b16 %v9204, %v9200
        %v9517 = vpack.c.b16 %v9209, %v9205
        %v9518 = vpack.c.b16 %v9210, %v9206
        %v9519 = vpack.c.b16 %v9211, %v9207
        %v9520 = vpack.c.b16 %v9212, %v9208
        %v9521 = vpack.c.b16 %v9217, %v9213
        %v9522 = vpack.c.b16 %v9218, %v9214
        %v9523 = vpack.c.b16 %v9219, %v9215
        %v9524 = vpack.c.b16 %v9220, %v9216
        %v9525 = vpack.c.b16 %v9225, %v9221
        %v9526 = vpack.c.b16 %v9226, %v9222
        %v9527 = vpack.c.b16 %v9227, %v9223
        %v9528 = vpack.c.b16 %v9228, %v9224
        %v9529 = vpack.c.b16 %v9233, %v9229
        %v9530 = vpack.c.b16 %v9234, %v9230
        %v9531 = vpack.c.b16 %v9235, %v9231
        %v9532 = vpack.c.b16 %v9236, %v9232
        %v9533 = vpack.c.b16 %v9241, %v9237
        %v9534 = vpack.c.b16 %v9242, %v9238
        %v9535 = vpack.c.b16 %v9243, %v9239
        %v9536 = vpack.c.b16 %v9244, %v9240
        %v9537 = vpack.c.b16 %v9249, %v9245
        %v9538 = vpack.c.b16 %v9250, %v9246
        %v9539 = vpack.c.b16 %v9251, %v9247
        %v9540 = vpack.c.b16 %v9252, %v9248
        %v9541 = vpack.c.b16 %v9257, %v9253
        %v9542 = vpack.c.b16 %v9258, %v9254
        %v9543 = vpack.c.b16 %v9259, %v9255
        %v9544 = vpack.c.b16 %v9260, %v9256
        %v9545 = vpack.c.b16 %v9265, %v9261
        %v9546 = vpack.c.b16 %v9266, %v9262
        %v9547 = vpack.c.b16 %v9267, %v9263
        %v9548 = vpack.c.b16 %v9268, %v9264
        %v9549 = vpack.c.b16 %v9273, %v9269
        %v9550 = vpack.c.b16 %v9274, %v9270
        %v9551 = vpack.c.b16 %v9275, %v9271
        %v9552 = vpack.c.b16 %v9276, %v9272
        %v9553 = vpack.c.b16 %v9281, %v9277
        %v9554 = vpack.c.b16 %v9282, %v9278
        %v9555 = vpack.c.b16 %v9283, %v9279
        %v9556 = vpack.c.b16 %v9284, %v9280
        %v9557 = vpack.c.b16 %v9289, %v9285
        %v9558 = vpack.c.b16 %v9290, %v9286
        %v9559 = vpack.c.b16 %v9291, %v9287
        %v9560 = vpack.c.b16 %v9292, %v9288
        %v9561 = vpack.c.b16 %v9297, %v9293
        %v9562 = vpack.c.b16 %v9298, %v9294
        %v9563 = vpack.c.b16 %v9299, %v9295
        %v9564 = vpack.c.b16 %v9300, %v9296
        %v9565 = vpack.c.b16 %v9305, %v9301
        %v9566 = vpack.c.b16 %v9306, %v9302
        %v9567 = vpack.c.b16 %v9307, %v9303
        %v9568 = vpack.c.b16 %v9308, %v9304
        %v9569 = vpack.c.b16 %v9313, %v9309
        %v9570 = vpack.c.b16 %v9314, %v9310
        %v9571 = vpack.c.b16 %v9315, %v9311
        %v9572 = vpack.c.b16 %v9316, %v9312
        %9829 = vmatprep.subr.bf16.mxu0 %v9318
        %9830 = vmatpush1.bf16.msra.mxu0 %v9317
        %9831 = vmatprep.subr.bf16.mxu0 %v9322
        %9832 = vmatpush1.bf16.msra.mxu0 %v9321
        %9833 = vmatprep.subr.bf16.mxu0 %v9326
        %9834 = vmatpush1.bf16.msra.mxu0 %v9325
        %9835 = vmatprep.subr.bf16.mxu0 %v9330
        %9836 = vmatpush1.bf16.msra.mxu0 %v9329
        %9837 = vmatprep.subr.bf16.mxu0 %v9334
        %9838 = vmatpush1.bf16.msra.mxu0 %v9333
        %9839 = vmatprep.subr.bf16.mxu0 %v9338
        %9840 = vmatpush1.bf16.msra.mxu0 %v9337
        %9841 = vmatprep.subr.bf16.mxu0 %v9342
        %9842 = vmatpush1.bf16.msra.mxu0 %v9341
        %9843 = vmatprep.subr.bf16.mxu0 %v9346
        %9844 = vmatpush1.bf16.msra.mxu0 %v9345
        %9845 = vmatprep.subr.bf16.mxu0 %v9350
        %9846 = vmatpush1.bf16.msra.mxu0 %v9349
        %9847 = vmatprep.subr.bf16.mxu0 %v9354
        %9848 = vmatpush1.bf16.msra.mxu0 %v9353
        %9849 = vmatprep.subr.bf16.mxu0 %v9358
        %9850 = vmatpush1.bf16.msra.mxu0 %v9357
        %9851 = vmatprep.subr.bf16.mxu0 %v9362
        %9852 = vmatpush1.bf16.msra.mxu0 %v9361
        %9853 = vmatprep.subr.bf16.mxu0 %v9366
        %9854 = vmatpush1.bf16.msra.mxu0 %v9365
        %9855 = vmatprep.subr.bf16.mxu0 %v9370
        %9856 = vmatpush1.bf16.msra.mxu0 %v9369
        %9857 = vmatprep.subr.bf16.mxu0 %v9374
        %9858 = vmatpush1.bf16.msra.mxu0 %v9373
        %9859 = vmatprep.subr.bf16.mxu0 %v9378
        %9860 = vmatpush1.bf16.msra.mxu0 %v9377
        %9861 = vmatprep.mubr.bf16.mxu0 %v8256
        %9862 = vmatmul.mubr.bf16.gmra.mrb[0].mxu0 %v8255
        %v9863 = vpop.f32.mrb[0].mxu0
        %v9864 = vadd.f32 %v8532, %v9863
        %v9865 = vpop.f32.mrb[0].mxu0
        %v9866 = vadd.f32 %v8536, %v9865
        %v9867 = vpop.f32.mrb[0].mxu0
        %v9868 = vadd.f32 %v8532, %v9867
        %v9869 = vpop.f32.mrb[0].mxu0
        %v9870 = vadd.f32 %v8536, %v9869
        %9871 = vmatprep.mubr.bf16.mxu0 %v8264
        %9872 = vmatmul.mubr.bf16.gmra.mrb[0].mxu0 %v8263
        %v9873 = vpop.f32.mrb[0].mxu0
        %v9874 = vadd.f32 %v8532, %v9873
        %v9875 = vpop.f32.mrb[0].mxu0
        %v9876 = vadd.f32 %v8536, %v9875
        %v9877 = vpop.f32.mrb[0].mxu0
        %v9878 = vadd.f32 %v8532, %v9877
        %v9879 = vpop.f32.mrb[0].mxu0
        %v9880 = vadd.f32 %v8536, %v9879
        %9881 = vdwg.mxu0
        %9882 = vmatprep.subr.bf16.mxu0 %v9382
        %9883 = vmatpush1.bf16.msra.mxu0 %v9381
        %9884 = vmatprep.subr.bf16.mxu0 %v9386
        %9885 = vmatpush1.bf16.msra.mxu0 %v9385
        %9886 = vmatprep.subr.bf16.mxu0 %v9390
        %9887 = vmatpush1.bf16.msra.mxu0 %v9389
        %9888 = vmatprep.subr.bf16.mxu0 %v9394
        %9889 = vmatpush1.bf16.msra.mxu0 %v9393
        %9890 = vmatprep.subr.bf16.mxu0 %v9398
        %9891 = vmatpush1.bf16.msra.mxu0 %v9397
        %9892 = vmatprep.subr.bf16.mxu0 %v9402
        %9893 = vmatpush1.bf16.msra.mxu0 %v9401
        %9894 = vmatprep.subr.bf16.mxu0 %v9406
        %9895 = vmatpush1.bf16.msra.mxu0 %v9405
        %9896 = vmatprep.subr.bf16.mxu0 %v9410
        %9897 = vmatpush1.bf16.msra.mxu0 %v9409
        %9898 = vmatprep.subr.bf16.mxu0 %v9414
        %9899 = vmatpush1.bf16.msra.mxu0 %v9413
        %9900 = vmatprep.subr.bf16.mxu0 %v9418
        %9901 = vmatpush1.bf16.msra.mxu0 %v9417
        %9902 = vmatprep.subr.bf16.mxu0 %v9422
        %9903 = vmatpush1.bf16.msra.mxu0 %v9421
        %9904 = vmatprep.subr.bf16.mxu0 %v9426
        %9905 = vmatpush1.bf16.msra.mxu0 %v9425
        %9906 = vmatprep.subr.bf16.mxu0 %v9430
        %9907 = vmatpush1.bf16.msra.mxu0 %v9429
        %9908 = vmatprep.subr.bf16.mxu0 %v9434
        %9909 = vmatpush1.bf16.msra.mxu0 %v9433
        %9910 = vmatprep.subr.bf16.mxu0 %v9438
        %9911 = vmatpush1.bf16.msra.mxu0 %v9437
        %9912 = vmatprep.subr.bf16.mxu0 %v9442
        %9913 = vmatpush1.bf16.msra.mxu0 %v9441
        %9914 = vmatprep.mubr.bf16.mxu0 %v8258
        %9915 = vmatmul.mubr.bf16.gmra.mrb[0].mxu0 %v8257
        %v9916 = vpop.f32.mrb[0].mxu0
        %v9917 = vadd.f32 %v9864, %v9916
        %v9918 = vpop.f32.mrb[0].mxu0
        %v9919 = vadd.f32 %v9866, %v9918
        %v9920 = vpop.f32.mrb[0].mxu0
        %v9921 = vadd.f32 %v9868, %v9920
        %v9922 = vpop.f32.mrb[0].mxu0
        %v9923 = vadd.f32 %v9870, %v9922
        %9924 = vmatprep.mubr.bf16.mxu0 %v8266
        %9925 = vmatmul.mubr.bf16.gmra.mrb[0].mxu0 %v8265
        %v9926 = vpop.f32.mrb[0].mxu0
        %v9927 = vadd.f32 %v9874, %v9926
        %v9928 = vpop.f32.mrb[0].mxu0
        %v9929 = vadd.f32 %v9876, %v9928
        %v9930 = vpop.f32.mrb[0].mxu0
        %v9931 = vadd.f32 %v9878, %v9930
        %v9932 = vpop.f32.mrb[0].mxu0
        %v9933 = vadd.f32 %v9880, %v9932
        %9934 = vdwg.mxu0
        %9935 = vmatprep.subr.bf16.mxu0 %v9446
        %9936 = vmatpush1.bf16.msra.mxu0 %v9445
        %9937 = vmatprep.subr.bf16.mxu0 %v9450
        %9938 = vmatpush1.bf16.msra.mxu0 %v9449
        %9939 = vmatprep.subr.bf16.mxu0 %v9454
        %9940 = vmatpush1.bf16.msra.mxu0 %v9453
        %9941 = vmatprep.subr.bf16.mxu0 %v9458
        %9942 = vmatpush1.bf16.msra.mxu0 %v9457
        %9943 = vmatprep.subr.bf16.mxu0 %v9462
        %9944 = vmatpush1.bf16.msra.mxu0 %v9461
        %9945 = vmatprep.subr.bf16.mxu0 %v9466
        %9946 = vmatpush1.bf16.msra.mxu0 %v9465
        %9947 = vmatprep.subr.bf16.mxu0 %v9470
        %9948 = vmatpush1.bf16.msra.mxu0 %v9469
        %9949 = vmatprep.subr.bf16.mxu0 %v9474
        %9950 = vmatpush1.bf16.msra.mxu0 %v9473
        %9951 = vmatprep.subr.bf16.mxu0 %v9478
        %9952 = vmatpush1.bf16.msra.mxu0 %v9477
        %9953 = vmatprep.subr.bf16.mxu0 %v9482
        %9954 = vmatpush1.bf16.msra.mxu0 %v9481
        %9955 = vmatprep.subr.bf16.mxu0 %v9486
        %9956 = vmatpush1.bf16.msra.mxu0 %v9485
        %9957 = vmatprep.subr.bf16.mxu0 %v9490
        %9958 = vmatpush1.bf16.msra.mxu0 %v9489
        %9959 = vmatprep.subr.bf16.mxu0 %v9494
        %9960 = vmatpush1.bf16.msra.mxu0 %v9493
        %9961 = vmatprep.subr.bf16.mxu0 %v9498
        %9962 = vmatpush1.bf16.msra.mxu0 %v9497
        %9963 = vmatprep.subr.bf16.mxu0 %v9502
        %9964 = vmatpush1.bf16.msra.mxu0 %v9501
        %9965 = vmatprep.subr.bf16.mxu0 %v9506
        %9966 = vmatpush1.bf16.msra.mxu0 %v9505
        %9967 = vmatprep.mubr.bf16.mxu0 %v8260
        %9968 = vmatmul.mubr.bf16.gmra.mrb[0].mxu0 %v8259
        %v9969 = vpop.f32.mrb[0].mxu0
        %v9970 = vadd.f32 %v9917, %v9969
        %v9971 = vpop.f32.mrb[0].mxu0
        %v9972 = vadd.f32 %v9919, %v9971
        %v9973 = vpop.f32.mrb[0].mxu0
        %v9974 = vadd.f32 %v9921, %v9973
        %v9975 = vpop.f32.mrb[0].mxu0
        %v9976 = vadd.f32 %v9923, %v9975
        %9977 = vmatprep.mubr.bf16.mxu0 %v8268
        %9978 = vmatmul.mubr.bf16.gmra.mrb[0].mxu0 %v8267
        %v9979 = vpop.f32.mrb[0].mxu0
        %v9980 = vadd.f32 %v9927, %v9979
        %v9981 = vpop.f32.mrb[0].mxu0
        %v9982 = vadd.f32 %v9929, %v9981
        %v9983 = vpop.f32.mrb[0].mxu0
        %v9984 = vadd.f32 %v9931, %v9983
        %v9985 = vpop.f32.mrb[0].mxu0
        %v9986 = vadd.f32 %v9933, %v9985
        %9987 = vdwg.mxu0
        %9988 = vmatprep.subr.bf16.mxu0 %v9510
        %9989 = vmatpush1.bf16.msra.mxu0 %v9509
        %9990 = vmatprep.subr.bf16.mxu0 %v9514
        %9991 = vmatpush1.bf16.msra.mxu0 %v9513
        %9992 = vmatprep.subr.bf16.mxu0 %v9518
        %9993 = vmatpush1.bf16.msra.mxu0 %v9517
        %9994 = vmatprep.subr.bf16.mxu0 %v9522
        %9995 = vmatpush1.bf16.msra.mxu0 %v9521
        %9996 = vmatprep.subr.bf16.mxu0 %v9526
        %9997 = vmatpush1.bf16.msra.mxu0 %v9525
        %9998 = vmatprep.subr.bf16.mxu0 %v9530
        %9999 = vmatpush1.bf16.msra.mxu0 %v9529
        %10000 = vmatprep.subr.bf16.mxu0 %v9534
        %10001 = vmatpush1.bf16.msra.mxu0 %v9533
        %10002 = vmatprep.subr.bf16.mxu0 %v9538
        %10003 = vmatpush1.bf16.msra.mxu0 %v9537
        %10004 = vmatprep.subr.bf16.mxu0 %v9542
        %10005 = vmatpush1.bf16.msra.mxu0 %v9541
        %10006 = vmatprep.subr.bf16.mxu0 %v9546
        %10007 = vmatpush1.bf16.msra.mxu0 %v9545
        %10008 = vmatprep.subr.bf16.mxu0 %v9550
        %10009 = vmatpush1.bf16.msra.mxu0 %v9549
        %10010 = vmatprep.subr.bf16.mxu0 %v9554
        %10011 = vmatpush1.bf16.msra.mxu0 %v9553
        %10012 = vmatprep.subr.bf16.mxu0 %v9558
        %10013 = vmatpush1.bf16.msra.mxu0 %v9557
        %10014 = vmatprep.subr.bf16.mxu0 %v9562
        %10015 = vmatpush1.bf16.msra.mxu0 %v9561
        %10016 = vmatprep.subr.bf16.mxu0 %v9566
        %10017 = vmatpush1.bf16.msra.mxu0 %v9565
        %10018 = vmatprep.subr.bf16.mxu0 %v9570
        %10019 = vmatpush1.bf16.msra.mxu0 %v9569
        %10020 = vmatprep.mubr.bf16.mxu0 %v8262
        %10021 = vmatmul.mubr.bf16.gmra.mrb[0].mxu0 %v8261
        %v10022 = vpop.f32.mrb[0].mxu0
        %v10023 = vadd.f32 %v9970, %v10022
        %v10024 = vpop.f32.mrb[0].mxu0
        %v10025 = vadd.f32 %v9972, %v10024
        %v10026 = vpop.f32.mrb[0].mxu0
        %v10027 = vadd.f32 %v9974, %v10026
        %v10028 = vpop.f32.mrb[0].mxu0
        %v10029 = vadd.f32 %v9976, %v10028
        %10030 = vmatprep.mubr.bf16.mxu0 %v8270
        %10031 = vmatmul.mubr.bf16.gmra.mrb[0].mxu0 %v8269
        %v10032 = vpop.f32.mrb[0].mxu0
        %v10033 = vadd.f32 %v9980, %v10032
        %v10034 = vpop.f32.mrb[0].mxu0
        %v10035 = vadd.f32 %v9982, %v10034
        %v10036 = vpop.f32.mrb[0].mxu0
        %v10037 = vadd.f32 %v9984, %v10036
        %v10038 = vpop.f32.mrb[0].mxu0
        %v10039 = vadd.f32 %v9986, %v10038
        %10040 = vdwg.mxu0
        %10041 = vmatprep.subr.bf16.mxu0 %v9320
        %10042 = vmatpush1.bf16.msra.mxu0 %v9319
        %10043 = vmatprep.subr.bf16.mxu0 %v9324
        %10044 = vmatpush1.bf16.msra.mxu0 %v9323
        %10045 = vmatprep.subr.bf16.mxu0 %v9328
        %10046 = vmatpush1.bf16.msra.mxu0 %v9327
        %10047 = vmatprep.subr.bf16.mxu0 %v9332
        %10048 = vmatpush1.bf16.msra.mxu0 %v9331
        %10049 = vmatprep.subr.bf16.mxu0 %v9336
        %10050 = vmatpush1.bf16.msra.mxu0 %v9335
        %10051 = vmatprep.subr.bf16.mxu0 %v9340
        %10052 = vmatpush1.bf16.msra.mxu0 %v9339
        %10053 = vmatprep.subr.bf16.mxu0 %v9344
        %10054 = vmatpush1.bf16.msra.mxu0 %v9343
        %10055 = vmatprep.subr.bf16.mxu0 %v9348
        %10056 = vmatpush1.bf16.msra.mxu0 %v9347
        %10057 = vmatprep.subr.bf16.mxu0 %v9352
        %10058 = vmatpush1.bf16.msra.mxu0 %v9351
        %10059 = vmatprep.subr.bf16.mxu0 %v9356
        %10060 = vmatpush1.bf16.msra.mxu0 %v9355
        %10061 = vmatprep.subr.bf16.mxu0 %v9360
        %10062 = vmatpush1.bf16.msra.mxu0 %v9359
        %10063 = vmatprep.subr.bf16.mxu0 %v9364
        %10064 = vmatpush1.bf16.msra.mxu0 %v9363
        %10065 = vmatprep.subr.bf16.mxu0 %v9368
        %10066 = vmatpush1.bf16.msra.mxu0 %v9367
        %10067 = vmatprep.subr.bf16.mxu0 %v9372
        %10068 = vmatpush1.bf16.msra.mxu0 %v9371
        %10069 = vmatprep.subr.bf16.mxu0 %v9376
        %10070 = vmatpush1.bf16.msra.mxu0 %v9375
        %10071 = vmatprep.subr.bf16.mxu0 %v9380
        %10072 = vmatpush1.bf16.msra.mxu0 %v9379
        %10073 = vmatprep.mubr.bf16.mxu0 %v8256
        %10074 = vmatmul.mubr.bf16.gmra.mrb[0].mxu0 %v8255
        %v10075 = vpop.f32.mrb[0].mxu0
        %v10076 = vadd.f32 %v8540, %v10075
        %v10077 = vpop.f32.mrb[0].mxu0
        %v10078 = vadd.f32 %v8544, %v10077
        %v10079 = vpop.f32.mrb[0].mxu0
        %v10080 = vadd.f32 %v8540, %v10079
        %v10081 = vpop.f32.mrb[0].mxu0
        %v10082 = vadd.f32 %v8544, %v10081
        %10083 = vmatprep.mubr.bf16.mxu0 %v8264
        %10084 = vmatmul.mubr.bf16.gmra.mrb[0].mxu0 %v8263
        %v10085 = vpop.f32.mrb[0].mxu0
        %v10086 = vadd.f32 %v8540, %v10085
        %v10087 = vpop.f32.mrb[0].mxu0
        %v10088 = vadd.f32 %v8544, %v10087
        %v10089 = vpop.f32.mrb[0].mxu0
        %v10090 = vadd.f32 %v8540, %v10089
        %v10091 = vpop.f32.mrb[0].mxu0
        %v10092 = vadd.f32 %v8544, %v10091
        %10093 = vdwg.mxu0
        %10094 = vmatprep.subr.bf16.mxu0 %v9384
        %10095 = vmatpush1.bf16.msra.mxu0 %v9383
        %10096 = vmatprep.subr.bf16.mxu0 %v9388
        %10097 = vmatpush1.bf16.msra.mxu0 %v9387
        %10098 = vmatprep.subr.bf16.mxu0 %v9392
        %10099 = vmatpush1.bf16.msra.mxu0 %v9391
        %10100 = vmatprep.subr.bf16.mxu0 %v9396
        %10101 = vmatpush1.bf16.msra.mxu0 %v9395
        %10102 = vmatprep.subr.bf16.mxu0 %v9400
        %10103 = vmatpush1.bf16.msra.mxu0 %v9399
        %10104 = vmatprep.subr.bf16.mxu0 %v9404
        %10105 = vmatpush1.bf16.msra.mxu0 %v9403
        %10106 = vmatprep.subr.bf16.mxu0 %v9408
        %10107 = vmatpush1.bf16.msra.mxu0 %v9407
        %10108 = vmatprep.subr.bf16.mxu0 %v9412
        %10109 = vmatpush1.bf16.msra.mxu0 %v9411
        %10110 = vmatprep.subr.bf16.mxu0 %v9416
        %10111 = vmatpush1.bf16.msra.mxu0 %v9415
        %10112 = vmatprep.subr.bf16.mxu0 %v9420
        %10113 = vmatpush1.bf16.msra.mxu0 %v9419
        %10114 = vmatprep.subr.bf16.mxu0 %v9424
        %10115 = vmatpush1.bf16.msra.mxu0 %v9423
        %10116 = vmatprep.subr.bf16.mxu0 %v9428
        %10117 = vmatpush1.bf16.msra.mxu0 %v9427
        %10118 = vmatprep.subr.bf16.mxu0 %v9432
        %10119 = vmatpush1.bf16.msra.mxu0 %v9431
        %10120 = vmatprep.subr.bf16.mxu0 %v9436
        %10121 = vmatpush1.bf16.msra.mxu0 %v9435
        %10122 = vmatprep.subr.bf16.mxu0 %v9440
        %10123 = vmatpush1.bf16.msra.mxu0 %v9439
        %10124 = vmatprep.subr.bf16.mxu0 %v9444
        %10125 = vmatpush1.bf16.msra.mxu0 %v9443
        %10126 = vmatprep.mubr.bf16.mxu0 %v8258
        %10127 = vmatmul.mubr.bf16.gmra.mrb[0].mxu0 %v8257
        %v10128 = vpop.f32.mrb[0].mxu0
        %v10129 = vadd.f32 %v10076, %v10128
        %v10130 = vpop.f32.mrb[0].mxu0
        %v10131 = vadd.f32 %v10078, %v10130
        %v10132 = vpop.f32.mrb[0].mxu0
        %v10133 = vadd.f32 %v10080, %v10132
        %v10134 = vpop.f32.mrb[0].mxu0
        %v10135 = vadd.f32 %v10082, %v10134
        %10136 = vmatprep.mubr.bf16.mxu0 %v8266
        %10137 = vmatmul.mubr.bf16.gmra.mrb[0].mxu0 %v8265
        %v10138 = vpop.f32.mrb[0].mxu0
        %v10139 = vadd.f32 %v10086, %v10138
        %v10140 = vpop.f32.mrb[0].mxu0
        %v10141 = vadd.f32 %v10088, %v10140
        %v10142 = vpop.f32.mrb[0].mxu0
        %v10143 = vadd.f32 %v10090, %v10142
        %v10144 = vpop.f32.mrb[0].mxu0
        %v10145 = vadd.f32 %v10092, %v10144
        %10146 = vdwg.mxu0
        %10147 = vmatprep.subr.bf16.mxu0 %v9448
        %10148 = vmatpush1.bf16.msra.mxu0 %v9447
        %10149 = vmatprep.subr.bf16.mxu0 %v9452
        %10150 = vmatpush1.bf16.msra.mxu0 %v9451
        %10151 = vmatprep.subr.bf16.mxu0 %v9456
        %10152 = vmatpush1.bf16.msra.mxu0 %v9455
        %10153 = vmatprep.subr.bf16.mxu0 %v9460
        %10154 = vmatpush1.bf16.msra.mxu0 %v9459
        %10155 = vmatprep.subr.bf16.mxu0 %v9464
        %10156 = vmatpush1.bf16.msra.mxu0 %v9463
        %10157 = vmatprep.subr.bf16.mxu0 %v9468
        %10158 = vmatpush1.bf16.msra.mxu0 %v9467
        %10159 = vmatprep.subr.bf16.mxu0 %v9472
        %10160 = vmatpush1.bf16.msra.mxu0 %v9471
        %10161 = vmatprep.subr.bf16.mxu0 %v9476
        %10162 = vmatpush1.bf16.msra.mxu0 %v9475
        %10163 = vmatprep.subr.bf16.mxu0 %v9480
        %10164 = vmatpush1.bf16.msra.mxu0 %v9479
        %10165 = vmatprep.subr.bf16.mxu0 %v9484
        %10166 = vmatpush1.bf16.msra.mxu0 %v9483
        %10167 = vmatprep.subr.bf16.mxu0 %v9488
        %10168 = vmatpush1.bf16.msra.mxu0 %v9487
        %10169 = vmatprep.subr.bf16.mxu0 %v9492
        %10170 = vmatpush1.bf16.msra.mxu0 %v9491
        %10171 = vmatprep.subr.bf16.mxu0 %v9496
        %10172 = vmatpush1.bf16.msra.mxu0 %v9495
        %10173 = vmatprep.subr.bf16.mxu0 %v9500
        %10174 = vmatpush1.bf16.msra.mxu0 %v9499
        %10175 = vmatprep.subr.bf16.mxu0 %v9504
        %10176 = vmatpush1.bf16.msra.mxu0 %v9503
        %10177 = vmatprep.subr.bf16.mxu0 %v9508
        %10178 = vmatpush1.bf16.msra.mxu0 %v9507
        %10179 = vmatprep.mubr.bf16.mxu0 %v8260
        %10180 = vmatmul.mubr.bf16.gmra.mrb[0].mxu0 %v8259
        %v10181 = vpop.f32.mrb[0].mxu0
        %v10182 = vadd.f32 %v10129, %v10181
        %v10183 = vpop.f32.mrb[0].mxu0
        %v10184 = vadd.f32 %v10131, %v10183
        %v10185 = vpop.f32.mrb[0].mxu0
        %v10186 = vadd.f32 %v10133, %v10185
        %v10187 = vpop.f32.mrb[0].mxu0
        %v10188 = vadd.f32 %v10135, %v10187
        %10189 = vmatprep.mubr.bf16.mxu0 %v8268
        %10190 = vmatmul.mubr.bf16.gmra.mrb[0].mxu0 %v8267
        %v10191 = vpop.f32.mrb[0].mxu0
        %v10192 = vadd.f32 %v10139, %v10191
        %v10193 = vpop.f32.mrb[0].mxu0
        %v10194 = vadd.f32 %v10141, %v10193
        %v10195 = vpop.f32.mrb[0].mxu0
        %v10196 = vadd.f32 %v10143, %v10195
        %v10197 = vpop.f32.mrb[0].mxu0
        %v10198 = vadd.f32 %v10145, %v10197
        %10199 = vdwg.mxu0
        %10200 = vmatprep.subr.bf16.mxu0 %v9512
        %10201 = vmatpush1.bf16.msra.mxu0 %v9511
        %10202 = vmatprep.subr.bf16.mxu0 %v9516
        %10203 = vmatpush1.bf16.msra.mxu0 %v9515
        %10204 = vmatprep.subr.bf16.mxu0 %v9520
        %10205 = vmatpush1.bf16.msra.mxu0 %v9519
        %10206 = vmatprep.subr.bf16.mxu0 %v9524
        %10207 = vmatpush1.bf16.msra.mxu0 %v9523
        %10208 = vmatprep.subr.bf16.mxu0 %v9528
        %10209 = vmatpush1.bf16.msra.mxu0 %v9527
        %10210 = vmatprep.subr.bf16.mxu0 %v9532
        %10211 = vmatpush1.bf16.msra.mxu0 %v9531
        %10212 = vmatprep.subr.bf16.mxu0 %v9536
        %10213 = vmatpush1.bf16.msra.mxu0 %v9535
        %10214 = vmatprep.subr.bf16.mxu0 %v9540
        %10215 = vmatpush1.bf16.msra.mxu0 %v9539
        %10216 = vmatprep.subr.bf16.mxu0 %v9544
        %10217 = vmatpush1.bf16.msra.mxu0 %v9543
        %10218 = vmatprep.subr.bf16.mxu0 %v9548
        %10219 = vmatpush1.bf16.msra.mxu0 %v9547
        %10220 = vmatprep.subr.bf16.mxu0 %v9552
        %10221 = vmatpush1.bf16.msra.mxu0 %v9551
        %10222 = vmatprep.subr.bf16.mxu0 %v9556
        %10223 = vmatpush1.bf16.msra.mxu0 %v9555
        %10224 = vmatprep.subr.bf16.mxu0 %v9560
        %10225 = vmatpush1.bf16.msra.mxu0 %v9559
        %10226 = vmatprep.subr.bf16.mxu0 %v9564
        %10227 = vmatpush1.bf16.msra.mxu0 %v9563
        %10228 = vmatprep.subr.bf16.mxu0 %v9568
        %10229 = vmatpush1.bf16.msra.mxu0 %v9567
        %10230 = vmatprep.subr.bf16.mxu0 %v9572
        %10231 = vmatpush1.bf16.msra.mxu0 %v9571
        %10232 = vmatprep.mubr.bf16.mxu0 %v8262
        %10233 = vmatmul.mubr.bf16.gmra.mrb[0].mxu0 %v8261
        %v10234 = vpop.f32.mrb[0].mxu0
        %v10235 = vadd.f32 %v10182, %v10234
        %v10236 = vpop.f32.mrb[0].mxu0
        %v10237 = vadd.f32 %v10184, %v10236
        %v10238 = vpop.f32.mrb[0].mxu0
        %v10239 = vadd.f32 %v10186, %v10238
        %v10240 = vpop.f32.mrb[0].mxu0
        %v10241 = vadd.f32 %v10188, %v10240
        %10242 = vmatprep.mubr.bf16.mxu0 %v8270
        %10243 = vmatmul.mubr.bf16.gmra.mrb[0].mxu0 %v8269
        %v10244 = vpop.f32.mrb[0].mxu0
        %v10245 = vadd.f32 %v10192, %v10244
        %v10246 = vpop.f32.mrb[0].mxu0
        %v10247 = vadd.f32 %v10194, %v10246
        %v10248 = vpop.f32.mrb[0].mxu0
        %v10249 = vadd.f32 %v10196, %v10248
        %v10250 = vpop.f32.mrb[0].mxu0
        %v10251 = vadd.f32 %v10198, %v10250
        %10252 = vdwg.mxu0
        %v10253 = vadd.f32 %v10023, %v5761
        %v10254 = vadd.f32 %v10025, %v5762
        %v10255 = vadd.f32 %v10235, %v5763
        %v10256 = vadd.f32 %v10237, %v5764
        %v10257 = vadd.f32 %v10027, %v5765
        %v10258 = vadd.f32 %v10029, %v5766
        %v10259 = vadd.f32 %v10239, %v5767
        %v10260 = vadd.f32 %v10241, %v5768
        %v10261 = vadd.f32 %v10033, %v5769
        %v10262 = vadd.f32 %v10035, %v5770
        %v10263 = vadd.f32 %v10245, %v5771
        %v10264 = vadd.f32 %v10247, %v5772
        %v10265 = vadd.f32 %v10037, %v5773
        %v10266 = vadd.f32 %v10039, %v5774
        %v10267 = vadd.f32 %v10249, %v5775
        %v10268 = vadd.f32 %v10251, %v5776
        %10269 = vst [vmem:[%s617] sm:$0xff] %v10253
        %10270 = vst [vmem:[%s617 + $0x8] sm:$0xff] %v10254
        %10271 = vst [vmem:[%s617 + $0x10] sm:$0xff] %v10255
        %10272 = vst [vmem:[%s617 + $0x18] sm:$0xff] %v10256
        %10273 = vst [vmem:[%s617 + $0x20] sm:$0xff] %v10257
        %10274 = vst [vmem:[%s617 + $0x28] sm:$0xff] %v10258
        %10275 = vst [vmem:[%s617 + $0x30] sm:$0xff] %v10259
        %10276 = vst [vmem:[%s617 + $0x38] sm:$0xff] %v10260
        %10277 = vst [vmem:[%s617 + $0x40] sm:$0xff] %v10261
        %10278 = vst [vmem:[%s617 + $0x48] sm:$0xff] %v10262
        %10279 = vst [vmem:[%s617 + $0x50] sm:$0xff] %v10263
        %10280 = vst [vmem:[%s617 + $0x58] sm:$0xff] %v10264
        %10281 = vst [vmem:[%s617 + $0x60] sm:$0xff] %v10265
        %10282 = vst [vmem:[%s617 + $0x68] sm:$0xff] %v10266
        %10283 = vst [vmem:[%s617 + $0x70] sm:$0xff] %v10267
        %10284 = vst [vmem:[%s617 + $0x78] sm:$0xff] %v10268
        %s10285 = sand.u32 %s322, 1
        %s10286 = scalar_lea.sflag [#allocation5], %s10285
        %s10287 = sand.u32 %s322, 1
        %s10288 = smul.addr %s10287, 128
        %s10289 = scalar_lea.vmem [#allocation24], %s10288
        // Predicated region
        $region125: #{encoder_block_pallas.1} parent=71 // pred_check
          %p10290 = pneg %p332
        $region126: #{encoder_block_pallas.1} parent=71 // pred_check_branch
          %10292 = sbr.rel (%p10290) target = $region128
        $region127: #{encoder_block_pallas.1} parent=71 // pred_region
          %s10293 = smul.u32 2, %s36
          %s10295 = ssub.s32 2048, 2048
          %10296 = vsyncadd %s10286, %s10295
          %s10297 = smul.addr %s10293, 8
          %s10298 = smul.addr %s10297, 128
          %s10299 = scalar_lea.hbm %s13, %s10298
          %s10300 = sshll.u32 %s10289, 4
          %s10301 = int_to_ptr.vmem [resolvable:$true] %s10300
          %10306 = dma.vmem_to_hbm [thread:$0]  %s10301, 2048, %s10299, %s10286, 512, 512, 32
        $region128: #{encoder_block_pallas.1} parent=71 // pred_fallthru
          _
      $region72: #{encoder_block_pallas.1} parent=5 // pred_fallthru
        _
      %p10307 = scmp.le.s32.totalorder 2, %s31
      // Predicated region
      $region129: #{encoder_block_pallas.1} parent=5 // pred_check
        %p10308 = pneg %p10307
      $region130: #{encoder_block_pallas.1} parent=5 // pred_check_branch
        %10310 = sbr.rel (%p10308) target = $region132
      $region131: #{encoder_block_pallas.1} parent=5 // pred_region
        %s10311 = ssub.s32 %s31, 2
        // Predicated region
        $region133: #{encoder_block_pallas.1} parent=131 // pred_check
          %p10312 = pneg %p338
        $region134: #{encoder_block_pallas.1} parent=131 // pred_check_branch
          %10314 = sbr.rel (%p10312) target = $region136
        $region135: #{encoder_block_pallas.1} parent=131 // pred_region
          %s10315 = sand.u32 %s323, 1
          %s10316 = scalar_lea.sflag [#allocation5], %s10315
          %s10317 = sand.u32 %s323, 1
          %s10318 = smul.addr %s10317, 128
          %s10319 = scalar_lea.vmem [#allocation24], %s10318
          %10320 = dma.done %s10316, 2048
        $region136: #{encoder_block_pallas.1} parent=131 // pred_fallthru
          _
      $region132: #{encoder_block_pallas.1} parent=5 // pred_fallthru
        _
    $region6: #{encoder_block_pallas.1} parent=1 // loop_footer
      %s35 = sadd.s32 1, %s31
    $region7: #{encoder_block_pallas.1} parent=1 // loop_footer_branch
      %30 = sbr.rel target = $region3
    $region8: #{encoder_block_pallas.1} parent=1 // loop_exit
      _
    %10321 = vsyncpa [#allocation4], 1
    %s10322 = scalar_lea.sflag [#allocation4], 1
    %10323 = vsyncpa %s10322, 1
    %10324 = vsyncpa [#allocation7], 1
    %10325 = vsyncpa [#allocation10], 1
    %10326 = vsyncpa [#allocation13], 1
    %10327 = vsyncpa [#allocation16], 1
    %10328 = vsyncpa [#allocation19], 1
    %10329 = vsyncpa [#allocation22], 1
    %10330 = vsyncpa [#allocation5], 1
    %s10331 = scalar_lea.sflag [#allocation5], 1
    %10332 = vsyncpa %s10331, 1

</llo_original>
